<compile_context>
chip_gen: v5e
topology: v5e:2x2
jax: 0.10.0
libtpu: 0.0.40
codegen_flags: <defaults>
</compile_context>

<pallas_src>
import functools

import jax
import jax.numpy as jnp
from jax.experimental import pallas as pl
from jax.experimental.pallas import tpu as pltpu


# ----------------------------- Pallas kernels ------------------------------

def _mm_bn_relu_kernel(a_ref, w_ref, g_ref, b_ref, o_ref, *, n_groups, cout, eps):
    """Fused (M,K)@(K,n_groups*cout) matmul + BatchNorm(train) + ReLU.

    Output columns are (group, channel) with channel fastest.  BN statistics
    are taken per channel over all rows and all column groups (groups = the 16
    spatial taps for layer 1, the 4 output phases for layers 2-4), i.e. over
    the full N*H*W extent, matching nn.BatchNorm2d in training mode.
    Single pass: var = E[y^2] - mean^2 (biased, like PyTorch).
    """
    y = jnp.dot(a_ref[...], w_ref[...], preferred_element_type=jnp.float32)
    parts = [y[:, g * cout:(g + 1) * cout] for g in range(n_groups)]
    ysum = parts[0]
    ysq = parts[0] * parts[0]
    for p in parts[1:]:
        ysum = ysum + p
        ysq = ysq + p * p
    cnt = y.shape[0] * n_groups
    mean = jnp.sum(ysum, axis=0, keepdims=True) * (1.0 / cnt)       # (1, cout)
    ex2 = jnp.sum(ysq, axis=0, keepdims=True) * (1.0 / cnt)
    var = ex2 - mean * mean
    scale = jax.lax.rsqrt(var + eps) * g_ref[...]                   # (1, cout)
    shift = b_ref[...] - mean * scale
    scale_full = jnp.concatenate([scale] * n_groups, axis=1)        # lane-dense
    shift_full = jnp.concatenate([shift] * n_groups, axis=1)
    o_ref[...] = jnp.maximum(y * scale_full + shift_full, 0.0).astype(o_ref.dtype)


def _mm_tanh_kernel(a_ref, w_ref, o_ref):
    y = jnp.dot(a_ref[...], w_ref[...], preferred_element_type=jnp.float32)
    o_ref[...] = jnp.tanh(y)


def _fused_matmul_bn_relu(a, w_mat, gamma, beta, *, n_groups, cout, eps=1e-5):
    """Single-block fused matmul + BN + ReLU.  BN needs the whole batch in one
    block; at these sizes the full (M, n_groups*cout) slab is << VMEM.
    (At full DCGAN scale this would switch to a K-tiled accumulator grid and
    an explicit vmem_limit_bytes.)"""
    m = a.shape[0]
    return pl.pallas_call(
        functools.partial(_mm_bn_relu_kernel,
                          n_groups=n_groups, cout=cout, eps=eps),
        out_shape=jax.ShapeDtypeStruct((m, n_groups * cout), jnp.bfloat16),
    )(a, w_mat, gamma, beta)


def _pick_tm(m):
    for t in (1024, 512, 256, 128):
        if m % t == 0:
            return t
    return m


def _fused_matmul_tanh(a, w_mat):
    """M-tiled matmul + tanh epilogue (layer 5).  The parallel M grid keeps
    both TensorCores busy on v7x; tanh runs on the EUP slot (nearly free)."""
    m, k = a.shape
    n = w_mat.shape[1]
    tm = _pick_tm(m)
    return pl.pallas_call(
        _mm_tanh_kernel,
        out_shape=jax.ShapeDtypeStruct((m, n), jnp.float32),
        grid=(m // tm,),
        in_specs=[pl.BlockSpec((tm, k), lambda i: (i, 0)),
                  pl.BlockSpec((k, n), lambda i: (0, 0))],
        out_specs=pl.BlockSpec((tm, n), lambda i: (i, 0)),
        compiler_params=pltpu.CompilerParams(
            dimension_semantics=("parallel",)),
    )(a, w_mat)


# -------------------- ConvTranspose -> phase-matmul glue -------------------

def _im2col_3x3(x):
    """NHWC (N,H,W,C) -> (N*H*W, 9*C) patches of 3x3 windows (zero pad 1).

    Column order is (dh, dw, c); one window per *input* pixel serves all four
    output phases of the stride-2 deconv.
    """
    n, h, w, c = x.shape
    xp = jnp.pad(x, ((0, 0), (1, 1), (1, 1), (0, 0)))
    cols = [xp[:, dh:dh + h, dw:dw + w, :] for dh in range(3) for dw in range(3)]
    return jnp.concatenate(cols, axis=-1).reshape(n * h * w, 9 * c)


def _phase_weight(w_t):
    """ConvTranspose2d(k=4, s=2, p=1) weight (Cin,Cout,4,4) -> (9*Cin, 4*Cout).

    Rows: (dh, dw, ci) over the 3x3 input window; cols: (r, s, co) over the
    2x2 output phases.  Each phase only touches a 2x2 sub-window; the other
    taps are zeroed:
        phase r=0 (even rows): dh=0 -> kernel row 3, dh=1 -> row 1, dh=2 unused
        phase r=1 (odd rows) : dh=0 unused, dh=1 -> row 2, dh=2 -> row 0
    (same mapping for columns).
    """
    cin, cout = w_t.shape[0], w_t.shape[1]
    ki = jnp.array([[3, 1, 0], [0, 2, 0]], jnp.int32)       # (r, dh) -> kernel row
    km = jnp.array([[1.0, 1.0, 0.0], [0.0, 1.0, 1.0]], w_t.dtype)
    # (ci, co, r, dh, s, dw)
    w_sub = w_t[:, :, ki[:, :, None, None], ki[None, None, :, :]]
    w_sub = w_sub * (km[:, :, None, None] * km[None, None, :, :])
    w_full = jnp.transpose(w_sub, (3, 5, 0, 2, 4, 1))        # (dh, dw, ci, r, s, co)
    return w_full.reshape(9 * cin, 4 * cout)


def _pixel_shuffle(y, n, h, w, cout):
    """(N*H*W, 4*Cout) with cols (r, s, co) -> NHWC (N, 2H, 2W, Cout)."""
    y = y.reshape(n, h, w, 2, 2, cout)
    y = jnp.transpose(y, (0, 1, 3, 2, 4, 5))
    return y.reshape(n, 2 * h, 2 * w, cout)


# ------------------------------ layer builders -----------------------------

def deconv1x1_bn_relu(x, w_t, gamma, beta):
    """Layer 1: ConvTranspose2d on a 1x1 input == plain matmul, fused BN+ReLU."""
    n, cin = x.shape[0], x.shape[1]
    cout, k = w_t.shape[1], w_t.shape[2]
    a = x.reshape(n, cin).astype(jnp.bfloat16)
    w_mat = jnp.transpose(w_t, (0, 2, 3, 1)).reshape(cin, k * k * cout)
    y = _fused_matmul_bn_relu(a, w_mat.astype(jnp.bfloat16), gamma, beta,
                              n_groups=k * k, cout=cout)
    return y.reshape(n, k, k, cout)                          # NHWC, free reshape


def deconv_s2_bn_relu(x, w_t, gamma, beta):
    """Layers 2-4: ConvTranspose2d(4, s=2, p=1) + BN + ReLU, NHWC in/out."""
    n, h, w, _ = x.shape
    cout = w_t.shape[1]
    patches = _im2col_3x3(x).astype(jnp.bfloat16)
    w_mat = _phase_weight(w_t).astype(jnp.bfloat16)
    y = _fused_matmul_bn_relu(patches, w_mat, gamma, beta, n_groups=4, cout=cout)
    return _pixel_shuffle(y, n, h, w, cout)


def deconv_s2_tanh(x, w_t):
    """Layer 5: ConvTranspose2d(4, s=2, p=1) + tanh, NHWC in/out."""
    n, h, w, _ = x.shape
    cout = w_t.shape[1]
    patches = _im2col_3x3(x).astype(jnp.bfloat16)
    w_mat = _phase_weight(w_t).astype(jnp.bfloat16)
    y = _fused_matmul_tanh(patches, w_mat)
    return _pixel_shuffle(y, n, h, w, cout)


# ------------------------------ Generator ---------------------------------

# Scaled-down DCGAN generator config (original: latent=100, gf=64, img=64).
LATENT = 16
GF = 16
CHANNELS = 3
BATCH = 2

_LAYER_CFG = [  # (stride, pad)
    (1, 0), (2, 1), (2, 1), (2, 1), (2, 1)]


def init_params(key):
    shapes = [
        (LATENT, GF * 8, 4, 4),
        (GF * 8, GF * 4, 4, 4),
        (GF * 4, GF * 2, 4, 4),
        (GF * 2, GF, 4, 4),
        (GF, CHANNELS, 4, 4),
    ]
    keys = jax.random.split(key, len(shapes))
    weights = [0.05 * jax.random.normal(k, s, jnp.float32)
               for k, s in zip(keys, shapes)]
    # BatchNorm2d default init: gamma = 1, beta = 0 (running stats unused in
    # training-mode forward).
    bn = [(jnp.ones((1, s[1]), jnp.float32), jnp.zeros((1, s[1]), jnp.float32))
          for s in shapes[:4]]
    return weights, bn


@jax.jit
def generator_forward(x, weights, bn):
    h = deconv1x1_bn_relu(x, weights[0], *bn[0])            # (N, 4, 4, 8*GF)
    for li in range(1, 4):
        h = deconv_s2_bn_relu(h, weights[li], *bn[li])      # NHWC bf16 slabs
    y = deconv_s2_tanh(h, weights[4])                       # (N, 64, 64, 3) f32
    return jnp.transpose(y, (0, 3, 1, 2))                   # NCHW once, at end


# ------------------------- pure-JAX reference ------------------------------

def _deconv_ref(x, w_t, stride, pad):
    k = w_t.shape[2]
    w = jnp.flip(w_t, axis=(2, 3)).transpose(1, 0, 2, 3)            # OIHW
    return jax.lax.conv_general_dilated(
        x, w, window_strides=(1, 1),
        padding=[(k - 1 - pad, k - 1 - pad)] * 2,
        lhs_dilation=(stride, stride),
        dimension_numbers=("NCHW", "OIHW", "NCHW"))


def _bn_relu_ref(x, eps=1e-5):
    mean = x.mean(axis=(0, 2, 3), keepdims=True)
    var = ((x - mean) ** 2).mean(axis=(0, 2, 3), keepdims=True)
    return jnp.maximum((x - mean) / jnp.sqrt(var + eps), 0.0)


def generator_ref(x, weights):
    for li in range(4):
        stride, pad = _LAYER_CFG[li]
        x = _bn_relu_ref(_deconv_ref(x, weights[li], stride, pad))
    stride, pad = _LAYER_CFG[4]
    return jnp.tanh(_deconv_ref(x, weights[4], stride, pad))


# --------------------------------- main ------------------------------------

if __name__ == "__main__":
    key = jax.random.PRNGKey(0)
    kx, kw = jax.random.split(key)
    x = jax.random.normal(kx, (BATCH, LATENT, 1, 1), jnp.float32)
    weights, bn = init_params(kw)

    out = generator_forward(x, weights, bn)
    out = jax.block_until_ready(out)

    assert out.shape == (BATCH, CHANNELS, 64, 64), out.shape
    assert bool(jnp.all(jnp.isfinite(out)))

    # bf16 matmul operands / activations -> tolerance loosened vs f32 ref.
    ref = generator_ref(x, weights)
    assert bool(jnp.allclose(out, ref, atol=3e-2, rtol=3e-2)), (
        float(jnp.max(jnp.abs(out - ref))))

    print("KERNEL_OK")
</pallas_src>

<mosaic_0001>
module attributes {stable_mosaic.version = 11 : i64} {
  func.func @_mm_bn_relu_kernel(%arg0: memref<2x16xbf16, #tpu.memory_space<vmem>>, %arg1: memref<16x2048xbf16, #tpu.memory_space<vmem>>, %arg2: memref<1x128xf32, #tpu.memory_space<vmem>>, %arg3: memref<1x128xf32, #tpu.memory_space<vmem>>, %arg4: memref<2x2048xbf16, #tpu.memory_space<vmem>>) attributes {dimension_semantics = [], scalar_prefetch = 0 : i64, scratch_operands = 0 : i64, tpu.core_type = #tpu.core_type<tc>} {
    %c0 = arith.constant 0 : index
    %c0_0 = arith.constant 0 : index
    %0 = vector.load %arg0[%c0, %c0_0] : memref<2x16xbf16, #tpu.memory_space<vmem>>, vector<2x16xbf16>
    %c0_1 = arith.constant 0 : index
    %c0_2 = arith.constant 0 : index
    %1 = vector.load %arg1[%c0_1, %c0_2] : memref<16x2048xbf16, #tpu.memory_space<vmem>>, vector<16x2048xbf16>
    %cst = arith.constant dense<0.000000e+00> : vector<2x2048xf32>
    %2 = tpu.matmul %0, %1, %cst {dimension_numbers = #tpu.dot_dimension_numbers<[1], [0], [0], [1], [0, 0, 1, 1], [], []>} : vector<2x16xbf16>, vector<16x2048xbf16>, vector<2x2048xf32> -> vector<2x2048xf32>
    %3 = vector.extract_strided_slice %2 {offsets = [0, 0], sizes = [2, 128], strides = [1, 1]} : vector<2x2048xf32> to vector<2x128xf32>
    %4 = vector.extract_strided_slice %2 {offsets = [0, 128], sizes = [2, 128], strides = [1, 1]} : vector<2x2048xf32> to vector<2x128xf32>
    %5 = vector.extract_strided_slice %2 {offsets = [0, 256], sizes = [2, 128], strides = [1, 1]} : vector<2x2048xf32> to vector<2x128xf32>
    %6 = vector.extract_strided_slice %2 {offsets = [0, 384], sizes = [2, 128], strides = [1, 1]} : vector<2x2048xf32> to vector<2x128xf32>
    %7 = vector.extract_strided_slice %2 {offsets = [0, 512], sizes = [2, 128], strides = [1, 1]} : vector<2x2048xf32> to vector<2x128xf32>
    %8 = vector.extract_strided_slice %2 {offsets = [0, 640], sizes = [2, 128], strides = [1, 1]} : vector<2x2048xf32> to vector<2x128xf32>
    %9 = vector.extract_strided_slice %2 {offsets = [0, 768], sizes = [2, 128], strides = [1, 1]} : vector<2x2048xf32> to vector<2x128xf32>
    %10 = vector.extract_strided_slice %2 {offsets = [0, 896], sizes = [2, 128], strides = [1, 1]} : vector<2x2048xf32> to vector<2x128xf32>
    %11 = vector.extract_strided_slice %2 {offsets = [0, 1024], sizes = [2, 128], strides = [1, 1]} : vector<2x2048xf32> to vector<2x128xf32>
    %12 = vector.extract_strided_slice %2 {offsets = [0, 1152], sizes = [2, 128], strides = [1, 1]} : vector<2x2048xf32> to vector<2x128xf32>
    %13 = vector.extract_strided_slice %2 {offsets = [0, 1280], sizes = [2, 128], strides = [1, 1]} : vector<2x2048xf32> to vector<2x128xf32>
    %14 = vector.extract_strided_slice %2 {offsets = [0, 1408], sizes = [2, 128], strides = [1, 1]} : vector<2x2048xf32> to vector<2x128xf32>
    %15 = vector.extract_strided_slice %2 {offsets = [0, 1536], sizes = [2, 128], strides = [1, 1]} : vector<2x2048xf32> to vector<2x128xf32>
    %16 = vector.extract_strided_slice %2 {offsets = [0, 1664], sizes = [2, 128], strides = [1, 1]} : vector<2x2048xf32> to vector<2x128xf32>
    %17 = vector.extract_strided_slice %2 {offsets = [0, 1792], sizes = [2, 128], strides = [1, 1]} : vector<2x2048xf32> to vector<2x128xf32>
    %18 = vector.extract_strided_slice %2 {offsets = [0, 1920], sizes = [2, 128], strides = [1, 1]} : vector<2x2048xf32> to vector<2x128xf32>
    %19 = arith.mulf %3, %3 : vector<2x128xf32>
    %20 = arith.addf %3, %4 : vector<2x128xf32>
    %21 = arith.mulf %4, %4 : vector<2x128xf32>
    %22 = arith.addf %19, %21 : vector<2x128xf32>
    %23 = arith.addf %20, %5 : vector<2x128xf32>
    %24 = arith.mulf %5, %5 : vector<2x128xf32>
    %25 = arith.addf %22, %24 : vector<2x128xf32>
    %26 = arith.addf %23, %6 : vector<2x128xf32>
    %27 = arith.mulf %6, %6 : vector<2x128xf32>
    %28 = arith.addf %25, %27 : vector<2x128xf32>
    %29 = arith.addf %26, %7 : vector<2x128xf32>
    %30 = arith.mulf %7, %7 : vector<2x128xf32>
    %31 = arith.addf %28, %30 : vector<2x128xf32>
    %32 = arith.addf %29, %8 : vector<2x128xf32>
    %33 = arith.mulf %8, %8 : vector<2x128xf32>
    %34 = arith.addf %31, %33 : vector<2x128xf32>
    %35 = arith.addf %32, %9 : vector<2x128xf32>
    %36 = arith.mulf %9, %9 : vector<2x128xf32>
    %37 = arith.addf %34, %36 : vector<2x128xf32>
    %38 = arith.addf %35, %10 : vector<2x128xf32>
    %39 = arith.mulf %10, %10 : vector<2x128xf32>
    %40 = arith.addf %37, %39 : vector<2x128xf32>
    %41 = arith.addf %38, %11 : vector<2x128xf32>
    %42 = arith.mulf %11, %11 : vector<2x128xf32>
    %43 = arith.addf %40, %42 : vector<2x128xf32>
    %44 = arith.addf %41, %12 : vector<2x128xf32>
    %45 = arith.mulf %12, %12 : vector<2x128xf32>
    %46 = arith.addf %43, %45 : vector<2x128xf32>
    %47 = arith.addf %44, %13 : vector<2x128xf32>
    %48 = arith.mulf %13, %13 : vector<2x128xf32>
    %49 = arith.addf %46, %48 : vector<2x128xf32>
    %50 = arith.addf %47, %14 : vector<2x128xf32>
    %51 = arith.mulf %14, %14 : vector<2x128xf32>
    %52 = arith.addf %49, %51 : vector<2x128xf32>
    %53 = arith.addf %50, %15 : vector<2x128xf32>
    %54 = arith.mulf %15, %15 : vector<2x128xf32>
    %55 = arith.addf %52, %54 : vector<2x128xf32>
    %56 = arith.addf %53, %16 : vector<2x128xf32>
    %57 = arith.mulf %16, %16 : vector<2x128xf32>
    %58 = arith.addf %55, %57 : vector<2x128xf32>
    %59 = arith.addf %56, %17 : vector<2x128xf32>
    %60 = arith.mulf %17, %17 : vector<2x128xf32>
    %61 = arith.addf %58, %60 : vector<2x128xf32>
    %62 = arith.addf %59, %18 : vector<2x128xf32>
    %63 = arith.mulf %18, %18 : vector<2x128xf32>
    %64 = arith.addf %61, %63 : vector<2x128xf32>
    %cst_3 = arith.constant dense<0.000000e+00> : vector<128xf32>
    %65 = vector.multi_reduction <add>, %62, %cst_3 [0] : vector<2x128xf32> to vector<128xf32>
    %66 = vector.shape_cast %65 : vector<128xf32> to vector<1x128xf32>
    %cst_4 = arith.constant 3.125000e-02 : f32
    %67 = vector.broadcast %cst_4 : f32 to vector<1x128xf32>
    %68 = arith.mulf %66, %67 : vector<1x128xf32>
    %cst_5 = arith.constant dense<0.000000e+00> : vector<128xf32>
    %69 = vector.multi_reduction <add>, %64, %cst_5 [0] : vector<2x128xf32> to vector<128xf32>
    %70 = vector.shape_cast %69 : vector<128xf32> to vector<1x128xf32>
    %cst_6 = arith.constant 3.125000e-02 : f32
    %71 = vector.broadcast %cst_6 : f32 to vector<1x128xf32>
    %72 = arith.mulf %70, %71 : vector<1x128xf32>
    %73 = arith.mulf %68, %68 : vector<1x128xf32>
    %74 = arith.subf %72, %73 : vector<1x128xf32>
    %cst_7 = arith.constant 9.99999974E-6 : f32
    %75 = vector.broadcast %cst_7 : f32 to vector<1x128xf32>
    %76 = arith.addf %74, %75 : vector<1x128xf32>
    %77 = math.rsqrt %76 : vector<1x128xf32>
    %c0_8 = arith.constant 0 : index
    %c0_9 = arith.constant 0 : index
    %78 = vector.load %arg2[%c0_8, %c0_9] : memref<1x128xf32, #tpu.memory_space<vmem>>, vector<1x128xf32>
    %79 = arith.mulf %77, %78 : vector<1x128xf32>
    %c0_10 = arith.constant 0 : index
    %c0_11 = arith.constant 0 : index
    %80 = vector.load %arg3[%c0_10, %c0_11] : memref<1x128xf32, #tpu.memory_space<vmem>>, vector<1x128xf32>
    %81 = arith.mulf %68, %79 : vector<1x128xf32>
    %82 = arith.subf %80, %81 : vector<1x128xf32>
    %83 = tpu.concatenate %79, %79, %79, %79, %79, %79, %79, %79, %79, %79, %79, %79, %79, %79, %79, %79 in 1 : vector<1x128xf32>, vector<1x128xf32>, vector<1x128xf32>, vector<1x128xf32>, vector<1x128xf32>, vector<1x128xf32>, vector<1x128xf32>, vector<1x128xf32>, vector<1x128xf32>, vector<1x128xf32>, vector<1x128xf32>, vector<1x128xf32>, vector<1x128xf32>, vector<1x128xf32>, vector<1x128xf32>, vector<1x128xf32> -> vector<1x2048xf32>
    %84 = tpu.concatenate %82, %82, %82, %82, %82, %82, %82, %82, %82, %82, %82, %82, %82, %82, %82, %82 in 1 : vector<1x128xf32>, vector<1x128xf32>, vector<1x128xf32>, vector<1x128xf32>, vector<1x128xf32>, vector<1x128xf32>, vector<1x128xf32>, vector<1x128xf32>, vector<1x128xf32>, vector<1x128xf32>, vector<1x128xf32>, vector<1x128xf32>, vector<1x128xf32>, vector<1x128xf32>, vector<1x128xf32>, vector<1x128xf32> -> vector<1x2048xf32>
    %85 = vector.broadcast %83 : vector<1x2048xf32> to vector<2x2048xf32>
    %86 = arith.mulf %2, %85 : vector<2x2048xf32>
    %87 = vector.broadcast %84 : vector<1x2048xf32> to vector<2x2048xf32>
    %88 = arith.addf %86, %87 : vector<2x2048xf32>
    %cst_12 = arith.constant 0.000000e+00 : f32
    %89 = vector.broadcast %cst_12 : f32 to vector<2x2048xf32>
    %90 = arith.maximumf %88, %89 : vector<2x2048xf32>
    %91 = arith.truncf %90 : vector<2x2048xf32> to vector<2x2048xbf16>
    %c0_13 = arith.constant 0 : index
    %c0_14 = arith.constant 0 : index
    %92 = vector.load %arg4[%c0_13, %c0_14] : memref<2x2048xbf16, #tpu.memory_space<vmem>>, vector<2x2048xbf16>
    tpu.vector_store %arg4[%c0_13, %c0_14], %91 {strides = array<i32>} : memref<2x2048xbf16, #tpu.memory_space<vmem>>, vector<2x2048xbf16>,
    return
  }
}

module attributes {stable_mosaic.version = 11 : i64} {
  func.func @_mm_bn_relu_kernel(%arg0: memref<32x1152xbf16, #tpu.memory_space<vmem>>, %arg1: memref<1152x256xbf16, #tpu.memory_space<vmem>>, %arg2: memref<1x64xf32, #tpu.memory_space<vmem>>, %arg3: memref<1x64xf32, #tpu.memory_space<vmem>>, %arg4: memref<32x256xbf16, #tpu.memory_space<vmem>>) attributes {dimension_semantics = [], scalar_prefetch = 0 : i64, scratch_operands = 0 : i64, tpu.core_type = #tpu.core_type<tc>} {
    %c0 = arith.constant 0 : index
    %c0_0 = arith.constant 0 : index
    %0 = vector.load %arg0[%c0, %c0_0] : memref<32x1152xbf16, #tpu.memory_space<vmem>>, vector<32x1152xbf16>
    %c0_1 = arith.constant 0 : index
    %c0_2 = arith.constant 0 : index
    %1 = vector.load %arg1[%c0_1, %c0_2] : memref<1152x256xbf16, #tpu.memory_space<vmem>>, vector<1152x256xbf16>
    %cst = arith.constant dense<0.000000e+00> : vector<32x256xf32>
    %2 = tpu.matmul %0, %1, %cst {dimension_numbers = #tpu.dot_dimension_numbers<[1], [0], [0], [1], [0, 0, 1, 1], [], []>} : vector<32x1152xbf16>, vector<1152x256xbf16>, vector<32x256xf32> -> vector<32x256xf32>
    %3 = vector.extract_strided_slice %2 {offsets = [0, 0], sizes = [32, 64], strides = [1, 1]} : vector<32x256xf32> to vector<32x64xf32>
    %4 = vector.extract_strided_slice %2 {offsets = [0, 64], sizes = [32, 64], strides = [1, 1]} : vector<32x256xf32> to vector<32x64xf32>
    %5 = vector.extract_strided_slice %2 {offsets = [0, 128], sizes = [32, 64], strides = [1, 1]} : vector<32x256xf32> to vector<32x64xf32>
    %6 = vector.extract_strided_slice %2 {offsets = [0, 192], sizes = [32, 64], strides = [1, 1]} : vector<32x256xf32> to vector<32x64xf32>
    %7 = arith.mulf %3, %3 : vector<32x64xf32>
    %8 = arith.addf %3, %4 : vector<32x64xf32>
    %9 = arith.mulf %4, %4 : vector<32x64xf32>
    %10 = arith.addf %7, %9 : vector<32x64xf32>
    %11 = arith.addf %8, %5 : vector<32x64xf32>
    %12 = arith.mulf %5, %5 : vector<32x64xf32>
    %13 = arith.addf %10, %12 : vector<32x64xf32>
    %14 = arith.addf %11, %6 : vector<32x64xf32>
    %15 = arith.mulf %6, %6 : vector<32x64xf32>
    %16 = arith.addf %13, %15 : vector<32x64xf32>
    %cst_3 = arith.constant dense<0.000000e+00> : vector<64xf32>
    %17 = vector.multi_reduction <add>, %14, %cst_3 [0] : vector<32x64xf32> to vector<64xf32>
    %18 = vector.shape_cast %17 : vector<64xf32> to vector<1x64xf32>
    %cst_4 = arith.constant 7.812500e-03 : f32
    %19 = vector.broadcast %cst_4 : f32 to vector<1x64xf32>
    %20 = arith.mulf %18, %19 : vector<1x64xf32>
    %cst_5 = arith.constant dense<0.000000e+00> : vector<64xf32>
    %21 = vector.multi_reduction <add>, %16, %cst_5 [0] : vector<32x64xf32> to vector<64xf32>
    %22 = vector.shape_cast %21 : vector<64xf32> to vector<1x64xf32>
    %cst_6 = arith.constant 7.812500e-03 : f32
    %23 = vector.broadcast %cst_6 : f32 to vector<1x64xf32>
    %24 = arith.mulf %22, %23 : vector<1x64xf32>
    %25 = arith.mulf %20, %20 : vector<1x64xf32>
    %26 = arith.subf %24, %25 : vector<1x64xf32>
    %cst_7 = arith.constant 9.99999974E-6 : f32
    %27 = vector.broadcast %cst_7 : f32 to vector<1x64xf32>
    %28 = arith.addf %26, %27 : vector<1x64xf32>
    %29 = math.rsqrt %28 : vector<1x64xf32>
    %c0_8 = arith.constant 0 : index
    %c0_9 = arith.constant 0 : index
    %30 = vector.load %arg2[%c0_8, %c0_9] : memref<1x64xf32, #tpu.memory_space<vmem>>, vector<1x64xf32>
    %31 = arith.mulf %29, %30 : vector<1x64xf32>
    %c0_10 = arith.constant 0 : index
    %c0_11 = arith.constant 0 : index
    %32 = vector.load %arg3[%c0_10, %c0_11] : memref<1x64xf32, #tpu.memory_space<vmem>>, vector<1x64xf32>
    %33 = arith.mulf %20, %31 : vector<1x64xf32>
    %34 = arith.subf %32, %33 : vector<1x64xf32>
    %35 = tpu.concatenate %31, %31, %31, %31 in 1 : vector<1x64xf32>, vector<1x64xf32>, vector<1x64xf32>, vector<1x64xf32> -> vector<1x256xf32>
    %36 = tpu.concatenate %34, %34, %34, %34 in 1 : vector<1x64xf32>, vector<1x64xf32>, vector<1x64xf32>, vector<1x64xf32> -> vector<1x256xf32>
    %37 = vector.broadcast %35 : vector<1x256xf32> to vector<32x256xf32>
    %38 = arith.mulf %2, %37 : vector<32x256xf32>
    %39 = vector.broadcast %36 : vector<1x256xf32> to vector<32x256xf32>
    %40 = arith.addf %38, %39 : vector<32x256xf32>
    %cst_12 = arith.constant 0.000000e+00 : f32
    %41 = vector.broadcast %cst_12 : f32 to vector<32x256xf32>
    %42 = arith.maximumf %40, %41 : vector<32x256xf32>
    %43 = arith.truncf %42 : vector<32x256xf32> to vector<32x256xbf16>
    %c0_13 = arith.constant 0 : index
    %c0_14 = arith.constant 0 : index
    %44 = vector.load %arg4[%c0_13, %c0_14] : memref<32x256xbf16, #tpu.memory_space<vmem>>, vector<32x256xbf16>
    tpu.vector_store %arg4[%c0_13, %c0_14], %43 {strides = array<i32>} : memref<32x256xbf16, #tpu.memory_space<vmem>>, vector<32x256xbf16>,
    return
  }
}

module attributes {stable_mosaic.version = 11 : i64} {
  func.func @_mm_bn_relu_kernel(%arg0: memref<128x576xbf16, #tpu.memory_space<vmem>>, %arg1: memref<576x128xbf16, #tpu.memory_space<vmem>>, %arg2: memref<1x32xf32, #tpu.memory_space<vmem>>, %arg3: memref<1x32xf32, #tpu.memory_space<vmem>>, %arg4: memref<128x128xbf16, #tpu.memory_space<vmem>>) attributes {dimension_semantics = [], scalar_prefetch = 0 : i64, scratch_operands = 0 : i64, tpu.core_type = #tpu.core_type<tc>} {
    %c0 = arith.constant 0 : index
    %c0_0 = arith.constant 0 : index
    %0 = vector.load %arg0[%c0, %c0_0] : memref<128x576xbf16, #tpu.memory_space<vmem>>, vector<128x576xbf16>
    %c0_1 = arith.constant 0 : index
    %c0_2 = arith.constant 0 : index
    %1 = vector.load %arg1[%c0_1, %c0_2] : memref<576x128xbf16, #tpu.memory_space<vmem>>, vector<576x128xbf16>
    %cst = arith.constant dense<0.000000e+00> : vector<128x128xf32>
    %2 = tpu.matmul %0, %1, %cst {dimension_numbers = #tpu.dot_dimension_numbers<[1], [0], [0], [1], [0, 0, 1, 1], [], []>} : vector<128x576xbf16>, vector<576x128xbf16>, vector<128x128xf32> -> vector<128x128xf32>
    %3 = vector.extract_strided_slice %2 {offsets = [0, 0], sizes = [128, 32], strides = [1, 1]} : vector<128x128xf32> to vector<128x32xf32>
    %4 = vector.extract_strided_slice %2 {offsets = [0, 32], sizes = [128, 32], strides = [1, 1]} : vector<128x128xf32> to vector<128x32xf32>
    %5 = vector.extract_strided_slice %2 {offsets = [0, 64], sizes = [128, 32], strides = [1, 1]} : vector<128x128xf32> to vector<128x32xf32>
    %6 = vector.extract_strided_slice %2 {offsets = [0, 96], sizes = [128, 32], strides = [1, 1]} : vector<128x128xf32> to vector<128x32xf32>
    %7 = arith.mulf %3, %3 : vector<128x32xf32>
    %8 = arith.addf %3, %4 : vector<128x32xf32>
    %9 = arith.mulf %4, %4 : vector<128x32xf32>
    %10 = arith.addf %7, %9 : vector<128x32xf32>
    %11 = arith.addf %8, %5 : vector<128x32xf32>
    %12 = arith.mulf %5, %5 : vector<128x32xf32>
    %13 = arith.addf %10, %12 : vector<128x32xf32>
    %14 = arith.addf %11, %6 : vector<128x32xf32>
    %15 = arith.mulf %6, %6 : vector<128x32xf32>
    %16 = arith.addf %13, %15 : vector<128x32xf32>
    %cst_3 = arith.constant dense<0.000000e+00> : vector<32xf32>
    %17 = vector.multi_reduction <add>, %14, %cst_3 [0] : vector<128x32xf32> to vector<32xf32>
    %18 = vector.shape_cast %17 : vector<32xf32> to vector<1x32xf32>
    %cst_4 = arith.constant 0.001953125 : f32
    %19 = vector.broadcast %cst_4 : f32 to vector<1x32xf32>
    %20 = arith.mulf %18, %19 : vector<1x32xf32>
    %cst_5 = arith.constant dense<0.000000e+00> : vector<32xf32>
    %21 = vector.multi_reduction <add>, %16, %cst_5 [0] : vector<128x32xf32> to vector<32xf32>
    %22 = vector.shape_cast %21 : vector<32xf32> to vector<1x32xf32>
    %cst_6 = arith.constant 0.001953125 : f32
    %23 = vector.broadcast %cst_6 : f32 to vector<1x32xf32>
    %24 = arith.mulf %22, %23 : vector<1x32xf32>
    %25 = arith.mulf %20, %20 : vector<1x32xf32>
    %26 = arith.subf %24, %25 : vector<1x32xf32>
    %cst_7 = arith.constant 9.99999974E-6 : f32
    %27 = vector.broadcast %cst_7 : f32 to vector<1x32xf32>
    %28 = arith.addf %26, %27 : vector<1x32xf32>
    %29 = math.rsqrt %28 : vector<1x32xf32>
    %c0_8 = arith.constant 0 : index
    %c0_9 = arith.constant 0 : index
    %30 = vector.load %arg2[%c0_8, %c0_9] : memref<1x32xf32, #tpu.memory_space<vmem>>, vector<1x32xf32>
    %31 = arith.mulf %29, %30 : vector<1x32xf32>
    %c0_10 = arith.constant 0 : index
    %c0_11 = arith.constant 0 : index
    %32 = vector.load %arg3[%c0_10, %c0_11] : memref<1x32xf32, #tpu.memory_space<vmem>>, vector<1x32xf32>
    %33 = arith.mulf %20, %31 : vector<1x32xf32>
    %34 = arith.subf %32, %33 : vector<1x32xf32>
    %35 = tpu.concatenate %31, %31, %31, %31 in 1 : vector<1x32xf32>, vector<1x32xf32>, vector<1x32xf32>, vector<1x32xf32> -> vector<1x128xf32>
    %36 = tpu.concatenate %34, %34, %34, %34 in 1 : vector<1x32xf32>, vector<1x32xf32>, vector<1x32xf32>, vector<1x32xf32> -> vector<1x128xf32>
    %37 = vector.broadcast %35 : vector<1x128xf32> to vector<128x128xf32>
    %38 = arith.mulf %2, %37 : vector<128x128xf32>
    %39 = vector.broadcast %36 : vector<1x128xf32> to vector<128x128xf32>
    %40 = arith.addf %38, %39 : vector<128x128xf32>
    %cst_12 = arith.constant 0.000000e+00 : f32
    %41 = vector.broadcast %cst_12 : f32 to vector<128x128xf32>
    %42 = arith.maximumf %40, %41 : vector<128x128xf32>
    %43 = arith.truncf %42 : vector<128x128xf32> to vector<128x128xbf16>
    %c0_13 = arith.constant 0 : index
    %c0_14 = arith.constant 0 : index
    %44 = vector.load %arg4[%c0_13, %c0_14] : memref<128x128xbf16, #tpu.memory_space<vmem>>, vector<128x128xbf16>
    tpu.vector_store %arg4[%c0_13, %c0_14], %43 {strides = array<i32>} : memref<128x128xbf16, #tpu.memory_space<vmem>>, vector<128x128xbf16>,
    return
  }
}

module attributes {stable_mosaic.version = 11 : i64} {
  func.func @_mm_bn_relu_kernel(%arg0: memref<512x288xbf16, #tpu.memory_space<vmem>>, %arg1: memref<288x64xbf16, #tpu.memory_space<vmem>>, %arg2: memref<1x16xf32, #tpu.memory_space<vmem>>, %arg3: memref<1x16xf32, #tpu.memory_space<vmem>>, %arg4: memref<512x64xbf16, #tpu.memory_space<vmem>>) attributes {dimension_semantics = [], scalar_prefetch = 0 : i64, scratch_operands = 0 : i64, tpu.core_type = #tpu.core_type<tc>} {
    %c0 = arith.constant 0 : index
    %c0_0 = arith.constant 0 : index
    %0 = vector.load %arg0[%c0, %c0_0] : memref<512x288xbf16, #tpu.memory_space<vmem>>, vector<512x288xbf16>
    %c0_1 = arith.constant 0 : index
    %c0_2 = arith.constant 0 : index
    %1 = vector.load %arg1[%c0_1, %c0_2] : memref<288x64xbf16, #tpu.memory_space<vmem>>, vector<288x64xbf16>
    %cst = arith.constant dense<0.000000e+00> : vector<512x64xf32>
    %2 = tpu.matmul %0, %1, %cst {dimension_numbers = #tpu.dot_dimension_numbers<[1], [0], [0], [1], [0, 0, 1, 1], [], []>} : vector<512x288xbf16>, vector<288x64xbf16>, vector<512x64xf32> -> vector<512x64xf32>
    %3 = vector.extract_strided_slice %2 {offsets = [0, 0], sizes = [512, 16], strides = [1, 1]} : vector<512x64xf32> to vector<512x16xf32>
    %4 = vector.extract_strided_slice %2 {offsets = [0, 16], sizes = [512, 16], strides = [1, 1]} : vector<512x64xf32> to vector<512x16xf32>
    %5 = vector.extract_strided_slice %2 {offsets = [0, 32], sizes = [512, 16], strides = [1, 1]} : vector<512x64xf32> to vector<512x16xf32>
    %6 = vector.extract_strided_slice %2 {offsets = [0, 48], sizes = [512, 16], strides = [1, 1]} : vector<512x64xf32> to vector<512x16xf32>
    %7 = arith.mulf %3, %3 : vector<512x16xf32>
    %8 = arith.addf %3, %4 : vector<512x16xf32>
    %9 = arith.mulf %4, %4 : vector<512x16xf32>
    %10 = arith.addf %7, %9 : vector<512x16xf32>
    %11 = arith.addf %8, %5 : vector<512x16xf32>
    %12 = arith.mulf %5, %5 : vector<512x16xf32>
    %13 = arith.addf %10, %12 : vector<512x16xf32>
    %14 = arith.addf %11, %6 : vector<512x16xf32>
    %15 = arith.mulf %6, %6 : vector<512x16xf32>
    %16 = arith.addf %13, %15 : vector<512x16xf32>
    %cst_3 = arith.constant dense<0.000000e+00> : vector<16xf32>
    %17 = vector.multi_reduction <add>, %14, %cst_3 [0] : vector<512x16xf32> to vector<16xf32>
    %18 = vector.shape_cast %17 : vector<16xf32> to vector<1x16xf32>
    %cst_4 = arith.constant 4.8828125E-4 : f32
    %19 = vector.broadcast %cst_4 : f32 to vector<1x16xf32>
    %20 = arith.mulf %18, %19 : vector<1x16xf32>
    %cst_5 = arith.constant dense<0.000000e+00> : vector<16xf32>
    %21 = vector.multi_reduction <add>, %16, %cst_5 [0] : vector<512x16xf32> to vector<16xf32>
    %22 = vector.shape_cast %21 : vector<16xf32> to vector<1x16xf32>
    %cst_6 = arith.constant 4.8828125E-4 : f32
    %23 = vector.broadcast %cst_6 : f32 to vector<1x16xf32>
    %24 = arith.mulf %22, %23 : vector<1x16xf32>
    %25 = arith.mulf %20, %20 : vector<1x16xf32>
    %26 = arith.subf %24, %25 : vector<1x16xf32>
    %cst_7 = arith.constant 9.99999974E-6 : f32
    %27 = vector.broadcast %cst_7 : f32 to vector<1x16xf32>
    %28 = arith.addf %26, %27 : vector<1x16xf32>
    %29 = math.rsqrt %28 : vector<1x16xf32>
    %c0_8 = arith.constant 0 : index
    %c0_9 = arith.constant 0 : index
    %30 = vector.load %arg2[%c0_8, %c0_9] : memref<1x16xf32, #tpu.memory_space<vmem>>, vector<1x16xf32>
    %31 = arith.mulf %29, %30 : vector<1x16xf32>
    %c0_10 = arith.constant 0 : index
    %c0_11 = arith.constant 0 : index
    %32 = vector.load %arg3[%c0_10, %c0_11] : memref<1x16xf32, #tpu.memory_space<vmem>>, vector<1x16xf32>
    %33 = arith.mulf %20, %31 : vector<1x16xf32>
    %34 = arith.subf %32, %33 : vector<1x16xf32>
    %35 = tpu.concatenate %31, %31, %31, %31 in 1 : vector<1x16xf32>, vector<1x16xf32>, vector<1x16xf32>, vector<1x16xf32> -> vector<1x64xf32>
    %36 = tpu.concatenate %34, %34, %34, %34 in 1 : vector<1x16xf32>, vector<1x16xf32>, vector<1x16xf32>, vector<1x16xf32> -> vector<1x64xf32>
    %37 = vector.broadcast %35 : vector<1x64xf32> to vector<512x64xf32>
    %38 = arith.mulf %2, %37 : vector<512x64xf32>
    %39 = vector.broadcast %36 : vector<1x64xf32> to vector<512x64xf32>
    %40 = arith.addf %38, %39 : vector<512x64xf32>
    %cst_12 = arith.constant 0.000000e+00 : f32
    %41 = vector.broadcast %cst_12 : f32 to vector<512x64xf32>
    %42 = arith.maximumf %40, %41 : vector<512x64xf32>
    %43 = arith.truncf %42 : vector<512x64xf32> to vector<512x64xbf16>
    %c0_13 = arith.constant 0 : index
    %c0_14 = arith.constant 0 : index
    %44 = vector.load %arg4[%c0_13, %c0_14] : memref<512x64xbf16, #tpu.memory_space<vmem>>, vector<512x64xbf16>
    tpu.vector_store %arg4[%c0_13, %c0_14], %43 {strides = array<i32>} : memref<512x64xbf16, #tpu.memory_space<vmem>>, vector<512x64xbf16>,
    return
  }
}

module attributes {stable_mosaic.version = 11 : i64} {
  func.func @_mm_tanh_kernel(%arg0: i32, %arg1: memref<1024x144xbf16, #tpu.memory_space<vmem>>, %arg2: memref<144x12xbf16, #tpu.memory_space<vmem>>, %arg3: memref<1024x12xf32, #tpu.memory_space<vmem>>) attributes {dimension_semantics = [#tpu.dimension_semantics<parallel>], iteration_bounds = array<i64: 2>, scalar_prefetch = 0 : i64, scratch_operands = 0 : i64, tpu.core_type = #tpu.core_type<tc>, window_params = [{transform_indices = @transform_0, window_bounds = array<i64: 1024, 144>}, {pipeline_mode = #tpu.pipeline_mode<synchronous>, transform_indices = @transform_1, window_bounds = array<i64: 144, 12>}, {transform_indices = @transform_2, window_bounds = array<i64: 1024, 12>}]} {
    %c0 = arith.constant 0 : index
    %c0_0 = arith.constant 0 : index
    %0 = vector.load %arg1[%c0, %c0_0] : memref<1024x144xbf16, #tpu.memory_space<vmem>>, vector<1024x144xbf16>
    %c0_1 = arith.constant 0 : index
    %c0_2 = arith.constant 0 : index
    %1 = vector.load %arg2[%c0_1, %c0_2] : memref<144x12xbf16, #tpu.memory_space<vmem>>, vector<144x12xbf16>
    %cst = arith.constant dense<0.000000e+00> : vector<1024x12xf32>
    %2 = tpu.matmul %0, %1, %cst {dimension_numbers = #tpu.dot_dimension_numbers<[1], [0], [0], [1], [0, 0, 1, 1], [], []>} : vector<1024x144xbf16>, vector<144x12xbf16>, vector<1024x12xf32> -> vector<1024x12xf32>
    %3 = math.tanh %2 : vector<1024x12xf32>
    %c0_3 = arith.constant 0 : index
    %c0_4 = arith.constant 0 : index
    %4 = vector.load %arg3[%c0_3, %c0_4] : memref<1024x12xf32, #tpu.memory_space<vmem>>, vector<1024x12xf32>
    tpu.vector_store %arg3[%c0_3, %c0_4], %3 {strides = array<i32>} : memref<1024x12xf32, #tpu.memory_space<vmem>>, vector<1024x12xf32>,
    return
  }
  func.func @transform_0(%arg0: i32) -> (i32, i32) {
    %c0_i32 = arith.constant 0 : i32
    %c0_i32_0 = arith.constant 0 : i32
    return %arg0, %c0_i32 : i32, i32
  }
  func.func @transform_1(%arg0: i32) -> (i32, i32) {
    %c0_i32 = arith.constant 0 : i32
    %c0_i32_0 = arith.constant 0 : i32
    %c0_i32_1 = arith.constant 0 : i32
    return %c0_i32, %c0_i32_0 : i32, i32
  }
  func.func @transform_2(%arg0: i32) -> (i32, i32) {
    %c0_i32 = arith.constant 0 : i32
    %c0_i32_0 = arith.constant 0 : i32
    return %arg0, %c0_i32 : i32, i32
  }
}

</mosaic_0001>

<llo_original>
// kernel: generator_forward.5
$region0: #{generator_forward.5}
  #allocation0 [shape = 'u32[]', space=smem, size = 0x4, offset = 0x4, fixed_abs, tag = 'smem constant byte address 0x4 - core index']
  #allocation1 [shape = 'u32[72,128]{1,0:T(1,128)}', space=vmem, size = 0x9000, scoped, tag = 'internal scratch']
  %s0 = inlined_call_operand.vmem [shape: bf16[2,16], index: 0, kind: input, shape index: {}]
  %s1 = inlined_call_operand.vmem [shape: bf16[16,2048], index: 1, kind: input, shape index: {}]
  %s2 = inlined_call_operand.vmem [shape: f32[1,128], index: 2, kind: input, shape index: {}]
  %s3 = inlined_call_operand.vmem [shape: f32[1,128], index: 3, kind: input, shape index: {}]
  %s4 = inlined_call_operand.vmem [shape: bf16[2,2048], index: 4, kind: output, shape index: {}]
  %s5 = sld [smem:[#allocation0]]
  $region26: #{generator_forward.5} parent=0
    _
  %s7 = ssub.s32 1, %s5
  %s8 = scalar_select 0, %s7, %s5
  // Predicated region
  $region2: #{generator_forward.5} parent=0 // pred_check
    _
  $region3: #{generator_forward.5} parent=0 // pred_check_branch
    %10 = sbr.rel (0) target = $region5
  $region4: #{generator_forward.5} parent=0 // pred_region
    _
  $region5: #{generator_forward.5} parent=0 // pred_fallthru
    _
  // Predicated region
  $region6: #{generator_forward.5} parent=0 // pred_check
    _
  $region7: #{generator_forward.5} parent=0 // pred_check_branch
    %12 = sbr.rel (0) target = $region9
  $region8: #{generator_forward.5} parent=0 // pred_region
    _
  $region9: #{generator_forward.5} parent=0 // pred_fallthru
    _
  // Predicated region
  $region10: #{generator_forward.5} parent=0 // pred_check
    _
  $region11: #{generator_forward.5} parent=0 // pred_check_branch
    %14 = sbr.rel (0) target = $region13
  $region12: #{generator_forward.5} parent=0 // pred_region
    _
  $region13: #{generator_forward.5} parent=0 // pred_fallthru
    _
  // Predicated region
  $region14: #{generator_forward.5} parent=0 // pred_check
    _
  $region15: #{generator_forward.5} parent=0 // pred_check_branch
    %16 = sbr.rel (0) target = $region17
  $region16: #{generator_forward.5} parent=0 // pred_region
    _
  $region17: #{generator_forward.5} parent=0 // pred_fallthru
    _
  %v18 = vld [vmem:[%s0] sm:$0x1]
  %v19 = vld [vmem:[%s1] sm:$0xff]
  %v20 = vld [vmem:[%s1 + $0x8] sm:$0xff]
  %v21 = vld [vmem:[%s1 + $0x10] sm:$0xff]
  %v22 = vld [vmem:[%s1 + $0x18] sm:$0xff]
  %v23 = vld [vmem:[%s1 + $0x20] sm:$0xff]
  %v24 = vld [vmem:[%s1 + $0x28] sm:$0xff]
  %v25 = vld [vmem:[%s1 + $0x30] sm:$0xff]
  %v26 = vld [vmem:[%s1 + $0x38] sm:$0xff]
  %v27 = vld [vmem:[%s1 + $0x40] sm:$0xff]
  %v28 = vld [vmem:[%s1 + $0x48] sm:$0xff]
  %v29 = vld [vmem:[%s1 + $0x50] sm:$0xff]
  %v30 = vld [vmem:[%s1 + $0x58] sm:$0xff]
  %v31 = vld [vmem:[%s1 + $0x60] sm:$0xff]
  %v32 = vld [vmem:[%s1 + $0x68] sm:$0xff]
  %v33 = vld [vmem:[%s1 + $0x70] sm:$0xff]
  %v34 = vld [vmem:[%s1 + $0x78] sm:$0xff]
  %v51 = vunpack.c.l.b16 %v19
  %v52 = vunpack.c.h.b16 %v19
  %v53 = vunpack.c.l.b16 %v20
  %v54 = vunpack.c.h.b16 %v20
  %v55 = vunpack.c.l.b16 %v21
  %v56 = vunpack.c.h.b16 %v21
  %v57 = vunpack.c.l.b16 %v22
  %v58 = vunpack.c.h.b16 %v22
  %v59 = vunpack.c.l.b16 %v23
  %v60 = vunpack.c.h.b16 %v23
  %v61 = vunpack.c.l.b16 %v24
  %v62 = vunpack.c.h.b16 %v24
  %v63 = vunpack.c.l.b16 %v25
  %v64 = vunpack.c.h.b16 %v25
  %v65 = vunpack.c.l.b16 %v26
  %v66 = vunpack.c.h.b16 %v26
  %v67 = vunpack.c.l.b16 %v27
  %v68 = vunpack.c.h.b16 %v27
  %v69 = vunpack.c.l.b16 %v28
  %v70 = vunpack.c.h.b16 %v28
  %v71 = vunpack.c.l.b16 %v29
  %v72 = vunpack.c.h.b16 %v29
  %v73 = vunpack.c.l.b16 %v30
  %v74 = vunpack.c.h.b16 %v30
  %v75 = vunpack.c.l.b16 %v31
  %v76 = vunpack.c.h.b16 %v31
  %v77 = vunpack.c.l.b16 %v32
  %v78 = vunpack.c.h.b16 %v32
  %v79 = vunpack.c.l.b16 %v33
  %v80 = vunpack.c.h.b16 %v33
  %v81 = vunpack.c.l.b16 %v34
  %v82 = vunpack.c.h.b16 %v34
  %v83 = vpack.c.b16 %v67, %v51
  %v84 = vpack.c.b16 %v68, %v52
  %v85 = vpack.c.b16 %v69, %v53
  %v86 = vpack.c.b16 %v70, %v54
  %v87 = vpack.c.b16 %v71, %v55
  %v88 = vpack.c.b16 %v72, %v56
  %v89 = vpack.c.b16 %v73, %v57
  %v90 = vpack.c.b16 %v74, %v58
  %v91 = vpack.c.b16 %v75, %v59
  %v92 = vpack.c.b16 %v76, %v60
  %v93 = vpack.c.b16 %v77, %v61
  %v94 = vpack.c.b16 %v78, %v62
  %v95 = vpack.c.b16 %v79, %v63
  %v96 = vpack.c.b16 %v80, %v64
  %v97 = vpack.c.b16 %v81, %v65
  %v98 = vpack.c.b16 %v82, %v66
  %vm115 = vcmask 130048
  %v117 = vsel %vm115, %v18, 0
  %119 = vmatpush.bf16.msra.mxu0 0
  %120 = vmatpush.bf16.msra.mxu0 0
  %121 = vmatpush.bf16.msra.mxu0 0
  %122 = vmatpush.bf16.msra.mxu0 0
  %123 = vmatpush.bf16.msra.mxu0 0
  %124 = vmatpush.bf16.msra.mxu0 0
  %125 = vmatpush.bf16.msra.mxu0 0
  %126 = vmatpush.bf16.msra.mxu0 %v83
  %127 = vmatmul.bf16.gmra.mxu0 %v117
  %v128 = vpop.f32.mrf.mxu0
  %v129 = vadd.f32 0.0, %v128
  %v130 = vpop.f32.mrf.mxu0
  %131 = vdwg.mxu0
  %132 = vmatpush.bf16.msra.mxu0 0
  %133 = vmatpush.bf16.msra.mxu0 0
  %134 = vmatpush.bf16.msra.mxu0 0
  %135 = vmatpush.bf16.msra.mxu0 0
  %136 = vmatpush.bf16.msra.mxu0 0
  %137 = vmatpush.bf16.msra.mxu0 0
  %138 = vmatpush.bf16.msra.mxu0 0
  %139 = vmatpush.bf16.msra.mxu0 %v84
  %140 = vmatmul.bf16.gmra.mxu0 %v117
  %v141 = vpop.f32.mrf.mxu0
  %v142 = vadd.f32 0.0, %v141
  %v143 = vpop.f32.mrf.mxu0
  %144 = vdwg.mxu0
  %145 = vmatpush.bf16.msra.mxu0 0
  %146 = vmatpush.bf16.msra.mxu0 0
  %147 = vmatpush.bf16.msra.mxu0 0
  %148 = vmatpush.bf16.msra.mxu0 0
  %149 = vmatpush.bf16.msra.mxu0 0
  %150 = vmatpush.bf16.msra.mxu0 0
  %151 = vmatpush.bf16.msra.mxu0 0
  %152 = vmatpush.bf16.msra.mxu0 %v85
  %153 = vmatmul.bf16.gmra.mxu0 %v117
  %v154 = vpop.f32.mrf.mxu0
  %v155 = vadd.f32 0.0, %v154
  %v156 = vpop.f32.mrf.mxu0
  %157 = vdwg.mxu0
  %158 = vmatpush.bf16.msra.mxu0 0
  %159 = vmatpush.bf16.msra.mxu0 0
  %160 = vmatpush.bf16.msra.mxu0 0
  %161 = vmatpush.bf16.msra.mxu0 0
  %162 = vmatpush.bf16.msra.mxu0 0
  %163 = vmatpush.bf16.msra.mxu0 0
  %164 = vmatpush.bf16.msra.mxu0 0
  %165 = vmatpush.bf16.msra.mxu0 %v86
  %166 = vmatmul.bf16.gmra.mxu0 %v117
  %v167 = vpop.f32.mrf.mxu0
  %v168 = vadd.f32 0.0, %v167
  %v169 = vpop.f32.mrf.mxu0
  %170 = vdwg.mxu0
  %171 = vmatpush.bf16.msra.mxu0 0
  %172 = vmatpush.bf16.msra.mxu0 0
  %173 = vmatpush.bf16.msra.mxu0 0
  %174 = vmatpush.bf16.msra.mxu0 0
  %175 = vmatpush.bf16.msra.mxu0 0
  %176 = vmatpush.bf16.msra.mxu0 0
  %177 = vmatpush.bf16.msra.mxu0 0
  %178 = vmatpush.bf16.msra.mxu0 %v87
  %179 = vmatmul.bf16.gmra.mxu0 %v117
  %v180 = vpop.f32.mrf.mxu0
  %v181 = vadd.f32 0.0, %v180
  %v182 = vpop.f32.mrf.mxu0
  %183 = vdwg.mxu0
  %184 = vmatpush.bf16.msra.mxu0 0
  %185 = vmatpush.bf16.msra.mxu0 0
  %186 = vmatpush.bf16.msra.mxu0 0
  %187 = vmatpush.bf16.msra.mxu0 0
  %188 = vmatpush.bf16.msra.mxu0 0
  %189 = vmatpush.bf16.msra.mxu0 0
  %190 = vmatpush.bf16.msra.mxu0 0
  %191 = vmatpush.bf16.msra.mxu0 %v88
  %192 = vmatmul.bf16.gmra.mxu0 %v117
  %v193 = vpop.f32.mrf.mxu0
  %v194 = vadd.f32 0.0, %v193
  %v195 = vpop.f32.mrf.mxu0
  %196 = vdwg.mxu0
  %197 = vmatpush.bf16.msra.mxu0 0
  %198 = vmatpush.bf16.msra.mxu0 0
  %199 = vmatpush.bf16.msra.mxu0 0
  %200 = vmatpush.bf16.msra.mxu0 0
  %201 = vmatpush.bf16.msra.mxu0 0
  %202 = vmatpush.bf16.msra.mxu0 0
  %203 = vmatpush.bf16.msra.mxu0 0
  %204 = vmatpush.bf16.msra.mxu0 %v89
  %205 = vmatmul.bf16.gmra.mxu0 %v117
  %v206 = vpop.f32.mrf.mxu0
  %v207 = vadd.f32 0.0, %v206
  %v208 = vpop.f32.mrf.mxu0
  %209 = vdwg.mxu0
  %210 = vmatpush.bf16.msra.mxu0 0
  %211 = vmatpush.bf16.msra.mxu0 0
  %212 = vmatpush.bf16.msra.mxu0 0
  %213 = vmatpush.bf16.msra.mxu0 0
  %214 = vmatpush.bf16.msra.mxu0 0
  %215 = vmatpush.bf16.msra.mxu0 0
  %216 = vmatpush.bf16.msra.mxu0 0
  %217 = vmatpush.bf16.msra.mxu0 %v90
  %218 = vmatmul.bf16.gmra.mxu0 %v117
  %v219 = vpop.f32.mrf.mxu0
  %v220 = vadd.f32 0.0, %v219
  %v221 = vpop.f32.mrf.mxu0
  %222 = vdwg.mxu0
  %223 = vmatpush.bf16.msra.mxu0 0
  %224 = vmatpush.bf16.msra.mxu0 0
  %225 = vmatpush.bf16.msra.mxu0 0
  %226 = vmatpush.bf16.msra.mxu0 0
  %227 = vmatpush.bf16.msra.mxu0 0
  %228 = vmatpush.bf16.msra.mxu0 0
  %229 = vmatpush.bf16.msra.mxu0 0
  %230 = vmatpush.bf16.msra.mxu0 %v91
  %231 = vmatmul.bf16.gmra.mxu0 %v117
  %v232 = vpop.f32.mrf.mxu0
  %v233 = vadd.f32 0.0, %v232
  %v234 = vpop.f32.mrf.mxu0
  %235 = vdwg.mxu0
  %236 = vmatpush.bf16.msra.mxu0 0
  %237 = vmatpush.bf16.msra.mxu0 0
  %238 = vmatpush.bf16.msra.mxu0 0
  %239 = vmatpush.bf16.msra.mxu0 0
  %240 = vmatpush.bf16.msra.mxu0 0
  %241 = vmatpush.bf16.msra.mxu0 0
  %242 = vmatpush.bf16.msra.mxu0 0
  %243 = vmatpush.bf16.msra.mxu0 %v92
  %244 = vmatmul.bf16.gmra.mxu0 %v117
  %v245 = vpop.f32.mrf.mxu0
  %v246 = vadd.f32 0.0, %v245
  %v247 = vpop.f32.mrf.mxu0
  %248 = vdwg.mxu0
  %249 = vmatpush.bf16.msra.mxu0 0
  %250 = vmatpush.bf16.msra.mxu0 0
  %251 = vmatpush.bf16.msra.mxu0 0
  %252 = vmatpush.bf16.msra.mxu0 0
  %253 = vmatpush.bf16.msra.mxu0 0
  %254 = vmatpush.bf16.msra.mxu0 0
  %255 = vmatpush.bf16.msra.mxu0 0
  %256 = vmatpush.bf16.msra.mxu0 %v93
  %257 = vmatmul.bf16.gmra.mxu0 %v117
  %v258 = vpop.f32.mrf.mxu0
  %v259 = vadd.f32 0.0, %v258
  %v260 = vpop.f32.mrf.mxu0
  %261 = vdwg.mxu0
  %262 = vmatpush.bf16.msra.mxu0 0
  %263 = vmatpush.bf16.msra.mxu0 0
  %264 = vmatpush.bf16.msra.mxu0 0
  %265 = vmatpush.bf16.msra.mxu0 0
  %266 = vmatpush.bf16.msra.mxu0 0
  %267 = vmatpush.bf16.msra.mxu0 0
  %268 = vmatpush.bf16.msra.mxu0 0
  %269 = vmatpush.bf16.msra.mxu0 %v94
  %270 = vmatmul.bf16.gmra.mxu0 %v117
  %v271 = vpop.f32.mrf.mxu0
  %v272 = vadd.f32 0.0, %v271
  %v273 = vpop.f32.mrf.mxu0
  %274 = vdwg.mxu0
  %275 = vmatpush.bf16.msra.mxu0 0
  %276 = vmatpush.bf16.msra.mxu0 0
  %277 = vmatpush.bf16.msra.mxu0 0
  %278 = vmatpush.bf16.msra.mxu0 0
  %279 = vmatpush.bf16.msra.mxu0 0
  %280 = vmatpush.bf16.msra.mxu0 0
  %281 = vmatpush.bf16.msra.mxu0 0
  %282 = vmatpush.bf16.msra.mxu0 %v95
  %283 = vmatmul.bf16.gmra.mxu0 %v117
  %v284 = vpop.f32.mrf.mxu0
  %v285 = vadd.f32 0.0, %v284
  %v286 = vpop.f32.mrf.mxu0
  %287 = vdwg.mxu0
  %288 = vmatpush.bf16.msra.mxu0 0
  %289 = vmatpush.bf16.msra.mxu0 0
  %290 = vmatpush.bf16.msra.mxu0 0
  %291 = vmatpush.bf16.msra.mxu0 0
  %292 = vmatpush.bf16.msra.mxu0 0
  %293 = vmatpush.bf16.msra.mxu0 0
  %294 = vmatpush.bf16.msra.mxu0 0
  %295 = vmatpush.bf16.msra.mxu0 %v96
  %296 = vmatmul.bf16.gmra.mxu0 %v117
  %v297 = vpop.f32.mrf.mxu0
  %v298 = vadd.f32 0.0, %v297
  %v299 = vpop.f32.mrf.mxu0
  %300 = vdwg.mxu0
  %301 = vmatpush.bf16.msra.mxu0 0
  %302 = vmatpush.bf16.msra.mxu0 0
  %303 = vmatpush.bf16.msra.mxu0 0
  %304 = vmatpush.bf16.msra.mxu0 0
  %305 = vmatpush.bf16.msra.mxu0 0
  %306 = vmatpush.bf16.msra.mxu0 0
  %307 = vmatpush.bf16.msra.mxu0 0
  %308 = vmatpush.bf16.msra.mxu0 %v97
  %309 = vmatmul.bf16.gmra.mxu0 %v117
  %v310 = vpop.f32.mrf.mxu0
  %v311 = vadd.f32 0.0, %v310
  %v312 = vpop.f32.mrf.mxu0
  %313 = vdwg.mxu0
  %314 = vmatpush.bf16.msra.mxu0 0
  %315 = vmatpush.bf16.msra.mxu0 0
  %316 = vmatpush.bf16.msra.mxu0 0
  %317 = vmatpush.bf16.msra.mxu0 0
  %318 = vmatpush.bf16.msra.mxu0 0
  %319 = vmatpush.bf16.msra.mxu0 0
  %320 = vmatpush.bf16.msra.mxu0 0
  %321 = vmatpush.bf16.msra.mxu0 %v98
  %322 = vmatmul.bf16.gmra.mxu0 %v117
  %v323 = vpop.f32.mrf.mxu0
  %v324 = vadd.f32 0.0, %v323
  %v325 = vpop.f32.mrf.mxu0
  %326 = vdwg.mxu0
  %v327 = vmul.f32 %v129, %v129
  %v328 = vadd.f32 %v129, %v142
  %v329 = vmul.f32 %v142, %v142
  %v330 = vadd.f32 %v327, %v329
  %v331 = vadd.f32 %v328, %v155
  %v332 = vmul.f32 %v155, %v155
  %v333 = vadd.f32 %v330, %v332
  %v334 = vadd.f32 %v331, %v168
  %v335 = vmul.f32 %v168, %v168
  %v336 = vadd.f32 %v333, %v335
  %v337 = vadd.f32 %v334, %v181
  %v338 = vmul.f32 %v181, %v181
  %v339 = vadd.f32 %v336, %v338
  %v340 = vadd.f32 %v337, %v194
  %v341 = vmul.f32 %v194, %v194
  %v342 = vadd.f32 %v339, %v341
  %v343 = vadd.f32 %v340, %v207
  %v344 = vmul.f32 %v207, %v207
  %v345 = vadd.f32 %v342, %v344
  %v346 = vadd.f32 %v343, %v220
  %v347 = vmul.f32 %v220, %v220
  %v348 = vadd.f32 %v345, %v347
  %v349 = vadd.f32 %v346, %v233
  %v350 = vmul.f32 %v233, %v233
  %v351 = vadd.f32 %v348, %v350
  %v352 = vadd.f32 %v349, %v246
  %v353 = vmul.f32 %v246, %v246
  %v354 = vadd.f32 %v351, %v353
  %v355 = vadd.f32 %v352, %v259
  %v356 = vmul.f32 %v259, %v259
  %v357 = vadd.f32 %v354, %v356
  %v358 = vadd.f32 %v355, %v272
  %v359 = vmul.f32 %v272, %v272
  %v360 = vadd.f32 %v357, %v359
  %v361 = vadd.f32 %v358, %v285
  %v362 = vmul.f32 %v285, %v285
  %v363 = vadd.f32 %v360, %v362
  %v364 = vadd.f32 %v361, %v298
  %v365 = vmul.f32 %v298, %v298
  %v366 = vadd.f32 %v363, %v365
  %v367 = vadd.f32 %v364, %v311
  %v368 = vmul.f32 %v311, %v311
  %v369 = vadd.f32 %v366, %v368
  %v370 = vadd.f32 %v367, %v324
  %v371 = vmul.f32 %v324, %v324
  %v372 = vadd.f32 %v369, %v371
  %vm373 = vcmask 1041408
  %v374 = vsel %vm373, %v370, 0.0
  %v375 = vrot.slane %v374, 4
  %v376 = vadd.f32 %v374, %v375
  %v377 = vrot.slane %v376, 2
  %v378 = vadd.f32 %v376, %v377
  %v379 = vrot.slane %v378, 1
  %v380 = vadd.f32 %v378, %v379
  %v381 = vmul.f32 %v380, 0.03125
  %v382 = vsel %vm373, %v372, 0.0
  %v383 = vrot.slane %v382, 4
  %v384 = vadd.f32 %v382, %v383
  %v385 = vrot.slane %v384, 2
  %v386 = vadd.f32 %v384, %v385
  %v387 = vrot.slane %v386, 1
  %v388 = vadd.f32 %v386, %v387
  %v389 = vmul.f32 %v388, 0.03125
  %v390 = vmul.f32 %v381, %v381
  %v391 = vsub.f32 %v389, %v390
  %v392 = vadd.f32 %v391, 1e-05
  %v393 = vrsqrt.pop %v392
  %v394 = vmul.f32 %v393, %v392
  %v395 = vmul.f32 %v394, %v393
  %v396 = vmul.f32 0.5, %v395
  %v397 = vsub.f32 1.5, %v396
  %v398 = vmul.f32 %v393, %v397
  %vm399 = vweird.f32 %v392
  %vm400 = vweird.f32 %v393
  %vm401 = vmor %vm399, %vm400
  %v402 = vsel %vm401, %v393, %v398
  %v403 = vld [vmem:[%s2] sm:$0x1]
  %v404 = vmul.f32 %v402, %v403
  %v405 = vld [vmem:[%s3] sm:$0x1]
  %v406 = vmul.f32 %v381, %v404
  %v407 = vsub.f32 %v405, %v406
  %v408 = vperm.slane %v404, 0
  %v409 = vmul.f32 %v129, %v408
  %v410 = vmul.f32 %v142, %v408
  %v411 = vmul.f32 %v155, %v408
  %v412 = vmul.f32 %v168, %v408
  %v413 = vmul.f32 %v181, %v408
  %v414 = vmul.f32 %v194, %v408
  %v415 = vmul.f32 %v207, %v408
  %v416 = vmul.f32 %v220, %v408
  %v417 = vmul.f32 %v233, %v408
  %v418 = vmul.f32 %v246, %v408
  %v419 = vmul.f32 %v259, %v408
  %v420 = vmul.f32 %v272, %v408
  %v421 = vmul.f32 %v285, %v408
  %v422 = vmul.f32 %v298, %v408
  %v423 = vmul.f32 %v311, %v408
  %v424 = vmul.f32 %v324, %v408
  %v425 = vperm.slane %v407, 0
  %v426 = vadd.f32 %v409, %v425
  %v427 = vadd.f32 %v410, %v425
  %v428 = vadd.f32 %v411, %v425
  %v429 = vadd.f32 %v412, %v425
  %v430 = vadd.f32 %v413, %v425
  %v431 = vadd.f32 %v414, %v425
  %v432 = vadd.f32 %v415, %v425
  %v433 = vadd.f32 %v416, %v425
  %v434 = vadd.f32 %v417, %v425
  %v435 = vadd.f32 %v418, %v425
  %v436 = vadd.f32 %v419, %v425
  %v437 = vadd.f32 %v420, %v425
  %v438 = vadd.f32 %v421, %v425
  %v439 = vadd.f32 %v422, %v425
  %v440 = vadd.f32 %v423, %v425
  %v441 = vadd.f32 %v424, %v425
  %v442 = vmax.f32 %v426, 0.0
  %v443 = vmax.f32 %v427, 0.0
  %v444 = vmax.f32 %v428, 0.0
  %v445 = vmax.f32 %v429, 0.0
  %v446 = vmax.f32 %v430, 0.0
  %v447 = vmax.f32 %v431, 0.0
  %v448 = vmax.f32 %v432, 0.0
  %v449 = vmax.f32 %v433, 0.0
  %v450 = vmax.f32 %v434, 0.0
  %v451 = vmax.f32 %v435, 0.0
  %v452 = vmax.f32 %v436, 0.0
  %v453 = vmax.f32 %v437, 0.0
  %v454 = vmax.f32 %v438, 0.0
  %v455 = vmax.f32 %v439, 0.0
  %v456 = vmax.f32 %v440, 0.0
  %v457 = vmax.f32 %v441, 0.0
  %v458 = vpack.c.bf16 %v443, %v442
  %v459 = vpack.c.bf16 %v445, %v444
  %v460 = vpack.c.bf16 %v447, %v446
  %v461 = vpack.c.bf16 %v449, %v448
  %v462 = vpack.c.bf16 %v451, %v450
  %v463 = vpack.c.bf16 %v453, %v452
  %v464 = vpack.c.bf16 %v455, %v454
  %v465 = vpack.c.bf16 %v457, %v456
  %v474 = vrot.slane %v458, 3
  %v475 = vrot.slane %v459, 6
  %v476 = vrot.slane %v459, 1
  %v477 = vrot.slane %v460, 4
  %v478 = vrot.slane %v460, 7
  %v479 = vrot.slane %v461, 2
  %v480 = vrot.slane %v461, 5
  %v481 = vrot.slane %v462, 3
  %v482 = vrot.slane %v463, 6
  %v483 = vrot.slane %v463, 1
  %v484 = vrot.slane %v464, 4
  %v485 = vrot.slane %v464, 7
  %v486 = vrot.slane %v465, 2
  %v487 = vrot.slane %v465, 5
  %vm488 = vcmask 1040384
  %v491 = vsel %vm488, %v458, %v474
  %vm492 = vcmask 1042434
  %v495 = vsel %vm492, %v475, %v476
  %v496 = vsel %vm373, %v491, %v495
  %vm497 = vcmask 1044484
  %v500 = vsel %vm497, %v477, %v478
  %vm501 = vcmask 1046534
  %v504 = vsel %vm501, %v479, %v480
  %vm505 = vcmask 1045508
  %v506 = vsel %vm505, %v500, %v504
  %vm507 = vcmask 1043456
  %v508 = vsel %vm507, %v496, %v506
  %v511 = vsel %vm488, %v462, %v481
  %v514 = vsel %vm492, %v482, %v483
  %v515 = vsel %vm373, %v511, %v514
  %v518 = vsel %vm497, %v484, %v485
  %v521 = vsel %vm501, %v486, %v487
  %v522 = vsel %vm505, %v518, %v521
  %v523 = vsel %vm507, %v515, %v522
  %526 = vst [vmem:[%s4] sm:$0xff] %v508
  %527 = vst [vmem:[%s4 + $0x8] sm:$0xff] %v523
  // Predicated region
  $region18: #{generator_forward.5} parent=0 // pred_check
    _
  $region19: #{generator_forward.5} parent=0 // pred_check_branch
    %529 = sbr.rel (0) target = $region21
  $region20: #{generator_forward.5} parent=0 // pred_region
    _
  $region21: #{generator_forward.5} parent=0 // pred_fallthru
    _
  // Predicated region
  $region22: #{generator_forward.5} parent=0 // pred_check
    _
  $region23: #{generator_forward.5} parent=0 // pred_check_branch
    %531 = sbr.rel (0) target = $region25
  $region24: #{generator_forward.5} parent=0 // pred_region
    _
  $region25: #{generator_forward.5} parent=0 // pred_fallthru
    _

// kernel: generator_forward.6
$region0: #{generator_forward.6}
  #allocation0 [shape = 'u32[]', space=smem, size = 0x4, offset = 0x4, fixed_abs, tag = 'smem constant byte address 0x4 - core index']
  #allocation1 [shape = 'u32[72,128]{1,0:T(1,128)}', space=vmem, size = 0x9000, scoped, tag = 'internal scratch']
  %s0 = inlined_call_operand.vmem [shape: bf16[32,1152], index: 0, kind: input, shape index: {}]
  %s1 = inlined_call_operand.vmem [shape: bf16[1152,256], index: 1, kind: input, shape index: {}]
  %s2 = inlined_call_operand.vmem [shape: f32[1,64], index: 2, kind: input, shape index: {}]
  %s3 = inlined_call_operand.vmem [shape: f32[1,64], index: 3, kind: input, shape index: {}]
  %s4 = inlined_call_operand.vmem [shape: bf16[32,256], index: 4, kind: output, shape index: {}]
  %s5 = sld [smem:[#allocation0]]
  $region26: #{generator_forward.6} parent=0
    _
  %s7 = ssub.s32 1, %s5
  %s8 = scalar_select 0, %s7, %s5
  // Predicated region
  $region2: #{generator_forward.6} parent=0 // pred_check
    _
  $region3: #{generator_forward.6} parent=0 // pred_check_branch
    %10 = sbr.rel (0) target = $region5
  $region4: #{generator_forward.6} parent=0 // pred_region
    _
  $region5: #{generator_forward.6} parent=0 // pred_fallthru
    _
  // Predicated region
  $region6: #{generator_forward.6} parent=0 // pred_check
    _
  $region7: #{generator_forward.6} parent=0 // pred_check_branch
    %12 = sbr.rel (0) target = $region9
  $region8: #{generator_forward.6} parent=0 // pred_region
    _
  $region9: #{generator_forward.6} parent=0 // pred_fallthru
    _
  // Predicated region
  $region10: #{generator_forward.6} parent=0 // pred_check
    _
  $region11: #{generator_forward.6} parent=0 // pred_check_branch
    %14 = sbr.rel (0) target = $region13
  $region12: #{generator_forward.6} parent=0 // pred_region
    _
  $region13: #{generator_forward.6} parent=0 // pred_fallthru
    _
  // Predicated region
  $region14: #{generator_forward.6} parent=0 // pred_check
    _
  $region15: #{generator_forward.6} parent=0 // pred_check_branch
    %16 = sbr.rel (0) target = $region17
  $region16: #{generator_forward.6} parent=0 // pred_region
    _
  $region17: #{generator_forward.6} parent=0 // pred_fallthru
    _
  %v17 = vld [vmem:[%s0] sm:$0xff]
  %v18 = vld [vmem:[%s0 + $0x8] sm:$0xff]
  %v19 = vld [vmem:[%s0 + $0x10] sm:$0xff]
  %v20 = vld [vmem:[%s0 + $0x18] sm:$0xff]
  %v21 = vld [vmem:[%s0 + $0x20] sm:$0xf]
  %v22 = vld [vmem:[%s0 + $0x24] sm:$0xff]
  %v23 = vld [vmem:[%s0 + $0x2c] sm:$0xff]
  %v24 = vld [vmem:[%s0 + $0x34] sm:$0xff]
  %v25 = vld [vmem:[%s0 + $0x3c] sm:$0xff]
  %v26 = vld [vmem:[%s0 + $0x44] sm:$0xf]
  %v27 = vld [vmem:[%s0 + $0x48] sm:$0xff]
  %v28 = vld [vmem:[%s0 + $0x50] sm:$0xff]
  %v29 = vld [vmem:[%s0 + $0x58] sm:$0xff]
  %v30 = vld [vmem:[%s0 + $0x60] sm:$0xff]
  %v31 = vld [vmem:[%s0 + $0x68] sm:$0xf]
  %v32 = vld [vmem:[%s0 + $0x6c] sm:$0xff]
  %v33 = vld [vmem:[%s0 + $0x74] sm:$0xff]
  %v34 = vld [vmem:[%s0 + $0x7c] sm:$0xff]
  %v35 = vld [vmem:[%s0 + $0x84] sm:$0xff]
  %v36 = vld [vmem:[%s0 + $0x8c] sm:$0xf]
  %v37 = vld [vmem:[%s1] sm:$0xff]
  %v38 = vld [vmem:[%s1 + $0x8] sm:$0xff]
  %v39 = vld [vmem:[%s1 + $0x10] sm:$0xff]
  %v40 = vld [vmem:[%s1 + $0x18] sm:$0xff]
  %v41 = vld [vmem:[%s1 + $0x20] sm:$0xff]
  %v42 = vld [vmem:[%s1 + $0x28] sm:$0xff]
  %v43 = vld [vmem:[%s1 + $0x30] sm:$0xff]
  %v44 = vld [vmem:[%s1 + $0x38] sm:$0xff]
  %v45 = vld [vmem:[%s1 + $0x40] sm:$0xff]
  %v46 = vld [vmem:[%s1 + $0x48] sm:$0xff]
  %v47 = vld [vmem:[%s1 + $0x50] sm:$0xff]
  %v48 = vld [vmem:[%s1 + $0x58] sm:$0xff]
  %v49 = vld [vmem:[%s1 + $0x60] sm:$0xff]
  %v50 = vld [vmem:[%s1 + $0x68] sm:$0xff]
  %v51 = vld [vmem:[%s1 + $0x70] sm:$0xff]
  %v52 = vld [vmem:[%s1 + $0x78] sm:$0xff]
  %v53 = vld [vmem:[%s1 + $0x80] sm:$0xff]
  %v54 = vld [vmem:[%s1 + $0x88] sm:$0xff]
  %v55 = vld [vmem:[%s1 + $0x90] sm:$0xff]
  %v56 = vld [vmem:[%s1 + $0x98] sm:$0xff]
  %v57 = vld [vmem:[%s1 + $0xa0] sm:$0xff]
  %v58 = vld [vmem:[%s1 + $0xa8] sm:$0xff]
  %v59 = vld [vmem:[%s1 + $0xb0] sm:$0xff]
  %v60 = vld [vmem:[%s1 + $0xb8] sm:$0xff]
  %v61 = vld [vmem:[%s1 + $0xc0] sm:$0xff]
  %v62 = vld [vmem:[%s1 + $0xc8] sm:$0xff]
  %v63 = vld [vmem:[%s1 + $0xd0] sm:$0xff]
  %v64 = vld [vmem:[%s1 + $0xd8] sm:$0xff]
  %v65 = vld [vmem:[%s1 + $0xe0] sm:$0xff]
  %v66 = vld [vmem:[%s1 + $0xe8] sm:$0xff]
  %v67 = vld [vmem:[%s1 + $0xf0] sm:$0xff]
  %v68 = vld [vmem:[%s1 + $0xf8] sm:$0xff]
  %v69 = vld [vmem:[%s1 + $0x100] sm:$0xff]
  %v70 = vld [vmem:[%s1 + $0x108] sm:$0xff]
  %v71 = vld [vmem:[%s1 + $0x110] sm:$0xff]
  %v72 = vld [vmem:[%s1 + $0x118] sm:$0xff]
  %v73 = vld [vmem:[%s1 + $0x120] sm:$0xff]
  %v74 = vld [vmem:[%s1 + $0x128] sm:$0xff]
  %v75 = vld [vmem:[%s1 + $0x130] sm:$0xff]
  %v76 = vld [vmem:[%s1 + $0x138] sm:$0xff]
  %v77 = vld [vmem:[%s1 + $0x140] sm:$0xff]
  %v78 = vld [vmem:[%s1 + $0x148] sm:$0xff]
  %v79 = vld [vmem:[%s1 + $0x150] sm:$0xff]
  %v80 = vld [vmem:[%s1 + $0x158] sm:$0xff]
  %v81 = vld [vmem:[%s1 + $0x160] sm:$0xff]
  %v82 = vld [vmem:[%s1 + $0x168] sm:$0xff]
  %v83 = vld [vmem:[%s1 + $0x170] sm:$0xff]
  %v84 = vld [vmem:[%s1 + $0x178] sm:$0xff]
  %v85 = vld [vmem:[%s1 + $0x180] sm:$0xff]
  %v86 = vld [vmem:[%s1 + $0x188] sm:$0xff]
  %v87 = vld [vmem:[%s1 + $0x190] sm:$0xff]
  %v88 = vld [vmem:[%s1 + $0x198] sm:$0xff]
  %v89 = vld [vmem:[%s1 + $0x1a0] sm:$0xff]
  %v90 = vld [vmem:[%s1 + $0x1a8] sm:$0xff]
  %v91 = vld [vmem:[%s1 + $0x1b0] sm:$0xff]
  %v92 = vld [vmem:[%s1 + $0x1b8] sm:$0xff]
  %v93 = vld [vmem:[%s1 + $0x1c0] sm:$0xff]
  %v94 = vld [vmem:[%s1 + $0x1c8] sm:$0xff]
  %v95 = vld [vmem:[%s1 + $0x1d0] sm:$0xff]
  %v96 = vld [vmem:[%s1 + $0x1d8] sm:$0xff]
  %v97 = vld [vmem:[%s1 + $0x1e0] sm:$0xff]
  %v98 = vld [vmem:[%s1 + $0x1e8] sm:$0xff]
  %v99 = vld [vmem:[%s1 + $0x1f0] sm:$0xff]
  %v100 = vld [vmem:[%s1 + $0x1f8] sm:$0xff]
  %v101 = vld [vmem:[%s1 + $0x200] sm:$0xff]
  %v102 = vld [vmem:[%s1 + $0x208] sm:$0xff]
  %v103 = vld [vmem:[%s1 + $0x210] sm:$0xff]
  %v104 = vld [vmem:[%s1 + $0x218] sm:$0xff]
  %v105 = vld [vmem:[%s1 + $0x220] sm:$0xff]
  %v106 = vld [vmem:[%s1 + $0x228] sm:$0xff]
  %v107 = vld [vmem:[%s1 + $0x230] sm:$0xff]
  %v108 = vld [vmem:[%s1 + $0x238] sm:$0xff]
  %v109 = vld [vmem:[%s1 + $0x240] sm:$0xff]
  %v110 = vld [vmem:[%s1 + $0x248] sm:$0xff]
  %v111 = vld [vmem:[%s1 + $0x250] sm:$0xff]
  %v112 = vld [vmem:[%s1 + $0x258] sm:$0xff]
  %v113 = vld [vmem:[%s1 + $0x260] sm:$0xff]
  %v114 = vld [vmem:[%s1 + $0x268] sm:$0xff]
  %v115 = vld [vmem:[%s1 + $0x270] sm:$0xff]
  %v116 = vld [vmem:[%s1 + $0x278] sm:$0xff]
  %v117 = vld [vmem:[%s1 + $0x280] sm:$0xff]
  %v118 = vld [vmem:[%s1 + $0x288] sm:$0xff]
  %v119 = vld [vmem:[%s1 + $0x290] sm:$0xff]
  %v120 = vld [vmem:[%s1 + $0x298] sm:$0xff]
  %v121 = vld [vmem:[%s1 + $0x2a0] sm:$0xff]
  %v122 = vld [vmem:[%s1 + $0x2a8] sm:$0xff]
  %v123 = vld [vmem:[%s1 + $0x2b0] sm:$0xff]
  %v124 = vld [vmem:[%s1 + $0x2b8] sm:$0xff]
  %v125 = vld [vmem:[%s1 + $0x2c0] sm:$0xff]
  %v126 = vld [vmem:[%s1 + $0x2c8] sm:$0xff]
  %v127 = vld [vmem:[%s1 + $0x2d0] sm:$0xff]
  %v128 = vld [vmem:[%s1 + $0x2d8] sm:$0xff]
  %v129 = vld [vmem:[%s1 + $0x2e0] sm:$0xff]
  %v130 = vld [vmem:[%s1 + $0x2e8] sm:$0xff]
  %v131 = vld [vmem:[%s1 + $0x2f0] sm:$0xff]
  %v132 = vld [vmem:[%s1 + $0x2f8] sm:$0xff]
  %v133 = vld [vmem:[%s1 + $0x300] sm:$0xff]
  %v134 = vld [vmem:[%s1 + $0x308] sm:$0xff]
  %v135 = vld [vmem:[%s1 + $0x310] sm:$0xff]
  %v136 = vld [vmem:[%s1 + $0x318] sm:$0xff]
  %v137 = vld [vmem:[%s1 + $0x320] sm:$0xff]
  %v138 = vld [vmem:[%s1 + $0x328] sm:$0xff]
  %v139 = vld [vmem:[%s1 + $0x330] sm:$0xff]
  %v140 = vld [vmem:[%s1 + $0x338] sm:$0xff]
  %v141 = vld [vmem:[%s1 + $0x340] sm:$0xff]
  %v142 = vld [vmem:[%s1 + $0x348] sm:$0xff]
  %v143 = vld [vmem:[%s1 + $0x350] sm:$0xff]
  %v144 = vld [vmem:[%s1 + $0x358] sm:$0xff]
  %v145 = vld [vmem:[%s1 + $0x360] sm:$0xff]
  %v146 = vld [vmem:[%s1 + $0x368] sm:$0xff]
  %v147 = vld [vmem:[%s1 + $0x370] sm:$0xff]
  %v148 = vld [vmem:[%s1 + $0x378] sm:$0xff]
  %v149 = vld [vmem:[%s1 + $0x380] sm:$0xff]
  %v150 = vld [vmem:[%s1 + $0x388] sm:$0xff]
  %v151 = vld [vmem:[%s1 + $0x390] sm:$0xff]
  %v152 = vld [vmem:[%s1 + $0x398] sm:$0xff]
  %v153 = vld [vmem:[%s1 + $0x3a0] sm:$0xff]
  %v154 = vld [vmem:[%s1 + $0x3a8] sm:$0xff]
  %v155 = vld [vmem:[%s1 + $0x3b0] sm:$0xff]
  %v156 = vld [vmem:[%s1 + $0x3b8] sm:$0xff]
  %v157 = vld [vmem:[%s1 + $0x3c0] sm:$0xff]
  %v158 = vld [vmem:[%s1 + $0x3c8] sm:$0xff]
  %v159 = vld [vmem:[%s1 + $0x3d0] sm:$0xff]
  %v160 = vld [vmem:[%s1 + $0x3d8] sm:$0xff]
  %v161 = vld [vmem:[%s1 + $0x3e0] sm:$0xff]
  %v162 = vld [vmem:[%s1 + $0x3e8] sm:$0xff]
  %v163 = vld [vmem:[%s1 + $0x3f0] sm:$0xff]
  %v164 = vld [vmem:[%s1 + $0x3f8] sm:$0xff]
  %v165 = vld [vmem:[%s1 + $0x400] sm:$0xff]
  %v166 = vld [vmem:[%s1 + $0x408] sm:$0xff]
  %v167 = vld [vmem:[%s1 + $0x410] sm:$0xff]
  %v168 = vld [vmem:[%s1 + $0x418] sm:$0xff]
  %v169 = vld [vmem:[%s1 + $0x420] sm:$0xff]
  %v170 = vld [vmem:[%s1 + $0x428] sm:$0xff]
  %v171 = vld [vmem:[%s1 + $0x430] sm:$0xff]
  %v172 = vld [vmem:[%s1 + $0x438] sm:$0xff]
  %v173 = vld [vmem:[%s1 + $0x440] sm:$0xff]
  %v174 = vld [vmem:[%s1 + $0x448] sm:$0xff]
  %v175 = vld [vmem:[%s1 + $0x450] sm:$0xff]
  %v176 = vld [vmem:[%s1 + $0x458] sm:$0xff]
  %v177 = vld [vmem:[%s1 + $0x460] sm:$0xff]
  %v178 = vld [vmem:[%s1 + $0x468] sm:$0xff]
  %v179 = vld [vmem:[%s1 + $0x470] sm:$0xff]
  %v180 = vld [vmem:[%s1 + $0x478] sm:$0xff]
  %v201 = vunpack.c.l.b16 %v17
  %v202 = vunpack.c.h.b16 %v17
  %v203 = vunpack.c.l.b16 %v18
  %v204 = vunpack.c.h.b16 %v18
  %v205 = vunpack.c.l.b16 %v19
  %v206 = vunpack.c.h.b16 %v19
  %v207 = vunpack.c.l.b16 %v20
  %v208 = vunpack.c.h.b16 %v20
  %v209 = vunpack.c.l.b16 %v21
  %v210 = vunpack.c.l.b16 %v22
  %v211 = vunpack.c.h.b16 %v22
  %v212 = vunpack.c.l.b16 %v23
  %v213 = vunpack.c.h.b16 %v23
  %v214 = vunpack.c.l.b16 %v24
  %v215 = vunpack.c.h.b16 %v24
  %v216 = vunpack.c.l.b16 %v25
  %v217 = vunpack.c.h.b16 %v25
  %v218 = vunpack.c.l.b16 %v26
  %v219 = vunpack.c.l.b16 %v27
  %v220 = vunpack.c.h.b16 %v27
  %v221 = vunpack.c.l.b16 %v28
  %v222 = vunpack.c.h.b16 %v28
  %v223 = vunpack.c.l.b16 %v29
  %v224 = vunpack.c.h.b16 %v29
  %v225 = vunpack.c.l.b16 %v30
  %v226 = vunpack.c.h.b16 %v30
  %v227 = vunpack.c.l.b16 %v31
  %v228 = vunpack.c.l.b16 %v32
  %v229 = vunpack.c.h.b16 %v32
  %v230 = vunpack.c.l.b16 %v33
  %v231 = vunpack.c.h.b16 %v33
  %v232 = vunpack.c.l.b16 %v34
  %v233 = vunpack.c.h.b16 %v34
  %v234 = vunpack.c.l.b16 %v35
  %v235 = vunpack.c.h.b16 %v35
  %v236 = vunpack.c.l.b16 %v36
  %v237 = vpack.c.b16 %v210, %v201
  %v238 = vpack.c.b16 %v211, %v202
  %v239 = vpack.c.b16 %v212, %v203
  %v240 = vpack.c.b16 %v213, %v204
  %v241 = vpack.c.b16 %v214, %v205
  %v242 = vpack.c.b16 %v215, %v206
  %v243 = vpack.c.b16 %v216, %v207
  %v244 = vpack.c.b16 %v217, %v208
  %v245 = vpack.c.b16 %v218, %v209
  %v246 = vpack.c.b16 %v228, %v219
  %v247 = vpack.c.b16 %v229, %v220
  %v248 = vpack.c.b16 %v230, %v221
  %v249 = vpack.c.b16 %v231, %v222
  %v250 = vpack.c.b16 %v232, %v223
  %v251 = vpack.c.b16 %v233, %v224
  %v252 = vpack.c.b16 %v234, %v225
  %v253 = vpack.c.b16 %v235, %v226
  %v254 = vpack.c.b16 %v236, %v227
  %v417 = vunpack.c.l.b16 %v37
  %v418 = vunpack.c.h.b16 %v37
  %v419 = vunpack.c.l.b16 %v38
  %v420 = vunpack.c.h.b16 %v38
  %v421 = vunpack.c.l.b16 %v39
  %v422 = vunpack.c.h.b16 %v39
  %v423 = vunpack.c.l.b16 %v40
  %v424 = vunpack.c.h.b16 %v40
  %v425 = vunpack.c.l.b16 %v41
  %v426 = vunpack.c.h.b16 %v41
  %v427 = vunpack.c.l.b16 %v42
  %v428 = vunpack.c.h.b16 %v42
  %v429 = vunpack.c.l.b16 %v43
  %v430 = vunpack.c.h.b16 %v43
  %v431 = vunpack.c.l.b16 %v44
  %v432 = vunpack.c.h.b16 %v44
  %v433 = vunpack.c.l.b16 %v45
  %v434 = vunpack.c.h.b16 %v45
  %v435 = vunpack.c.l.b16 %v46
  %v436 = vunpack.c.h.b16 %v46
  %v437 = vunpack.c.l.b16 %v47
  %v438 = vunpack.c.h.b16 %v47
  %v439 = vunpack.c.l.b16 %v48
  %v440 = vunpack.c.h.b16 %v48
  %v441 = vunpack.c.l.b16 %v49
  %v442 = vunpack.c.h.b16 %v49
  %v443 = vunpack.c.l.b16 %v50
  %v444 = vunpack.c.h.b16 %v50
  %v445 = vunpack.c.l.b16 %v51
  %v446 = vunpack.c.h.b16 %v51
  %v447 = vunpack.c.l.b16 %v52
  %v448 = vunpack.c.h.b16 %v52
  %v449 = vunpack.c.l.b16 %v53
  %v450 = vunpack.c.h.b16 %v53
  %v451 = vunpack.c.l.b16 %v54
  %v452 = vunpack.c.h.b16 %v54
  %v453 = vunpack.c.l.b16 %v55
  %v454 = vunpack.c.h.b16 %v55
  %v455 = vunpack.c.l.b16 %v56
  %v456 = vunpack.c.h.b16 %v56
  %v457 = vunpack.c.l.b16 %v57
  %v458 = vunpack.c.h.b16 %v57
  %v459 = vunpack.c.l.b16 %v58
  %v460 = vunpack.c.h.b16 %v58
  %v461 = vunpack.c.l.b16 %v59
  %v462 = vunpack.c.h.b16 %v59
  %v463 = vunpack.c.l.b16 %v60
  %v464 = vunpack.c.h.b16 %v60
  %v465 = vunpack.c.l.b16 %v61
  %v466 = vunpack.c.h.b16 %v61
  %v467 = vunpack.c.l.b16 %v62
  %v468 = vunpack.c.h.b16 %v62
  %v469 = vunpack.c.l.b16 %v63
  %v470 = vunpack.c.h.b16 %v63
  %v471 = vunpack.c.l.b16 %v64
  %v472 = vunpack.c.h.b16 %v64
  %v473 = vunpack.c.l.b16 %v65
  %v474 = vunpack.c.h.b16 %v65
  %v475 = vunpack.c.l.b16 %v66
  %v476 = vunpack.c.h.b16 %v66
  %v477 = vunpack.c.l.b16 %v67
  %v478 = vunpack.c.h.b16 %v67
  %v479 = vunpack.c.l.b16 %v68
  %v480 = vunpack.c.h.b16 %v68
  %v481 = vunpack.c.l.b16 %v69
  %v482 = vunpack.c.h.b16 %v69
  %v483 = vunpack.c.l.b16 %v70
  %v484 = vunpack.c.h.b16 %v70
  %v485 = vunpack.c.l.b16 %v71
  %v486 = vunpack.c.h.b16 %v71
  %v487 = vunpack.c.l.b16 %v72
  %v488 = vunpack.c.h.b16 %v72
  %v489 = vunpack.c.l.b16 %v73
  %v490 = vunpack.c.h.b16 %v73
  %v491 = vunpack.c.l.b16 %v74
  %v492 = vunpack.c.h.b16 %v74
  %v493 = vunpack.c.l.b16 %v75
  %v494 = vunpack.c.h.b16 %v75
  %v495 = vunpack.c.l.b16 %v76
  %v496 = vunpack.c.h.b16 %v76
  %v497 = vunpack.c.l.b16 %v77
  %v498 = vunpack.c.h.b16 %v77
  %v499 = vunpack.c.l.b16 %v78
  %v500 = vunpack.c.h.b16 %v78
  %v501 = vunpack.c.l.b16 %v79
  %v502 = vunpack.c.h.b16 %v79
  %v503 = vunpack.c.l.b16 %v80
  %v504 = vunpack.c.h.b16 %v80
  %v505 = vunpack.c.l.b16 %v81
  %v506 = vunpack.c.h.b16 %v81
  %v507 = vunpack.c.l.b16 %v82
  %v508 = vunpack.c.h.b16 %v82
  %v509 = vunpack.c.l.b16 %v83
  %v510 = vunpack.c.h.b16 %v83
  %v511 = vunpack.c.l.b16 %v84
  %v512 = vunpack.c.h.b16 %v84
  %v513 = vunpack.c.l.b16 %v85
  %v514 = vunpack.c.h.b16 %v85
  %v515 = vunpack.c.l.b16 %v86
  %v516 = vunpack.c.h.b16 %v86
  %v517 = vunpack.c.l.b16 %v87
  %v518 = vunpack.c.h.b16 %v87
  %v519 = vunpack.c.l.b16 %v88
  %v520 = vunpack.c.h.b16 %v88
  %v521 = vunpack.c.l.b16 %v89
  %v522 = vunpack.c.h.b16 %v89
  %v523 = vunpack.c.l.b16 %v90
  %v524 = vunpack.c.h.b16 %v90
  %v525 = vunpack.c.l.b16 %v91
  %v526 = vunpack.c.h.b16 %v91
  %v527 = vunpack.c.l.b16 %v92
  %v528 = vunpack.c.h.b16 %v92
  %v529 = vunpack.c.l.b16 %v93
  %v530 = vunpack.c.h.b16 %v93
  %v531 = vunpack.c.l.b16 %v94
  %v532 = vunpack.c.h.b16 %v94
  %v533 = vunpack.c.l.b16 %v95
  %v534 = vunpack.c.h.b16 %v95
  %v535 = vunpack.c.l.b16 %v96
  %v536 = vunpack.c.h.b16 %v96
  %v537 = vunpack.c.l.b16 %v97
  %v538 = vunpack.c.h.b16 %v97
  %v539 = vunpack.c.l.b16 %v98
  %v540 = vunpack.c.h.b16 %v98
  %v541 = vunpack.c.l.b16 %v99
  %v542 = vunpack.c.h.b16 %v99
  %v543 = vunpack.c.l.b16 %v100
  %v544 = vunpack.c.h.b16 %v100
  %v545 = vunpack.c.l.b16 %v101
  %v546 = vunpack.c.h.b16 %v101
  %v547 = vunpack.c.l.b16 %v102
  %v548 = vunpack.c.h.b16 %v102
  %v549 = vunpack.c.l.b16 %v103
  %v550 = vunpack.c.h.b16 %v103
  %v551 = vunpack.c.l.b16 %v104
  %v552 = vunpack.c.h.b16 %v104
  %v553 = vunpack.c.l.b16 %v105
  %v554 = vunpack.c.h.b16 %v105
  %v555 = vunpack.c.l.b16 %v106
  %v556 = vunpack.c.h.b16 %v106
  %v557 = vunpack.c.l.b16 %v107
  %v558 = vunpack.c.h.b16 %v107
  %v559 = vunpack.c.l.b16 %v108
  %v560 = vunpack.c.h.b16 %v108
  %v561 = vunpack.c.l.b16 %v109
  %v562 = vunpack.c.h.b16 %v109
  %v563 = vunpack.c.l.b16 %v110
  %v564 = vunpack.c.h.b16 %v110
  %v565 = vunpack.c.l.b16 %v111
  %v566 = vunpack.c.h.b16 %v111
  %v567 = vunpack.c.l.b16 %v112
  %v568 = vunpack.c.h.b16 %v112
  %v569 = vunpack.c.l.b16 %v113
  %v570 = vunpack.c.h.b16 %v113
  %v571 = vunpack.c.l.b16 %v114
  %v572 = vunpack.c.h.b16 %v114
  %v573 = vunpack.c.l.b16 %v115
  %v574 = vunpack.c.h.b16 %v115
  %v575 = vunpack.c.l.b16 %v116
  %v576 = vunpack.c.h.b16 %v116
  %v577 = vunpack.c.l.b16 %v117
  %v578 = vunpack.c.h.b16 %v117
  %v579 = vunpack.c.l.b16 %v118
  %v580 = vunpack.c.h.b16 %v118
  %v581 = vunpack.c.l.b16 %v119
  %v582 = vunpack.c.h.b16 %v119
  %v583 = vunpack.c.l.b16 %v120
  %v584 = vunpack.c.h.b16 %v120
  %v585 = vunpack.c.l.b16 %v121
  %v586 = vunpack.c.h.b16 %v121
  %v587 = vunpack.c.l.b16 %v122
  %v588 = vunpack.c.h.b16 %v122
  %v589 = vunpack.c.l.b16 %v123
  %v590 = vunpack.c.h.b16 %v123
  %v591 = vunpack.c.l.b16 %v124
  %v592 = vunpack.c.h.b16 %v124
  %v593 = vunpack.c.l.b16 %v125
  %v594 = vunpack.c.h.b16 %v125
  %v595 = vunpack.c.l.b16 %v126
  %v596 = vunpack.c.h.b16 %v126
  %v597 = vunpack.c.l.b16 %v127
  %v598 = vunpack.c.h.b16 %v127
  %v599 = vunpack.c.l.b16 %v128
  %v600 = vunpack.c.h.b16 %v128
  %v601 = vunpack.c.l.b16 %v129
  %v602 = vunpack.c.h.b16 %v129
  %v603 = vunpack.c.l.b16 %v130
  %v604 = vunpack.c.h.b16 %v130
  %v605 = vunpack.c.l.b16 %v131
  %v606 = vunpack.c.h.b16 %v131
  %v607 = vunpack.c.l.b16 %v132
  %v608 = vunpack.c.h.b16 %v132
  %v609 = vunpack.c.l.b16 %v133
  %v610 = vunpack.c.h.b16 %v133
  %v611 = vunpack.c.l.b16 %v134
  %v612 = vunpack.c.h.b16 %v134
  %v613 = vunpack.c.l.b16 %v135
  %v614 = vunpack.c.h.b16 %v135
  %v615 = vunpack.c.l.b16 %v136
  %v616 = vunpack.c.h.b16 %v136
  %v617 = vunpack.c.l.b16 %v137
  %v618 = vunpack.c.h.b16 %v137
  %v619 = vunpack.c.l.b16 %v138
  %v620 = vunpack.c.h.b16 %v138
  %v621 = vunpack.c.l.b16 %v139
  %v622 = vunpack.c.h.b16 %v139
  %v623 = vunpack.c.l.b16 %v140
  %v624 = vunpack.c.h.b16 %v140
  %v625 = vunpack.c.l.b16 %v141
  %v626 = vunpack.c.h.b16 %v141
  %v627 = vunpack.c.l.b16 %v142
  %v628 = vunpack.c.h.b16 %v142
  %v629 = vunpack.c.l.b16 %v143
  %v630 = vunpack.c.h.b16 %v143
  %v631 = vunpack.c.l.b16 %v144
  %v632 = vunpack.c.h.b16 %v144
  %v633 = vunpack.c.l.b16 %v145
  %v634 = vunpack.c.h.b16 %v145
  %v635 = vunpack.c.l.b16 %v146
  %v636 = vunpack.c.h.b16 %v146
  %v637 = vunpack.c.l.b16 %v147
  %v638 = vunpack.c.h.b16 %v147
  %v639 = vunpack.c.l.b16 %v148
  %v640 = vunpack.c.h.b16 %v148
  %v641 = vunpack.c.l.b16 %v149
  %v642 = vunpack.c.h.b16 %v149
  %v643 = vunpack.c.l.b16 %v150
  %v644 = vunpack.c.h.b16 %v150
  %v645 = vunpack.c.l.b16 %v151
  %v646 = vunpack.c.h.b16 %v151
  %v647 = vunpack.c.l.b16 %v152
  %v648 = vunpack.c.h.b16 %v152
  %v649 = vunpack.c.l.b16 %v153
  %v650 = vunpack.c.h.b16 %v153
  %v651 = vunpack.c.l.b16 %v154
  %v652 = vunpack.c.h.b16 %v154
  %v653 = vunpack.c.l.b16 %v155
  %v654 = vunpack.c.h.b16 %v155
  %v655 = vunpack.c.l.b16 %v156
  %v656 = vunpack.c.h.b16 %v156
  %v657 = vunpack.c.l.b16 %v157
  %v658 = vunpack.c.h.b16 %v157
  %v659 = vunpack.c.l.b16 %v158
  %v660 = vunpack.c.h.b16 %v158
  %v661 = vunpack.c.l.b16 %v159
  %v662 = vunpack.c.h.b16 %v159
  %v663 = vunpack.c.l.b16 %v160
  %v664 = vunpack.c.h.b16 %v160
  %v665 = vunpack.c.l.b16 %v161
  %v666 = vunpack.c.h.b16 %v161
  %v667 = vunpack.c.l.b16 %v162
  %v668 = vunpack.c.h.b16 %v162
  %v669 = vunpack.c.l.b16 %v163
  %v670 = vunpack.c.h.b16 %v163
  %v671 = vunpack.c.l.b16 %v164
  %v672 = vunpack.c.h.b16 %v164
  %v673 = vunpack.c.l.b16 %v165
  %v674 = vunpack.c.h.b16 %v165
  %v675 = vunpack.c.l.b16 %v166
  %v676 = vunpack.c.h.b16 %v166
  %v677 = vunpack.c.l.b16 %v167
  %v678 = vunpack.c.h.b16 %v167
  %v679 = vunpack.c.l.b16 %v168
  %v680 = vunpack.c.h.b16 %v168
  %v681 = vunpack.c.l.b16 %v169
  %v682 = vunpack.c.h.b16 %v169
  %v683 = vunpack.c.l.b16 %v170
  %v684 = vunpack.c.h.b16 %v170
  %v685 = vunpack.c.l.b16 %v171
  %v686 = vunpack.c.h.b16 %v171
  %v687 = vunpack.c.l.b16 %v172
  %v688 = vunpack.c.h.b16 %v172
  %v689 = vunpack.c.l.b16 %v173
  %v690 = vunpack.c.h.b16 %v173
  %v691 = vunpack.c.l.b16 %v174
  %v692 = vunpack.c.h.b16 %v174
  %v693 = vunpack.c.l.b16 %v175
  %v694 = vunpack.c.h.b16 %v175
  %v695 = vunpack.c.l.b16 %v176
  %v696 = vunpack.c.h.b16 %v176
  %v697 = vunpack.c.l.b16 %v177
  %v698 = vunpack.c.h.b16 %v177
  %v699 = vunpack.c.l.b16 %v178
  %v700 = vunpack.c.h.b16 %v178
  %v701 = vunpack.c.l.b16 %v179
  %v702 = vunpack.c.h.b16 %v179
  %v703 = vunpack.c.l.b16 %v180
  %v704 = vunpack.c.h.b16 %v180
  %v705 = vpack.c.b16 %v419, %v417
  %v706 = vpack.c.b16 %v420, %v418
  %v707 = vpack.c.b16 %v423, %v421
  %v708 = vpack.c.b16 %v424, %v422
  %v709 = vpack.c.b16 %v427, %v425
  %v710 = vpack.c.b16 %v428, %v426
  %v711 = vpack.c.b16 %v431, %v429
  %v712 = vpack.c.b16 %v432, %v430
  %v713 = vpack.c.b16 %v435, %v433
  %v714 = vpack.c.b16 %v436, %v434
  %v715 = vpack.c.b16 %v439, %v437
  %v716 = vpack.c.b16 %v440, %v438
  %v717 = vpack.c.b16 %v443, %v441
  %v718 = vpack.c.b16 %v444, %v442
  %v719 = vpack.c.b16 %v447, %v445
  %v720 = vpack.c.b16 %v448, %v446
  %v721 = vpack.c.b16 %v451, %v449
  %v722 = vpack.c.b16 %v452, %v450
  %v723 = vpack.c.b16 %v455, %v453
  %v724 = vpack.c.b16 %v456, %v454
  %v725 = vpack.c.b16 %v459, %v457
  %v726 = vpack.c.b16 %v460, %v458
  %v727 = vpack.c.b16 %v463, %v461
  %v728 = vpack.c.b16 %v464, %v462
  %v729 = vpack.c.b16 %v467, %v465
  %v730 = vpack.c.b16 %v468, %v466
  %v731 = vpack.c.b16 %v471, %v469
  %v732 = vpack.c.b16 %v472, %v470
  %v733 = vpack.c.b16 %v475, %v473
  %v734 = vpack.c.b16 %v476, %v474
  %v735 = vpack.c.b16 %v479, %v477
  %v736 = vpack.c.b16 %v480, %v478
  %v737 = vpack.c.b16 %v483, %v481
  %v738 = vpack.c.b16 %v484, %v482
  %v739 = vpack.c.b16 %v487, %v485
  %v740 = vpack.c.b16 %v488, %v486
  %v741 = vpack.c.b16 %v491, %v489
  %v742 = vpack.c.b16 %v492, %v490
  %v743 = vpack.c.b16 %v495, %v493
  %v744 = vpack.c.b16 %v496, %v494
  %v745 = vpack.c.b16 %v499, %v497
  %v746 = vpack.c.b16 %v500, %v498
  %v747 = vpack.c.b16 %v503, %v501
  %v748 = vpack.c.b16 %v504, %v502
  %v749 = vpack.c.b16 %v507, %v505
  %v750 = vpack.c.b16 %v508, %v506
  %v751 = vpack.c.b16 %v511, %v509
  %v752 = vpack.c.b16 %v512, %v510
  %v753 = vpack.c.b16 %v515, %v513
  %v754 = vpack.c.b16 %v516, %v514
  %v755 = vpack.c.b16 %v519, %v517
  %v756 = vpack.c.b16 %v520, %v518
  %v757 = vpack.c.b16 %v523, %v521
  %v758 = vpack.c.b16 %v524, %v522
  %v759 = vpack.c.b16 %v527, %v525
  %v760 = vpack.c.b16 %v528, %v526
  %v761 = vpack.c.b16 %v531, %v529
  %v762 = vpack.c.b16 %v532, %v530
  %v763 = vpack.c.b16 %v535, %v533
  %v764 = vpack.c.b16 %v536, %v534
  %v765 = vpack.c.b16 %v539, %v537
  %v766 = vpack.c.b16 %v540, %v538
  %v767 = vpack.c.b16 %v543, %v541
  %v768 = vpack.c.b16 %v544, %v542
  %v769 = vpack.c.b16 %v547, %v545
  %v770 = vpack.c.b16 %v548, %v546
  %v771 = vpack.c.b16 %v551, %v549
  %v772 = vpack.c.b16 %v552, %v550
  %v773 = vpack.c.b16 %v555, %v553
  %v774 = vpack.c.b16 %v556, %v554
  %v775 = vpack.c.b16 %v559, %v557
  %v776 = vpack.c.b16 %v560, %v558
  %v777 = vpack.c.b16 %v563, %v561
  %v778 = vpack.c.b16 %v564, %v562
  %v779 = vpack.c.b16 %v567, %v565
  %v780 = vpack.c.b16 %v568, %v566
  %v781 = vpack.c.b16 %v571, %v569
  %v782 = vpack.c.b16 %v572, %v570
  %v783 = vpack.c.b16 %v575, %v573
  %v784 = vpack.c.b16 %v576, %v574
  %v785 = vpack.c.b16 %v579, %v577
  %v786 = vpack.c.b16 %v580, %v578
  %v787 = vpack.c.b16 %v583, %v581
  %v788 = vpack.c.b16 %v584, %v582
  %v789 = vpack.c.b16 %v587, %v585
  %v790 = vpack.c.b16 %v588, %v586
  %v791 = vpack.c.b16 %v591, %v589
  %v792 = vpack.c.b16 %v592, %v590
  %v793 = vpack.c.b16 %v595, %v593
  %v794 = vpack.c.b16 %v596, %v594
  %v795 = vpack.c.b16 %v599, %v597
  %v796 = vpack.c.b16 %v600, %v598
  %v797 = vpack.c.b16 %v603, %v601
  %v798 = vpack.c.b16 %v604, %v602
  %v799 = vpack.c.b16 %v607, %v605
  %v800 = vpack.c.b16 %v608, %v606
  %v801 = vpack.c.b16 %v611, %v609
  %v802 = vpack.c.b16 %v612, %v610
  %v803 = vpack.c.b16 %v615, %v613
  %v804 = vpack.c.b16 %v616, %v614
  %v805 = vpack.c.b16 %v619, %v617
  %v806 = vpack.c.b16 %v620, %v618
  %v807 = vpack.c.b16 %v623, %v621
  %v808 = vpack.c.b16 %v624, %v622
  %v809 = vpack.c.b16 %v627, %v625
  %v810 = vpack.c.b16 %v628, %v626
  %v811 = vpack.c.b16 %v631, %v629
  %v812 = vpack.c.b16 %v632, %v630
  %v813 = vpack.c.b16 %v635, %v633
  %v814 = vpack.c.b16 %v636, %v634
  %v815 = vpack.c.b16 %v639, %v637
  %v816 = vpack.c.b16 %v640, %v638
  %v817 = vpack.c.b16 %v643, %v641
  %v818 = vpack.c.b16 %v644, %v642
  %v819 = vpack.c.b16 %v647, %v645
  %v820 = vpack.c.b16 %v648, %v646
  %v821 = vpack.c.b16 %v651, %v649
  %v822 = vpack.c.b16 %v652, %v650
  %v823 = vpack.c.b16 %v655, %v653
  %v824 = vpack.c.b16 %v656, %v654
  %v825 = vpack.c.b16 %v659, %v657
  %v826 = vpack.c.b16 %v660, %v658
  %v827 = vpack.c.b16 %v663, %v661
  %v828 = vpack.c.b16 %v664, %v662
  %v829 = vpack.c.b16 %v667, %v665
  %v830 = vpack.c.b16 %v668, %v666
  %v831 = vpack.c.b16 %v671, %v669
  %v832 = vpack.c.b16 %v672, %v670
  %v833 = vpack.c.b16 %v675, %v673
  %v834 = vpack.c.b16 %v676, %v674
  %v835 = vpack.c.b16 %v679, %v677
  %v836 = vpack.c.b16 %v680, %v678
  %v837 = vpack.c.b16 %v683, %v681
  %v838 = vpack.c.b16 %v684, %v682
  %v839 = vpack.c.b16 %v687, %v685
  %v840 = vpack.c.b16 %v688, %v686
  %v841 = vpack.c.b16 %v691, %v689
  %v842 = vpack.c.b16 %v692, %v690
  %v843 = vpack.c.b16 %v695, %v693
  %v844 = vpack.c.b16 %v696, %v694
  %v845 = vpack.c.b16 %v699, %v697
  %v846 = vpack.c.b16 %v700, %v698
  %v847 = vpack.c.b16 %v703, %v701
  %v848 = vpack.c.b16 %v704, %v702
  %993 = vmatpush.bf16.msra.mxu0 %v719
  %994 = vmatpush.bf16.msra.mxu0 %v717
  %995 = vmatpush.bf16.msra.mxu0 %v715
  %996 = vmatpush.bf16.msra.mxu0 %v713
  %997 = vmatpush.bf16.msra.mxu0 %v711
  %998 = vmatpush.bf16.msra.mxu0 %v709
  %999 = vmatpush.bf16.msra.mxu0 %v707
  %1000 = vmatpush.bf16.msra.mxu0 %v705
  %1001 = vmatmul.bf16.gmra.mxu0 %v237
  %v1002 = vpop.f32.mrf.mxu0
  %v1003 = vadd.f32 0.0, %v1002
  %v1004 = vpop.f32.mrf.mxu0
  %v1005 = vadd.f32 0.0, %v1004
  %1006 = vmatmul.bf16.gmra.mxu0 %v246
  %v1007 = vpop.f32.mrf.mxu0
  %v1008 = vadd.f32 0.0, %v1007
  %v1009 = vpop.f32.mrf.mxu0
  %v1010 = vadd.f32 0.0, %v1009
  %1011 = vdwg.mxu0
  %1012 = vmatpush.bf16.msra.mxu0 %v735
  %1013 = vmatpush.bf16.msra.mxu0 %v733
  %1014 = vmatpush.bf16.msra.mxu0 %v731
  %1015 = vmatpush.bf16.msra.mxu0 %v729
  %1016 = vmatpush.bf16.msra.mxu0 %v727
  %1017 = vmatpush.bf16.msra.mxu0 %v725
  %1018 = vmatpush.bf16.msra.mxu0 %v723
  %1019 = vmatpush.bf16.msra.mxu0 %v721
  %1020 = vmatmul.bf16.gmra.mxu0 %v238
  %v1021 = vpop.f32.mrf.mxu0
  %v1022 = vadd.f32 %v1003, %v1021
  %v1023 = vpop.f32.mrf.mxu0
  %v1024 = vadd.f32 %v1005, %v1023
  %1025 = vmatmul.bf16.gmra.mxu0 %v247
  %v1026 = vpop.f32.mrf.mxu0
  %v1027 = vadd.f32 %v1008, %v1026
  %v1028 = vpop.f32.mrf.mxu0
  %v1029 = vadd.f32 %v1010, %v1028
  %1030 = vdwg.mxu0
  %1031 = vmatpush.bf16.msra.mxu0 %v751
  %1032 = vmatpush.bf16.msra.mxu0 %v749
  %1033 = vmatpush.bf16.msra.mxu0 %v747
  %1034 = vmatpush.bf16.msra.mxu0 %v745
  %1035 = vmatpush.bf16.msra.mxu0 %v743
  %1036 = vmatpush.bf16.msra.mxu0 %v741
  %1037 = vmatpush.bf16.msra.mxu0 %v739
  %1038 = vmatpush.bf16.msra.mxu0 %v737
  %1039 = vmatmul.bf16.gmra.mxu0 %v239
  %v1040 = vpop.f32.mrf.mxu0
  %v1041 = vadd.f32 %v1022, %v1040
  %v1042 = vpop.f32.mrf.mxu0
  %v1043 = vadd.f32 %v1024, %v1042
  %1044 = vmatmul.bf16.gmra.mxu0 %v248
  %v1045 = vpop.f32.mrf.mxu0
  %v1046 = vadd.f32 %v1027, %v1045
  %v1047 = vpop.f32.mrf.mxu0
  %v1048 = vadd.f32 %v1029, %v1047
  %1049 = vdwg.mxu0
  %1050 = vmatpush.bf16.msra.mxu0 %v767
  %1051 = vmatpush.bf16.msra.mxu0 %v765
  %1052 = vmatpush.bf16.msra.mxu0 %v763
  %1053 = vmatpush.bf16.msra.mxu0 %v761
  %1054 = vmatpush.bf16.msra.mxu0 %v759
  %1055 = vmatpush.bf16.msra.mxu0 %v757
  %1056 = vmatpush.bf16.msra.mxu0 %v755
  %1057 = vmatpush.bf16.msra.mxu0 %v753
  %1058 = vmatmul.bf16.gmra.mxu0 %v240
  %v1059 = vpop.f32.mrf.mxu0
  %v1060 = vadd.f32 %v1041, %v1059
  %v1061 = vpop.f32.mrf.mxu0
  %v1062 = vadd.f32 %v1043, %v1061
  %1063 = vmatmul.bf16.gmra.mxu0 %v249
  %v1064 = vpop.f32.mrf.mxu0
  %v1065 = vadd.f32 %v1046, %v1064
  %v1066 = vpop.f32.mrf.mxu0
  %v1067 = vadd.f32 %v1048, %v1066
  %1068 = vdwg.mxu0
  %1069 = vmatpush.bf16.msra.mxu0 %v783
  %1070 = vmatpush.bf16.msra.mxu0 %v781
  %1071 = vmatpush.bf16.msra.mxu0 %v779
  %1072 = vmatpush.bf16.msra.mxu0 %v777
  %1073 = vmatpush.bf16.msra.mxu0 %v775
  %1074 = vmatpush.bf16.msra.mxu0 %v773
  %1075 = vmatpush.bf16.msra.mxu0 %v771
  %1076 = vmatpush.bf16.msra.mxu0 %v769
  %1077 = vmatmul.bf16.gmra.mxu0 %v241
  %v1078 = vpop.f32.mrf.mxu0
  %v1079 = vadd.f32 %v1060, %v1078
  %v1080 = vpop.f32.mrf.mxu0
  %v1081 = vadd.f32 %v1062, %v1080
  %1082 = vmatmul.bf16.gmra.mxu0 %v250
  %v1083 = vpop.f32.mrf.mxu0
  %v1084 = vadd.f32 %v1065, %v1083
  %v1085 = vpop.f32.mrf.mxu0
  %v1086 = vadd.f32 %v1067, %v1085
  %1087 = vdwg.mxu0
  %1088 = vmatpush.bf16.msra.mxu0 %v799
  %1089 = vmatpush.bf16.msra.mxu0 %v797
  %1090 = vmatpush.bf16.msra.mxu0 %v795
  %1091 = vmatpush.bf16.msra.mxu0 %v793
  %1092 = vmatpush.bf16.msra.mxu0 %v791
  %1093 = vmatpush.bf16.msra.mxu0 %v789
  %1094 = vmatpush.bf16.msra.mxu0 %v787
  %1095 = vmatpush.bf16.msra.mxu0 %v785
  %1096 = vmatmul.bf16.gmra.mxu0 %v242
  %v1097 = vpop.f32.mrf.mxu0
  %v1098 = vadd.f32 %v1079, %v1097
  %v1099 = vpop.f32.mrf.mxu0
  %v1100 = vadd.f32 %v1081, %v1099
  %1101 = vmatmul.bf16.gmra.mxu0 %v251
  %v1102 = vpop.f32.mrf.mxu0
  %v1103 = vadd.f32 %v1084, %v1102
  %v1104 = vpop.f32.mrf.mxu0
  %v1105 = vadd.f32 %v1086, %v1104
  %1106 = vdwg.mxu0
  %1107 = vmatpush.bf16.msra.mxu0 %v815
  %1108 = vmatpush.bf16.msra.mxu0 %v813
  %1109 = vmatpush.bf16.msra.mxu0 %v811
  %1110 = vmatpush.bf16.msra.mxu0 %v809
  %1111 = vmatpush.bf16.msra.mxu0 %v807
  %1112 = vmatpush.bf16.msra.mxu0 %v805
  %1113 = vmatpush.bf16.msra.mxu0 %v803
  %1114 = vmatpush.bf16.msra.mxu0 %v801
  %1115 = vmatmul.bf16.gmra.mxu0 %v243
  %v1116 = vpop.f32.mrf.mxu0
  %v1117 = vadd.f32 %v1098, %v1116
  %v1118 = vpop.f32.mrf.mxu0
  %v1119 = vadd.f32 %v1100, %v1118
  %1120 = vmatmul.bf16.gmra.mxu0 %v252
  %v1121 = vpop.f32.mrf.mxu0
  %v1122 = vadd.f32 %v1103, %v1121
  %v1123 = vpop.f32.mrf.mxu0
  %v1124 = vadd.f32 %v1105, %v1123
  %1125 = vdwg.mxu0
  %1126 = vmatpush.bf16.msra.mxu0 %v831
  %1127 = vmatpush.bf16.msra.mxu0 %v829
  %1128 = vmatpush.bf16.msra.mxu0 %v827
  %1129 = vmatpush.bf16.msra.mxu0 %v825
  %1130 = vmatpush.bf16.msra.mxu0 %v823
  %1131 = vmatpush.bf16.msra.mxu0 %v821
  %1132 = vmatpush.bf16.msra.mxu0 %v819
  %1133 = vmatpush.bf16.msra.mxu0 %v817
  %1134 = vmatmul.bf16.gmra.mxu0 %v244
  %v1135 = vpop.f32.mrf.mxu0
  %v1136 = vadd.f32 %v1117, %v1135
  %v1137 = vpop.f32.mrf.mxu0
  %v1138 = vadd.f32 %v1119, %v1137
  %1139 = vmatmul.bf16.gmra.mxu0 %v253
  %v1140 = vpop.f32.mrf.mxu0
  %v1141 = vadd.f32 %v1122, %v1140
  %v1142 = vpop.f32.mrf.mxu0
  %v1143 = vadd.f32 %v1124, %v1142
  %1144 = vdwg.mxu0
  %1145 = vmatpush.bf16.msra.mxu0 %v847
  %1146 = vmatpush.bf16.msra.mxu0 %v845
  %1147 = vmatpush.bf16.msra.mxu0 %v843
  %1148 = vmatpush.bf16.msra.mxu0 %v841
  %1149 = vmatpush.bf16.msra.mxu0 %v839
  %1150 = vmatpush.bf16.msra.mxu0 %v837
  %1151 = vmatpush.bf16.msra.mxu0 %v835
  %1152 = vmatpush.bf16.msra.mxu0 %v833
  %1153 = vmatmul.bf16.gmra.mxu0 %v245
  %v1154 = vpop.f32.mrf.mxu0
  %v1155 = vadd.f32 %v1136, %v1154
  %v1156 = vpop.f32.mrf.mxu0
  %v1157 = vadd.f32 %v1138, %v1156
  %1158 = vmatmul.bf16.gmra.mxu0 %v254
  %v1159 = vpop.f32.mrf.mxu0
  %v1160 = vadd.f32 %v1141, %v1159
  %v1161 = vpop.f32.mrf.mxu0
  %v1162 = vadd.f32 %v1143, %v1161
  %1163 = vdwg.mxu0
  %1164 = vmatpush.bf16.msra.mxu0 %v720
  %1165 = vmatpush.bf16.msra.mxu0 %v718
  %1166 = vmatpush.bf16.msra.mxu0 %v716
  %1167 = vmatpush.bf16.msra.mxu0 %v714
  %1168 = vmatpush.bf16.msra.mxu0 %v712
  %1169 = vmatpush.bf16.msra.mxu0 %v710
  %1170 = vmatpush.bf16.msra.mxu0 %v708
  %1171 = vmatpush.bf16.msra.mxu0 %v706
  %1172 = vmatmul.bf16.gmra.mxu0 %v237
  %v1173 = vpop.f32.mrf.mxu0
  %v1174 = vadd.f32 0.0, %v1173
  %v1175 = vpop.f32.mrf.mxu0
  %v1176 = vadd.f32 0.0, %v1175
  %1177 = vmatmul.bf16.gmra.mxu0 %v246
  %v1178 = vpop.f32.mrf.mxu0
  %v1179 = vadd.f32 0.0, %v1178
  %v1180 = vpop.f32.mrf.mxu0
  %v1181 = vadd.f32 0.0, %v1180
  %1182 = vdwg.mxu0
  %1183 = vmatpush.bf16.msra.mxu0 %v736
  %1184 = vmatpush.bf16.msra.mxu0 %v734
  %1185 = vmatpush.bf16.msra.mxu0 %v732
  %1186 = vmatpush.bf16.msra.mxu0 %v730
  %1187 = vmatpush.bf16.msra.mxu0 %v728
  %1188 = vmatpush.bf16.msra.mxu0 %v726
  %1189 = vmatpush.bf16.msra.mxu0 %v724
  %1190 = vmatpush.bf16.msra.mxu0 %v722
  %1191 = vmatmul.bf16.gmra.mxu0 %v238
  %v1192 = vpop.f32.mrf.mxu0
  %v1193 = vadd.f32 %v1174, %v1192
  %v1194 = vpop.f32.mrf.mxu0
  %v1195 = vadd.f32 %v1176, %v1194
  %1196 = vmatmul.bf16.gmra.mxu0 %v247
  %v1197 = vpop.f32.mrf.mxu0
  %v1198 = vadd.f32 %v1179, %v1197
  %v1199 = vpop.f32.mrf.mxu0
  %v1200 = vadd.f32 %v1181, %v1199
  %1201 = vdwg.mxu0
  %1202 = vmatpush.bf16.msra.mxu0 %v752
  %1203 = vmatpush.bf16.msra.mxu0 %v750
  %1204 = vmatpush.bf16.msra.mxu0 %v748
  %1205 = vmatpush.bf16.msra.mxu0 %v746
  %1206 = vmatpush.bf16.msra.mxu0 %v744
  %1207 = vmatpush.bf16.msra.mxu0 %v742
  %1208 = vmatpush.bf16.msra.mxu0 %v740
  %1209 = vmatpush.bf16.msra.mxu0 %v738
  %1210 = vmatmul.bf16.gmra.mxu0 %v239
  %v1211 = vpop.f32.mrf.mxu0
  %v1212 = vadd.f32 %v1193, %v1211
  %v1213 = vpop.f32.mrf.mxu0
  %v1214 = vadd.f32 %v1195, %v1213
  %1215 = vmatmul.bf16.gmra.mxu0 %v248
  %v1216 = vpop.f32.mrf.mxu0
  %v1217 = vadd.f32 %v1198, %v1216
  %v1218 = vpop.f32.mrf.mxu0
  %v1219 = vadd.f32 %v1200, %v1218
  %1220 = vdwg.mxu0
  %1221 = vmatpush.bf16.msra.mxu0 %v768
  %1222 = vmatpush.bf16.msra.mxu0 %v766
  %1223 = vmatpush.bf16.msra.mxu0 %v764
  %1224 = vmatpush.bf16.msra.mxu0 %v762
  %1225 = vmatpush.bf16.msra.mxu0 %v760
  %1226 = vmatpush.bf16.msra.mxu0 %v758
  %1227 = vmatpush.bf16.msra.mxu0 %v756
  %1228 = vmatpush.bf16.msra.mxu0 %v754
  %1229 = vmatmul.bf16.gmra.mxu0 %v240
  %v1230 = vpop.f32.mrf.mxu0
  %v1231 = vadd.f32 %v1212, %v1230
  %v1232 = vpop.f32.mrf.mxu0
  %v1233 = vadd.f32 %v1214, %v1232
  %1234 = vmatmul.bf16.gmra.mxu0 %v249
  %v1235 = vpop.f32.mrf.mxu0
  %v1236 = vadd.f32 %v1217, %v1235
  %v1237 = vpop.f32.mrf.mxu0
  %v1238 = vadd.f32 %v1219, %v1237
  %1239 = vdwg.mxu0
  %1240 = vmatpush.bf16.msra.mxu0 %v784
  %1241 = vmatpush.bf16.msra.mxu0 %v782
  %1242 = vmatpush.bf16.msra.mxu0 %v780
  %1243 = vmatpush.bf16.msra.mxu0 %v778
  %1244 = vmatpush.bf16.msra.mxu0 %v776
  %1245 = vmatpush.bf16.msra.mxu0 %v774
  %1246 = vmatpush.bf16.msra.mxu0 %v772
  %1247 = vmatpush.bf16.msra.mxu0 %v770
  %1248 = vmatmul.bf16.gmra.mxu0 %v241
  %v1249 = vpop.f32.mrf.mxu0
  %v1250 = vadd.f32 %v1231, %v1249
  %v1251 = vpop.f32.mrf.mxu0
  %v1252 = vadd.f32 %v1233, %v1251
  %1253 = vmatmul.bf16.gmra.mxu0 %v250
  %v1254 = vpop.f32.mrf.mxu0
  %v1255 = vadd.f32 %v1236, %v1254
  %v1256 = vpop.f32.mrf.mxu0
  %v1257 = vadd.f32 %v1238, %v1256
  %1258 = vdwg.mxu0
  %1259 = vmatpush.bf16.msra.mxu0 %v800
  %1260 = vmatpush.bf16.msra.mxu0 %v798
  %1261 = vmatpush.bf16.msra.mxu0 %v796
  %1262 = vmatpush.bf16.msra.mxu0 %v794
  %1263 = vmatpush.bf16.msra.mxu0 %v792
  %1264 = vmatpush.bf16.msra.mxu0 %v790
  %1265 = vmatpush.bf16.msra.mxu0 %v788
  %1266 = vmatpush.bf16.msra.mxu0 %v786
  %1267 = vmatmul.bf16.gmra.mxu0 %v242
  %v1268 = vpop.f32.mrf.mxu0
  %v1269 = vadd.f32 %v1250, %v1268
  %v1270 = vpop.f32.mrf.mxu0
  %v1271 = vadd.f32 %v1252, %v1270
  %1272 = vmatmul.bf16.gmra.mxu0 %v251
  %v1273 = vpop.f32.mrf.mxu0
  %v1274 = vadd.f32 %v1255, %v1273
  %v1275 = vpop.f32.mrf.mxu0
  %v1276 = vadd.f32 %v1257, %v1275
  %1277 = vdwg.mxu0
  %1278 = vmatpush.bf16.msra.mxu0 %v816
  %1279 = vmatpush.bf16.msra.mxu0 %v814
  %1280 = vmatpush.bf16.msra.mxu0 %v812
  %1281 = vmatpush.bf16.msra.mxu0 %v810
  %1282 = vmatpush.bf16.msra.mxu0 %v808
  %1283 = vmatpush.bf16.msra.mxu0 %v806
  %1284 = vmatpush.bf16.msra.mxu0 %v804
  %1285 = vmatpush.bf16.msra.mxu0 %v802
  %1286 = vmatmul.bf16.gmra.mxu0 %v243
  %v1287 = vpop.f32.mrf.mxu0
  %v1288 = vadd.f32 %v1269, %v1287
  %v1289 = vpop.f32.mrf.mxu0
  %v1290 = vadd.f32 %v1271, %v1289
  %1291 = vmatmul.bf16.gmra.mxu0 %v252
  %v1292 = vpop.f32.mrf.mxu0
  %v1293 = vadd.f32 %v1274, %v1292
  %v1294 = vpop.f32.mrf.mxu0
  %v1295 = vadd.f32 %v1276, %v1294
  %1296 = vdwg.mxu0
  %1297 = vmatpush.bf16.msra.mxu0 %v832
  %1298 = vmatpush.bf16.msra.mxu0 %v830
  %1299 = vmatpush.bf16.msra.mxu0 %v828
  %1300 = vmatpush.bf16.msra.mxu0 %v826
  %1301 = vmatpush.bf16.msra.mxu0 %v824
  %1302 = vmatpush.bf16.msra.mxu0 %v822
  %1303 = vmatpush.bf16.msra.mxu0 %v820
  %1304 = vmatpush.bf16.msra.mxu0 %v818
  %1305 = vmatmul.bf16.gmra.mxu0 %v244
  %v1306 = vpop.f32.mrf.mxu0
  %v1307 = vadd.f32 %v1288, %v1306
  %v1308 = vpop.f32.mrf.mxu0
  %v1309 = vadd.f32 %v1290, %v1308
  %1310 = vmatmul.bf16.gmra.mxu0 %v253
  %v1311 = vpop.f32.mrf.mxu0
  %v1312 = vadd.f32 %v1293, %v1311
  %v1313 = vpop.f32.mrf.mxu0
  %v1314 = vadd.f32 %v1295, %v1313
  %1315 = vdwg.mxu0
  %1316 = vmatpush.bf16.msra.mxu0 %v848
  %1317 = vmatpush.bf16.msra.mxu0 %v846
  %1318 = vmatpush.bf16.msra.mxu0 %v844
  %1319 = vmatpush.bf16.msra.mxu0 %v842
  %1320 = vmatpush.bf16.msra.mxu0 %v840
  %1321 = vmatpush.bf16.msra.mxu0 %v838
  %1322 = vmatpush.bf16.msra.mxu0 %v836
  %1323 = vmatpush.bf16.msra.mxu0 %v834
  %1324 = vmatmul.bf16.gmra.mxu0 %v245
  %v1325 = vpop.f32.mrf.mxu0
  %v1326 = vadd.f32 %v1307, %v1325
  %v1327 = vpop.f32.mrf.mxu0
  %v1328 = vadd.f32 %v1309, %v1327
  %1329 = vmatmul.bf16.gmra.mxu0 %v254
  %v1330 = vpop.f32.mrf.mxu0
  %v1331 = vadd.f32 %v1312, %v1330
  %v1332 = vpop.f32.mrf.mxu0
  %v1333 = vadd.f32 %v1314, %v1332
  %1334 = vdwg.mxu0
  %v1335 = vmul.f32 %v1155, %v1155
  %v1336 = vmul.f32 %v1157, %v1157
  %v1337 = vmul.f32 %v1160, %v1160
  %v1338 = vmul.f32 %v1162, %v1162
  %1343 = vrot.lane.b32.xlu0 %v1155, 64
  %v1344 = vpop.permute.xlu0 %1343
  %1345 = vrot.lane.b32.xlu0 %v1157, 64
  %v1346 = vpop.permute.xlu0 %1345
  %1347 = vrot.lane.b32.xlu0 %v1160, 64
  %v1348 = vpop.permute.xlu0 %1347
  %1349 = vrot.lane.b32.xlu0 %v1162, 64
  %v1350 = vpop.permute.xlu0 %1349
  %v1355 = vadd.f32 %v1155, %v1344
  %v1356 = vadd.f32 %v1157, %v1346
  %v1357 = vadd.f32 %v1160, %v1348
  %v1358 = vadd.f32 %v1162, %v1350
  %1363 = vrot.lane.b32.xlu0 %v1335, 64
  %v1364 = vpop.permute.xlu0 %1363
  %1365 = vrot.lane.b32.xlu0 %v1336, 64
  %v1366 = vpop.permute.xlu0 %1365
  %1367 = vrot.lane.b32.xlu0 %v1337, 64
  %v1368 = vpop.permute.xlu0 %1367
  %1369 = vrot.lane.b32.xlu0 %v1338, 64
  %v1370 = vpop.permute.xlu0 %1369
  %v1375 = vadd.f32 %v1335, %v1364
  %v1376 = vadd.f32 %v1336, %v1366
  %v1377 = vadd.f32 %v1337, %v1368
  %v1378 = vadd.f32 %v1338, %v1370
  %v1379 = vadd.f32 %v1355, %v1326
  %v1380 = vadd.f32 %v1356, %v1328
  %v1381 = vadd.f32 %v1357, %v1331
  %v1382 = vadd.f32 %v1358, %v1333
  %v1383 = vmul.f32 %v1326, %v1326
  %v1384 = vmul.f32 %v1328, %v1328
  %v1385 = vmul.f32 %v1331, %v1331
  %v1386 = vmul.f32 %v1333, %v1333
  %v1387 = vadd.f32 %v1375, %v1383
  %v1388 = vadd.f32 %v1376, %v1384
  %v1389 = vadd.f32 %v1377, %v1385
  %v1390 = vadd.f32 %v1378, %v1386
  %1395 = vrot.lane.b32.xlu0 %v1326, 64
  %v1396 = vpop.permute.xlu0 %1395
  %1397 = vrot.lane.b32.xlu0 %v1328, 64
  %v1398 = vpop.permute.xlu0 %1397
  %1399 = vrot.lane.b32.xlu0 %v1331, 64
  %v1400 = vpop.permute.xlu0 %1399
  %1401 = vrot.lane.b32.xlu0 %v1333, 64
  %v1402 = vpop.permute.xlu0 %1401
  %v1407 = vadd.f32 %v1379, %v1396
  %v1408 = vadd.f32 %v1380, %v1398
  %v1409 = vadd.f32 %v1381, %v1400
  %v1410 = vadd.f32 %v1382, %v1402
  %1415 = vrot.lane.b32.xlu0 %v1383, 64
  %v1416 = vpop.permute.xlu0 %1415
  %1417 = vrot.lane.b32.xlu0 %v1384, 64
  %v1418 = vpop.permute.xlu0 %1417
  %1419 = vrot.lane.b32.xlu0 %v1385, 64
  %v1420 = vpop.permute.xlu0 %1419
  %1421 = vrot.lane.b32.xlu0 %v1386, 64
  %v1422 = vpop.permute.xlu0 %1421
  %v1427 = vadd.f32 %v1387, %v1416
  %v1428 = vadd.f32 %v1388, %v1418
  %v1429 = vadd.f32 %v1389, %v1420
  %v1430 = vadd.f32 %v1390, %v1422
  %vm1431 = vcmask 523264
  %v1432 = vsel %vm1431, %v1407, 0.0
  %v1433 = vsel %vm1431, %v1408, 0.0
  %v1434 = vadd.f32 %v1432, %v1433
  %v1435 = vsel %vm1431, %v1409, 0.0
  %v1436 = vadd.f32 %v1434, %v1435
  %v1437 = vsel %vm1431, %v1410, 0.0
  %v1438 = vadd.f32 %v1436, %v1437
  %v1439 = vrot.slane %v1438, 4
  %v1440 = vadd.f32 %v1438, %v1439
  %v1441 = vrot.slane %v1440, 2
  %v1442 = vadd.f32 %v1440, %v1441
  %v1443 = vrot.slane %v1442, 1
  %v1444 = vadd.f32 %v1442, %v1443
  %v1445 = vmul.f32 %v1444, 0.0078125
  %v1446 = vsel %vm1431, %v1427, 0.0
  %v1447 = vsel %vm1431, %v1428, 0.0
  %v1448 = vadd.f32 %v1446, %v1447
  %v1449 = vsel %vm1431, %v1429, 0.0
  %v1450 = vadd.f32 %v1448, %v1449
  %v1451 = vsel %vm1431, %v1430, 0.0
  %v1452 = vadd.f32 %v1450, %v1451
  %v1453 = vrot.slane %v1452, 4
  %v1454 = vadd.f32 %v1452, %v1453
  %v1455 = vrot.slane %v1454, 2
  %v1456 = vadd.f32 %v1454, %v1455
  %v1457 = vrot.slane %v1456, 1
  %v1458 = vadd.f32 %v1456, %v1457
  %v1459 = vmul.f32 %v1458, 0.0078125
  %v1460 = vmul.f32 %v1445, %v1445
  %v1461 = vsub.f32 %v1459, %v1460
  %v1462 = vadd.f32 %v1461, 1e-05
  %v1463 = vrsqrt.pop %v1462
  %v1464 = vmul.f32 %v1463, %v1462
  %v1465 = vmul.f32 %v1464, %v1463
  %v1466 = vmul.f32 0.5, %v1465
  %v1467 = vsub.f32 1.5, %v1466
  %v1468 = vmul.f32 %v1463, %v1467
  %vm1469 = vweird.f32 %v1462
  %vm1470 = vweird.f32 %v1463
  %vm1471 = vmor %vm1469, %vm1470
  %v1472 = vsel %vm1471, %v1463, %v1468
  %v1473 = vld [vmem:[%s2] sm:$0x1]
  %v1474 = vmul.f32 %v1472, %v1473
  %v1475 = vld [vmem:[%s3] sm:$0x1]
  %v1476 = vmul.f32 %v1445, %v1474
  %v1477 = vsub.f32 %v1475, %v1476
  %1479 = vrot.lane.b32.xlu0 %v1474, 64
  %v1480 = vpop.permute.xlu0 %1479
  %v1482 = vsel %vm1431, %v1474, %v1480
  %v1484 = vperm.slane %v1477, 0
  %1485 = vrot.lane.b32.xlu0 %v1484, 64
  %v1486 = vpop.permute.xlu0 %1485
  %v1488 = vsel %vm1431, %v1477, %v1486
  %v1489 = vperm.slane %v1482, 0
  %v1490 = vmul.f32 %v1155, %v1489
  %v1491 = vmul.f32 %v1326, %v1489
  %v1492 = vmul.f32 %v1157, %v1489
  %v1493 = vmul.f32 %v1328, %v1489
  %v1494 = vmul.f32 %v1160, %v1489
  %v1495 = vmul.f32 %v1331, %v1489
  %v1496 = vmul.f32 %v1162, %v1489
  %v1497 = vmul.f32 %v1333, %v1489
  %v1498 = vperm.slane %v1488, 0
  %v1499 = vadd.f32 %v1490, %v1498
  %v1500 = vadd.f32 %v1491, %v1498
  %v1501 = vadd.f32 %v1492, %v1498
  %v1502 = vadd.f32 %v1493, %v1498
  %v1503 = vadd.f32 %v1494, %v1498
  %v1504 = vadd.f32 %v1495, %v1498
  %v1505 = vadd.f32 %v1496, %v1498
  %v1506 = vadd.f32 %v1497, %v1498
  %v1507 = vmax.f32 %v1499, 0.0
  %v1508 = vmax.f32 %v1500, 0.0
  %v1509 = vmax.f32 %v1501, 0.0
  %v1510 = vmax.f32 %v1502, 0.0
  %v1511 = vmax.f32 %v1503, 0.0
  %v1512 = vmax.f32 %v1504, 0.0
  %v1513 = vmax.f32 %v1505, 0.0
  %v1514 = vmax.f32 %v1506, 0.0
  %v1515 = vpack.c.bf16 %v1508, %v1507
  %v1516 = vpack.c.bf16 %v1510, %v1509
  %v1517 = vpack.c.bf16 %v1512, %v1511
  %v1518 = vpack.c.bf16 %v1514, %v1513
  %1519 = vst [vmem:[%s4] sm:$0xff] %v1515
  %1520 = vst [vmem:[%s4 + $0x8] sm:$0xff] %v1516
  %1521 = vst [vmem:[%s4 + $0x10] sm:$0xff] %v1517
  %1522 = vst [vmem:[%s4 + $0x18] sm:$0xff] %v1518
  // Predicated region
  $region18: #{generator_forward.6} parent=0 // pred_check
    _
  $region19: #{generator_forward.6} parent=0 // pred_check_branch
    %1524 = sbr.rel (0) target = $region21
  $region20: #{generator_forward.6} parent=0 // pred_region
    _
  $region21: #{generator_forward.6} parent=0 // pred_fallthru
    _
  // Predicated region
  $region22: #{generator_forward.6} parent=0 // pred_check
    _
  $region23: #{generator_forward.6} parent=0 // pred_check_branch
    %1526 = sbr.rel (0) target = $region25
  $region24: #{generator_forward.6} parent=0 // pred_region
    _
  $region25: #{generator_forward.6} parent=0 // pred_fallthru
    _

// kernel: generator_forward.7
$region0: #{generator_forward.7}
  #allocation0 [shape = 'u32[]', space=smem, size = 0x4, offset = 0x4, fixed_abs, tag = 'smem constant byte address 0x4 - core index']
  #allocation1 [shape = 'u32[72,128]{1,0:T(1,128)}', space=vmem, size = 0x9000, scoped, tag = 'internal scratch']
  %s0 = inlined_call_operand.vmem [shape: bf16[128,576], index: 0, kind: input, shape index: {}]
  %s1 = inlined_call_operand.vmem [shape: bf16[576,128], index: 1, kind: input, shape index: {}]
  %s2 = inlined_call_operand.vmem [shape: f32[1,32], index: 2, kind: input, shape index: {}]
  %s3 = inlined_call_operand.vmem [shape: f32[1,32], index: 3, kind: input, shape index: {}]
  %s4 = inlined_call_operand.vmem [shape: bf16[128,128], index: 4, kind: output, shape index: {}]
  %s5 = sld [smem:[#allocation0]]
  $region26: #{generator_forward.7} parent=0
    _
  %s7 = ssub.s32 1, %s5
  %s8 = scalar_select 0, %s7, %s5
  // Predicated region
  $region2: #{generator_forward.7} parent=0 // pred_check
    _
  $region3: #{generator_forward.7} parent=0 // pred_check_branch
    %10 = sbr.rel (0) target = $region5
  $region4: #{generator_forward.7} parent=0 // pred_region
    _
  $region5: #{generator_forward.7} parent=0 // pred_fallthru
    _
  // Predicated region
  $region6: #{generator_forward.7} parent=0 // pred_check
    _
  $region7: #{generator_forward.7} parent=0 // pred_check_branch
    %12 = sbr.rel (0) target = $region9
  $region8: #{generator_forward.7} parent=0 // pred_region
    _
  $region9: #{generator_forward.7} parent=0 // pred_fallthru
    _
  // Predicated region
  $region10: #{generator_forward.7} parent=0 // pred_check
    _
  $region11: #{generator_forward.7} parent=0 // pred_check_branch
    %14 = sbr.rel (0) target = $region13
  $region12: #{generator_forward.7} parent=0 // pred_region
    _
  $region13: #{generator_forward.7} parent=0 // pred_fallthru
    _
  // Predicated region
  $region14: #{generator_forward.7} parent=0 // pred_check
    _
  $region15: #{generator_forward.7} parent=0 // pred_check_branch
    %16 = sbr.rel (0) target = $region17
  $region16: #{generator_forward.7} parent=0 // pred_region
    _
  $region17: #{generator_forward.7} parent=0 // pred_fallthru
    _
  %v18 = vld [vmem:[%s0] sm:$0xff]
  %v19 = vld [vmem:[%s0 + $0x8] sm:$0xff]
  %v20 = vld [vmem:[%s0 + $0x10] sm:$0xf]
  %v21 = vld [vmem:[%s0 + $0x14] sm:$0xff]
  %v22 = vld [vmem:[%s0 + $0x1c] sm:$0xff]
  %v23 = vld [vmem:[%s0 + $0x24] sm:$0xf]
  %v24 = vld [vmem:[%s0 + $0x28] sm:$0xff]
  %v25 = vld [vmem:[%s0 + $0x30] sm:$0xff]
  %v26 = vld [vmem:[%s0 + $0x38] sm:$0xf]
  %v27 = vld [vmem:[%s0 + $0x3c] sm:$0xff]
  %v28 = vld [vmem:[%s0 + $0x44] sm:$0xff]
  %v29 = vld [vmem:[%s0 + $0x4c] sm:$0xf]
  %v30 = vld [vmem:[%s0 + $0x50] sm:$0xff]
  %v31 = vld [vmem:[%s0 + $0x58] sm:$0xff]
  %v32 = vld [vmem:[%s0 + $0x60] sm:$0xf]
  %v33 = vld [vmem:[%s0 + $0x64] sm:$0xff]
  %v34 = vld [vmem:[%s0 + $0x6c] sm:$0xff]
  %v35 = vld [vmem:[%s0 + $0x74] sm:$0xf]
  %v36 = vld [vmem:[%s0 + $0x78] sm:$0xff]
  %v37 = vld [vmem:[%s0 + $0x80] sm:$0xff]
  %v38 = vld [vmem:[%s0 + $0x88] sm:$0xf]
  %v39 = vld [vmem:[%s0 + $0x8c] sm:$0xff]
  %v40 = vld [vmem:[%s0 + $0x94] sm:$0xff]
  %v41 = vld [vmem:[%s0 + $0x9c] sm:$0xf]
  %v42 = vld [vmem:[%s0 + $0xa0] sm:$0xff]
  %v43 = vld [vmem:[%s0 + $0xa8] sm:$0xff]
  %v44 = vld [vmem:[%s0 + $0xb0] sm:$0xf]
  %v45 = vld [vmem:[%s0 + $0xb4] sm:$0xff]
  %v46 = vld [vmem:[%s0 + $0xbc] sm:$0xff]
  %v47 = vld [vmem:[%s0 + $0xc4] sm:$0xf]
  %v48 = vld [vmem:[%s0 + $0xc8] sm:$0xff]
  %v49 = vld [vmem:[%s0 + $0xd0] sm:$0xff]
  %v50 = vld [vmem:[%s0 + $0xd8] sm:$0xf]
  %v51 = vld [vmem:[%s0 + $0xdc] sm:$0xff]
  %v52 = vld [vmem:[%s0 + $0xe4] sm:$0xff]
  %v53 = vld [vmem:[%s0 + $0xec] sm:$0xf]
  %v54 = vld [vmem:[%s0 + $0xf0] sm:$0xff]
  %v55 = vld [vmem:[%s0 + $0xf8] sm:$0xff]
  %v56 = vld [vmem:[%s0 + $0x100] sm:$0xf]
  %v57 = vld [vmem:[%s0 + $0x104] sm:$0xff]
  %v58 = vld [vmem:[%s0 + $0x10c] sm:$0xff]
  %v59 = vld [vmem:[%s0 + $0x114] sm:$0xf]
  %v60 = vld [vmem:[%s0 + $0x118] sm:$0xff]
  %v61 = vld [vmem:[%s0 + $0x120] sm:$0xff]
  %v62 = vld [vmem:[%s0 + $0x128] sm:$0xf]
  %v63 = vld [vmem:[%s0 + $0x12c] sm:$0xff]
  %v64 = vld [vmem:[%s0 + $0x134] sm:$0xff]
  %v65 = vld [vmem:[%s0 + $0x13c] sm:$0xf]
  %v66 = vld [vmem:[%s1] sm:$0xf]
  %v67 = vld [vmem:[%s1 + $0x4] sm:$0xf]
  %v68 = vld [vmem:[%s1 + $0x8] sm:$0xf]
  %v69 = vld [vmem:[%s1 + $0xc] sm:$0xf]
  %v70 = vld [vmem:[%s1 + $0x10] sm:$0xf]
  %v71 = vld [vmem:[%s1 + $0x14] sm:$0xf]
  %v72 = vld [vmem:[%s1 + $0x18] sm:$0xf]
  %v73 = vld [vmem:[%s1 + $0x1c] sm:$0xf]
  %v74 = vld [vmem:[%s1 + $0x20] sm:$0xf]
  %v75 = vld [vmem:[%s1 + $0x24] sm:$0xf]
  %v76 = vld [vmem:[%s1 + $0x28] sm:$0xf]
  %v77 = vld [vmem:[%s1 + $0x2c] sm:$0xf]
  %v78 = vld [vmem:[%s1 + $0x30] sm:$0xf]
  %v79 = vld [vmem:[%s1 + $0x34] sm:$0xf]
  %v80 = vld [vmem:[%s1 + $0x38] sm:$0xf]
  %v81 = vld [vmem:[%s1 + $0x3c] sm:$0xf]
  %v82 = vld [vmem:[%s1 + $0x40] sm:$0xf]
  %v83 = vld [vmem:[%s1 + $0x44] sm:$0xf]
  %v84 = vld [vmem:[%s1 + $0x48] sm:$0xf]
  %v85 = vld [vmem:[%s1 + $0x4c] sm:$0xf]
  %v86 = vld [vmem:[%s1 + $0x50] sm:$0xf]
  %v87 = vld [vmem:[%s1 + $0x54] sm:$0xf]
  %v88 = vld [vmem:[%s1 + $0x58] sm:$0xf]
  %v89 = vld [vmem:[%s1 + $0x5c] sm:$0xf]
  %v90 = vld [vmem:[%s1 + $0x60] sm:$0xf]
  %v91 = vld [vmem:[%s1 + $0x64] sm:$0xf]
  %v92 = vld [vmem:[%s1 + $0x68] sm:$0xf]
  %v93 = vld [vmem:[%s1 + $0x6c] sm:$0xf]
  %v94 = vld [vmem:[%s1 + $0x70] sm:$0xf]
  %v95 = vld [vmem:[%s1 + $0x74] sm:$0xf]
  %v96 = vld [vmem:[%s1 + $0x78] sm:$0xf]
  %v97 = vld [vmem:[%s1 + $0x7c] sm:$0xf]
  %v98 = vld [vmem:[%s1 + $0x80] sm:$0xf]
  %v99 = vld [vmem:[%s1 + $0x84] sm:$0xf]
  %v100 = vld [vmem:[%s1 + $0x88] sm:$0xf]
  %v101 = vld [vmem:[%s1 + $0x8c] sm:$0xf]
  %v102 = vld [vmem:[%s1 + $0x90] sm:$0xf]
  %v103 = vld [vmem:[%s1 + $0x94] sm:$0xf]
  %v104 = vld [vmem:[%s1 + $0x98] sm:$0xf]
  %v105 = vld [vmem:[%s1 + $0x9c] sm:$0xf]
  %v106 = vld [vmem:[%s1 + $0xa0] sm:$0xf]
  %v107 = vld [vmem:[%s1 + $0xa4] sm:$0xf]
  %v108 = vld [vmem:[%s1 + $0xa8] sm:$0xf]
  %v109 = vld [vmem:[%s1 + $0xac] sm:$0xf]
  %v110 = vld [vmem:[%s1 + $0xb0] sm:$0xf]
  %v111 = vld [vmem:[%s1 + $0xb4] sm:$0xf]
  %v112 = vld [vmem:[%s1 + $0xb8] sm:$0xf]
  %v113 = vld [vmem:[%s1 + $0xbc] sm:$0xf]
  %v114 = vld [vmem:[%s1 + $0xc0] sm:$0xf]
  %v115 = vld [vmem:[%s1 + $0xc4] sm:$0xf]
  %v116 = vld [vmem:[%s1 + $0xc8] sm:$0xf]
  %v117 = vld [vmem:[%s1 + $0xcc] sm:$0xf]
  %v118 = vld [vmem:[%s1 + $0xd0] sm:$0xf]
  %v119 = vld [vmem:[%s1 + $0xd4] sm:$0xf]
  %v120 = vld [vmem:[%s1 + $0xd8] sm:$0xf]
  %v121 = vld [vmem:[%s1 + $0xdc] sm:$0xf]
  %v122 = vld [vmem:[%s1 + $0xe0] sm:$0xf]
  %v123 = vld [vmem:[%s1 + $0xe4] sm:$0xf]
  %v124 = vld [vmem:[%s1 + $0xe8] sm:$0xf]
  %v125 = vld [vmem:[%s1 + $0xec] sm:$0xf]
  %v126 = vld [vmem:[%s1 + $0xf0] sm:$0xf]
  %v127 = vld [vmem:[%s1 + $0xf4] sm:$0xf]
  %v128 = vld [vmem:[%s1 + $0xf8] sm:$0xf]
  %v129 = vld [vmem:[%s1 + $0xfc] sm:$0xf]
  %v130 = vld [vmem:[%s1 + $0x100] sm:$0xf]
  %v131 = vld [vmem:[%s1 + $0x104] sm:$0xf]
  %v132 = vld [vmem:[%s1 + $0x108] sm:$0xf]
  %v133 = vld [vmem:[%s1 + $0x10c] sm:$0xf]
  %v134 = vld [vmem:[%s1 + $0x110] sm:$0xf]
  %v135 = vld [vmem:[%s1 + $0x114] sm:$0xf]
  %v136 = vld [vmem:[%s1 + $0x118] sm:$0xf]
  %v137 = vld [vmem:[%s1 + $0x11c] sm:$0xf]
  %v186 = vunpack.c.l.b16 %v18
  %v187 = vunpack.c.h.b16 %v18
  %v188 = vunpack.c.l.b16 %v19
  %v189 = vunpack.c.h.b16 %v19
  %v190 = vunpack.c.l.b16 %v20
  %v191 = vunpack.c.l.b16 %v21
  %v192 = vunpack.c.h.b16 %v21
  %v193 = vunpack.c.l.b16 %v22
  %v194 = vunpack.c.h.b16 %v22
  %v195 = vunpack.c.l.b16 %v23
  %v196 = vunpack.c.l.b16 %v24
  %v197 = vunpack.c.h.b16 %v24
  %v198 = vunpack.c.l.b16 %v25
  %v199 = vunpack.c.h.b16 %v25
  %v200 = vunpack.c.l.b16 %v26
  %v201 = vunpack.c.l.b16 %v27
  %v202 = vunpack.c.h.b16 %v27
  %v203 = vunpack.c.l.b16 %v28
  %v204 = vunpack.c.h.b16 %v28
  %v205 = vunpack.c.l.b16 %v29
  %v206 = vunpack.c.l.b16 %v30
  %v207 = vunpack.c.h.b16 %v30
  %v208 = vunpack.c.l.b16 %v31
  %v209 = vunpack.c.h.b16 %v31
  %v210 = vunpack.c.l.b16 %v32
  %v211 = vunpack.c.l.b16 %v33
  %v212 = vunpack.c.h.b16 %v33
  %v213 = vunpack.c.l.b16 %v34
  %v214 = vunpack.c.h.b16 %v34
  %v215 = vunpack.c.l.b16 %v35
  %v216 = vunpack.c.l.b16 %v36
  %v217 = vunpack.c.h.b16 %v36
  %v218 = vunpack.c.l.b16 %v37
  %v219 = vunpack.c.h.b16 %v37
  %v220 = vunpack.c.l.b16 %v38
  %v221 = vunpack.c.l.b16 %v39
  %v222 = vunpack.c.h.b16 %v39
  %v223 = vunpack.c.l.b16 %v40
  %v224 = vunpack.c.h.b16 %v40
  %v225 = vunpack.c.l.b16 %v41
  %v226 = vunpack.c.l.b16 %v42
  %v227 = vunpack.c.h.b16 %v42
  %v228 = vunpack.c.l.b16 %v43
  %v229 = vunpack.c.h.b16 %v43
  %v230 = vunpack.c.l.b16 %v44
  %v231 = vunpack.c.l.b16 %v45
  %v232 = vunpack.c.h.b16 %v45
  %v233 = vunpack.c.l.b16 %v46
  %v234 = vunpack.c.h.b16 %v46
  %v235 = vunpack.c.l.b16 %v47
  %v236 = vunpack.c.l.b16 %v48
  %v237 = vunpack.c.h.b16 %v48
  %v238 = vunpack.c.l.b16 %v49
  %v239 = vunpack.c.h.b16 %v49
  %v240 = vunpack.c.l.b16 %v50
  %v241 = vunpack.c.l.b16 %v51
  %v242 = vunpack.c.h.b16 %v51
  %v243 = vunpack.c.l.b16 %v52
  %v244 = vunpack.c.h.b16 %v52
  %v245 = vunpack.c.l.b16 %v53
  %v246 = vunpack.c.l.b16 %v54
  %v247 = vunpack.c.h.b16 %v54
  %v248 = vunpack.c.l.b16 %v55
  %v249 = vunpack.c.h.b16 %v55
  %v250 = vunpack.c.l.b16 %v56
  %v251 = vunpack.c.l.b16 %v57
  %v252 = vunpack.c.h.b16 %v57
  %v253 = vunpack.c.l.b16 %v58
  %v254 = vunpack.c.h.b16 %v58
  %v255 = vunpack.c.l.b16 %v59
  %v256 = vunpack.c.l.b16 %v60
  %v257 = vunpack.c.h.b16 %v60
  %v258 = vunpack.c.l.b16 %v61
  %v259 = vunpack.c.h.b16 %v61
  %v260 = vunpack.c.l.b16 %v62
  %v261 = vunpack.c.l.b16 %v63
  %v262 = vunpack.c.h.b16 %v63
  %v263 = vunpack.c.l.b16 %v64
  %v264 = vunpack.c.h.b16 %v64
  %v265 = vunpack.c.l.b16 %v65
  %v266 = vpack.c.b16 %v191, %v186
  %v267 = vpack.c.b16 %v192, %v187
  %v268 = vpack.c.b16 %v193, %v188
  %v269 = vpack.c.b16 %v194, %v189
  %v270 = vpack.c.b16 %v195, %v190
  %v271 = vpack.c.b16 %v201, %v196
  %v272 = vpack.c.b16 %v202, %v197
  %v273 = vpack.c.b16 %v203, %v198
  %v274 = vpack.c.b16 %v204, %v199
  %v275 = vpack.c.b16 %v205, %v200
  %v276 = vpack.c.b16 %v211, %v206
  %v277 = vpack.c.b16 %v212, %v207
  %v278 = vpack.c.b16 %v213, %v208
  %v279 = vpack.c.b16 %v214, %v209
  %v280 = vpack.c.b16 %v215, %v210
  %v281 = vpack.c.b16 %v221, %v216
  %v282 = vpack.c.b16 %v222, %v217
  %v283 = vpack.c.b16 %v223, %v218
  %v284 = vpack.c.b16 %v224, %v219
  %v285 = vpack.c.b16 %v225, %v220
  %v286 = vpack.c.b16 %v231, %v226
  %v287 = vpack.c.b16 %v232, %v227
  %v288 = vpack.c.b16 %v233, %v228
  %v289 = vpack.c.b16 %v234, %v229
  %v290 = vpack.c.b16 %v235, %v230
  %v291 = vpack.c.b16 %v241, %v236
  %v292 = vpack.c.b16 %v242, %v237
  %v293 = vpack.c.b16 %v243, %v238
  %v294 = vpack.c.b16 %v244, %v239
  %v295 = vpack.c.b16 %v245, %v240
  %v296 = vpack.c.b16 %v251, %v246
  %v297 = vpack.c.b16 %v252, %v247
  %v298 = vpack.c.b16 %v253, %v248
  %v299 = vpack.c.b16 %v254, %v249
  %v300 = vpack.c.b16 %v255, %v250
  %v301 = vpack.c.b16 %v261, %v256
  %v302 = vpack.c.b16 %v262, %v257
  %v303 = vpack.c.b16 %v263, %v258
  %v304 = vpack.c.b16 %v264, %v259
  %v305 = vpack.c.b16 %v265, %v260
  %v410 = vunpack.c.l.b16 %v66
  %v411 = vunpack.c.l.b16 %v67
  %v412 = vunpack.c.l.b16 %v68
  %v413 = vunpack.c.l.b16 %v69
  %v414 = vunpack.c.l.b16 %v70
  %v415 = vunpack.c.l.b16 %v71
  %v416 = vunpack.c.l.b16 %v72
  %v417 = vunpack.c.l.b16 %v73
  %v418 = vunpack.c.l.b16 %v74
  %v419 = vunpack.c.l.b16 %v75
  %v420 = vunpack.c.l.b16 %v76
  %v421 = vunpack.c.l.b16 %v77
  %v422 = vunpack.c.l.b16 %v78
  %v423 = vunpack.c.l.b16 %v79
  %v424 = vunpack.c.l.b16 %v80
  %v425 = vunpack.c.l.b16 %v81
  %v426 = vunpack.c.l.b16 %v82
  %v427 = vunpack.c.l.b16 %v83
  %v428 = vunpack.c.l.b16 %v84
  %v429 = vunpack.c.l.b16 %v85
  %v430 = vunpack.c.l.b16 %v86
  %v431 = vunpack.c.l.b16 %v87
  %v432 = vunpack.c.l.b16 %v88
  %v433 = vunpack.c.l.b16 %v89
  %v434 = vunpack.c.l.b16 %v90
  %v435 = vunpack.c.l.b16 %v91
  %v436 = vunpack.c.l.b16 %v92
  %v437 = vunpack.c.l.b16 %v93
  %v438 = vunpack.c.l.b16 %v94
  %v439 = vunpack.c.l.b16 %v95
  %v440 = vunpack.c.l.b16 %v96
  %v441 = vunpack.c.l.b16 %v97
  %v442 = vunpack.c.l.b16 %v98
  %v443 = vunpack.c.l.b16 %v99
  %v444 = vunpack.c.l.b16 %v100
  %v445 = vunpack.c.l.b16 %v101
  %v446 = vunpack.c.l.b16 %v102
  %v447 = vunpack.c.l.b16 %v103
  %v448 = vunpack.c.l.b16 %v104
  %v449 = vunpack.c.l.b16 %v105
  %v450 = vunpack.c.l.b16 %v106
  %v451 = vunpack.c.l.b16 %v107
  %v452 = vunpack.c.l.b16 %v108
  %v453 = vunpack.c.l.b16 %v109
  %v454 = vunpack.c.l.b16 %v110
  %v455 = vunpack.c.l.b16 %v111
  %v456 = vunpack.c.l.b16 %v112
  %v457 = vunpack.c.l.b16 %v113
  %v458 = vunpack.c.l.b16 %v114
  %v459 = vunpack.c.l.b16 %v115
  %v460 = vunpack.c.l.b16 %v116
  %v461 = vunpack.c.l.b16 %v117
  %v462 = vunpack.c.l.b16 %v118
  %v463 = vunpack.c.l.b16 %v119
  %v464 = vunpack.c.l.b16 %v120
  %v465 = vunpack.c.l.b16 %v121
  %v466 = vunpack.c.l.b16 %v122
  %v467 = vunpack.c.l.b16 %v123
  %v468 = vunpack.c.l.b16 %v124
  %v469 = vunpack.c.l.b16 %v125
  %v470 = vunpack.c.l.b16 %v126
  %v471 = vunpack.c.l.b16 %v127
  %v472 = vunpack.c.l.b16 %v128
  %v473 = vunpack.c.l.b16 %v129
  %v474 = vunpack.c.l.b16 %v130
  %v475 = vunpack.c.l.b16 %v131
  %v476 = vunpack.c.l.b16 %v132
  %v477 = vunpack.c.l.b16 %v133
  %v478 = vunpack.c.l.b16 %v134
  %v479 = vunpack.c.l.b16 %v135
  %v480 = vunpack.c.l.b16 %v136
  %v481 = vunpack.c.l.b16 %v137
  %v482 = vpack.c.b16 %v411, %v410
  %v483 = vpack.c.b16 %v413, %v412
  %v484 = vpack.c.b16 %v415, %v414
  %v485 = vpack.c.b16 %v417, %v416
  %v486 = vpack.c.b16 %v419, %v418
  %v487 = vpack.c.b16 %v421, %v420
  %v488 = vpack.c.b16 %v423, %v422
  %v489 = vpack.c.b16 %v425, %v424
  %v490 = vpack.c.b16 %v427, %v426
  %v491 = vpack.c.b16 %v429, %v428
  %v492 = vpack.c.b16 %v431, %v430
  %v493 = vpack.c.b16 %v433, %v432
  %v494 = vpack.c.b16 %v435, %v434
  %v495 = vpack.c.b16 %v437, %v436
  %v496 = vpack.c.b16 %v439, %v438
  %v497 = vpack.c.b16 %v441, %v440
  %v498 = vpack.c.b16 %v443, %v442
  %v499 = vpack.c.b16 %v445, %v444
  %v500 = vpack.c.b16 %v447, %v446
  %v501 = vpack.c.b16 %v449, %v448
  %v502 = vpack.c.b16 %v451, %v450
  %v503 = vpack.c.b16 %v453, %v452
  %v504 = vpack.c.b16 %v455, %v454
  %v505 = vpack.c.b16 %v457, %v456
  %v506 = vpack.c.b16 %v459, %v458
  %v507 = vpack.c.b16 %v461, %v460
  %v508 = vpack.c.b16 %v463, %v462
  %v509 = vpack.c.b16 %v465, %v464
  %v510 = vpack.c.b16 %v467, %v466
  %v511 = vpack.c.b16 %v469, %v468
  %v512 = vpack.c.b16 %v471, %v470
  %v513 = vpack.c.b16 %v473, %v472
  %v514 = vpack.c.b16 %v475, %v474
  %v515 = vpack.c.b16 %v477, %v476
  %v516 = vpack.c.b16 %v479, %v478
  %v517 = vpack.c.b16 %v481, %v480
  %vm554 = vcmask 523264
  %v556 = vsel %vm554, %v270, 0
  %v559 = vsel %vm554, %v275, 0
  %v562 = vsel %vm554, %v280, 0
  %v565 = vsel %vm554, %v285, 0
  %v568 = vsel %vm554, %v290, 0
  %v571 = vsel %vm554, %v295, 0
  %v574 = vsel %vm554, %v300, 0
  %v577 = vsel %vm554, %v305, 0
  %579 = vmatpush.bf16.msra.mxu0 %v489
  %580 = vmatpush.bf16.msra.mxu0 %v488
  %581 = vmatpush.bf16.msra.mxu0 %v487
  %582 = vmatpush.bf16.msra.mxu0 %v486
  %583 = vmatpush.bf16.msra.mxu0 %v485
  %584 = vmatpush.bf16.msra.mxu0 %v484
  %585 = vmatpush.bf16.msra.mxu0 %v483
  %586 = vmatpush.bf16.msra.mxu0 %v482
  %587 = vmatmul.bf16.gmra.mxu0 %v266
  %v588 = vpop.f32.mrf.mxu0
  %v589 = vadd.f32 0.0, %v588
  %v590 = vpop.f32.mrf.mxu0
  %v591 = vadd.f32 0.0, %v590
  %592 = vmatmul.bf16.gmra.mxu0 %v271
  %v593 = vpop.f32.mrf.mxu0
  %v594 = vadd.f32 0.0, %v593
  %v595 = vpop.f32.mrf.mxu0
  %v596 = vadd.f32 0.0, %v595
  %597 = vmatmul.bf16.gmra.mxu0 %v276
  %v598 = vpop.f32.mrf.mxu0
  %v599 = vadd.f32 0.0, %v598
  %v600 = vpop.f32.mrf.mxu0
  %v601 = vadd.f32 0.0, %v600
  %602 = vmatmul.bf16.gmra.mxu0 %v281
  %v603 = vpop.f32.mrf.mxu0
  %v604 = vadd.f32 0.0, %v603
  %v605 = vpop.f32.mrf.mxu0
  %v606 = vadd.f32 0.0, %v605
  %607 = vmatmul.bf16.gmra.mxu0 %v286
  %v608 = vpop.f32.mrf.mxu0
  %v609 = vadd.f32 0.0, %v608
  %v610 = vpop.f32.mrf.mxu0
  %v611 = vadd.f32 0.0, %v610
  %612 = vmatmul.bf16.gmra.mxu0 %v291
  %v613 = vpop.f32.mrf.mxu0
  %v614 = vadd.f32 0.0, %v613
  %v615 = vpop.f32.mrf.mxu0
  %v616 = vadd.f32 0.0, %v615
  %617 = vmatmul.bf16.gmra.mxu0 %v296
  %v618 = vpop.f32.mrf.mxu0
  %v619 = vadd.f32 0.0, %v618
  %v620 = vpop.f32.mrf.mxu0
  %v621 = vadd.f32 0.0, %v620
  %622 = vmatmul.bf16.gmra.mxu0 %v301
  %v623 = vpop.f32.mrf.mxu0
  %v624 = vadd.f32 0.0, %v623
  %v625 = vpop.f32.mrf.mxu0
  %v626 = vadd.f32 0.0, %v625
  %627 = vdwg.mxu0
  %628 = vmatpush.bf16.msra.mxu0 %v497
  %629 = vmatpush.bf16.msra.mxu0 %v496
  %630 = vmatpush.bf16.msra.mxu0 %v495
  %631 = vmatpush.bf16.msra.mxu0 %v494
  %632 = vmatpush.bf16.msra.mxu0 %v493
  %633 = vmatpush.bf16.msra.mxu0 %v492
  %634 = vmatpush.bf16.msra.mxu0 %v491
  %635 = vmatpush.bf16.msra.mxu0 %v490
  %636 = vmatmul.bf16.gmra.mxu0 %v267
  %v637 = vpop.f32.mrf.mxu0
  %v638 = vadd.f32 %v589, %v637
  %v639 = vpop.f32.mrf.mxu0
  %v640 = vadd.f32 %v591, %v639
  %641 = vmatmul.bf16.gmra.mxu0 %v272
  %v642 = vpop.f32.mrf.mxu0
  %v643 = vadd.f32 %v594, %v642
  %v644 = vpop.f32.mrf.mxu0
  %v645 = vadd.f32 %v596, %v644
  %646 = vmatmul.bf16.gmra.mxu0 %v277
  %v647 = vpop.f32.mrf.mxu0
  %v648 = vadd.f32 %v599, %v647
  %v649 = vpop.f32.mrf.mxu0
  %v650 = vadd.f32 %v601, %v649
  %651 = vmatmul.bf16.gmra.mxu0 %v282
  %v652 = vpop.f32.mrf.mxu0
  %v653 = vadd.f32 %v604, %v652
  %v654 = vpop.f32.mrf.mxu0
  %v655 = vadd.f32 %v606, %v654
  %656 = vmatmul.bf16.gmra.mxu0 %v287
  %v657 = vpop.f32.mrf.mxu0
  %v658 = vadd.f32 %v609, %v657
  %v659 = vpop.f32.mrf.mxu0
  %v660 = vadd.f32 %v611, %v659
  %661 = vmatmul.bf16.gmra.mxu0 %v292
  %v662 = vpop.f32.mrf.mxu0
  %v663 = vadd.f32 %v614, %v662
  %v664 = vpop.f32.mrf.mxu0
  %v665 = vadd.f32 %v616, %v664
  %666 = vmatmul.bf16.gmra.mxu0 %v297
  %v667 = vpop.f32.mrf.mxu0
  %v668 = vadd.f32 %v619, %v667
  %v669 = vpop.f32.mrf.mxu0
  %v670 = vadd.f32 %v621, %v669
  %671 = vmatmul.bf16.gmra.mxu0 %v302
  %v672 = vpop.f32.mrf.mxu0
  %v673 = vadd.f32 %v624, %v672
  %v674 = vpop.f32.mrf.mxu0
  %v675 = vadd.f32 %v626, %v674
  %676 = vdwg.mxu0
  %677 = vmatpush.bf16.msra.mxu0 %v505
  %678 = vmatpush.bf16.msra.mxu0 %v504
  %679 = vmatpush.bf16.msra.mxu0 %v503
  %680 = vmatpush.bf16.msra.mxu0 %v502
  %681 = vmatpush.bf16.msra.mxu0 %v501
  %682 = vmatpush.bf16.msra.mxu0 %v500
  %683 = vmatpush.bf16.msra.mxu0 %v499
  %684 = vmatpush.bf16.msra.mxu0 %v498
  %685 = vmatmul.bf16.gmra.mxu0 %v268
  %v686 = vpop.f32.mrf.mxu0
  %v687 = vadd.f32 %v638, %v686
  %v688 = vpop.f32.mrf.mxu0
  %v689 = vadd.f32 %v640, %v688
  %690 = vmatmul.bf16.gmra.mxu0 %v273
  %v691 = vpop.f32.mrf.mxu0
  %v692 = vadd.f32 %v643, %v691
  %v693 = vpop.f32.mrf.mxu0
  %v694 = vadd.f32 %v645, %v693
  %695 = vmatmul.bf16.gmra.mxu0 %v278
  %v696 = vpop.f32.mrf.mxu0
  %v697 = vadd.f32 %v648, %v696
  %v698 = vpop.f32.mrf.mxu0
  %v699 = vadd.f32 %v650, %v698
  %700 = vmatmul.bf16.gmra.mxu0 %v283
  %v701 = vpop.f32.mrf.mxu0
  %v702 = vadd.f32 %v653, %v701
  %v703 = vpop.f32.mrf.mxu0
  %v704 = vadd.f32 %v655, %v703
  %705 = vmatmul.bf16.gmra.mxu0 %v288
  %v706 = vpop.f32.mrf.mxu0
  %v707 = vadd.f32 %v658, %v706
  %v708 = vpop.f32.mrf.mxu0
  %v709 = vadd.f32 %v660, %v708
  %710 = vmatmul.bf16.gmra.mxu0 %v293
  %v711 = vpop.f32.mrf.mxu0
  %v712 = vadd.f32 %v663, %v711
  %v713 = vpop.f32.mrf.mxu0
  %v714 = vadd.f32 %v665, %v713
  %715 = vmatmul.bf16.gmra.mxu0 %v298
  %v716 = vpop.f32.mrf.mxu0
  %v717 = vadd.f32 %v668, %v716
  %v718 = vpop.f32.mrf.mxu0
  %v719 = vadd.f32 %v670, %v718
  %720 = vmatmul.bf16.gmra.mxu0 %v303
  %v721 = vpop.f32.mrf.mxu0
  %v722 = vadd.f32 %v673, %v721
  %v723 = vpop.f32.mrf.mxu0
  %v724 = vadd.f32 %v675, %v723
  %725 = vdwg.mxu0
  %726 = vmatpush.bf16.msra.mxu0 %v513
  %727 = vmatpush.bf16.msra.mxu0 %v512
  %728 = vmatpush.bf16.msra.mxu0 %v511
  %729 = vmatpush.bf16.msra.mxu0 %v510
  %730 = vmatpush.bf16.msra.mxu0 %v509
  %731 = vmatpush.bf16.msra.mxu0 %v508
  %732 = vmatpush.bf16.msra.mxu0 %v507
  %733 = vmatpush.bf16.msra.mxu0 %v506
  %734 = vmatmul.bf16.gmra.mxu0 %v269
  %v735 = vpop.f32.mrf.mxu0
  %v736 = vadd.f32 %v687, %v735
  %v737 = vpop.f32.mrf.mxu0
  %v738 = vadd.f32 %v689, %v737
  %739 = vmatmul.bf16.gmra.mxu0 %v274
  %v740 = vpop.f32.mrf.mxu0
  %v741 = vadd.f32 %v692, %v740
  %v742 = vpop.f32.mrf.mxu0
  %v743 = vadd.f32 %v694, %v742
  %744 = vmatmul.bf16.gmra.mxu0 %v279
  %v745 = vpop.f32.mrf.mxu0
  %v746 = vadd.f32 %v697, %v745
  %v747 = vpop.f32.mrf.mxu0
  %v748 = vadd.f32 %v699, %v747
  %749 = vmatmul.bf16.gmra.mxu0 %v284
  %v750 = vpop.f32.mrf.mxu0
  %v751 = vadd.f32 %v702, %v750
  %v752 = vpop.f32.mrf.mxu0
  %v753 = vadd.f32 %v704, %v752
  %754 = vmatmul.bf16.gmra.mxu0 %v289
  %v755 = vpop.f32.mrf.mxu0
  %v756 = vadd.f32 %v707, %v755
  %v757 = vpop.f32.mrf.mxu0
  %v758 = vadd.f32 %v709, %v757
  %759 = vmatmul.bf16.gmra.mxu0 %v294
  %v760 = vpop.f32.mrf.mxu0
  %v761 = vadd.f32 %v712, %v760
  %v762 = vpop.f32.mrf.mxu0
  %v763 = vadd.f32 %v714, %v762
  %764 = vmatmul.bf16.gmra.mxu0 %v299
  %v765 = vpop.f32.mrf.mxu0
  %v766 = vadd.f32 %v717, %v765
  %v767 = vpop.f32.mrf.mxu0
  %v768 = vadd.f32 %v719, %v767
  %769 = vmatmul.bf16.gmra.mxu0 %v304
  %v770 = vpop.f32.mrf.mxu0
  %v771 = vadd.f32 %v722, %v770
  %v772 = vpop.f32.mrf.mxu0
  %v773 = vadd.f32 %v724, %v772
  %774 = vdwg.mxu0
  %775 = vmatpush.bf16.msra.mxu0 0
  %776 = vmatpush.bf16.msra.mxu0 0
  %777 = vmatpush.bf16.msra.mxu0 0
  %778 = vmatpush.bf16.msra.mxu0 0
  %779 = vmatpush.bf16.msra.mxu0 %v517
  %780 = vmatpush.bf16.msra.mxu0 %v516
  %781 = vmatpush.bf16.msra.mxu0 %v515
  %782 = vmatpush.bf16.msra.mxu0 %v514
  %783 = vmatmul.bf16.gmra.mxu0 %v556
  %v784 = vpop.f32.mrf.mxu0
  %v785 = vadd.f32 %v736, %v784
  %v786 = vpop.f32.mrf.mxu0
  %v787 = vadd.f32 %v738, %v786
  %788 = vmatmul.bf16.gmra.mxu0 %v559
  %v789 = vpop.f32.mrf.mxu0
  %v790 = vadd.f32 %v741, %v789
  %v791 = vpop.f32.mrf.mxu0
  %v792 = vadd.f32 %v743, %v791
  %793 = vmatmul.bf16.gmra.mxu0 %v562
  %v794 = vpop.f32.mrf.mxu0
  %v795 = vadd.f32 %v746, %v794
  %v796 = vpop.f32.mrf.mxu0
  %v797 = vadd.f32 %v748, %v796
  %798 = vmatmul.bf16.gmra.mxu0 %v565
  %v799 = vpop.f32.mrf.mxu0
  %v800 = vadd.f32 %v751, %v799
  %v801 = vpop.f32.mrf.mxu0
  %v802 = vadd.f32 %v753, %v801
  %803 = vmatmul.bf16.gmra.mxu0 %v568
  %v804 = vpop.f32.mrf.mxu0
  %v805 = vadd.f32 %v756, %v804
  %v806 = vpop.f32.mrf.mxu0
  %v807 = vadd.f32 %v758, %v806
  %808 = vmatmul.bf16.gmra.mxu0 %v571
  %v809 = vpop.f32.mrf.mxu0
  %v810 = vadd.f32 %v761, %v809
  %v811 = vpop.f32.mrf.mxu0
  %v812 = vadd.f32 %v763, %v811
  %813 = vmatmul.bf16.gmra.mxu0 %v574
  %v814 = vpop.f32.mrf.mxu0
  %v815 = vadd.f32 %v766, %v814
  %v816 = vpop.f32.mrf.mxu0
  %v817 = vadd.f32 %v768, %v816
  %818 = vmatmul.bf16.gmra.mxu0 %v577
  %v819 = vpop.f32.mrf.mxu0
  %v820 = vadd.f32 %v771, %v819
  %v821 = vpop.f32.mrf.mxu0
  %v822 = vadd.f32 %v773, %v821
  %823 = vdwg.mxu0
  %v824 = vmul.f32 %v785, %v785
  %v825 = vmul.f32 %v787, %v787
  %v826 = vmul.f32 %v790, %v790
  %v827 = vmul.f32 %v792, %v792
  %v828 = vmul.f32 %v795, %v795
  %v829 = vmul.f32 %v797, %v797
  %v830 = vmul.f32 %v800, %v800
  %v831 = vmul.f32 %v802, %v802
  %v832 = vmul.f32 %v805, %v805
  %v833 = vmul.f32 %v807, %v807
  %v834 = vmul.f32 %v810, %v810
  %v835 = vmul.f32 %v812, %v812
  %v836 = vmul.f32 %v815, %v815
  %v837 = vmul.f32 %v817, %v817
  %v838 = vmul.f32 %v820, %v820
  %v839 = vmul.f32 %v822, %v822
  %856 = vrot.lane.b32.xlu0 %v785, 96
  %v857 = vpop.permute.xlu0 %856
  %858 = vrot.lane.b32.xlu0 %v787, 96
  %v859 = vpop.permute.xlu0 %858
  %860 = vrot.lane.b32.xlu0 %v790, 96
  %v861 = vpop.permute.xlu0 %860
  %862 = vrot.lane.b32.xlu0 %v792, 96
  %v863 = vpop.permute.xlu0 %862
  %864 = vrot.lane.b32.xlu0 %v795, 96
  %v865 = vpop.permute.xlu0 %864
  %866 = vrot.lane.b32.xlu0 %v797, 96
  %v867 = vpop.permute.xlu0 %866
  %868 = vrot.lane.b32.xlu0 %v800, 96
  %v869 = vpop.permute.xlu0 %868
  %870 = vrot.lane.b32.xlu0 %v802, 96
  %v871 = vpop.permute.xlu0 %870
  %872 = vrot.lane.b32.xlu0 %v805, 96
  %v873 = vpop.permute.xlu0 %872
  %874 = vrot.lane.b32.xlu0 %v807, 96
  %v875 = vpop.permute.xlu0 %874
  %876 = vrot.lane.b32.xlu0 %v810, 96
  %v877 = vpop.permute.xlu0 %876
  %878 = vrot.lane.b32.xlu0 %v812, 96
  %v879 = vpop.permute.xlu0 %878
  %880 = vrot.lane.b32.xlu0 %v815, 96
  %v881 = vpop.permute.xlu0 %880
  %882 = vrot.lane.b32.xlu0 %v817, 96
  %v883 = vpop.permute.xlu0 %882
  %884 = vrot.lane.b32.xlu0 %v820, 96
  %v885 = vpop.permute.xlu0 %884
  %886 = vrot.lane.b32.xlu0 %v822, 96
  %v887 = vpop.permute.xlu0 %886
  %v904 = vadd.f32 %v785, %v857
  %v905 = vadd.f32 %v787, %v859
  %v906 = vadd.f32 %v790, %v861
  %v907 = vadd.f32 %v792, %v863
  %v908 = vadd.f32 %v795, %v865
  %v909 = vadd.f32 %v797, %v867
  %v910 = vadd.f32 %v800, %v869
  %v911 = vadd.f32 %v802, %v871
  %v912 = vadd.f32 %v805, %v873
  %v913 = vadd.f32 %v807, %v875
  %v914 = vadd.f32 %v810, %v877
  %v915 = vadd.f32 %v812, %v879
  %v916 = vadd.f32 %v815, %v881
  %v917 = vadd.f32 %v817, %v883
  %v918 = vadd.f32 %v820, %v885
  %v919 = vadd.f32 %v822, %v887
  %936 = vrot.lane.b32.xlu0 %v824, 96
  %v937 = vpop.permute.xlu0 %936
  %938 = vrot.lane.b32.xlu0 %v825, 96
  %v939 = vpop.permute.xlu0 %938
  %940 = vrot.lane.b32.xlu0 %v826, 96
  %v941 = vpop.permute.xlu0 %940
  %942 = vrot.lane.b32.xlu0 %v827, 96
  %v943 = vpop.permute.xlu0 %942
  %944 = vrot.lane.b32.xlu0 %v828, 96
  %v945 = vpop.permute.xlu0 %944
  %946 = vrot.lane.b32.xlu0 %v829, 96
  %v947 = vpop.permute.xlu0 %946
  %948 = vrot.lane.b32.xlu0 %v830, 96
  %v949 = vpop.permute.xlu0 %948
  %950 = vrot.lane.b32.xlu0 %v831, 96
  %v951 = vpop.permute.xlu0 %950
  %952 = vrot.lane.b32.xlu0 %v832, 96
  %v953 = vpop.permute.xlu0 %952
  %954 = vrot.lane.b32.xlu0 %v833, 96
  %v955 = vpop.permute.xlu0 %954
  %956 = vrot.lane.b32.xlu0 %v834, 96
  %v957 = vpop.permute.xlu0 %956
  %958 = vrot.lane.b32.xlu0 %v835, 96
  %v959 = vpop.permute.xlu0 %958
  %960 = vrot.lane.b32.xlu0 %v836, 96
  %v961 = vpop.permute.xlu0 %960
  %962 = vrot.lane.b32.xlu0 %v837, 96
  %v963 = vpop.permute.xlu0 %962
  %964 = vrot.lane.b32.xlu0 %v838, 96
  %v965 = vpop.permute.xlu0 %964
  %966 = vrot.lane.b32.xlu0 %v839, 96
  %v967 = vpop.permute.xlu0 %966
  %v984 = vadd.f32 %v824, %v937
  %v985 = vadd.f32 %v825, %v939
  %v986 = vadd.f32 %v826, %v941
  %v987 = vadd.f32 %v827, %v943
  %v988 = vadd.f32 %v828, %v945
  %v989 = vadd.f32 %v829, %v947
  %v990 = vadd.f32 %v830, %v949
  %v991 = vadd.f32 %v831, %v951
  %v992 = vadd.f32 %v832, %v953
  %v993 = vadd.f32 %v833, %v955
  %v994 = vadd.f32 %v834, %v957
  %v995 = vadd.f32 %v835, %v959
  %v996 = vadd.f32 %v836, %v961
  %v997 = vadd.f32 %v837, %v963
  %v998 = vadd.f32 %v838, %v965
  %v999 = vadd.f32 %v839, %v967
  %1000 = vrot.lane.b32.xlu0 %v785, 64
  %v1001 = vpop.permute.xlu0 %1000
  %1002 = vrot.lane.b32.xlu0 %v787, 64
  %v1003 = vpop.permute.xlu0 %1002
  %1004 = vrot.lane.b32.xlu0 %v790, 64
  %v1005 = vpop.permute.xlu0 %1004
  %1006 = vrot.lane.b32.xlu0 %v792, 64
  %v1007 = vpop.permute.xlu0 %1006
  %1008 = vrot.lane.b32.xlu0 %v795, 64
  %v1009 = vpop.permute.xlu0 %1008
  %1010 = vrot.lane.b32.xlu0 %v797, 64
  %v1011 = vpop.permute.xlu0 %1010
  %1012 = vrot.lane.b32.xlu0 %v800, 64
  %v1013 = vpop.permute.xlu0 %1012
  %1014 = vrot.lane.b32.xlu0 %v802, 64
  %v1015 = vpop.permute.xlu0 %1014
  %1016 = vrot.lane.b32.xlu0 %v805, 64
  %v1017 = vpop.permute.xlu0 %1016
  %1018 = vrot.lane.b32.xlu0 %v807, 64
  %v1019 = vpop.permute.xlu0 %1018
  %1020 = vrot.lane.b32.xlu0 %v810, 64
  %v1021 = vpop.permute.xlu0 %1020
  %1022 = vrot.lane.b32.xlu0 %v812, 64
  %v1023 = vpop.permute.xlu0 %1022
  %1024 = vrot.lane.b32.xlu0 %v815, 64
  %v1025 = vpop.permute.xlu0 %1024
  %1026 = vrot.lane.b32.xlu0 %v817, 64
  %v1027 = vpop.permute.xlu0 %1026
  %1028 = vrot.lane.b32.xlu0 %v820, 64
  %v1029 = vpop.permute.xlu0 %1028
  %1030 = vrot.lane.b32.xlu0 %v822, 64
  %v1031 = vpop.permute.xlu0 %1030
  %v1048 = vadd.f32 %v904, %v1001
  %v1049 = vadd.f32 %v905, %v1003
  %v1050 = vadd.f32 %v906, %v1005
  %v1051 = vadd.f32 %v907, %v1007
  %v1052 = vadd.f32 %v908, %v1009
  %v1053 = vadd.f32 %v909, %v1011
  %v1054 = vadd.f32 %v910, %v1013
  %v1055 = vadd.f32 %v911, %v1015
  %v1056 = vadd.f32 %v912, %v1017
  %v1057 = vadd.f32 %v913, %v1019
  %v1058 = vadd.f32 %v914, %v1021
  %v1059 = vadd.f32 %v915, %v1023
  %v1060 = vadd.f32 %v916, %v1025
  %v1061 = vadd.f32 %v917, %v1027
  %v1062 = vadd.f32 %v918, %v1029
  %v1063 = vadd.f32 %v919, %v1031
  %1064 = vrot.lane.b32.xlu0 %v824, 64
  %v1065 = vpop.permute.xlu0 %1064
  %1066 = vrot.lane.b32.xlu0 %v825, 64
  %v1067 = vpop.permute.xlu0 %1066
  %1068 = vrot.lane.b32.xlu0 %v826, 64
  %v1069 = vpop.permute.xlu0 %1068
  %1070 = vrot.lane.b32.xlu0 %v827, 64
  %v1071 = vpop.permute.xlu0 %1070
  %1072 = vrot.lane.b32.xlu0 %v828, 64
  %v1073 = vpop.permute.xlu0 %1072
  %1074 = vrot.lane.b32.xlu0 %v829, 64
  %v1075 = vpop.permute.xlu0 %1074
  %1076 = vrot.lane.b32.xlu0 %v830, 64
  %v1077 = vpop.permute.xlu0 %1076
  %1078 = vrot.lane.b32.xlu0 %v831, 64
  %v1079 = vpop.permute.xlu0 %1078
  %1080 = vrot.lane.b32.xlu0 %v832, 64
  %v1081 = vpop.permute.xlu0 %1080
  %1082 = vrot.lane.b32.xlu0 %v833, 64
  %v1083 = vpop.permute.xlu0 %1082
  %1084 = vrot.lane.b32.xlu0 %v834, 64
  %v1085 = vpop.permute.xlu0 %1084
  %1086 = vrot.lane.b32.xlu0 %v835, 64
  %v1087 = vpop.permute.xlu0 %1086
  %1088 = vrot.lane.b32.xlu0 %v836, 64
  %v1089 = vpop.permute.xlu0 %1088
  %1090 = vrot.lane.b32.xlu0 %v837, 64
  %v1091 = vpop.permute.xlu0 %1090
  %1092 = vrot.lane.b32.xlu0 %v838, 64
  %v1093 = vpop.permute.xlu0 %1092
  %1094 = vrot.lane.b32.xlu0 %v839, 64
  %v1095 = vpop.permute.xlu0 %1094
  %v1112 = vadd.f32 %v984, %v1065
  %v1113 = vadd.f32 %v985, %v1067
  %v1114 = vadd.f32 %v986, %v1069
  %v1115 = vadd.f32 %v987, %v1071
  %v1116 = vadd.f32 %v988, %v1073
  %v1117 = vadd.f32 %v989, %v1075
  %v1118 = vadd.f32 %v990, %v1077
  %v1119 = vadd.f32 %v991, %v1079
  %v1120 = vadd.f32 %v992, %v1081
  %v1121 = vadd.f32 %v993, %v1083
  %v1122 = vadd.f32 %v994, %v1085
  %v1123 = vadd.f32 %v995, %v1087
  %v1124 = vadd.f32 %v996, %v1089
  %v1125 = vadd.f32 %v997, %v1091
  %v1126 = vadd.f32 %v998, %v1093
  %v1127 = vadd.f32 %v999, %v1095
  %1128 = vrot.lane.b32.xlu0 %v785, 32
  %v1129 = vpop.permute.xlu0 %1128
  %1130 = vrot.lane.b32.xlu0 %v787, 32
  %v1131 = vpop.permute.xlu0 %1130
  %1132 = vrot.lane.b32.xlu0 %v790, 32
  %v1133 = vpop.permute.xlu0 %1132
  %1134 = vrot.lane.b32.xlu0 %v792, 32
  %v1135 = vpop.permute.xlu0 %1134
  %1136 = vrot.lane.b32.xlu0 %v795, 32
  %v1137 = vpop.permute.xlu0 %1136
  %1138 = vrot.lane.b32.xlu0 %v797, 32
  %v1139 = vpop.permute.xlu0 %1138
  %1140 = vrot.lane.b32.xlu0 %v800, 32
  %v1141 = vpop.permute.xlu0 %1140
  %1142 = vrot.lane.b32.xlu0 %v802, 32
  %v1143 = vpop.permute.xlu0 %1142
  %1144 = vrot.lane.b32.xlu0 %v805, 32
  %v1145 = vpop.permute.xlu0 %1144
  %1146 = vrot.lane.b32.xlu0 %v807, 32
  %v1147 = vpop.permute.xlu0 %1146
  %1148 = vrot.lane.b32.xlu0 %v810, 32
  %v1149 = vpop.permute.xlu0 %1148
  %1150 = vrot.lane.b32.xlu0 %v812, 32
  %v1151 = vpop.permute.xlu0 %1150
  %1152 = vrot.lane.b32.xlu0 %v815, 32
  %v1153 = vpop.permute.xlu0 %1152
  %1154 = vrot.lane.b32.xlu0 %v817, 32
  %v1155 = vpop.permute.xlu0 %1154
  %1156 = vrot.lane.b32.xlu0 %v820, 32
  %v1157 = vpop.permute.xlu0 %1156
  %1158 = vrot.lane.b32.xlu0 %v822, 32
  %v1159 = vpop.permute.xlu0 %1158
  %v1176 = vadd.f32 %v1048, %v1129
  %v1177 = vadd.f32 %v1049, %v1131
  %v1178 = vadd.f32 %v1050, %v1133
  %v1179 = vadd.f32 %v1051, %v1135
  %v1180 = vadd.f32 %v1052, %v1137
  %v1181 = vadd.f32 %v1053, %v1139
  %v1182 = vadd.f32 %v1054, %v1141
  %v1183 = vadd.f32 %v1055, %v1143
  %v1184 = vadd.f32 %v1056, %v1145
  %v1185 = vadd.f32 %v1057, %v1147
  %v1186 = vadd.f32 %v1058, %v1149
  %v1187 = vadd.f32 %v1059, %v1151
  %v1188 = vadd.f32 %v1060, %v1153
  %v1189 = vadd.f32 %v1061, %v1155
  %v1190 = vadd.f32 %v1062, %v1157
  %v1191 = vadd.f32 %v1063, %v1159
  %1192 = vrot.lane.b32.xlu0 %v824, 32
  %v1193 = vpop.permute.xlu0 %1192
  %1194 = vrot.lane.b32.xlu0 %v825, 32
  %v1195 = vpop.permute.xlu0 %1194
  %1196 = vrot.lane.b32.xlu0 %v826, 32
  %v1197 = vpop.permute.xlu0 %1196
  %1198 = vrot.lane.b32.xlu0 %v827, 32
  %v1199 = vpop.permute.xlu0 %1198
  %1200 = vrot.lane.b32.xlu0 %v828, 32
  %v1201 = vpop.permute.xlu0 %1200
  %1202 = vrot.lane.b32.xlu0 %v829, 32
  %v1203 = vpop.permute.xlu0 %1202
  %1204 = vrot.lane.b32.xlu0 %v830, 32
  %v1205 = vpop.permute.xlu0 %1204
  %1206 = vrot.lane.b32.xlu0 %v831, 32
  %v1207 = vpop.permute.xlu0 %1206
  %1208 = vrot.lane.b32.xlu0 %v832, 32
  %v1209 = vpop.permute.xlu0 %1208
  %1210 = vrot.lane.b32.xlu0 %v833, 32
  %v1211 = vpop.permute.xlu0 %1210
  %1212 = vrot.lane.b32.xlu0 %v834, 32
  %v1213 = vpop.permute.xlu0 %1212
  %1214 = vrot.lane.b32.xlu0 %v835, 32
  %v1215 = vpop.permute.xlu0 %1214
  %1216 = vrot.lane.b32.xlu0 %v836, 32
  %v1217 = vpop.permute.xlu0 %1216
  %1218 = vrot.lane.b32.xlu0 %v837, 32
  %v1219 = vpop.permute.xlu0 %1218
  %1220 = vrot.lane.b32.xlu0 %v838, 32
  %v1221 = vpop.permute.xlu0 %1220
  %1222 = vrot.lane.b32.xlu0 %v839, 32
  %v1223 = vpop.permute.xlu0 %1222
  %v1240 = vadd.f32 %v1112, %v1193
  %v1241 = vadd.f32 %v1113, %v1195
  %v1242 = vadd.f32 %v1114, %v1197
  %v1243 = vadd.f32 %v1115, %v1199
  %v1244 = vadd.f32 %v1116, %v1201
  %v1245 = vadd.f32 %v1117, %v1203
  %v1246 = vadd.f32 %v1118, %v1205
  %v1247 = vadd.f32 %v1119, %v1207
  %v1248 = vadd.f32 %v1120, %v1209
  %v1249 = vadd.f32 %v1121, %v1211
  %v1250 = vadd.f32 %v1122, %v1213
  %v1251 = vadd.f32 %v1123, %v1215
  %v1252 = vadd.f32 %v1124, %v1217
  %v1253 = vadd.f32 %v1125, %v1219
  %v1254 = vadd.f32 %v1126, %v1221
  %v1255 = vadd.f32 %v1127, %v1223
  %vm1256 = vcmask 261120
  %v1257 = vsel %vm1256, %v1176, 0.0
  %v1258 = vsel %vm1256, %v1177, 0.0
  %v1259 = vadd.f32 %v1257, %v1258
  %v1260 = vsel %vm1256, %v1178, 0.0
  %v1261 = vadd.f32 %v1259, %v1260
  %v1262 = vsel %vm1256, %v1179, 0.0
  %v1263 = vadd.f32 %v1261, %v1262
  %v1264 = vsel %vm1256, %v1180, 0.0
  %v1265 = vadd.f32 %v1263, %v1264
  %v1266 = vsel %vm1256, %v1181, 0.0
  %v1267 = vadd.f32 %v1265, %v1266
  %v1268 = vsel %vm1256, %v1182, 0.0
  %v1269 = vadd.f32 %v1267, %v1268
  %v1270 = vsel %vm1256, %v1183, 0.0
  %v1271 = vadd.f32 %v1269, %v1270
  %v1272 = vsel %vm1256, %v1184, 0.0
  %v1273 = vadd.f32 %v1271, %v1272
  %v1274 = vsel %vm1256, %v1185, 0.0
  %v1275 = vadd.f32 %v1273, %v1274
  %v1276 = vsel %vm1256, %v1186, 0.0
  %v1277 = vadd.f32 %v1275, %v1276
  %v1278 = vsel %vm1256, %v1187, 0.0
  %v1279 = vadd.f32 %v1277, %v1278
  %v1280 = vsel %vm1256, %v1188, 0.0
  %v1281 = vadd.f32 %v1279, %v1280
  %v1282 = vsel %vm1256, %v1189, 0.0
  %v1283 = vadd.f32 %v1281, %v1282
  %v1284 = vsel %vm1256, %v1190, 0.0
  %v1285 = vadd.f32 %v1283, %v1284
  %v1286 = vsel %vm1256, %v1191, 0.0
  %v1287 = vadd.f32 %v1285, %v1286
  %v1288 = vrot.slane %v1287, 4
  %v1289 = vadd.f32 %v1287, %v1288
  %v1290 = vrot.slane %v1289, 2
  %v1291 = vadd.f32 %v1289, %v1290
  %v1292 = vrot.slane %v1291, 1
  %v1293 = vadd.f32 %v1291, %v1292
  %v1294 = vmul.f32 %v1293, 0.001953125
  %v1295 = vsel %vm1256, %v1240, 0.0
  %v1296 = vsel %vm1256, %v1241, 0.0
  %v1297 = vadd.f32 %v1295, %v1296
  %v1298 = vsel %vm1256, %v1242, 0.0
  %v1299 = vadd.f32 %v1297, %v1298
  %v1300 = vsel %vm1256, %v1243, 0.0
  %v1301 = vadd.f32 %v1299, %v1300
  %v1302 = vsel %vm1256, %v1244, 0.0
  %v1303 = vadd.f32 %v1301, %v1302
  %v1304 = vsel %vm1256, %v1245, 0.0
  %v1305 = vadd.f32 %v1303, %v1304
  %v1306 = vsel %vm1256, %v1246, 0.0
  %v1307 = vadd.f32 %v1305, %v1306
  %v1308 = vsel %vm1256, %v1247, 0.0
  %v1309 = vadd.f32 %v1307, %v1308
  %v1310 = vsel %vm1256, %v1248, 0.0
  %v1311 = vadd.f32 %v1309, %v1310
  %v1312 = vsel %vm1256, %v1249, 0.0
  %v1313 = vadd.f32 %v1311, %v1312
  %v1314 = vsel %vm1256, %v1250, 0.0
  %v1315 = vadd.f32 %v1313, %v1314
  %v1316 = vsel %vm1256, %v1251, 0.0
  %v1317 = vadd.f32 %v1315, %v1316
  %v1318 = vsel %vm1256, %v1252, 0.0
  %v1319 = vadd.f32 %v1317, %v1318
  %v1320 = vsel %vm1256, %v1253, 0.0
  %v1321 = vadd.f32 %v1319, %v1320
  %v1322 = vsel %vm1256, %v1254, 0.0
  %v1323 = vadd.f32 %v1321, %v1322
  %v1324 = vsel %vm1256, %v1255, 0.0
  %v1325 = vadd.f32 %v1323, %v1324
  %v1326 = vrot.slane %v1325, 4
  %v1327 = vadd.f32 %v1325, %v1326
  %v1328 = vrot.slane %v1327, 2
  %v1329 = vadd.f32 %v1327, %v1328
  %v1330 = vrot.slane %v1329, 1
  %v1331 = vadd.f32 %v1329, %v1330
  %v1332 = vmul.f32 %v1331, 0.001953125
  %v1333 = vmul.f32 %v1294, %v1294
  %v1334 = vsub.f32 %v1332, %v1333
  %v1335 = vadd.f32 %v1334, 1e-05
  %v1336 = vrsqrt.pop %v1335
  %v1337 = vmul.f32 %v1336, %v1335
  %v1338 = vmul.f32 %v1337, %v1336
  %v1339 = vmul.f32 0.5, %v1338
  %v1340 = vsub.f32 1.5, %v1339
  %v1341 = vmul.f32 %v1336, %v1340
  %vm1342 = vweird.f32 %v1335
  %vm1343 = vweird.f32 %v1336
  %vm1344 = vmor %vm1342, %vm1343
  %v1345 = vsel %vm1344, %v1336, %v1341
  %v1346 = vld [vmem:[%s2] sm:$0x1]
  %v1347 = vmul.f32 %v1345, %v1346
  %v1348 = vld [vmem:[%s3] sm:$0x1]
  %v1349 = vmul.f32 %v1294, %v1347
  %v1350 = vsub.f32 %v1348, %v1349
  %1352 = vrot.lane.b32.xlu0 %v1347, 32
  %v1353 = vpop.permute.xlu0 %1352
  %1355 = vrot.lane.b32.xlu0 %v1347, 64
  %v1356 = vpop.permute.xlu0 %1355
  %1358 = vrot.lane.b32.xlu0 %v1347, 96
  %v1359 = vpop.permute.xlu0 %1358
  %v1361 = vsel %vm1256, %v1347, %v1353
  %v1362 = vsel %vm554, %v1361, %v1356
  %vm1363 = vcmask 785408
  %v1364 = vsel %vm1363, %v1362, %v1359
  %v1366 = vperm.slane %v1350, 0
  %1367 = vrot.lane.b32.xlu0 %v1366, 32
  %v1368 = vpop.permute.xlu0 %1367
  %1370 = vrot.lane.b32.xlu0 %v1366, 64
  %v1371 = vpop.permute.xlu0 %1370
  %1373 = vrot.lane.b32.xlu0 %v1366, 96
  %v1374 = vpop.permute.xlu0 %1373
  %v1376 = vsel %vm1256, %v1350, %v1368
  %v1377 = vsel %vm554, %v1376, %v1371
  %v1378 = vsel %vm1363, %v1377, %v1374
  %v1379 = vperm.slane %v1364, 0
  %v1380 = vmul.f32 %v785, %v1379
  %v1381 = vmul.f32 %v787, %v1379
  %v1382 = vmul.f32 %v790, %v1379
  %v1383 = vmul.f32 %v792, %v1379
  %v1384 = vmul.f32 %v795, %v1379
  %v1385 = vmul.f32 %v797, %v1379
  %v1386 = vmul.f32 %v800, %v1379
  %v1387 = vmul.f32 %v802, %v1379
  %v1388 = vmul.f32 %v805, %v1379
  %v1389 = vmul.f32 %v807, %v1379
  %v1390 = vmul.f32 %v810, %v1379
  %v1391 = vmul.f32 %v812, %v1379
  %v1392 = vmul.f32 %v815, %v1379
  %v1393 = vmul.f32 %v817, %v1379
  %v1394 = vmul.f32 %v820, %v1379
  %v1395 = vmul.f32 %v822, %v1379
  %v1396 = vperm.slane %v1378, 0
  %v1397 = vadd.f32 %v1380, %v1396
  %v1398 = vadd.f32 %v1381, %v1396
  %v1399 = vadd.f32 %v1382, %v1396
  %v1400 = vadd.f32 %v1383, %v1396
  %v1401 = vadd.f32 %v1384, %v1396
  %v1402 = vadd.f32 %v1385, %v1396
  %v1403 = vadd.f32 %v1386, %v1396
  %v1404 = vadd.f32 %v1387, %v1396
  %v1405 = vadd.f32 %v1388, %v1396
  %v1406 = vadd.f32 %v1389, %v1396
  %v1407 = vadd.f32 %v1390, %v1396
  %v1408 = vadd.f32 %v1391, %v1396
  %v1409 = vadd.f32 %v1392, %v1396
  %v1410 = vadd.f32 %v1393, %v1396
  %v1411 = vadd.f32 %v1394, %v1396
  %v1412 = vadd.f32 %v1395, %v1396
  %v1413 = vmax.f32 %v1397, 0.0
  %v1414 = vmax.f32 %v1398, 0.0
  %v1415 = vmax.f32 %v1399, 0.0
  %v1416 = vmax.f32 %v1400, 0.0
  %v1417 = vmax.f32 %v1401, 0.0
  %v1418 = vmax.f32 %v1402, 0.0
  %v1419 = vmax.f32 %v1403, 0.0
  %v1420 = vmax.f32 %v1404, 0.0
  %v1421 = vmax.f32 %v1405, 0.0
  %v1422 = vmax.f32 %v1406, 0.0
  %v1423 = vmax.f32 %v1407, 0.0
  %v1424 = vmax.f32 %v1408, 0.0
  %v1425 = vmax.f32 %v1409, 0.0
  %v1426 = vmax.f32 %v1410, 0.0
  %v1427 = vmax.f32 %v1411, 0.0
  %v1428 = vmax.f32 %v1412, 0.0
  %v1429 = vpack.c.bf16 %v1413, %v1413
  %v1430 = vpack.c.bf16 %v1414, %v1414
  %v1431 = vpack.c.bf16 %v1415, %v1415
  %v1432 = vpack.c.bf16 %v1416, %v1416
  %v1433 = vpack.c.bf16 %v1417, %v1417
  %v1434 = vpack.c.bf16 %v1418, %v1418
  %v1435 = vpack.c.bf16 %v1419, %v1419
  %v1436 = vpack.c.bf16 %v1420, %v1420
  %v1437 = vpack.c.bf16 %v1421, %v1421
  %v1438 = vpack.c.bf16 %v1422, %v1422
  %v1439 = vpack.c.bf16 %v1423, %v1423
  %v1440 = vpack.c.bf16 %v1424, %v1424
  %v1441 = vpack.c.bf16 %v1425, %v1425
  %v1442 = vpack.c.bf16 %v1426, %v1426
  %v1443 = vpack.c.bf16 %v1427, %v1427
  %v1444 = vpack.c.bf16 %v1428, %v1428
  %1445 = vst [vmem:[%s4] sm:$0xf] %v1429
  %1446 = vst [vmem:[%s4 + $0x4] sm:$0xf] %v1430
  %1447 = vst [vmem:[%s4 + $0x8] sm:$0xf] %v1431
  %1448 = vst [vmem:[%s4 + $0xc] sm:$0xf] %v1432
  %1449 = vst [vmem:[%s4 + $0x10] sm:$0xf] %v1433
  %1450 = vst [vmem:[%s4 + $0x14] sm:$0xf] %v1434
  %1451 = vst [vmem:[%s4 + $0x18] sm:$0xf] %v1435
  %1452 = vst [vmem:[%s4 + $0x1c] sm:$0xf] %v1436
  %1453 = vst [vmem:[%s4 + $0x20] sm:$0xf] %v1437
  %1454 = vst [vmem:[%s4 + $0x24] sm:$0xf] %v1438
  %1455 = vst [vmem:[%s4 + $0x28] sm:$0xf] %v1439
  %1456 = vst [vmem:[%s4 + $0x2c] sm:$0xf] %v1440
  %1457 = vst [vmem:[%s4 + $0x30] sm:$0xf] %v1441
  %1458 = vst [vmem:[%s4 + $0x34] sm:$0xf] %v1442
  %1459 = vst [vmem:[%s4 + $0x38] sm:$0xf] %v1443
  %1460 = vst [vmem:[%s4 + $0x3c] sm:$0xf] %v1444
  // Predicated region
  $region18: #{generator_forward.7} parent=0 // pred_check
    _
  $region19: #{generator_forward.7} parent=0 // pred_check_branch
    %1462 = sbr.rel (0) target = $region21
  $region20: #{generator_forward.7} parent=0 // pred_region
    _
  $region21: #{generator_forward.7} parent=0 // pred_fallthru
    _
  // Predicated region
  $region22: #{generator_forward.7} parent=0 // pred_check
    _
  $region23: #{generator_forward.7} parent=0 // pred_check_branch
    %1464 = sbr.rel (0) target = $region25
  $region24: #{generator_forward.7} parent=0 // pred_region
    _
  $region25: #{generator_forward.7} parent=0 // pred_fallthru
    _

// kernel: generator_forward.8
$region0: #{generator_forward.8}
  #allocation0 [shape = 'u32[]', space=smem, size = 0x4, offset = 0x4, fixed_abs, tag = 'smem constant byte address 0x4 - core index']
  #allocation1 [shape = 'u32[72,128]{1,0:T(1,128)}', space=vmem, size = 0x9000, scoped, tag = 'internal scratch']
  %s0 = inlined_call_operand.vmem [shape: bf16[512,288], index: 0, kind: input, shape index: {}]
  %s1 = inlined_call_operand.vmem [shape: bf16[288,64], index: 1, kind: input, shape index: {}]
  %s2 = inlined_call_operand.vmem [shape: f32[1,16], index: 2, kind: input, shape index: {}]
  %s3 = inlined_call_operand.vmem [shape: f32[1,16], index: 3, kind: input, shape index: {}]
  %s4 = inlined_call_operand.vmem [shape: bf16[512,64], index: 4, kind: output, shape index: {}]
  %s5 = sld [smem:[#allocation0]]
  $region26: #{generator_forward.8} parent=0
    _
  %s7 = ssub.s32 1, %s5
  %s8 = scalar_select 0, %s7, %s5
  // Predicated region
  $region2: #{generator_forward.8} parent=0 // pred_check
    _
  $region3: #{generator_forward.8} parent=0 // pred_check_branch
    %10 = sbr.rel (0) target = $region5
  $region4: #{generator_forward.8} parent=0 // pred_region
    _
  $region5: #{generator_forward.8} parent=0 // pred_fallthru
    _
  // Predicated region
  $region6: #{generator_forward.8} parent=0 // pred_check
    _
  $region7: #{generator_forward.8} parent=0 // pred_check_branch
    %12 = sbr.rel (0) target = $region9
  $region8: #{generator_forward.8} parent=0 // pred_region
    _
  $region9: #{generator_forward.8} parent=0 // pred_fallthru
    _
  // Predicated region
  $region10: #{generator_forward.8} parent=0 // pred_check
    _
  $region11: #{generator_forward.8} parent=0 // pred_check_branch
    %14 = sbr.rel (0) target = $region13
  $region12: #{generator_forward.8} parent=0 // pred_region
    _
  $region13: #{generator_forward.8} parent=0 // pred_fallthru
    _
  // Predicated region
  $region14: #{generator_forward.8} parent=0 // pred_check
    _
  $region15: #{generator_forward.8} parent=0 // pred_check_branch
    %16 = sbr.rel (0) target = $region17
  $region16: #{generator_forward.8} parent=0 // pred_region
    _
  $region17: #{generator_forward.8} parent=0 // pred_fallthru
    _
  %v18 = vld [vmem:[%s0] sm:$0xff]
  %v19 = vld [vmem:[%s0 + $0x8] sm:$0xf]
  %v20 = vld [vmem:[%s0 + $0xc] sm:$0xff]
  %v21 = vld [vmem:[%s0 + $0x14] sm:$0xf]
  %v22 = vld [vmem:[%s0 + $0x18] sm:$0xff]
  %v23 = vld [vmem:[%s0 + $0x20] sm:$0xf]
  %v24 = vld [vmem:[%s0 + $0x24] sm:$0xff]
  %v25 = vld [vmem:[%s0 + $0x2c] sm:$0xf]
  %v26 = vld [vmem:[%s0 + $0x30] sm:$0xff]
  %v27 = vld [vmem:[%s0 + $0x38] sm:$0xf]
  %v28 = vld [vmem:[%s0 + $0x3c] sm:$0xff]
  %v29 = vld [vmem:[%s0 + $0x44] sm:$0xf]
  %v30 = vld [vmem:[%s0 + $0x48] sm:$0xff]
  %v31 = vld [vmem:[%s0 + $0x50] sm:$0xf]
  %v32 = vld [vmem:[%s0 + $0x54] sm:$0xff]
  %v33 = vld [vmem:[%s0 + $0x5c] sm:$0xf]
  %v34 = vld [vmem:[%s0 + $0x60] sm:$0xff]
  %v35 = vld [vmem:[%s0 + $0x68] sm:$0xf]
  %v36 = vld [vmem:[%s0 + $0x6c] sm:$0xff]
  %v37 = vld [vmem:[%s0 + $0x74] sm:$0xf]
  %v38 = vld [vmem:[%s0 + $0x78] sm:$0xff]
  %v39 = vld [vmem:[%s0 + $0x80] sm:$0xf]
  %v40 = vld [vmem:[%s0 + $0x84] sm:$0xff]
  %v41 = vld [vmem:[%s0 + $0x8c] sm:$0xf]
  %v42 = vld [vmem:[%s0 + $0x90] sm:$0xff]
  %v43 = vld [vmem:[%s0 + $0x98] sm:$0xf]
  %v44 = vld [vmem:[%s0 + $0x9c] sm:$0xff]
  %v45 = vld [vmem:[%s0 + $0xa4] sm:$0xf]
  %v46 = vld [vmem:[%s0 + $0xa8] sm:$0xff]
  %v47 = vld [vmem:[%s0 + $0xb0] sm:$0xf]
  %v48 = vld [vmem:[%s0 + $0xb4] sm:$0xff]
  %v49 = vld [vmem:[%s0 + $0xbc] sm:$0xf]
  %v50 = vld [vmem:[%s0 + $0xc0] sm:$0xff]
  %v51 = vld [vmem:[%s0 + $0xc8] sm:$0xf]
  %v52 = vld [vmem:[%s0 + $0xcc] sm:$0xff]
  %v53 = vld [vmem:[%s0 + $0xd4] sm:$0xf]
  %v54 = vld [vmem:[%s0 + $0xd8] sm:$0xff]
  %v55 = vld [vmem:[%s0 + $0xe0] sm:$0xf]
  %v56 = vld [vmem:[%s0 + $0xe4] sm:$0xff]
  %v57 = vld [vmem:[%s0 + $0xec] sm:$0xf]
  %v58 = vld [vmem:[%s0 + $0xf0] sm:$0xff]
  %v59 = vld [vmem:[%s0 + $0xf8] sm:$0xf]
  %v60 = vld [vmem:[%s0 + $0xfc] sm:$0xff]
  %v61 = vld [vmem:[%s0 + $0x104] sm:$0xf]
  %v62 = vld [vmem:[%s0 + $0x108] sm:$0xff]
  %v63 = vld [vmem:[%s0 + $0x110] sm:$0xf]
  %v64 = vld [vmem:[%s0 + $0x114] sm:$0xff]
  %v65 = vld [vmem:[%s0 + $0x11c] sm:$0xf]
  %v66 = vld [vmem:[%s0 + $0x120] sm:$0xff]
  %v67 = vld [vmem:[%s0 + $0x128] sm:$0xf]
  %v68 = vld [vmem:[%s0 + $0x12c] sm:$0xff]
  %v69 = vld [vmem:[%s0 + $0x134] sm:$0xf]
  %v70 = vld [vmem:[%s0 + $0x138] sm:$0xff]
  %v71 = vld [vmem:[%s0 + $0x140] sm:$0xf]
  %v72 = vld [vmem:[%s0 + $0x144] sm:$0xff]
  %v73 = vld [vmem:[%s0 + $0x14c] sm:$0xf]
  %v74 = vld [vmem:[%s0 + $0x150] sm:$0xff]
  %v75 = vld [vmem:[%s0 + $0x158] sm:$0xf]
  %v76 = vld [vmem:[%s0 + $0x15c] sm:$0xff]
  %v77 = vld [vmem:[%s0 + $0x164] sm:$0xf]
  %v78 = vld [vmem:[%s0 + $0x168] sm:$0xff]
  %v79 = vld [vmem:[%s0 + $0x170] sm:$0xf]
  %v80 = vld [vmem:[%s0 + $0x174] sm:$0xff]
  %v81 = vld [vmem:[%s0 + $0x17c] sm:$0xf]
  %v82 = vld [vmem:[%s0 + $0x180] sm:$0xff]
  %v83 = vld [vmem:[%s0 + $0x188] sm:$0xf]
  %v84 = vld [vmem:[%s0 + $0x18c] sm:$0xff]
  %v85 = vld [vmem:[%s0 + $0x194] sm:$0xf]
  %v86 = vld [vmem:[%s0 + $0x198] sm:$0xff]
  %v87 = vld [vmem:[%s0 + $0x1a0] sm:$0xf]
  %v88 = vld [vmem:[%s0 + $0x1a4] sm:$0xff]
  %v89 = vld [vmem:[%s0 + $0x1ac] sm:$0xf]
  %v90 = vld [vmem:[%s0 + $0x1b0] sm:$0xff]
  %v91 = vld [vmem:[%s0 + $0x1b8] sm:$0xf]
  %v92 = vld [vmem:[%s0 + $0x1bc] sm:$0xff]
  %v93 = vld [vmem:[%s0 + $0x1c4] sm:$0xf]
  %v94 = vld [vmem:[%s0 + $0x1c8] sm:$0xff]
  %v95 = vld [vmem:[%s0 + $0x1d0] sm:$0xf]
  %v96 = vld [vmem:[%s0 + $0x1d4] sm:$0xff]
  %v97 = vld [vmem:[%s0 + $0x1dc] sm:$0xf]
  %v98 = vld [vmem:[%s0 + $0x1e0] sm:$0xff]
  %v99 = vld [vmem:[%s0 + $0x1e8] sm:$0xf]
  %v100 = vld [vmem:[%s0 + $0x1ec] sm:$0xff]
  %v101 = vld [vmem:[%s0 + $0x1f4] sm:$0xf]
  %v102 = vld [vmem:[%s0 + $0x1f8] sm:$0xff]
  %v103 = vld [vmem:[%s0 + $0x200] sm:$0xf]
  %v104 = vld [vmem:[%s0 + $0x204] sm:$0xff]
  %v105 = vld [vmem:[%s0 + $0x20c] sm:$0xf]
  %v106 = vld [vmem:[%s0 + $0x210] sm:$0xff]
  %v107 = vld [vmem:[%s0 + $0x218] sm:$0xf]
  %v108 = vld [vmem:[%s0 + $0x21c] sm:$0xff]
  %v109 = vld [vmem:[%s0 + $0x224] sm:$0xf]
  %v110 = vld [vmem:[%s0 + $0x228] sm:$0xff]
  %v111 = vld [vmem:[%s0 + $0x230] sm:$0xf]
  %v112 = vld [vmem:[%s0 + $0x234] sm:$0xff]
  %v113 = vld [vmem:[%s0 + $0x23c] sm:$0xf]
  %v114 = vld [vmem:[%s0 + $0x240] sm:$0xff]
  %v115 = vld [vmem:[%s0 + $0x248] sm:$0xf]
  %v116 = vld [vmem:[%s0 + $0x24c] sm:$0xff]
  %v117 = vld [vmem:[%s0 + $0x254] sm:$0xf]
  %v118 = vld [vmem:[%s0 + $0x258] sm:$0xff]
  %v119 = vld [vmem:[%s0 + $0x260] sm:$0xf]
  %v120 = vld [vmem:[%s0 + $0x264] sm:$0xff]
  %v121 = vld [vmem:[%s0 + $0x26c] sm:$0xf]
  %v122 = vld [vmem:[%s0 + $0x270] sm:$0xff]
  %v123 = vld [vmem:[%s0 + $0x278] sm:$0xf]
  %v124 = vld [vmem:[%s0 + $0x27c] sm:$0xff]
  %v125 = vld [vmem:[%s0 + $0x284] sm:$0xf]
  %v126 = vld [vmem:[%s0 + $0x288] sm:$0xff]
  %v127 = vld [vmem:[%s0 + $0x290] sm:$0xf]
  %v128 = vld [vmem:[%s0 + $0x294] sm:$0xff]
  %v129 = vld [vmem:[%s0 + $0x29c] sm:$0xf]
  %v130 = vld [vmem:[%s0 + $0x2a0] sm:$0xff]
  %v131 = vld [vmem:[%s0 + $0x2a8] sm:$0xf]
  %v132 = vld [vmem:[%s0 + $0x2ac] sm:$0xff]
  %v133 = vld [vmem:[%s0 + $0x2b4] sm:$0xf]
  %v134 = vld [vmem:[%s0 + $0x2b8] sm:$0xff]
  %v135 = vld [vmem:[%s0 + $0x2c0] sm:$0xf]
  %v136 = vld [vmem:[%s0 + $0x2c4] sm:$0xff]
  %v137 = vld [vmem:[%s0 + $0x2cc] sm:$0xf]
  %v138 = vld [vmem:[%s0 + $0x2d0] sm:$0xff]
  %v139 = vld [vmem:[%s0 + $0x2d8] sm:$0xf]
  %v140 = vld [vmem:[%s0 + $0x2dc] sm:$0xff]
  %v141 = vld [vmem:[%s0 + $0x2e4] sm:$0xf]
  %v142 = vld [vmem:[%s0 + $0x2e8] sm:$0xff]
  %v143 = vld [vmem:[%s0 + $0x2f0] sm:$0xf]
  %v144 = vld [vmem:[%s0 + $0x2f4] sm:$0xff]
  %v145 = vld [vmem:[%s0 + $0x2fc] sm:$0xf]
  %v146 = vld [vmem:[%s1] sm:$0xf]
  %v147 = vld [vmem:[%s1 + $0x4] sm:$0xf]
  %v148 = vld [vmem:[%s1 + $0x8] sm:$0xf]
  %v149 = vld [vmem:[%s1 + $0xc] sm:$0xf]
  %v150 = vld [vmem:[%s1 + $0x10] sm:$0xf]
  %v151 = vld [vmem:[%s1 + $0x14] sm:$0xf]
  %v152 = vld [vmem:[%s1 + $0x18] sm:$0xf]
  %v153 = vld [vmem:[%s1 + $0x1c] sm:$0xf]
  %v154 = vld [vmem:[%s1 + $0x20] sm:$0xf]
  %v155 = vld [vmem:[%s1 + $0x24] sm:$0xf]
  %v156 = vld [vmem:[%s1 + $0x28] sm:$0xf]
  %v157 = vld [vmem:[%s1 + $0x2c] sm:$0xf]
  %v158 = vld [vmem:[%s1 + $0x30] sm:$0xf]
  %v159 = vld [vmem:[%s1 + $0x34] sm:$0xf]
  %v160 = vld [vmem:[%s1 + $0x38] sm:$0xf]
  %v161 = vld [vmem:[%s1 + $0x3c] sm:$0xf]
  %v162 = vld [vmem:[%s1 + $0x40] sm:$0xf]
  %v163 = vld [vmem:[%s1 + $0x44] sm:$0xf]
  %v164 = vld [vmem:[%s1 + $0x48] sm:$0xf]
  %v165 = vld [vmem:[%s1 + $0x4c] sm:$0xf]
  %v166 = vld [vmem:[%s1 + $0x50] sm:$0xf]
  %v167 = vld [vmem:[%s1 + $0x54] sm:$0xf]
  %v168 = vld [vmem:[%s1 + $0x58] sm:$0xf]
  %v169 = vld [vmem:[%s1 + $0x5c] sm:$0xf]
  %v170 = vld [vmem:[%s1 + $0x60] sm:$0xf]
  %v171 = vld [vmem:[%s1 + $0x64] sm:$0xf]
  %v172 = vld [vmem:[%s1 + $0x68] sm:$0xf]
  %v173 = vld [vmem:[%s1 + $0x6c] sm:$0xf]
  %v174 = vld [vmem:[%s1 + $0x70] sm:$0xf]
  %v175 = vld [vmem:[%s1 + $0x74] sm:$0xf]
  %v176 = vld [vmem:[%s1 + $0x78] sm:$0xf]
  %v177 = vld [vmem:[%s1 + $0x7c] sm:$0xf]
  %v178 = vld [vmem:[%s1 + $0x80] sm:$0xf]
  %v179 = vld [vmem:[%s1 + $0x84] sm:$0xf]
  %v180 = vld [vmem:[%s1 + $0x88] sm:$0xf]
  %v181 = vld [vmem:[%s1 + $0x8c] sm:$0xf]
  %v310 = vunpack.c.l.b16 %v18
  %v311 = vunpack.c.h.b16 %v18
  %v312 = vunpack.c.l.b16 %v19
  %v313 = vunpack.c.l.b16 %v20
  %v314 = vunpack.c.h.b16 %v20
  %v315 = vunpack.c.l.b16 %v21
  %v316 = vunpack.c.l.b16 %v22
  %v317 = vunpack.c.h.b16 %v22
  %v318 = vunpack.c.l.b16 %v23
  %v319 = vunpack.c.l.b16 %v24
  %v320 = vunpack.c.h.b16 %v24
  %v321 = vunpack.c.l.b16 %v25
  %v322 = vunpack.c.l.b16 %v26
  %v323 = vunpack.c.h.b16 %v26
  %v324 = vunpack.c.l.b16 %v27
  %v325 = vunpack.c.l.b16 %v28
  %v326 = vunpack.c.h.b16 %v28
  %v327 = vunpack.c.l.b16 %v29
  %v328 = vunpack.c.l.b16 %v30
  %v329 = vunpack.c.h.b16 %v30
  %v330 = vunpack.c.l.b16 %v31
  %v331 = vunpack.c.l.b16 %v32
  %v332 = vunpack.c.h.b16 %v32
  %v333 = vunpack.c.l.b16 %v33
  %v334 = vunpack.c.l.b16 %v34
  %v335 = vunpack.c.h.b16 %v34
  %v336 = vunpack.c.l.b16 %v35
  %v337 = vunpack.c.l.b16 %v36
  %v338 = vunpack.c.h.b16 %v36
  %v339 = vunpack.c.l.b16 %v37
  %v340 = vunpack.c.l.b16 %v38
  %v341 = vunpack.c.h.b16 %v38
  %v342 = vunpack.c.l.b16 %v39
  %v343 = vunpack.c.l.b16 %v40
  %v344 = vunpack.c.h.b16 %v40
  %v345 = vunpack.c.l.b16 %v41
  %v346 = vunpack.c.l.b16 %v42
  %v347 = vunpack.c.h.b16 %v42
  %v348 = vunpack.c.l.b16 %v43
  %v349 = vunpack.c.l.b16 %v44
  %v350 = vunpack.c.h.b16 %v44
  %v351 = vunpack.c.l.b16 %v45
  %v352 = vunpack.c.l.b16 %v46
  %v353 = vunpack.c.h.b16 %v46
  %v354 = vunpack.c.l.b16 %v47
  %v355 = vunpack.c.l.b16 %v48
  %v356 = vunpack.c.h.b16 %v48
  %v357 = vunpack.c.l.b16 %v49
  %v358 = vunpack.c.l.b16 %v50
  %v359 = vunpack.c.h.b16 %v50
  %v360 = vunpack.c.l.b16 %v51
  %v361 = vunpack.c.l.b16 %v52
  %v362 = vunpack.c.h.b16 %v52
  %v363 = vunpack.c.l.b16 %v53
  %v364 = vunpack.c.l.b16 %v54
  %v365 = vunpack.c.h.b16 %v54
  %v366 = vunpack.c.l.b16 %v55
  %v367 = vunpack.c.l.b16 %v56
  %v368 = vunpack.c.h.b16 %v56
  %v369 = vunpack.c.l.b16 %v57
  %v370 = vunpack.c.l.b16 %v58
  %v371 = vunpack.c.h.b16 %v58
  %v372 = vunpack.c.l.b16 %v59
  %v373 = vunpack.c.l.b16 %v60
  %v374 = vunpack.c.h.b16 %v60
  %v375 = vunpack.c.l.b16 %v61
  %v376 = vunpack.c.l.b16 %v62
  %v377 = vunpack.c.h.b16 %v62
  %v378 = vunpack.c.l.b16 %v63
  %v379 = vunpack.c.l.b16 %v64
  %v380 = vunpack.c.h.b16 %v64
  %v381 = vunpack.c.l.b16 %v65
  %v382 = vunpack.c.l.b16 %v66
  %v383 = vunpack.c.h.b16 %v66
  %v384 = vunpack.c.l.b16 %v67
  %v385 = vunpack.c.l.b16 %v68
  %v386 = vunpack.c.h.b16 %v68
  %v387 = vunpack.c.l.b16 %v69
  %v388 = vunpack.c.l.b16 %v70
  %v389 = vunpack.c.h.b16 %v70
  %v390 = vunpack.c.l.b16 %v71
  %v391 = vunpack.c.l.b16 %v72
  %v392 = vunpack.c.h.b16 %v72
  %v393 = vunpack.c.l.b16 %v73
  %v394 = vunpack.c.l.b16 %v74
  %v395 = vunpack.c.h.b16 %v74
  %v396 = vunpack.c.l.b16 %v75
  %v397 = vunpack.c.l.b16 %v76
  %v398 = vunpack.c.h.b16 %v76
  %v399 = vunpack.c.l.b16 %v77
  %v400 = vunpack.c.l.b16 %v78
  %v401 = vunpack.c.h.b16 %v78
  %v402 = vunpack.c.l.b16 %v79
  %v403 = vunpack.c.l.b16 %v80
  %v404 = vunpack.c.h.b16 %v80
  %v405 = vunpack.c.l.b16 %v81
  %v406 = vunpack.c.l.b16 %v82
  %v407 = vunpack.c.h.b16 %v82
  %v408 = vunpack.c.l.b16 %v83
  %v409 = vunpack.c.l.b16 %v84
  %v410 = vunpack.c.h.b16 %v84
  %v411 = vunpack.c.l.b16 %v85
  %v412 = vunpack.c.l.b16 %v86
  %v413 = vunpack.c.h.b16 %v86
  %v414 = vunpack.c.l.b16 %v87
  %v415 = vunpack.c.l.b16 %v88
  %v416 = vunpack.c.h.b16 %v88
  %v417 = vunpack.c.l.b16 %v89
  %v418 = vunpack.c.l.b16 %v90
  %v419 = vunpack.c.h.b16 %v90
  %v420 = vunpack.c.l.b16 %v91
  %v421 = vunpack.c.l.b16 %v92
  %v422 = vunpack.c.h.b16 %v92
  %v423 = vunpack.c.l.b16 %v93
  %v424 = vunpack.c.l.b16 %v94
  %v425 = vunpack.c.h.b16 %v94
  %v426 = vunpack.c.l.b16 %v95
  %v427 = vunpack.c.l.b16 %v96
  %v428 = vunpack.c.h.b16 %v96
  %v429 = vunpack.c.l.b16 %v97
  %v430 = vunpack.c.l.b16 %v98
  %v431 = vunpack.c.h.b16 %v98
  %v432 = vunpack.c.l.b16 %v99
  %v433 = vunpack.c.l.b16 %v100
  %v434 = vunpack.c.h.b16 %v100
  %v435 = vunpack.c.l.b16 %v101
  %v436 = vunpack.c.l.b16 %v102
  %v437 = vunpack.c.h.b16 %v102
  %v438 = vunpack.c.l.b16 %v103
  %v439 = vunpack.c.l.b16 %v104
  %v440 = vunpack.c.h.b16 %v104
  %v441 = vunpack.c.l.b16 %v105
  %v442 = vunpack.c.l.b16 %v106
  %v443 = vunpack.c.h.b16 %v106
  %v444 = vunpack.c.l.b16 %v107
  %v445 = vunpack.c.l.b16 %v108
  %v446 = vunpack.c.h.b16 %v108
  %v447 = vunpack.c.l.b16 %v109
  %v448 = vunpack.c.l.b16 %v110
  %v449 = vunpack.c.h.b16 %v110
  %v450 = vunpack.c.l.b16 %v111
  %v451 = vunpack.c.l.b16 %v112
  %v452 = vunpack.c.h.b16 %v112
  %v453 = vunpack.c.l.b16 %v113
  %v454 = vunpack.c.l.b16 %v114
  %v455 = vunpack.c.h.b16 %v114
  %v456 = vunpack.c.l.b16 %v115
  %v457 = vunpack.c.l.b16 %v116
  %v458 = vunpack.c.h.b16 %v116
  %v459 = vunpack.c.l.b16 %v117
  %v460 = vunpack.c.l.b16 %v118
  %v461 = vunpack.c.h.b16 %v118
  %v462 = vunpack.c.l.b16 %v119
  %v463 = vunpack.c.l.b16 %v120
  %v464 = vunpack.c.h.b16 %v120
  %v465 = vunpack.c.l.b16 %v121
  %v466 = vunpack.c.l.b16 %v122
  %v467 = vunpack.c.h.b16 %v122
  %v468 = vunpack.c.l.b16 %v123
  %v469 = vunpack.c.l.b16 %v124
  %v470 = vunpack.c.h.b16 %v124
  %v471 = vunpack.c.l.b16 %v125
  %v472 = vunpack.c.l.b16 %v126
  %v473 = vunpack.c.h.b16 %v126
  %v474 = vunpack.c.l.b16 %v127
  %v475 = vunpack.c.l.b16 %v128
  %v476 = vunpack.c.h.b16 %v128
  %v477 = vunpack.c.l.b16 %v129
  %v478 = vunpack.c.l.b16 %v130
  %v479 = vunpack.c.h.b16 %v130
  %v480 = vunpack.c.l.b16 %v131
  %v481 = vunpack.c.l.b16 %v132
  %v482 = vunpack.c.h.b16 %v132
  %v483 = vunpack.c.l.b16 %v133
  %v484 = vunpack.c.l.b16 %v134
  %v485 = vunpack.c.h.b16 %v134
  %v486 = vunpack.c.l.b16 %v135
  %v487 = vunpack.c.l.b16 %v136
  %v488 = vunpack.c.h.b16 %v136
  %v489 = vunpack.c.l.b16 %v137
  %v490 = vunpack.c.l.b16 %v138
  %v491 = vunpack.c.h.b16 %v138
  %v492 = vunpack.c.l.b16 %v139
  %v493 = vunpack.c.l.b16 %v140
  %v494 = vunpack.c.h.b16 %v140
  %v495 = vunpack.c.l.b16 %v141
  %v496 = vunpack.c.l.b16 %v142
  %v497 = vunpack.c.h.b16 %v142
  %v498 = vunpack.c.l.b16 %v143
  %v499 = vunpack.c.l.b16 %v144
  %v500 = vunpack.c.h.b16 %v144
  %v501 = vunpack.c.l.b16 %v145
  %v502 = vpack.c.b16 %v313, %v310
  %v503 = vpack.c.b16 %v314, %v311
  %v504 = vpack.c.b16 %v315, %v312
  %v505 = vpack.c.b16 %v319, %v316
  %v506 = vpack.c.b16 %v320, %v317
  %v507 = vpack.c.b16 %v321, %v318
  %v508 = vpack.c.b16 %v325, %v322
  %v509 = vpack.c.b16 %v326, %v323
  %v510 = vpack.c.b16 %v327, %v324
  %v511 = vpack.c.b16 %v331, %v328
  %v512 = vpack.c.b16 %v332, %v329
  %v513 = vpack.c.b16 %v333, %v330
  %v514 = vpack.c.b16 %v337, %v334
  %v515 = vpack.c.b16 %v338, %v335
  %v516 = vpack.c.b16 %v339, %v336
  %v517 = vpack.c.b16 %v343, %v340
  %v518 = vpack.c.b16 %v344, %v341
  %v519 = vpack.c.b16 %v345, %v342
  %v520 = vpack.c.b16 %v349, %v346
  %v521 = vpack.c.b16 %v350, %v347
  %v522 = vpack.c.b16 %v351, %v348
  %v523 = vpack.c.b16 %v355, %v352
  %v524 = vpack.c.b16 %v356, %v353
  %v525 = vpack.c.b16 %v357, %v354
  %v526 = vpack.c.b16 %v361, %v358
  %v527 = vpack.c.b16 %v362, %v359
  %v528 = vpack.c.b16 %v363, %v360
  %v529 = vpack.c.b16 %v367, %v364
  %v530 = vpack.c.b16 %v368, %v365
  %v531 = vpack.c.b16 %v369, %v366
  %v532 = vpack.c.b16 %v373, %v370
  %v533 = vpack.c.b16 %v374, %v371
  %v534 = vpack.c.b16 %v375, %v372
  %v535 = vpack.c.b16 %v379, %v376
  %v536 = vpack.c.b16 %v380, %v377
  %v537 = vpack.c.b16 %v381, %v378
  %v538 = vpack.c.b16 %v385, %v382
  %v539 = vpack.c.b16 %v386, %v383
  %v540 = vpack.c.b16 %v387, %v384
  %v541 = vpack.c.b16 %v391, %v388
  %v542 = vpack.c.b16 %v392, %v389
  %v543 = vpack.c.b16 %v393, %v390
  %v544 = vpack.c.b16 %v397, %v394
  %v545 = vpack.c.b16 %v398, %v395
  %v546 = vpack.c.b16 %v399, %v396
  %v547 = vpack.c.b16 %v403, %v400
  %v548 = vpack.c.b16 %v404, %v401
  %v549 = vpack.c.b16 %v405, %v402
  %v550 = vpack.c.b16 %v409, %v406
  %v551 = vpack.c.b16 %v410, %v407
  %v552 = vpack.c.b16 %v411, %v408
  %v553 = vpack.c.b16 %v415, %v412
  %v554 = vpack.c.b16 %v416, %v413
  %v555 = vpack.c.b16 %v417, %v414
  %v556 = vpack.c.b16 %v421, %v418
  %v557 = vpack.c.b16 %v422, %v419
  %v558 = vpack.c.b16 %v423, %v420
  %v559 = vpack.c.b16 %v427, %v424
  %v560 = vpack.c.b16 %v428, %v425
  %v561 = vpack.c.b16 %v429, %v426
  %v562 = vpack.c.b16 %v433, %v430
  %v563 = vpack.c.b16 %v434, %v431
  %v564 = vpack.c.b16 %v435, %v432
  %v565 = vpack.c.b16 %v439, %v436
  %v566 = vpack.c.b16 %v440, %v437
  %v567 = vpack.c.b16 %v441, %v438
  %v568 = vpack.c.b16 %v445, %v442
  %v569 = vpack.c.b16 %v446, %v443
  %v570 = vpack.c.b16 %v447, %v444
  %v571 = vpack.c.b16 %v451, %v448
  %v572 = vpack.c.b16 %v452, %v449
  %v573 = vpack.c.b16 %v453, %v450
  %v574 = vpack.c.b16 %v457, %v454
  %v575 = vpack.c.b16 %v458, %v455
  %v576 = vpack.c.b16 %v459, %v456
  %v577 = vpack.c.b16 %v463, %v460
  %v578 = vpack.c.b16 %v464, %v461
  %v579 = vpack.c.b16 %v465, %v462
  %v580 = vpack.c.b16 %v469, %v466
  %v581 = vpack.c.b16 %v470, %v467
  %v582 = vpack.c.b16 %v471, %v468
  %v583 = vpack.c.b16 %v475, %v472
  %v584 = vpack.c.b16 %v476, %v473
  %v585 = vpack.c.b16 %v477, %v474
  %v586 = vpack.c.b16 %v481, %v478
  %v587 = vpack.c.b16 %v482, %v479
  %v588 = vpack.c.b16 %v483, %v480
  %v589 = vpack.c.b16 %v487, %v484
  %v590 = vpack.c.b16 %v488, %v485
  %v591 = vpack.c.b16 %v489, %v486
  %v592 = vpack.c.b16 %v493, %v490
  %v593 = vpack.c.b16 %v494, %v491
  %v594 = vpack.c.b16 %v495, %v492
  %v595 = vpack.c.b16 %v499, %v496
  %v596 = vpack.c.b16 %v500, %v497
  %v597 = vpack.c.b16 %v501, %v498
  %v698 = vunpack.c.l.b16 %v146
  %v699 = vunpack.c.l.b16 %v147
  %v700 = vunpack.c.l.b16 %v148
  %v701 = vunpack.c.l.b16 %v149
  %v702 = vunpack.c.l.b16 %v150
  %v703 = vunpack.c.l.b16 %v151
  %v704 = vunpack.c.l.b16 %v152
  %v705 = vunpack.c.l.b16 %v153
  %v706 = vunpack.c.l.b16 %v154
  %v707 = vunpack.c.l.b16 %v155
  %v708 = vunpack.c.l.b16 %v156
  %v709 = vunpack.c.l.b16 %v157
  %v710 = vunpack.c.l.b16 %v158
  %v711 = vunpack.c.l.b16 %v159
  %v712 = vunpack.c.l.b16 %v160
  %v713 = vunpack.c.l.b16 %v161
  %v714 = vunpack.c.l.b16 %v162
  %v715 = vunpack.c.l.b16 %v163
  %v716 = vunpack.c.l.b16 %v164
  %v717 = vunpack.c.l.b16 %v165
  %v718 = vunpack.c.l.b16 %v166
  %v719 = vunpack.c.l.b16 %v167
  %v720 = vunpack.c.l.b16 %v168
  %v721 = vunpack.c.l.b16 %v169
  %v722 = vunpack.c.l.b16 %v170
  %v723 = vunpack.c.l.b16 %v171
  %v724 = vunpack.c.l.b16 %v172
  %v725 = vunpack.c.l.b16 %v173
  %v726 = vunpack.c.l.b16 %v174
  %v727 = vunpack.c.l.b16 %v175
  %v728 = vunpack.c.l.b16 %v176
  %v729 = vunpack.c.l.b16 %v177
  %v730 = vunpack.c.l.b16 %v178
  %v731 = vunpack.c.l.b16 %v179
  %v732 = vunpack.c.l.b16 %v180
  %v733 = vunpack.c.l.b16 %v181
  %v734 = vpack.c.b16 %v699, %v698
  %v735 = vpack.c.b16 %v701, %v700
  %v736 = vpack.c.b16 %v703, %v702
  %v737 = vpack.c.b16 %v705, %v704
  %v738 = vpack.c.b16 %v707, %v706
  %v739 = vpack.c.b16 %v709, %v708
  %v740 = vpack.c.b16 %v711, %v710
  %v741 = vpack.c.b16 %v713, %v712
  %v742 = vpack.c.b16 %v715, %v714
  %v743 = vpack.c.b16 %v717, %v716
  %v744 = vpack.c.b16 %v719, %v718
  %v745 = vpack.c.b16 %v721, %v720
  %v746 = vpack.c.b16 %v723, %v722
  %v747 = vpack.c.b16 %v725, %v724
  %v748 = vpack.c.b16 %v727, %v726
  %v749 = vpack.c.b16 %v729, %v728
  %v750 = vpack.c.b16 %v731, %v730
  %v751 = vpack.c.b16 %v733, %v732
  %vm770 = vcmask 261120
  %v772 = vsel %vm770, %v504, 0
  %v775 = vsel %vm770, %v507, 0
  %v778 = vsel %vm770, %v510, 0
  %v781 = vsel %vm770, %v513, 0
  %v784 = vsel %vm770, %v516, 0
  %v787 = vsel %vm770, %v519, 0
  %v790 = vsel %vm770, %v522, 0
  %v793 = vsel %vm770, %v525, 0
  %v796 = vsel %vm770, %v528, 0
  %v799 = vsel %vm770, %v531, 0
  %v802 = vsel %vm770, %v534, 0
  %v805 = vsel %vm770, %v537, 0
  %v808 = vsel %vm770, %v540, 0
  %v811 = vsel %vm770, %v543, 0
  %v814 = vsel %vm770, %v546, 0
  %v817 = vsel %vm770, %v549, 0
  %v820 = vsel %vm770, %v552, 0
  %v823 = vsel %vm770, %v555, 0
  %v826 = vsel %vm770, %v558, 0
  %v829 = vsel %vm770, %v561, 0
  %v832 = vsel %vm770, %v564, 0
  %v835 = vsel %vm770, %v567, 0
  %v838 = vsel %vm770, %v570, 0
  %v841 = vsel %vm770, %v573, 0
  %v844 = vsel %vm770, %v576, 0
  %v847 = vsel %vm770, %v579, 0
  %v850 = vsel %vm770, %v582, 0
  %v853 = vsel %vm770, %v585, 0
  %v856 = vsel %vm770, %v588, 0
  %v859 = vsel %vm770, %v591, 0
  %v862 = vsel %vm770, %v594, 0
  %v865 = vsel %vm770, %v597, 0
  %867 = vmatpush.bf16.msra.mxu0 %v741
  %868 = vmatpush.bf16.msra.mxu0 %v740
  %869 = vmatpush.bf16.msra.mxu0 %v739
  %870 = vmatpush.bf16.msra.mxu0 %v738
  %871 = vmatpush.bf16.msra.mxu0 %v737
  %872 = vmatpush.bf16.msra.mxu0 %v736
  %873 = vmatpush.bf16.msra.mxu0 %v735
  %874 = vmatpush.bf16.msra.mxu0 %v734
  %875 = vmatmul.bf16.gmra.mxu0 %v502
  %v876 = vpop.f32.mrf.mxu0
  %v877 = vadd.f32 0.0, %v876
  %v878 = vpop.f32.mrf.mxu0
  %v879 = vadd.f32 0.0, %v878
  %880 = vmatmul.bf16.gmra.mxu0 %v505
  %v881 = vpop.f32.mrf.mxu0
  %v882 = vadd.f32 0.0, %v881
  %v883 = vpop.f32.mrf.mxu0
  %v884 = vadd.f32 0.0, %v883
  %885 = vmatmul.bf16.gmra.mxu0 %v508
  %v886 = vpop.f32.mrf.mxu0
  %v887 = vadd.f32 0.0, %v886
  %v888 = vpop.f32.mrf.mxu0
  %v889 = vadd.f32 0.0, %v888
  %890 = vmatmul.bf16.gmra.mxu0 %v511
  %v891 = vpop.f32.mrf.mxu0
  %v892 = vadd.f32 0.0, %v891
  %v893 = vpop.f32.mrf.mxu0
  %v894 = vadd.f32 0.0, %v893
  %895 = vmatmul.bf16.gmra.mxu0 %v514
  %v896 = vpop.f32.mrf.mxu0
  %v897 = vadd.f32 0.0, %v896
  %v898 = vpop.f32.mrf.mxu0
  %v899 = vadd.f32 0.0, %v898
  %900 = vmatmul.bf16.gmra.mxu0 %v517
  %v901 = vpop.f32.mrf.mxu0
  %v902 = vadd.f32 0.0, %v901
  %v903 = vpop.f32.mrf.mxu0
  %v904 = vadd.f32 0.0, %v903
  %905 = vmatmul.bf16.gmra.mxu0 %v520
  %v906 = vpop.f32.mrf.mxu0
  %v907 = vadd.f32 0.0, %v906
  %v908 = vpop.f32.mrf.mxu0
  %v909 = vadd.f32 0.0, %v908
  %910 = vmatmul.bf16.gmra.mxu0 %v523
  %v911 = vpop.f32.mrf.mxu0
  %v912 = vadd.f32 0.0, %v911
  %v913 = vpop.f32.mrf.mxu0
  %v914 = vadd.f32 0.0, %v913
  %915 = vmatmul.bf16.gmra.mxu0 %v526
  %v916 = vpop.f32.mrf.mxu0
  %v917 = vadd.f32 0.0, %v916
  %v918 = vpop.f32.mrf.mxu0
  %v919 = vadd.f32 0.0, %v918
  %920 = vmatmul.bf16.gmra.mxu0 %v529
  %v921 = vpop.f32.mrf.mxu0
  %v922 = vadd.f32 0.0, %v921
  %v923 = vpop.f32.mrf.mxu0
  %v924 = vadd.f32 0.0, %v923
  %925 = vmatmul.bf16.gmra.mxu0 %v532
  %v926 = vpop.f32.mrf.mxu0
  %v927 = vadd.f32 0.0, %v926
  %v928 = vpop.f32.mrf.mxu0
  %v929 = vadd.f32 0.0, %v928
  %930 = vmatmul.bf16.gmra.mxu0 %v535
  %v931 = vpop.f32.mrf.mxu0
  %v932 = vadd.f32 0.0, %v931
  %v933 = vpop.f32.mrf.mxu0
  %v934 = vadd.f32 0.0, %v933
  %935 = vmatmul.bf16.gmra.mxu0 %v538
  %v936 = vpop.f32.mrf.mxu0
  %v937 = vadd.f32 0.0, %v936
  %v938 = vpop.f32.mrf.mxu0
  %v939 = vadd.f32 0.0, %v938
  %940 = vmatmul.bf16.gmra.mxu0 %v541
  %v941 = vpop.f32.mrf.mxu0
  %v942 = vadd.f32 0.0, %v941
  %v943 = vpop.f32.mrf.mxu0
  %v944 = vadd.f32 0.0, %v943
  %945 = vmatmul.bf16.gmra.mxu0 %v544
  %v946 = vpop.f32.mrf.mxu0
  %v947 = vadd.f32 0.0, %v946
  %v948 = vpop.f32.mrf.mxu0
  %v949 = vadd.f32 0.0, %v948
  %950 = vmatmul.bf16.gmra.mxu0 %v547
  %v951 = vpop.f32.mrf.mxu0
  %v952 = vadd.f32 0.0, %v951
  %v953 = vpop.f32.mrf.mxu0
  %v954 = vadd.f32 0.0, %v953
  %955 = vmatmul.bf16.gmra.mxu0 %v550
  %v956 = vpop.f32.mrf.mxu0
  %v957 = vadd.f32 0.0, %v956
  %v958 = vpop.f32.mrf.mxu0
  %v959 = vadd.f32 0.0, %v958
  %960 = vmatmul.bf16.gmra.mxu0 %v553
  %v961 = vpop.f32.mrf.mxu0
  %v962 = vadd.f32 0.0, %v961
  %v963 = vpop.f32.mrf.mxu0
  %v964 = vadd.f32 0.0, %v963
  %965 = vmatmul.bf16.gmra.mxu0 %v556
  %v966 = vpop.f32.mrf.mxu0
  %v967 = vadd.f32 0.0, %v966
  %v968 = vpop.f32.mrf.mxu0
  %v969 = vadd.f32 0.0, %v968
  %970 = vmatmul.bf16.gmra.mxu0 %v559
  %v971 = vpop.f32.mrf.mxu0
  %v972 = vadd.f32 0.0, %v971
  %v973 = vpop.f32.mrf.mxu0
  %v974 = vadd.f32 0.0, %v973
  %975 = vmatmul.bf16.gmra.mxu0 %v562
  %v976 = vpop.f32.mrf.mxu0
  %v977 = vadd.f32 0.0, %v976
  %v978 = vpop.f32.mrf.mxu0
  %v979 = vadd.f32 0.0, %v978
  %980 = vmatmul.bf16.gmra.mxu0 %v565
  %v981 = vpop.f32.mrf.mxu0
  %v982 = vadd.f32 0.0, %v981
  %v983 = vpop.f32.mrf.mxu0
  %v984 = vadd.f32 0.0, %v983
  %985 = vmatmul.bf16.gmra.mxu0 %v568
  %v986 = vpop.f32.mrf.mxu0
  %v987 = vadd.f32 0.0, %v986
  %v988 = vpop.f32.mrf.mxu0
  %v989 = vadd.f32 0.0, %v988
  %990 = vmatmul.bf16.gmra.mxu0 %v571
  %v991 = vpop.f32.mrf.mxu0
  %v992 = vadd.f32 0.0, %v991
  %v993 = vpop.f32.mrf.mxu0
  %v994 = vadd.f32 0.0, %v993
  %995 = vmatmul.bf16.gmra.mxu0 %v574
  %v996 = vpop.f32.mrf.mxu0
  %v997 = vadd.f32 0.0, %v996
  %v998 = vpop.f32.mrf.mxu0
  %v999 = vadd.f32 0.0, %v998
  %1000 = vmatmul.bf16.gmra.mxu0 %v577
  %v1001 = vpop.f32.mrf.mxu0
  %v1002 = vadd.f32 0.0, %v1001
  %v1003 = vpop.f32.mrf.mxu0
  %v1004 = vadd.f32 0.0, %v1003
  %1005 = vmatmul.bf16.gmra.mxu0 %v580
  %v1006 = vpop.f32.mrf.mxu0
  %v1007 = vadd.f32 0.0, %v1006
  %v1008 = vpop.f32.mrf.mxu0
  %v1009 = vadd.f32 0.0, %v1008
  %1010 = vmatmul.bf16.gmra.mxu0 %v583
  %v1011 = vpop.f32.mrf.mxu0
  %v1012 = vadd.f32 0.0, %v1011
  %v1013 = vpop.f32.mrf.mxu0
  %v1014 = vadd.f32 0.0, %v1013
  %1015 = vmatmul.bf16.gmra.mxu0 %v586
  %v1016 = vpop.f32.mrf.mxu0
  %v1017 = vadd.f32 0.0, %v1016
  %v1018 = vpop.f32.mrf.mxu0
  %v1019 = vadd.f32 0.0, %v1018
  %1020 = vmatmul.bf16.gmra.mxu0 %v589
  %v1021 = vpop.f32.mrf.mxu0
  %v1022 = vadd.f32 0.0, %v1021
  %v1023 = vpop.f32.mrf.mxu0
  %v1024 = vadd.f32 0.0, %v1023
  %1025 = vmatmul.bf16.gmra.mxu0 %v592
  %v1026 = vpop.f32.mrf.mxu0
  %v1027 = vadd.f32 0.0, %v1026
  %v1028 = vpop.f32.mrf.mxu0
  %v1029 = vadd.f32 0.0, %v1028
  %1030 = vmatmul.bf16.gmra.mxu0 %v595
  %v1031 = vpop.f32.mrf.mxu0
  %v1032 = vadd.f32 0.0, %v1031
  %v1033 = vpop.f32.mrf.mxu0
  %v1034 = vadd.f32 0.0, %v1033
  %1035 = vdwg.mxu0
  %1036 = vmatpush.bf16.msra.mxu0 %v749
  %1037 = vmatpush.bf16.msra.mxu0 %v748
  %1038 = vmatpush.bf16.msra.mxu0 %v747
  %1039 = vmatpush.bf16.msra.mxu0 %v746
  %1040 = vmatpush.bf16.msra.mxu0 %v745
  %1041 = vmatpush.bf16.msra.mxu0 %v744
  %1042 = vmatpush.bf16.msra.mxu0 %v743
  %1043 = vmatpush.bf16.msra.mxu0 %v742
  %1044 = vmatmul.bf16.gmra.mxu0 %v503
  %v1045 = vpop.f32.mrf.mxu0
  %v1046 = vadd.f32 %v877, %v1045
  %v1047 = vpop.f32.mrf.mxu0
  %v1048 = vadd.f32 %v879, %v1047
  %1049 = vmatmul.bf16.gmra.mxu0 %v506
  %v1050 = vpop.f32.mrf.mxu0
  %v1051 = vadd.f32 %v882, %v1050
  %v1052 = vpop.f32.mrf.mxu0
  %v1053 = vadd.f32 %v884, %v1052
  %1054 = vmatmul.bf16.gmra.mxu0 %v509
  %v1055 = vpop.f32.mrf.mxu0
  %v1056 = vadd.f32 %v887, %v1055
  %v1057 = vpop.f32.mrf.mxu0
  %v1058 = vadd.f32 %v889, %v1057
  %1059 = vmatmul.bf16.gmra.mxu0 %v512
  %v1060 = vpop.f32.mrf.mxu0
  %v1061 = vadd.f32 %v892, %v1060
  %v1062 = vpop.f32.mrf.mxu0
  %v1063 = vadd.f32 %v894, %v1062
  %1064 = vmatmul.bf16.gmra.mxu0 %v515
  %v1065 = vpop.f32.mrf.mxu0
  %v1066 = vadd.f32 %v897, %v1065
  %v1067 = vpop.f32.mrf.mxu0
  %v1068 = vadd.f32 %v899, %v1067
  %1069 = vmatmul.bf16.gmra.mxu0 %v518
  %v1070 = vpop.f32.mrf.mxu0
  %v1071 = vadd.f32 %v902, %v1070
  %v1072 = vpop.f32.mrf.mxu0
  %v1073 = vadd.f32 %v904, %v1072
  %1074 = vmatmul.bf16.gmra.mxu0 %v521
  %v1075 = vpop.f32.mrf.mxu0
  %v1076 = vadd.f32 %v907, %v1075
  %v1077 = vpop.f32.mrf.mxu0
  %v1078 = vadd.f32 %v909, %v1077
  %1079 = vmatmul.bf16.gmra.mxu0 %v524
  %v1080 = vpop.f32.mrf.mxu0
  %v1081 = vadd.f32 %v912, %v1080
  %v1082 = vpop.f32.mrf.mxu0
  %v1083 = vadd.f32 %v914, %v1082
  %1084 = vmatmul.bf16.gmra.mxu0 %v527
  %v1085 = vpop.f32.mrf.mxu0
  %v1086 = vadd.f32 %v917, %v1085
  %v1087 = vpop.f32.mrf.mxu0
  %v1088 = vadd.f32 %v919, %v1087
  %1089 = vmatmul.bf16.gmra.mxu0 %v530
  %v1090 = vpop.f32.mrf.mxu0
  %v1091 = vadd.f32 %v922, %v1090
  %v1092 = vpop.f32.mrf.mxu0
  %v1093 = vadd.f32 %v924, %v1092
  %1094 = vmatmul.bf16.gmra.mxu0 %v533
  %v1095 = vpop.f32.mrf.mxu0
  %v1096 = vadd.f32 %v927, %v1095
  %v1097 = vpop.f32.mrf.mxu0
  %v1098 = vadd.f32 %v929, %v1097
  %1099 = vmatmul.bf16.gmra.mxu0 %v536
  %v1100 = vpop.f32.mrf.mxu0
  %v1101 = vadd.f32 %v932, %v1100
  %v1102 = vpop.f32.mrf.mxu0
  %v1103 = vadd.f32 %v934, %v1102
  %1104 = vmatmul.bf16.gmra.mxu0 %v539
  %v1105 = vpop.f32.mrf.mxu0
  %v1106 = vadd.f32 %v937, %v1105
  %v1107 = vpop.f32.mrf.mxu0
  %v1108 = vadd.f32 %v939, %v1107
  %1109 = vmatmul.bf16.gmra.mxu0 %v542
  %v1110 = vpop.f32.mrf.mxu0
  %v1111 = vadd.f32 %v942, %v1110
  %v1112 = vpop.f32.mrf.mxu0
  %v1113 = vadd.f32 %v944, %v1112
  %1114 = vmatmul.bf16.gmra.mxu0 %v545
  %v1115 = vpop.f32.mrf.mxu0
  %v1116 = vadd.f32 %v947, %v1115
  %v1117 = vpop.f32.mrf.mxu0
  %v1118 = vadd.f32 %v949, %v1117
  %1119 = vmatmul.bf16.gmra.mxu0 %v548
  %v1120 = vpop.f32.mrf.mxu0
  %v1121 = vadd.f32 %v952, %v1120
  %v1122 = vpop.f32.mrf.mxu0
  %v1123 = vadd.f32 %v954, %v1122
  %1124 = vmatmul.bf16.gmra.mxu0 %v551
  %v1125 = vpop.f32.mrf.mxu0
  %v1126 = vadd.f32 %v957, %v1125
  %v1127 = vpop.f32.mrf.mxu0
  %v1128 = vadd.f32 %v959, %v1127
  %1129 = vmatmul.bf16.gmra.mxu0 %v554
  %v1130 = vpop.f32.mrf.mxu0
  %v1131 = vadd.f32 %v962, %v1130
  %v1132 = vpop.f32.mrf.mxu0
  %v1133 = vadd.f32 %v964, %v1132
  %1134 = vmatmul.bf16.gmra.mxu0 %v557
  %v1135 = vpop.f32.mrf.mxu0
  %v1136 = vadd.f32 %v967, %v1135
  %v1137 = vpop.f32.mrf.mxu0
  %v1138 = vadd.f32 %v969, %v1137
  %1139 = vmatmul.bf16.gmra.mxu0 %v560
  %v1140 = vpop.f32.mrf.mxu0
  %v1141 = vadd.f32 %v972, %v1140
  %v1142 = vpop.f32.mrf.mxu0
  %v1143 = vadd.f32 %v974, %v1142
  %1144 = vmatmul.bf16.gmra.mxu0 %v563
  %v1145 = vpop.f32.mrf.mxu0
  %v1146 = vadd.f32 %v977, %v1145
  %v1147 = vpop.f32.mrf.mxu0
  %v1148 = vadd.f32 %v979, %v1147
  %1149 = vmatmul.bf16.gmra.mxu0 %v566
  %v1150 = vpop.f32.mrf.mxu0
  %v1151 = vadd.f32 %v982, %v1150
  %v1152 = vpop.f32.mrf.mxu0
  %v1153 = vadd.f32 %v984, %v1152
  %1154 = vmatmul.bf16.gmra.mxu0 %v569
  %v1155 = vpop.f32.mrf.mxu0
  %v1156 = vadd.f32 %v987, %v1155
  %v1157 = vpop.f32.mrf.mxu0
  %v1158 = vadd.f32 %v989, %v1157
  %1159 = vmatmul.bf16.gmra.mxu0 %v572
  %v1160 = vpop.f32.mrf.mxu0
  %v1161 = vadd.f32 %v992, %v1160
  %v1162 = vpop.f32.mrf.mxu0
  %v1163 = vadd.f32 %v994, %v1162
  %1164 = vmatmul.bf16.gmra.mxu0 %v575
  %v1165 = vpop.f32.mrf.mxu0
  %v1166 = vadd.f32 %v997, %v1165
  %v1167 = vpop.f32.mrf.mxu0
  %v1168 = vadd.f32 %v999, %v1167
  %1169 = vmatmul.bf16.gmra.mxu0 %v578
  %v1170 = vpop.f32.mrf.mxu0
  %v1171 = vadd.f32 %v1002, %v1170
  %v1172 = vpop.f32.mrf.mxu0
  %v1173 = vadd.f32 %v1004, %v1172
  %1174 = vmatmul.bf16.gmra.mxu0 %v581
  %v1175 = vpop.f32.mrf.mxu0
  %v1176 = vadd.f32 %v1007, %v1175
  %v1177 = vpop.f32.mrf.mxu0
  %v1178 = vadd.f32 %v1009, %v1177
  %1179 = vmatmul.bf16.gmra.mxu0 %v584
  %v1180 = vpop.f32.mrf.mxu0
  %v1181 = vadd.f32 %v1012, %v1180
  %v1182 = vpop.f32.mrf.mxu0
  %v1183 = vadd.f32 %v1014, %v1182
  %1184 = vmatmul.bf16.gmra.mxu0 %v587
  %v1185 = vpop.f32.mrf.mxu0
  %v1186 = vadd.f32 %v1017, %v1185
  %v1187 = vpop.f32.mrf.mxu0
  %v1188 = vadd.f32 %v1019, %v1187
  %1189 = vmatmul.bf16.gmra.mxu0 %v590
  %v1190 = vpop.f32.mrf.mxu0
  %v1191 = vadd.f32 %v1022, %v1190
  %v1192 = vpop.f32.mrf.mxu0
  %v1193 = vadd.f32 %v1024, %v1192
  %1194 = vmatmul.bf16.gmra.mxu0 %v593
  %v1195 = vpop.f32.mrf.mxu0
  %v1196 = vadd.f32 %v1027, %v1195
  %v1197 = vpop.f32.mrf.mxu0
  %v1198 = vadd.f32 %v1029, %v1197
  %1199 = vmatmul.bf16.gmra.mxu0 %v596
  %v1200 = vpop.f32.mrf.mxu0
  %v1201 = vadd.f32 %v1032, %v1200
  %v1202 = vpop.f32.mrf.mxu0
  %v1203 = vadd.f32 %v1034, %v1202
  %1204 = vdwg.mxu0
  %1205 = vmatpush.bf16.msra.mxu0 0
  %1206 = vmatpush.bf16.msra.mxu0 0
  %1207 = vmatpush.bf16.msra.mxu0 0
  %1208 = vmatpush.bf16.msra.mxu0 0
  %1209 = vmatpush.bf16.msra.mxu0 0
  %1210 = vmatpush.bf16.msra.mxu0 0
  %1211 = vmatpush.bf16.msra.mxu0 %v751
  %1212 = vmatpush.bf16.msra.mxu0 %v750
  %1213 = vmatmul.bf16.gmra.mxu0 %v772
  %v1214 = vpop.f32.mrf.mxu0
  %v1215 = vadd.f32 %v1046, %v1214
  %v1216 = vpop.f32.mrf.mxu0
  %v1217 = vadd.f32 %v1048, %v1216
  %1218 = vmatmul.bf16.gmra.mxu0 %v775
  %v1219 = vpop.f32.mrf.mxu0
  %v1220 = vadd.f32 %v1051, %v1219
  %v1221 = vpop.f32.mrf.mxu0
  %v1222 = vadd.f32 %v1053, %v1221
  %1223 = vmatmul.bf16.gmra.mxu0 %v778
  %v1224 = vpop.f32.mrf.mxu0
  %v1225 = vadd.f32 %v1056, %v1224
  %v1226 = vpop.f32.mrf.mxu0
  %v1227 = vadd.f32 %v1058, %v1226
  %1228 = vmatmul.bf16.gmra.mxu0 %v781
  %v1229 = vpop.f32.mrf.mxu0
  %v1230 = vadd.f32 %v1061, %v1229
  %v1231 = vpop.f32.mrf.mxu0
  %v1232 = vadd.f32 %v1063, %v1231
  %1233 = vmatmul.bf16.gmra.mxu0 %v784
  %v1234 = vpop.f32.mrf.mxu0
  %v1235 = vadd.f32 %v1066, %v1234
  %v1236 = vpop.f32.mrf.mxu0
  %v1237 = vadd.f32 %v1068, %v1236
  %1238 = vmatmul.bf16.gmra.mxu0 %v787
  %v1239 = vpop.f32.mrf.mxu0
  %v1240 = vadd.f32 %v1071, %v1239
  %v1241 = vpop.f32.mrf.mxu0
  %v1242 = vadd.f32 %v1073, %v1241
  %1243 = vmatmul.bf16.gmra.mxu0 %v790
  %v1244 = vpop.f32.mrf.mxu0
  %v1245 = vadd.f32 %v1076, %v1244
  %v1246 = vpop.f32.mrf.mxu0
  %v1247 = vadd.f32 %v1078, %v1246
  %1248 = vmatmul.bf16.gmra.mxu0 %v793
  %v1249 = vpop.f32.mrf.mxu0
  %v1250 = vadd.f32 %v1081, %v1249
  %v1251 = vpop.f32.mrf.mxu0
  %v1252 = vadd.f32 %v1083, %v1251
  %1253 = vmatmul.bf16.gmra.mxu0 %v796
  %v1254 = vpop.f32.mrf.mxu0
  %v1255 = vadd.f32 %v1086, %v1254
  %v1256 = vpop.f32.mrf.mxu0
  %v1257 = vadd.f32 %v1088, %v1256
  %1258 = vmatmul.bf16.gmra.mxu0 %v799
  %v1259 = vpop.f32.mrf.mxu0
  %v1260 = vadd.f32 %v1091, %v1259
  %v1261 = vpop.f32.mrf.mxu0
  %v1262 = vadd.f32 %v1093, %v1261
  %1263 = vmatmul.bf16.gmra.mxu0 %v802
  %v1264 = vpop.f32.mrf.mxu0
  %v1265 = vadd.f32 %v1096, %v1264
  %v1266 = vpop.f32.mrf.mxu0
  %v1267 = vadd.f32 %v1098, %v1266
  %1268 = vmatmul.bf16.gmra.mxu0 %v805
  %v1269 = vpop.f32.mrf.mxu0
  %v1270 = vadd.f32 %v1101, %v1269
  %v1271 = vpop.f32.mrf.mxu0
  %v1272 = vadd.f32 %v1103, %v1271
  %1273 = vmatmul.bf16.gmra.mxu0 %v808
  %v1274 = vpop.f32.mrf.mxu0
  %v1275 = vadd.f32 %v1106, %v1274
  %v1276 = vpop.f32.mrf.mxu0
  %v1277 = vadd.f32 %v1108, %v1276
  %1278 = vmatmul.bf16.gmra.mxu0 %v811
  %v1279 = vpop.f32.mrf.mxu0
  %v1280 = vadd.f32 %v1111, %v1279
  %v1281 = vpop.f32.mrf.mxu0
  %v1282 = vadd.f32 %v1113, %v1281
  %1283 = vmatmul.bf16.gmra.mxu0 %v814
  %v1284 = vpop.f32.mrf.mxu0
  %v1285 = vadd.f32 %v1116, %v1284
  %v1286 = vpop.f32.mrf.mxu0
  %v1287 = vadd.f32 %v1118, %v1286
  %1288 = vmatmul.bf16.gmra.mxu0 %v817
  %v1289 = vpop.f32.mrf.mxu0
  %v1290 = vadd.f32 %v1121, %v1289
  %v1291 = vpop.f32.mrf.mxu0
  %v1292 = vadd.f32 %v1123, %v1291
  %1293 = vmatmul.bf16.gmra.mxu0 %v820
  %v1294 = vpop.f32.mrf.mxu0
  %v1295 = vadd.f32 %v1126, %v1294
  %v1296 = vpop.f32.mrf.mxu0
  %v1297 = vadd.f32 %v1128, %v1296
  %1298 = vmatmul.bf16.gmra.mxu0 %v823
  %v1299 = vpop.f32.mrf.mxu0
  %v1300 = vadd.f32 %v1131, %v1299
  %v1301 = vpop.f32.mrf.mxu0
  %v1302 = vadd.f32 %v1133, %v1301
  %1303 = vmatmul.bf16.gmra.mxu0 %v826
  %v1304 = vpop.f32.mrf.mxu0
  %v1305 = vadd.f32 %v1136, %v1304
  %v1306 = vpop.f32.mrf.mxu0
  %v1307 = vadd.f32 %v1138, %v1306
  %1308 = vmatmul.bf16.gmra.mxu0 %v829
  %v1309 = vpop.f32.mrf.mxu0
  %v1310 = vadd.f32 %v1141, %v1309
  %v1311 = vpop.f32.mrf.mxu0
  %v1312 = vadd.f32 %v1143, %v1311
  %1313 = vmatmul.bf16.gmra.mxu0 %v832
  %v1314 = vpop.f32.mrf.mxu0
  %v1315 = vadd.f32 %v1146, %v1314
  %v1316 = vpop.f32.mrf.mxu0
  %v1317 = vadd.f32 %v1148, %v1316
  %1318 = vmatmul.bf16.gmra.mxu0 %v835
  %v1319 = vpop.f32.mrf.mxu0
  %v1320 = vadd.f32 %v1151, %v1319
  %v1321 = vpop.f32.mrf.mxu0
  %v1322 = vadd.f32 %v1153, %v1321
  %1323 = vmatmul.bf16.gmra.mxu0 %v838
  %v1324 = vpop.f32.mrf.mxu0
  %v1325 = vadd.f32 %v1156, %v1324
  %v1326 = vpop.f32.mrf.mxu0
  %v1327 = vadd.f32 %v1158, %v1326
  %1328 = vmatmul.bf16.gmra.mxu0 %v841
  %v1329 = vpop.f32.mrf.mxu0
  %v1330 = vadd.f32 %v1161, %v1329
  %v1331 = vpop.f32.mrf.mxu0
  %v1332 = vadd.f32 %v1163, %v1331
  %1333 = vmatmul.bf16.gmra.mxu0 %v844
  %v1334 = vpop.f32.mrf.mxu0
  %v1335 = vadd.f32 %v1166, %v1334
  %v1336 = vpop.f32.mrf.mxu0
  %v1337 = vadd.f32 %v1168, %v1336
  %1338 = vmatmul.bf16.gmra.mxu0 %v847
  %v1339 = vpop.f32.mrf.mxu0
  %v1340 = vadd.f32 %v1171, %v1339
  %v1341 = vpop.f32.mrf.mxu0
  %v1342 = vadd.f32 %v1173, %v1341
  %1343 = vmatmul.bf16.gmra.mxu0 %v850
  %v1344 = vpop.f32.mrf.mxu0
  %v1345 = vadd.f32 %v1176, %v1344
  %v1346 = vpop.f32.mrf.mxu0
  %v1347 = vadd.f32 %v1178, %v1346
  %1348 = vmatmul.bf16.gmra.mxu0 %v853
  %v1349 = vpop.f32.mrf.mxu0
  %v1350 = vadd.f32 %v1181, %v1349
  %v1351 = vpop.f32.mrf.mxu0
  %v1352 = vadd.f32 %v1183, %v1351
  %1353 = vmatmul.bf16.gmra.mxu0 %v856
  %v1354 = vpop.f32.mrf.mxu0
  %v1355 = vadd.f32 %v1186, %v1354
  %v1356 = vpop.f32.mrf.mxu0
  %v1357 = vadd.f32 %v1188, %v1356
  %1358 = vmatmul.bf16.gmra.mxu0 %v859
  %v1359 = vpop.f32.mrf.mxu0
  %v1360 = vadd.f32 %v1191, %v1359
  %v1361 = vpop.f32.mrf.mxu0
  %v1362 = vadd.f32 %v1193, %v1361
  %1363 = vmatmul.bf16.gmra.mxu0 %v862
  %v1364 = vpop.f32.mrf.mxu0
  %v1365 = vadd.f32 %v1196, %v1364
  %v1366 = vpop.f32.mrf.mxu0
  %v1367 = vadd.f32 %v1198, %v1366
  %1368 = vmatmul.bf16.gmra.mxu0 %v865
  %v1369 = vpop.f32.mrf.mxu0
  %v1370 = vadd.f32 %v1201, %v1369
  %v1371 = vpop.f32.mrf.mxu0
  %v1372 = vadd.f32 %v1203, %v1371
  %1373 = vdwg.mxu0
  %v1374 = vmul.f32 %v1215, %v1215
  %v1375 = vmul.f32 %v1217, %v1217
  %v1376 = vmul.f32 %v1220, %v1220
  %v1377 = vmul.f32 %v1222, %v1222
  %v1378 = vmul.f32 %v1225, %v1225
  %v1379 = vmul.f32 %v1227, %v1227
  %v1380 = vmul.f32 %v1230, %v1230
  %v1381 = vmul.f32 %v1232, %v1232
  %v1382 = vmul.f32 %v1235, %v1235
  %v1383 = vmul.f32 %v1237, %v1237
  %v1384 = vmul.f32 %v1240, %v1240
  %v1385 = vmul.f32 %v1242, %v1242
  %v1386 = vmul.f32 %v1245, %v1245
  %v1387 = vmul.f32 %v1247, %v1247
  %v1388 = vmul.f32 %v1250, %v1250
  %v1389 = vmul.f32 %v1252, %v1252
  %v1390 = vmul.f32 %v1255, %v1255
  %v1391 = vmul.f32 %v1257, %v1257
  %v1392 = vmul.f32 %v1260, %v1260
  %v1393 = vmul.f32 %v1262, %v1262
  %v1394 = vmul.f32 %v1265, %v1265
  %v1395 = vmul.f32 %v1267, %v1267
  %v1396 = vmul.f32 %v1270, %v1270
  %v1397 = vmul.f32 %v1272, %v1272
  %v1398 = vmul.f32 %v1275, %v1275
  %v1399 = vmul.f32 %v1277, %v1277
  %v1400 = vmul.f32 %v1280, %v1280
  %v1401 = vmul.f32 %v1282, %v1282
  %v1402 = vmul.f32 %v1285, %v1285
  %v1403 = vmul.f32 %v1287, %v1287
  %v1404 = vmul.f32 %v1290, %v1290
  %v1405 = vmul.f32 %v1292, %v1292
  %v1406 = vmul.f32 %v1295, %v1295
  %v1407 = vmul.f32 %v1297, %v1297
  %v1408 = vmul.f32 %v1300, %v1300
  %v1409 = vmul.f32 %v1302, %v1302
  %v1410 = vmul.f32 %v1305, %v1305
  %v1411 = vmul.f32 %v1307, %v1307
  %v1412 = vmul.f32 %v1310, %v1310
  %v1413 = vmul.f32 %v1312, %v1312
  %v1414 = vmul.f32 %v1315, %v1315
  %v1415 = vmul.f32 %v1317, %v1317
  %v1416 = vmul.f32 %v1320, %v1320
  %v1417 = vmul.f32 %v1322, %v1322
  %v1418 = vmul.f32 %v1325, %v1325
  %v1419 = vmul.f32 %v1327, %v1327
  %v1420 = vmul.f32 %v1330, %v1330
  %v1421 = vmul.f32 %v1332, %v1332
  %v1422 = vmul.f32 %v1335, %v1335
  %v1423 = vmul.f32 %v1337, %v1337
  %v1424 = vmul.f32 %v1340, %v1340
  %v1425 = vmul.f32 %v1342, %v1342
  %v1426 = vmul.f32 %v1345, %v1345
  %v1427 = vmul.f32 %v1347, %v1347
  %v1428 = vmul.f32 %v1350, %v1350
  %v1429 = vmul.f32 %v1352, %v1352
  %v1430 = vmul.f32 %v1355, %v1355
  %v1431 = vmul.f32 %v1357, %v1357
  %v1432 = vmul.f32 %v1360, %v1360
  %v1433 = vmul.f32 %v1362, %v1362
  %v1434 = vmul.f32 %v1365, %v1365
  %v1435 = vmul.f32 %v1367, %v1367
  %v1436 = vmul.f32 %v1370, %v1370
  %v1437 = vmul.f32 %v1372, %v1372
  %1502 = vrot.lane.b32.xlu0 %v1215, 112
  %v1503 = vpop.permute.xlu0 %1502
  %1504 = vrot.lane.b32.xlu0 %v1217, 112
  %v1505 = vpop.permute.xlu0 %1504
  %1506 = vrot.lane.b32.xlu0 %v1220, 112
  %v1507 = vpop.permute.xlu0 %1506
  %1508 = vrot.lane.b32.xlu0 %v1222, 112
  %v1509 = vpop.permute.xlu0 %1508
  %1510 = vrot.lane.b32.xlu0 %v1225, 112
  %v1511 = vpop.permute.xlu0 %1510
  %1512 = vrot.lane.b32.xlu0 %v1227, 112
  %v1513 = vpop.permute.xlu0 %1512
  %1514 = vrot.lane.b32.xlu0 %v1230, 112
  %v1515 = vpop.permute.xlu0 %1514
  %1516 = vrot.lane.b32.xlu0 %v1232, 112
  %v1517 = vpop.permute.xlu0 %1516
  %1518 = vrot.lane.b32.xlu0 %v1235, 112
  %v1519 = vpop.permute.xlu0 %1518
  %1520 = vrot.lane.b32.xlu0 %v1237, 112
  %v1521 = vpop.permute.xlu0 %1520
  %1522 = vrot.lane.b32.xlu0 %v1240, 112
  %v1523 = vpop.permute.xlu0 %1522
  %1524 = vrot.lane.b32.xlu0 %v1242, 112
  %v1525 = vpop.permute.xlu0 %1524
  %1526 = vrot.lane.b32.xlu0 %v1245, 112
  %v1527 = vpop.permute.xlu0 %1526
  %1528 = vrot.lane.b32.xlu0 %v1247, 112
  %v1529 = vpop.permute.xlu0 %1528
  %1530 = vrot.lane.b32.xlu0 %v1250, 112
  %v1531 = vpop.permute.xlu0 %1530
  %1532 = vrot.lane.b32.xlu0 %v1252, 112
  %v1533 = vpop.permute.xlu0 %1532
  %1534 = vrot.lane.b32.xlu0 %v1255, 112
  %v1535 = vpop.permute.xlu0 %1534
  %1536 = vrot.lane.b32.xlu0 %v1257, 112
  %v1537 = vpop.permute.xlu0 %1536
  %1538 = vrot.lane.b32.xlu0 %v1260, 112
  %v1539 = vpop.permute.xlu0 %1538
  %1540 = vrot.lane.b32.xlu0 %v1262, 112
  %v1541 = vpop.permute.xlu0 %1540
  %1542 = vrot.lane.b32.xlu0 %v1265, 112
  %v1543 = vpop.permute.xlu0 %1542
  %1544 = vrot.lane.b32.xlu0 %v1267, 112
  %v1545 = vpop.permute.xlu0 %1544
  %1546 = vrot.lane.b32.xlu0 %v1270, 112
  %v1547 = vpop.permute.xlu0 %1546
  %1548 = vrot.lane.b32.xlu0 %v1272, 112
  %v1549 = vpop.permute.xlu0 %1548
  %1550 = vrot.lane.b32.xlu0 %v1275, 112
  %v1551 = vpop.permute.xlu0 %1550
  %1552 = vrot.lane.b32.xlu0 %v1277, 112
  %v1553 = vpop.permute.xlu0 %1552
  %1554 = vrot.lane.b32.xlu0 %v1280, 112
  %v1555 = vpop.permute.xlu0 %1554
  %1556 = vrot.lane.b32.xlu0 %v1282, 112
  %v1557 = vpop.permute.xlu0 %1556
  %1558 = vrot.lane.b32.xlu0 %v1285, 112
  %v1559 = vpop.permute.xlu0 %1558
  %1560 = vrot.lane.b32.xlu0 %v1287, 112
  %v1561 = vpop.permute.xlu0 %1560
  %1562 = vrot.lane.b32.xlu0 %v1290, 112
  %v1563 = vpop.permute.xlu0 %1562
  %1564 = vrot.lane.b32.xlu0 %v1292, 112
  %v1565 = vpop.permute.xlu0 %1564
  %1566 = vrot.lane.b32.xlu0 %v1295, 112
  %v1567 = vpop.permute.xlu0 %1566
  %1568 = vrot.lane.b32.xlu0 %v1297, 112
  %v1569 = vpop.permute.xlu0 %1568
  %1570 = vrot.lane.b32.xlu0 %v1300, 112
  %v1571 = vpop.permute.xlu0 %1570
  %1572 = vrot.lane.b32.xlu0 %v1302, 112
  %v1573 = vpop.permute.xlu0 %1572
  %1574 = vrot.lane.b32.xlu0 %v1305, 112
  %v1575 = vpop.permute.xlu0 %1574
  %1576 = vrot.lane.b32.xlu0 %v1307, 112
  %v1577 = vpop.permute.xlu0 %1576
  %1578 = vrot.lane.b32.xlu0 %v1310, 112
  %v1579 = vpop.permute.xlu0 %1578
  %1580 = vrot.lane.b32.xlu0 %v1312, 112
  %v1581 = vpop.permute.xlu0 %1580
  %1582 = vrot.lane.b32.xlu0 %v1315, 112
  %v1583 = vpop.permute.xlu0 %1582
  %1584 = vrot.lane.b32.xlu0 %v1317, 112
  %v1585 = vpop.permute.xlu0 %1584
  %1586 = vrot.lane.b32.xlu0 %v1320, 112
  %v1587 = vpop.permute.xlu0 %1586
  %1588 = vrot.lane.b32.xlu0 %v1322, 112
  %v1589 = vpop.permute.xlu0 %1588
  %1590 = vrot.lane.b32.xlu0 %v1325, 112
  %v1591 = vpop.permute.xlu0 %1590
  %1592 = vrot.lane.b32.xlu0 %v1327, 112
  %v1593 = vpop.permute.xlu0 %1592
  %1594 = vrot.lane.b32.xlu0 %v1330, 112
  %v1595 = vpop.permute.xlu0 %1594
  %1596 = vrot.lane.b32.xlu0 %v1332, 112
  %v1597 = vpop.permute.xlu0 %1596
  %1598 = vrot.lane.b32.xlu0 %v1335, 112
  %v1599 = vpop.permute.xlu0 %1598
  %1600 = vrot.lane.b32.xlu0 %v1337, 112
  %v1601 = vpop.permute.xlu0 %1600
  %1602 = vrot.lane.b32.xlu0 %v1340, 112
  %v1603 = vpop.permute.xlu0 %1602
  %1604 = vrot.lane.b32.xlu0 %v1342, 112
  %v1605 = vpop.permute.xlu0 %1604
  %1606 = vrot.lane.b32.xlu0 %v1345, 112
  %v1607 = vpop.permute.xlu0 %1606
  %1608 = vrot.lane.b32.xlu0 %v1347, 112
  %v1609 = vpop.permute.xlu0 %1608
  %1610 = vrot.lane.b32.xlu0 %v1350, 112
  %v1611 = vpop.permute.xlu0 %1610
  %1612 = vrot.lane.b32.xlu0 %v1352, 112
  %v1613 = vpop.permute.xlu0 %1612
  %1614 = vrot.lane.b32.xlu0 %v1355, 112
  %v1615 = vpop.permute.xlu0 %1614
  %1616 = vrot.lane.b32.xlu0 %v1357, 112
  %v1617 = vpop.permute.xlu0 %1616
  %1618 = vrot.lane.b32.xlu0 %v1360, 112
  %v1619 = vpop.permute.xlu0 %1618
  %1620 = vrot.lane.b32.xlu0 %v1362, 112
  %v1621 = vpop.permute.xlu0 %1620
  %1622 = vrot.lane.b32.xlu0 %v1365, 112
  %v1623 = vpop.permute.xlu0 %1622
  %1624 = vrot.lane.b32.xlu0 %v1367, 112
  %v1625 = vpop.permute.xlu0 %1624
  %1626 = vrot.lane.b32.xlu0 %v1370, 112
  %v1627 = vpop.permute.xlu0 %1626
  %1628 = vrot.lane.b32.xlu0 %v1372, 112
  %v1629 = vpop.permute.xlu0 %1628
  %v1694 = vadd.f32 %v1215, %v1503
  %v1695 = vadd.f32 %v1217, %v1505
  %v1696 = vadd.f32 %v1220, %v1507
  %v1697 = vadd.f32 %v1222, %v1509
  %v1698 = vadd.f32 %v1225, %v1511
  %v1699 = vadd.f32 %v1227, %v1513
  %v1700 = vadd.f32 %v1230, %v1515
  %v1701 = vadd.f32 %v1232, %v1517
  %v1702 = vadd.f32 %v1235, %v1519
  %v1703 = vadd.f32 %v1237, %v1521
  %v1704 = vadd.f32 %v1240, %v1523
  %v1705 = vadd.f32 %v1242, %v1525
  %v1706 = vadd.f32 %v1245, %v1527
  %v1707 = vadd.f32 %v1247, %v1529
  %v1708 = vadd.f32 %v1250, %v1531
  %v1709 = vadd.f32 %v1252, %v1533
  %v1710 = vadd.f32 %v1255, %v1535
  %v1711 = vadd.f32 %v1257, %v1537
  %v1712 = vadd.f32 %v1260, %v1539
  %v1713 = vadd.f32 %v1262, %v1541
  %v1714 = vadd.f32 %v1265, %v1543
  %v1715 = vadd.f32 %v1267, %v1545
  %v1716 = vadd.f32 %v1270, %v1547
  %v1717 = vadd.f32 %v1272, %v1549
  %v1718 = vadd.f32 %v1275, %v1551
  %v1719 = vadd.f32 %v1277, %v1553
  %v1720 = vadd.f32 %v1280, %v1555
  %v1721 = vadd.f32 %v1282, %v1557
  %v1722 = vadd.f32 %v1285, %v1559
  %v1723 = vadd.f32 %v1287, %v1561
  %v1724 = vadd.f32 %v1290, %v1563
  %v1725 = vadd.f32 %v1292, %v1565
  %v1726 = vadd.f32 %v1295, %v1567
  %v1727 = vadd.f32 %v1297, %v1569
  %v1728 = vadd.f32 %v1300, %v1571
  %v1729 = vadd.f32 %v1302, %v1573
  %v1730 = vadd.f32 %v1305, %v1575
  %v1731 = vadd.f32 %v1307, %v1577
  %v1732 = vadd.f32 %v1310, %v1579
  %v1733 = vadd.f32 %v1312, %v1581
  %v1734 = vadd.f32 %v1315, %v1583
  %v1735 = vadd.f32 %v1317, %v1585
  %v1736 = vadd.f32 %v1320, %v1587
  %v1737 = vadd.f32 %v1322, %v1589
  %v1738 = vadd.f32 %v1325, %v1591
  %v1739 = vadd.f32 %v1327, %v1593
  %v1740 = vadd.f32 %v1330, %v1595
  %v1741 = vadd.f32 %v1332, %v1597
  %v1742 = vadd.f32 %v1335, %v1599
  %v1743 = vadd.f32 %v1337, %v1601
  %v1744 = vadd.f32 %v1340, %v1603
  %v1745 = vadd.f32 %v1342, %v1605
  %v1746 = vadd.f32 %v1345, %v1607
  %v1747 = vadd.f32 %v1347, %v1609
  %v1748 = vadd.f32 %v1350, %v1611
  %v1749 = vadd.f32 %v1352, %v1613
  %v1750 = vadd.f32 %v1355, %v1615
  %v1751 = vadd.f32 %v1357, %v1617
  %v1752 = vadd.f32 %v1360, %v1619
  %v1753 = vadd.f32 %v1362, %v1621
  %v1754 = vadd.f32 %v1365, %v1623
  %v1755 = vadd.f32 %v1367, %v1625
  %v1756 = vadd.f32 %v1370, %v1627
  %v1757 = vadd.f32 %v1372, %v1629
  %1822 = vrot.lane.b32.xlu0 %v1374, 112
  %v1823 = vpop.permute.xlu0 %1822
  %1824 = vrot.lane.b32.xlu0 %v1375, 112
  %v1825 = vpop.permute.xlu0 %1824
  %1826 = vrot.lane.b32.xlu0 %v1376, 112
  %v1827 = vpop.permute.xlu0 %1826
  %1828 = vrot.lane.b32.xlu0 %v1377, 112
  %v1829 = vpop.permute.xlu0 %1828
  %1830 = vrot.lane.b32.xlu0 %v1378, 112
  %v1831 = vpop.permute.xlu0 %1830
  %1832 = vrot.lane.b32.xlu0 %v1379, 112
  %v1833 = vpop.permute.xlu0 %1832
  %1834 = vrot.lane.b32.xlu0 %v1380, 112
  %v1835 = vpop.permute.xlu0 %1834
  %1836 = vrot.lane.b32.xlu0 %v1381, 112
  %v1837 = vpop.permute.xlu0 %1836
  %1838 = vrot.lane.b32.xlu0 %v1382, 112
  %v1839 = vpop.permute.xlu0 %1838
  %1840 = vrot.lane.b32.xlu0 %v1383, 112
  %v1841 = vpop.permute.xlu0 %1840
  %1842 = vrot.lane.b32.xlu0 %v1384, 112
  %v1843 = vpop.permute.xlu0 %1842
  %1844 = vrot.lane.b32.xlu0 %v1385, 112
  %v1845 = vpop.permute.xlu0 %1844
  %1846 = vrot.lane.b32.xlu0 %v1386, 112
  %v1847 = vpop.permute.xlu0 %1846
  %1848 = vrot.lane.b32.xlu0 %v1387, 112
  %v1849 = vpop.permute.xlu0 %1848
  %1850 = vrot.lane.b32.xlu0 %v1388, 112
  %v1851 = vpop.permute.xlu0 %1850
  %1852 = vrot.lane.b32.xlu0 %v1389, 112
  %v1853 = vpop.permute.xlu0 %1852
  %1854 = vrot.lane.b32.xlu0 %v1390, 112
  %v1855 = vpop.permute.xlu0 %1854
  %1856 = vrot.lane.b32.xlu0 %v1391, 112
  %v1857 = vpop.permute.xlu0 %1856
  %1858 = vrot.lane.b32.xlu0 %v1392, 112
  %v1859 = vpop.permute.xlu0 %1858
  %1860 = vrot.lane.b32.xlu0 %v1393, 112
  %v1861 = vpop.permute.xlu0 %1860
  %1862 = vrot.lane.b32.xlu0 %v1394, 112
  %v1863 = vpop.permute.xlu0 %1862
  %1864 = vrot.lane.b32.xlu0 %v1395, 112
  %v1865 = vpop.permute.xlu0 %1864
  %1866 = vrot.lane.b32.xlu0 %v1396, 112
  %v1867 = vpop.permute.xlu0 %1866
  %1868 = vrot.lane.b32.xlu0 %v1397, 112
  %v1869 = vpop.permute.xlu0 %1868
  %1870 = vrot.lane.b32.xlu0 %v1398, 112
  %v1871 = vpop.permute.xlu0 %1870
  %1872 = vrot.lane.b32.xlu0 %v1399, 112
  %v1873 = vpop.permute.xlu0 %1872
  %1874 = vrot.lane.b32.xlu0 %v1400, 112
  %v1875 = vpop.permute.xlu0 %1874
  %1876 = vrot.lane.b32.xlu0 %v1401, 112
  %v1877 = vpop.permute.xlu0 %1876
  %1878 = vrot.lane.b32.xlu0 %v1402, 112
  %v1879 = vpop.permute.xlu0 %1878
  %1880 = vrot.lane.b32.xlu0 %v1403, 112
  %v1881 = vpop.permute.xlu0 %1880
  %1882 = vrot.lane.b32.xlu0 %v1404, 112
  %v1883 = vpop.permute.xlu0 %1882
  %1884 = vrot.lane.b32.xlu0 %v1405, 112
  %v1885 = vpop.permute.xlu0 %1884
  %1886 = vrot.lane.b32.xlu0 %v1406, 112
  %v1887 = vpop.permute.xlu0 %1886
  %1888 = vrot.lane.b32.xlu0 %v1407, 112
  %v1889 = vpop.permute.xlu0 %1888
  %1890 = vrot.lane.b32.xlu0 %v1408, 112
  %v1891 = vpop.permute.xlu0 %1890
  %1892 = vrot.lane.b32.xlu0 %v1409, 112
  %v1893 = vpop.permute.xlu0 %1892
  %1894 = vrot.lane.b32.xlu0 %v1410, 112
  %v1895 = vpop.permute.xlu0 %1894
  %1896 = vrot.lane.b32.xlu0 %v1411, 112
  %v1897 = vpop.permute.xlu0 %1896
  %1898 = vrot.lane.b32.xlu0 %v1412, 112
  %v1899 = vpop.permute.xlu0 %1898
  %1900 = vrot.lane.b32.xlu0 %v1413, 112
  %v1901 = vpop.permute.xlu0 %1900
  %1902 = vrot.lane.b32.xlu0 %v1414, 112
  %v1903 = vpop.permute.xlu0 %1902
  %1904 = vrot.lane.b32.xlu0 %v1415, 112
  %v1905 = vpop.permute.xlu0 %1904
  %1906 = vrot.lane.b32.xlu0 %v1416, 112
  %v1907 = vpop.permute.xlu0 %1906
  %1908 = vrot.lane.b32.xlu0 %v1417, 112
  %v1909 = vpop.permute.xlu0 %1908
  %1910 = vrot.lane.b32.xlu0 %v1418, 112
  %v1911 = vpop.permute.xlu0 %1910
  %1912 = vrot.lane.b32.xlu0 %v1419, 112
  %v1913 = vpop.permute.xlu0 %1912
  %1914 = vrot.lane.b32.xlu0 %v1420, 112
  %v1915 = vpop.permute.xlu0 %1914
  %1916 = vrot.lane.b32.xlu0 %v1421, 112
  %v1917 = vpop.permute.xlu0 %1916
  %1918 = vrot.lane.b32.xlu0 %v1422, 112
  %v1919 = vpop.permute.xlu0 %1918
  %1920 = vrot.lane.b32.xlu0 %v1423, 112
  %v1921 = vpop.permute.xlu0 %1920
  %1922 = vrot.lane.b32.xlu0 %v1424, 112
  %v1923 = vpop.permute.xlu0 %1922
  %1924 = vrot.lane.b32.xlu0 %v1425, 112
  %v1925 = vpop.permute.xlu0 %1924
  %1926 = vrot.lane.b32.xlu0 %v1426, 112
  %v1927 = vpop.permute.xlu0 %1926
  %1928 = vrot.lane.b32.xlu0 %v1427, 112
  %v1929 = vpop.permute.xlu0 %1928
  %1930 = vrot.lane.b32.xlu0 %v1428, 112
  %v1931 = vpop.permute.xlu0 %1930
  %1932 = vrot.lane.b32.xlu0 %v1429, 112
  %v1933 = vpop.permute.xlu0 %1932
  %1934 = vrot.lane.b32.xlu0 %v1430, 112
  %v1935 = vpop.permute.xlu0 %1934
  %1936 = vrot.lane.b32.xlu0 %v1431, 112
  %v1937 = vpop.permute.xlu0 %1936
  %1938 = vrot.lane.b32.xlu0 %v1432, 112
  %v1939 = vpop.permute.xlu0 %1938
  %1940 = vrot.lane.b32.xlu0 %v1433, 112
  %v1941 = vpop.permute.xlu0 %1940
  %1942 = vrot.lane.b32.xlu0 %v1434, 112
  %v1943 = vpop.permute.xlu0 %1942
  %1944 = vrot.lane.b32.xlu0 %v1435, 112
  %v1945 = vpop.permute.xlu0 %1944
  %1946 = vrot.lane.b32.xlu0 %v1436, 112
  %v1947 = vpop.permute.xlu0 %1946
  %1948 = vrot.lane.b32.xlu0 %v1437, 112
  %v1949 = vpop.permute.xlu0 %1948
  %v2014 = vadd.f32 %v1374, %v1823
  %v2015 = vadd.f32 %v1375, %v1825
  %v2016 = vadd.f32 %v1376, %v1827
  %v2017 = vadd.f32 %v1377, %v1829
  %v2018 = vadd.f32 %v1378, %v1831
  %v2019 = vadd.f32 %v1379, %v1833
  %v2020 = vadd.f32 %v1380, %v1835
  %v2021 = vadd.f32 %v1381, %v1837
  %v2022 = vadd.f32 %v1382, %v1839
  %v2023 = vadd.f32 %v1383, %v1841
  %v2024 = vadd.f32 %v1384, %v1843
  %v2025 = vadd.f32 %v1385, %v1845
  %v2026 = vadd.f32 %v1386, %v1847
  %v2027 = vadd.f32 %v1387, %v1849
  %v2028 = vadd.f32 %v1388, %v1851
  %v2029 = vadd.f32 %v1389, %v1853
  %v2030 = vadd.f32 %v1390, %v1855
  %v2031 = vadd.f32 %v1391, %v1857
  %v2032 = vadd.f32 %v1392, %v1859
  %v2033 = vadd.f32 %v1393, %v1861
  %v2034 = vadd.f32 %v1394, %v1863
  %v2035 = vadd.f32 %v1395, %v1865
  %v2036 = vadd.f32 %v1396, %v1867
  %v2037 = vadd.f32 %v1397, %v1869
  %v2038 = vadd.f32 %v1398, %v1871
  %v2039 = vadd.f32 %v1399, %v1873
  %v2040 = vadd.f32 %v1400, %v1875
  %v2041 = vadd.f32 %v1401, %v1877
  %v2042 = vadd.f32 %v1402, %v1879
  %v2043 = vadd.f32 %v1403, %v1881
  %v2044 = vadd.f32 %v1404, %v1883
  %v2045 = vadd.f32 %v1405, %v1885
  %v2046 = vadd.f32 %v1406, %v1887
  %v2047 = vadd.f32 %v1407, %v1889
  %v2048 = vadd.f32 %v1408, %v1891
  %v2049 = vadd.f32 %v1409, %v1893
  %v2050 = vadd.f32 %v1410, %v1895
  %v2051 = vadd.f32 %v1411, %v1897
  %v2052 = vadd.f32 %v1412, %v1899
  %v2053 = vadd.f32 %v1413, %v1901
  %v2054 = vadd.f32 %v1414, %v1903
  %v2055 = vadd.f32 %v1415, %v1905
  %v2056 = vadd.f32 %v1416, %v1907
  %v2057 = vadd.f32 %v1417, %v1909
  %v2058 = vadd.f32 %v1418, %v1911
  %v2059 = vadd.f32 %v1419, %v1913
  %v2060 = vadd.f32 %v1420, %v1915
  %v2061 = vadd.f32 %v1421, %v1917
  %v2062 = vadd.f32 %v1422, %v1919
  %v2063 = vadd.f32 %v1423, %v1921
  %v2064 = vadd.f32 %v1424, %v1923
  %v2065 = vadd.f32 %v1425, %v1925
  %v2066 = vadd.f32 %v1426, %v1927
  %v2067 = vadd.f32 %v1427, %v1929
  %v2068 = vadd.f32 %v1428, %v1931
  %v2069 = vadd.f32 %v1429, %v1933
  %v2070 = vadd.f32 %v1430, %v1935
  %v2071 = vadd.f32 %v1431, %v1937
  %v2072 = vadd.f32 %v1432, %v1939
  %v2073 = vadd.f32 %v1433, %v1941
  %v2074 = vadd.f32 %v1434, %v1943
  %v2075 = vadd.f32 %v1435, %v1945
  %v2076 = vadd.f32 %v1436, %v1947
  %v2077 = vadd.f32 %v1437, %v1949
  %2078 = vrot.lane.b32.xlu0 %v1215, 96
  %v2079 = vpop.permute.xlu0 %2078
  %2080 = vrot.lane.b32.xlu0 %v1217, 96
  %v2081 = vpop.permute.xlu0 %2080
  %2082 = vrot.lane.b32.xlu0 %v1220, 96
  %v2083 = vpop.permute.xlu0 %2082
  %2084 = vrot.lane.b32.xlu0 %v1222, 96
  %v2085 = vpop.permute.xlu0 %2084
  %2086 = vrot.lane.b32.xlu0 %v1225, 96
  %v2087 = vpop.permute.xlu0 %2086
  %2088 = vrot.lane.b32.xlu0 %v1227, 96
  %v2089 = vpop.permute.xlu0 %2088
  %2090 = vrot.lane.b32.xlu0 %v1230, 96
  %v2091 = vpop.permute.xlu0 %2090
  %2092 = vrot.lane.b32.xlu0 %v1232, 96
  %v2093 = vpop.permute.xlu0 %2092
  %2094 = vrot.lane.b32.xlu0 %v1235, 96
  %v2095 = vpop.permute.xlu0 %2094
  %2096 = vrot.lane.b32.xlu0 %v1237, 96
  %v2097 = vpop.permute.xlu0 %2096
  %2098 = vrot.lane.b32.xlu0 %v1240, 96
  %v2099 = vpop.permute.xlu0 %2098
  %2100 = vrot.lane.b32.xlu0 %v1242, 96
  %v2101 = vpop.permute.xlu0 %2100
  %2102 = vrot.lane.b32.xlu0 %v1245, 96
  %v2103 = vpop.permute.xlu0 %2102
  %2104 = vrot.lane.b32.xlu0 %v1247, 96
  %v2105 = vpop.permute.xlu0 %2104
  %2106 = vrot.lane.b32.xlu0 %v1250, 96
  %v2107 = vpop.permute.xlu0 %2106
  %2108 = vrot.lane.b32.xlu0 %v1252, 96
  %v2109 = vpop.permute.xlu0 %2108
  %2110 = vrot.lane.b32.xlu0 %v1255, 96
  %v2111 = vpop.permute.xlu0 %2110
  %2112 = vrot.lane.b32.xlu0 %v1257, 96
  %v2113 = vpop.permute.xlu0 %2112
  %2114 = vrot.lane.b32.xlu0 %v1260, 96
  %v2115 = vpop.permute.xlu0 %2114
  %2116 = vrot.lane.b32.xlu0 %v1262, 96
  %v2117 = vpop.permute.xlu0 %2116
  %2118 = vrot.lane.b32.xlu0 %v1265, 96
  %v2119 = vpop.permute.xlu0 %2118
  %2120 = vrot.lane.b32.xlu0 %v1267, 96
  %v2121 = vpop.permute.xlu0 %2120
  %2122 = vrot.lane.b32.xlu0 %v1270, 96
  %v2123 = vpop.permute.xlu0 %2122
  %2124 = vrot.lane.b32.xlu0 %v1272, 96
  %v2125 = vpop.permute.xlu0 %2124
  %2126 = vrot.lane.b32.xlu0 %v1275, 96
  %v2127 = vpop.permute.xlu0 %2126
  %2128 = vrot.lane.b32.xlu0 %v1277, 96
  %v2129 = vpop.permute.xlu0 %2128
  %2130 = vrot.lane.b32.xlu0 %v1280, 96
  %v2131 = vpop.permute.xlu0 %2130
  %2132 = vrot.lane.b32.xlu0 %v1282, 96
  %v2133 = vpop.permute.xlu0 %2132
  %2134 = vrot.lane.b32.xlu0 %v1285, 96
  %v2135 = vpop.permute.xlu0 %2134
  %2136 = vrot.lane.b32.xlu0 %v1287, 96
  %v2137 = vpop.permute.xlu0 %2136
  %2138 = vrot.lane.b32.xlu0 %v1290, 96
  %v2139 = vpop.permute.xlu0 %2138
  %2140 = vrot.lane.b32.xlu0 %v1292, 96
  %v2141 = vpop.permute.xlu0 %2140
  %2142 = vrot.lane.b32.xlu0 %v1295, 96
  %v2143 = vpop.permute.xlu0 %2142
  %2144 = vrot.lane.b32.xlu0 %v1297, 96
  %v2145 = vpop.permute.xlu0 %2144
  %2146 = vrot.lane.b32.xlu0 %v1300, 96
  %v2147 = vpop.permute.xlu0 %2146
  %2148 = vrot.lane.b32.xlu0 %v1302, 96
  %v2149 = vpop.permute.xlu0 %2148
  %2150 = vrot.lane.b32.xlu0 %v1305, 96
  %v2151 = vpop.permute.xlu0 %2150
  %2152 = vrot.lane.b32.xlu0 %v1307, 96
  %v2153 = vpop.permute.xlu0 %2152
  %2154 = vrot.lane.b32.xlu0 %v1310, 96
  %v2155 = vpop.permute.xlu0 %2154
  %2156 = vrot.lane.b32.xlu0 %v1312, 96
  %v2157 = vpop.permute.xlu0 %2156
  %2158 = vrot.lane.b32.xlu0 %v1315, 96
  %v2159 = vpop.permute.xlu0 %2158
  %2160 = vrot.lane.b32.xlu0 %v1317, 96
  %v2161 = vpop.permute.xlu0 %2160
  %2162 = vrot.lane.b32.xlu0 %v1320, 96
  %v2163 = vpop.permute.xlu0 %2162
  %2164 = vrot.lane.b32.xlu0 %v1322, 96
  %v2165 = vpop.permute.xlu0 %2164
  %2166 = vrot.lane.b32.xlu0 %v1325, 96
  %v2167 = vpop.permute.xlu0 %2166
  %2168 = vrot.lane.b32.xlu0 %v1327, 96
  %v2169 = vpop.permute.xlu0 %2168
  %2170 = vrot.lane.b32.xlu0 %v1330, 96
  %v2171 = vpop.permute.xlu0 %2170
  %2172 = vrot.lane.b32.xlu0 %v1332, 96
  %v2173 = vpop.permute.xlu0 %2172
  %2174 = vrot.lane.b32.xlu0 %v1335, 96
  %v2175 = vpop.permute.xlu0 %2174
  %2176 = vrot.lane.b32.xlu0 %v1337, 96
  %v2177 = vpop.permute.xlu0 %2176
  %2178 = vrot.lane.b32.xlu0 %v1340, 96
  %v2179 = vpop.permute.xlu0 %2178
  %2180 = vrot.lane.b32.xlu0 %v1342, 96
  %v2181 = vpop.permute.xlu0 %2180
  %2182 = vrot.lane.b32.xlu0 %v1345, 96
  %v2183 = vpop.permute.xlu0 %2182
  %2184 = vrot.lane.b32.xlu0 %v1347, 96
  %v2185 = vpop.permute.xlu0 %2184
  %2186 = vrot.lane.b32.xlu0 %v1350, 96
  %v2187 = vpop.permute.xlu0 %2186
  %2188 = vrot.lane.b32.xlu0 %v1352, 96
  %v2189 = vpop.permute.xlu0 %2188
  %2190 = vrot.lane.b32.xlu0 %v1355, 96
  %v2191 = vpop.permute.xlu0 %2190
  %2192 = vrot.lane.b32.xlu0 %v1357, 96
  %v2193 = vpop.permute.xlu0 %2192
  %2194 = vrot.lane.b32.xlu0 %v1360, 96
  %v2195 = vpop.permute.xlu0 %2194
  %2196 = vrot.lane.b32.xlu0 %v1362, 96
  %v2197 = vpop.permute.xlu0 %2196
  %2198 = vrot.lane.b32.xlu0 %v1365, 96
  %v2199 = vpop.permute.xlu0 %2198
  %2200 = vrot.lane.b32.xlu0 %v1367, 96
  %v2201 = vpop.permute.xlu0 %2200
  %2202 = vrot.lane.b32.xlu0 %v1370, 96
  %v2203 = vpop.permute.xlu0 %2202
  %2204 = vrot.lane.b32.xlu0 %v1372, 96
  %v2205 = vpop.permute.xlu0 %2204
  %v2270 = vadd.f32 %v1694, %v2079
  %v2271 = vadd.f32 %v1695, %v2081
  %v2272 = vadd.f32 %v1696, %v2083
  %v2273 = vadd.f32 %v1697, %v2085
  %v2274 = vadd.f32 %v1698, %v2087
  %v2275 = vadd.f32 %v1699, %v2089
  %v2276 = vadd.f32 %v1700, %v2091
  %v2277 = vadd.f32 %v1701, %v2093
  %v2278 = vadd.f32 %v1702, %v2095
  %v2279 = vadd.f32 %v1703, %v2097
  %v2280 = vadd.f32 %v1704, %v2099
  %v2281 = vadd.f32 %v1705, %v2101
  %v2282 = vadd.f32 %v1706, %v2103
  %v2283 = vadd.f32 %v1707, %v2105
  %v2284 = vadd.f32 %v1708, %v2107
  %v2285 = vadd.f32 %v1709, %v2109
  %v2286 = vadd.f32 %v1710, %v2111
  %v2287 = vadd.f32 %v1711, %v2113
  %v2288 = vadd.f32 %v1712, %v2115
  %v2289 = vadd.f32 %v1713, %v2117
  %v2290 = vadd.f32 %v1714, %v2119
  %v2291 = vadd.f32 %v1715, %v2121
  %v2292 = vadd.f32 %v1716, %v2123
  %v2293 = vadd.f32 %v1717, %v2125
  %v2294 = vadd.f32 %v1718, %v2127
  %v2295 = vadd.f32 %v1719, %v2129
  %v2296 = vadd.f32 %v1720, %v2131
  %v2297 = vadd.f32 %v1721, %v2133
  %v2298 = vadd.f32 %v1722, %v2135
  %v2299 = vadd.f32 %v1723, %v2137
  %v2300 = vadd.f32 %v1724, %v2139
  %v2301 = vadd.f32 %v1725, %v2141
  %v2302 = vadd.f32 %v1726, %v2143
  %v2303 = vadd.f32 %v1727, %v2145
  %v2304 = vadd.f32 %v1728, %v2147
  %v2305 = vadd.f32 %v1729, %v2149
  %v2306 = vadd.f32 %v1730, %v2151
  %v2307 = vadd.f32 %v1731, %v2153
  %v2308 = vadd.f32 %v1732, %v2155
  %v2309 = vadd.f32 %v1733, %v2157
  %v2310 = vadd.f32 %v1734, %v2159
  %v2311 = vadd.f32 %v1735, %v2161
  %v2312 = vadd.f32 %v1736, %v2163
  %v2313 = vadd.f32 %v1737, %v2165
  %v2314 = vadd.f32 %v1738, %v2167
  %v2315 = vadd.f32 %v1739, %v2169
  %v2316 = vadd.f32 %v1740, %v2171
  %v2317 = vadd.f32 %v1741, %v2173
  %v2318 = vadd.f32 %v1742, %v2175
  %v2319 = vadd.f32 %v1743, %v2177
  %v2320 = vadd.f32 %v1744, %v2179
  %v2321 = vadd.f32 %v1745, %v2181
  %v2322 = vadd.f32 %v1746, %v2183
  %v2323 = vadd.f32 %v1747, %v2185
  %v2324 = vadd.f32 %v1748, %v2187
  %v2325 = vadd.f32 %v1749, %v2189
  %v2326 = vadd.f32 %v1750, %v2191
  %v2327 = vadd.f32 %v1751, %v2193
  %v2328 = vadd.f32 %v1752, %v2195
  %v2329 = vadd.f32 %v1753, %v2197
  %v2330 = vadd.f32 %v1754, %v2199
  %v2331 = vadd.f32 %v1755, %v2201
  %v2332 = vadd.f32 %v1756, %v2203
  %v2333 = vadd.f32 %v1757, %v2205
  %2334 = vrot.lane.b32.xlu0 %v1374, 96
  %v2335 = vpop.permute.xlu0 %2334
  %2336 = vrot.lane.b32.xlu0 %v1375, 96
  %v2337 = vpop.permute.xlu0 %2336
  %2338 = vrot.lane.b32.xlu0 %v1376, 96
  %v2339 = vpop.permute.xlu0 %2338
  %2340 = vrot.lane.b32.xlu0 %v1377, 96
  %v2341 = vpop.permute.xlu0 %2340
  %2342 = vrot.lane.b32.xlu0 %v1378, 96
  %v2343 = vpop.permute.xlu0 %2342
  %2344 = vrot.lane.b32.xlu0 %v1379, 96
  %v2345 = vpop.permute.xlu0 %2344
  %2346 = vrot.lane.b32.xlu0 %v1380, 96
  %v2347 = vpop.permute.xlu0 %2346
  %2348 = vrot.lane.b32.xlu0 %v1381, 96
  %v2349 = vpop.permute.xlu0 %2348
  %2350 = vrot.lane.b32.xlu0 %v1382, 96
  %v2351 = vpop.permute.xlu0 %2350
  %2352 = vrot.lane.b32.xlu0 %v1383, 96
  %v2353 = vpop.permute.xlu0 %2352
  %2354 = vrot.lane.b32.xlu0 %v1384, 96
  %v2355 = vpop.permute.xlu0 %2354
  %2356 = vrot.lane.b32.xlu0 %v1385, 96
  %v2357 = vpop.permute.xlu0 %2356
  %2358 = vrot.lane.b32.xlu0 %v1386, 96
  %v2359 = vpop.permute.xlu0 %2358
  %2360 = vrot.lane.b32.xlu0 %v1387, 96
  %v2361 = vpop.permute.xlu0 %2360
  %2362 = vrot.lane.b32.xlu0 %v1388, 96
  %v2363 = vpop.permute.xlu0 %2362
  %2364 = vrot.lane.b32.xlu0 %v1389, 96
  %v2365 = vpop.permute.xlu0 %2364
  %2366 = vrot.lane.b32.xlu0 %v1390, 96
  %v2367 = vpop.permute.xlu0 %2366
  %2368 = vrot.lane.b32.xlu0 %v1391, 96
  %v2369 = vpop.permute.xlu0 %2368
  %2370 = vrot.lane.b32.xlu0 %v1392, 96
  %v2371 = vpop.permute.xlu0 %2370
  %2372 = vrot.lane.b32.xlu0 %v1393, 96
  %v2373 = vpop.permute.xlu0 %2372
  %2374 = vrot.lane.b32.xlu0 %v1394, 96
  %v2375 = vpop.permute.xlu0 %2374
  %2376 = vrot.lane.b32.xlu0 %v1395, 96
  %v2377 = vpop.permute.xlu0 %2376
  %2378 = vrot.lane.b32.xlu0 %v1396, 96
  %v2379 = vpop.permute.xlu0 %2378
  %2380 = vrot.lane.b32.xlu0 %v1397, 96
  %v2381 = vpop.permute.xlu0 %2380
  %2382 = vrot.lane.b32.xlu0 %v1398, 96
  %v2383 = vpop.permute.xlu0 %2382
  %2384 = vrot.lane.b32.xlu0 %v1399, 96
  %v2385 = vpop.permute.xlu0 %2384
  %2386 = vrot.lane.b32.xlu0 %v1400, 96
  %v2387 = vpop.permute.xlu0 %2386
  %2388 = vrot.lane.b32.xlu0 %v1401, 96
  %v2389 = vpop.permute.xlu0 %2388
  %2390 = vrot.lane.b32.xlu0 %v1402, 96
  %v2391 = vpop.permute.xlu0 %2390
  %2392 = vrot.lane.b32.xlu0 %v1403, 96
  %v2393 = vpop.permute.xlu0 %2392
  %2394 = vrot.lane.b32.xlu0 %v1404, 96
  %v2395 = vpop.permute.xlu0 %2394
  %2396 = vrot.lane.b32.xlu0 %v1405, 96
  %v2397 = vpop.permute.xlu0 %2396
  %2398 = vrot.lane.b32.xlu0 %v1406, 96
  %v2399 = vpop.permute.xlu0 %2398
  %2400 = vrot.lane.b32.xlu0 %v1407, 96
  %v2401 = vpop.permute.xlu0 %2400
  %2402 = vrot.lane.b32.xlu0 %v1408, 96
  %v2403 = vpop.permute.xlu0 %2402
  %2404 = vrot.lane.b32.xlu0 %v1409, 96
  %v2405 = vpop.permute.xlu0 %2404
  %2406 = vrot.lane.b32.xlu0 %v1410, 96
  %v2407 = vpop.permute.xlu0 %2406
  %2408 = vrot.lane.b32.xlu0 %v1411, 96
  %v2409 = vpop.permute.xlu0 %2408
  %2410 = vrot.lane.b32.xlu0 %v1412, 96
  %v2411 = vpop.permute.xlu0 %2410
  %2412 = vrot.lane.b32.xlu0 %v1413, 96
  %v2413 = vpop.permute.xlu0 %2412
  %2414 = vrot.lane.b32.xlu0 %v1414, 96
  %v2415 = vpop.permute.xlu0 %2414
  %2416 = vrot.lane.b32.xlu0 %v1415, 96
  %v2417 = vpop.permute.xlu0 %2416
  %2418 = vrot.lane.b32.xlu0 %v1416, 96
  %v2419 = vpop.permute.xlu0 %2418
  %2420 = vrot.lane.b32.xlu0 %v1417, 96
  %v2421 = vpop.permute.xlu0 %2420
  %2422 = vrot.lane.b32.xlu0 %v1418, 96
  %v2423 = vpop.permute.xlu0 %2422
  %2424 = vrot.lane.b32.xlu0 %v1419, 96
  %v2425 = vpop.permute.xlu0 %2424
  %2426 = vrot.lane.b32.xlu0 %v1420, 96
  %v2427 = vpop.permute.xlu0 %2426
  %2428 = vrot.lane.b32.xlu0 %v1421, 96
  %v2429 = vpop.permute.xlu0 %2428
  %2430 = vrot.lane.b32.xlu0 %v1422, 96
  %v2431 = vpop.permute.xlu0 %2430
  %2432 = vrot.lane.b32.xlu0 %v1423, 96
  %v2433 = vpop.permute.xlu0 %2432
  %2434 = vrot.lane.b32.xlu0 %v1424, 96
  %v2435 = vpop.permute.xlu0 %2434
  %2436 = vrot.lane.b32.xlu0 %v1425, 96
  %v2437 = vpop.permute.xlu0 %2436
  %2438 = vrot.lane.b32.xlu0 %v1426, 96
  %v2439 = vpop.permute.xlu0 %2438
  %2440 = vrot.lane.b32.xlu0 %v1427, 96
  %v2441 = vpop.permute.xlu0 %2440
  %2442 = vrot.lane.b32.xlu0 %v1428, 96
  %v2443 = vpop.permute.xlu0 %2442
  %2444 = vrot.lane.b32.xlu0 %v1429, 96
  %v2445 = vpop.permute.xlu0 %2444
  %2446 = vrot.lane.b32.xlu0 %v1430, 96
  %v2447 = vpop.permute.xlu0 %2446
  %2448 = vrot.lane.b32.xlu0 %v1431, 96
  %v2449 = vpop.permute.xlu0 %2448
  %2450 = vrot.lane.b32.xlu0 %v1432, 96
  %v2451 = vpop.permute.xlu0 %2450
  %2452 = vrot.lane.b32.xlu0 %v1433, 96
  %v2453 = vpop.permute.xlu0 %2452
  %2454 = vrot.lane.b32.xlu0 %v1434, 96
  %v2455 = vpop.permute.xlu0 %2454
  %2456 = vrot.lane.b32.xlu0 %v1435, 96
  %v2457 = vpop.permute.xlu0 %2456
  %2458 = vrot.lane.b32.xlu0 %v1436, 96
  %v2459 = vpop.permute.xlu0 %2458
  %2460 = vrot.lane.b32.xlu0 %v1437, 96
  %v2461 = vpop.permute.xlu0 %2460
  %v2526 = vadd.f32 %v2014, %v2335
  %v2527 = vadd.f32 %v2015, %v2337
  %v2528 = vadd.f32 %v2016, %v2339
  %v2529 = vadd.f32 %v2017, %v2341
  %v2530 = vadd.f32 %v2018, %v2343
  %v2531 = vadd.f32 %v2019, %v2345
  %v2532 = vadd.f32 %v2020, %v2347
  %v2533 = vadd.f32 %v2021, %v2349
  %v2534 = vadd.f32 %v2022, %v2351
  %v2535 = vadd.f32 %v2023, %v2353
  %v2536 = vadd.f32 %v2024, %v2355
  %v2537 = vadd.f32 %v2025, %v2357
  %v2538 = vadd.f32 %v2026, %v2359
  %v2539 = vadd.f32 %v2027, %v2361
  %v2540 = vadd.f32 %v2028, %v2363
  %v2541 = vadd.f32 %v2029, %v2365
  %v2542 = vadd.f32 %v2030, %v2367
  %v2543 = vadd.f32 %v2031, %v2369
  %v2544 = vadd.f32 %v2032, %v2371
  %v2545 = vadd.f32 %v2033, %v2373
  %v2546 = vadd.f32 %v2034, %v2375
  %v2547 = vadd.f32 %v2035, %v2377
  %v2548 = vadd.f32 %v2036, %v2379
  %v2549 = vadd.f32 %v2037, %v2381
  %v2550 = vadd.f32 %v2038, %v2383
  %v2551 = vadd.f32 %v2039, %v2385
  %v2552 = vadd.f32 %v2040, %v2387
  %v2553 = vadd.f32 %v2041, %v2389
  %v2554 = vadd.f32 %v2042, %v2391
  %v2555 = vadd.f32 %v2043, %v2393
  %v2556 = vadd.f32 %v2044, %v2395
  %v2557 = vadd.f32 %v2045, %v2397
  %v2558 = vadd.f32 %v2046, %v2399
  %v2559 = vadd.f32 %v2047, %v2401
  %v2560 = vadd.f32 %v2048, %v2403
  %v2561 = vadd.f32 %v2049, %v2405
  %v2562 = vadd.f32 %v2050, %v2407
  %v2563 = vadd.f32 %v2051, %v2409
  %v2564 = vadd.f32 %v2052, %v2411
  %v2565 = vadd.f32 %v2053, %v2413
  %v2566 = vadd.f32 %v2054, %v2415
  %v2567 = vadd.f32 %v2055, %v2417
  %v2568 = vadd.f32 %v2056, %v2419
  %v2569 = vadd.f32 %v2057, %v2421
  %v2570 = vadd.f32 %v2058, %v2423
  %v2571 = vadd.f32 %v2059, %v2425
  %v2572 = vadd.f32 %v2060, %v2427
  %v2573 = vadd.f32 %v2061, %v2429
  %v2574 = vadd.f32 %v2062, %v2431
  %v2575 = vadd.f32 %v2063, %v2433
  %v2576 = vadd.f32 %v2064, %v2435
  %v2577 = vadd.f32 %v2065, %v2437
  %v2578 = vadd.f32 %v2066, %v2439
  %v2579 = vadd.f32 %v2067, %v2441
  %v2580 = vadd.f32 %v2068, %v2443
  %v2581 = vadd.f32 %v2069, %v2445
  %v2582 = vadd.f32 %v2070, %v2447
  %v2583 = vadd.f32 %v2071, %v2449
  %v2584 = vadd.f32 %v2072, %v2451
  %v2585 = vadd.f32 %v2073, %v2453
  %v2586 = vadd.f32 %v2074, %v2455
  %v2587 = vadd.f32 %v2075, %v2457
  %v2588 = vadd.f32 %v2076, %v2459
  %v2589 = vadd.f32 %v2077, %v2461
  %2590 = vrot.lane.b32.xlu0 %v1215, 80
  %v2591 = vpop.permute.xlu0 %2590
  %2592 = vrot.lane.b32.xlu0 %v1217, 80
  %v2593 = vpop.permute.xlu0 %2592
  %2594 = vrot.lane.b32.xlu0 %v1220, 80
  %v2595 = vpop.permute.xlu0 %2594
  %2596 = vrot.lane.b32.xlu0 %v1222, 80
  %v2597 = vpop.permute.xlu0 %2596
  %2598 = vrot.lane.b32.xlu0 %v1225, 80
  %v2599 = vpop.permute.xlu0 %2598
  %2600 = vrot.lane.b32.xlu0 %v1227, 80
  %v2601 = vpop.permute.xlu0 %2600
  %2602 = vrot.lane.b32.xlu0 %v1230, 80
  %v2603 = vpop.permute.xlu0 %2602
  %2604 = vrot.lane.b32.xlu0 %v1232, 80
  %v2605 = vpop.permute.xlu0 %2604
  %2606 = vrot.lane.b32.xlu0 %v1235, 80
  %v2607 = vpop.permute.xlu0 %2606
  %2608 = vrot.lane.b32.xlu0 %v1237, 80
  %v2609 = vpop.permute.xlu0 %2608
  %2610 = vrot.lane.b32.xlu0 %v1240, 80
  %v2611 = vpop.permute.xlu0 %2610
  %2612 = vrot.lane.b32.xlu0 %v1242, 80
  %v2613 = vpop.permute.xlu0 %2612
  %2614 = vrot.lane.b32.xlu0 %v1245, 80
  %v2615 = vpop.permute.xlu0 %2614
  %2616 = vrot.lane.b32.xlu0 %v1247, 80
  %v2617 = vpop.permute.xlu0 %2616
  %2618 = vrot.lane.b32.xlu0 %v1250, 80
  %v2619 = vpop.permute.xlu0 %2618
  %2620 = vrot.lane.b32.xlu0 %v1252, 80
  %v2621 = vpop.permute.xlu0 %2620
  %2622 = vrot.lane.b32.xlu0 %v1255, 80
  %v2623 = vpop.permute.xlu0 %2622
  %2624 = vrot.lane.b32.xlu0 %v1257, 80
  %v2625 = vpop.permute.xlu0 %2624
  %2626 = vrot.lane.b32.xlu0 %v1260, 80
  %v2627 = vpop.permute.xlu0 %2626
  %2628 = vrot.lane.b32.xlu0 %v1262, 80
  %v2629 = vpop.permute.xlu0 %2628
  %2630 = vrot.lane.b32.xlu0 %v1265, 80
  %v2631 = vpop.permute.xlu0 %2630
  %2632 = vrot.lane.b32.xlu0 %v1267, 80
  %v2633 = vpop.permute.xlu0 %2632
  %2634 = vrot.lane.b32.xlu0 %v1270, 80
  %v2635 = vpop.permute.xlu0 %2634
  %2636 = vrot.lane.b32.xlu0 %v1272, 80
  %v2637 = vpop.permute.xlu0 %2636
  %2638 = vrot.lane.b32.xlu0 %v1275, 80
  %v2639 = vpop.permute.xlu0 %2638
  %2640 = vrot.lane.b32.xlu0 %v1277, 80
  %v2641 = vpop.permute.xlu0 %2640
  %2642 = vrot.lane.b32.xlu0 %v1280, 80
  %v2643 = vpop.permute.xlu0 %2642
  %2644 = vrot.lane.b32.xlu0 %v1282, 80
  %v2645 = vpop.permute.xlu0 %2644
  %2646 = vrot.lane.b32.xlu0 %v1285, 80
  %v2647 = vpop.permute.xlu0 %2646
  %2648 = vrot.lane.b32.xlu0 %v1287, 80
  %v2649 = vpop.permute.xlu0 %2648
  %2650 = vrot.lane.b32.xlu0 %v1290, 80
  %v2651 = vpop.permute.xlu0 %2650
  %2652 = vrot.lane.b32.xlu0 %v1292, 80
  %v2653 = vpop.permute.xlu0 %2652
  %2654 = vrot.lane.b32.xlu0 %v1295, 80
  %v2655 = vpop.permute.xlu0 %2654
  %2656 = vrot.lane.b32.xlu0 %v1297, 80
  %v2657 = vpop.permute.xlu0 %2656
  %2658 = vrot.lane.b32.xlu0 %v1300, 80
  %v2659 = vpop.permute.xlu0 %2658
  %2660 = vrot.lane.b32.xlu0 %v1302, 80
  %v2661 = vpop.permute.xlu0 %2660
  %2662 = vrot.lane.b32.xlu0 %v1305, 80
  %v2663 = vpop.permute.xlu0 %2662
  %2664 = vrot.lane.b32.xlu0 %v1307, 80
  %v2665 = vpop.permute.xlu0 %2664
  %2666 = vrot.lane.b32.xlu0 %v1310, 80
  %v2667 = vpop.permute.xlu0 %2666
  %2668 = vrot.lane.b32.xlu0 %v1312, 80
  %v2669 = vpop.permute.xlu0 %2668
  %2670 = vrot.lane.b32.xlu0 %v1315, 80
  %v2671 = vpop.permute.xlu0 %2670
  %2672 = vrot.lane.b32.xlu0 %v1317, 80
  %v2673 = vpop.permute.xlu0 %2672
  %2674 = vrot.lane.b32.xlu0 %v1320, 80
  %v2675 = vpop.permute.xlu0 %2674
  %2676 = vrot.lane.b32.xlu0 %v1322, 80
  %v2677 = vpop.permute.xlu0 %2676
  %2678 = vrot.lane.b32.xlu0 %v1325, 80
  %v2679 = vpop.permute.xlu0 %2678
  %2680 = vrot.lane.b32.xlu0 %v1327, 80
  %v2681 = vpop.permute.xlu0 %2680
  %2682 = vrot.lane.b32.xlu0 %v1330, 80
  %v2683 = vpop.permute.xlu0 %2682
  %2684 = vrot.lane.b32.xlu0 %v1332, 80
  %v2685 = vpop.permute.xlu0 %2684
  %2686 = vrot.lane.b32.xlu0 %v1335, 80
  %v2687 = vpop.permute.xlu0 %2686
  %2688 = vrot.lane.b32.xlu0 %v1337, 80
  %v2689 = vpop.permute.xlu0 %2688
  %2690 = vrot.lane.b32.xlu0 %v1340, 80
  %v2691 = vpop.permute.xlu0 %2690
  %2692 = vrot.lane.b32.xlu0 %v1342, 80
  %v2693 = vpop.permute.xlu0 %2692
  %2694 = vrot.lane.b32.xlu0 %v1345, 80
  %v2695 = vpop.permute.xlu0 %2694
  %2696 = vrot.lane.b32.xlu0 %v1347, 80
  %v2697 = vpop.permute.xlu0 %2696
  %2698 = vrot.lane.b32.xlu0 %v1350, 80
  %v2699 = vpop.permute.xlu0 %2698
  %2700 = vrot.lane.b32.xlu0 %v1352, 80
  %v2701 = vpop.permute.xlu0 %2700
  %2702 = vrot.lane.b32.xlu0 %v1355, 80
  %v2703 = vpop.permute.xlu0 %2702
  %2704 = vrot.lane.b32.xlu0 %v1357, 80
  %v2705 = vpop.permute.xlu0 %2704
  %2706 = vrot.lane.b32.xlu0 %v1360, 80
  %v2707 = vpop.permute.xlu0 %2706
  %2708 = vrot.lane.b32.xlu0 %v1362, 80
  %v2709 = vpop.permute.xlu0 %2708
  %2710 = vrot.lane.b32.xlu0 %v1365, 80
  %v2711 = vpop.permute.xlu0 %2710
  %2712 = vrot.lane.b32.xlu0 %v1367, 80
  %v2713 = vpop.permute.xlu0 %2712
  %2714 = vrot.lane.b32.xlu0 %v1370, 80
  %v2715 = vpop.permute.xlu0 %2714
  %2716 = vrot.lane.b32.xlu0 %v1372, 80
  %v2717 = vpop.permute.xlu0 %2716
  %v2782 = vadd.f32 %v2270, %v2591
  %v2783 = vadd.f32 %v2271, %v2593
  %v2784 = vadd.f32 %v2272, %v2595
  %v2785 = vadd.f32 %v2273, %v2597
  %v2786 = vadd.f32 %v2274, %v2599
  %v2787 = vadd.f32 %v2275, %v2601
  %v2788 = vadd.f32 %v2276, %v2603
  %v2789 = vadd.f32 %v2277, %v2605
  %v2790 = vadd.f32 %v2278, %v2607
  %v2791 = vadd.f32 %v2279, %v2609
  %v2792 = vadd.f32 %v2280, %v2611
  %v2793 = vadd.f32 %v2281, %v2613
  %v2794 = vadd.f32 %v2282, %v2615
  %v2795 = vadd.f32 %v2283, %v2617
  %v2796 = vadd.f32 %v2284, %v2619
  %v2797 = vadd.f32 %v2285, %v2621
  %v2798 = vadd.f32 %v2286, %v2623
  %v2799 = vadd.f32 %v2287, %v2625
  %v2800 = vadd.f32 %v2288, %v2627
  %v2801 = vadd.f32 %v2289, %v2629
  %v2802 = vadd.f32 %v2290, %v2631
  %v2803 = vadd.f32 %v2291, %v2633
  %v2804 = vadd.f32 %v2292, %v2635
  %v2805 = vadd.f32 %v2293, %v2637
  %v2806 = vadd.f32 %v2294, %v2639
  %v2807 = vadd.f32 %v2295, %v2641
  %v2808 = vadd.f32 %v2296, %v2643
  %v2809 = vadd.f32 %v2297, %v2645
  %v2810 = vadd.f32 %v2298, %v2647
  %v2811 = vadd.f32 %v2299, %v2649
  %v2812 = vadd.f32 %v2300, %v2651
  %v2813 = vadd.f32 %v2301, %v2653
  %v2814 = vadd.f32 %v2302, %v2655
  %v2815 = vadd.f32 %v2303, %v2657
  %v2816 = vadd.f32 %v2304, %v2659
  %v2817 = vadd.f32 %v2305, %v2661
  %v2818 = vadd.f32 %v2306, %v2663
  %v2819 = vadd.f32 %v2307, %v2665
  %v2820 = vadd.f32 %v2308, %v2667
  %v2821 = vadd.f32 %v2309, %v2669
  %v2822 = vadd.f32 %v2310, %v2671
  %v2823 = vadd.f32 %v2311, %v2673
  %v2824 = vadd.f32 %v2312, %v2675
  %v2825 = vadd.f32 %v2313, %v2677
  %v2826 = vadd.f32 %v2314, %v2679
  %v2827 = vadd.f32 %v2315, %v2681
  %v2828 = vadd.f32 %v2316, %v2683
  %v2829 = vadd.f32 %v2317, %v2685
  %v2830 = vadd.f32 %v2318, %v2687
  %v2831 = vadd.f32 %v2319, %v2689
  %v2832 = vadd.f32 %v2320, %v2691
  %v2833 = vadd.f32 %v2321, %v2693
  %v2834 = vadd.f32 %v2322, %v2695
  %v2835 = vadd.f32 %v2323, %v2697
  %v2836 = vadd.f32 %v2324, %v2699
  %v2837 = vadd.f32 %v2325, %v2701
  %v2838 = vadd.f32 %v2326, %v2703
  %v2839 = vadd.f32 %v2327, %v2705
  %v2840 = vadd.f32 %v2328, %v2707
  %v2841 = vadd.f32 %v2329, %v2709
  %v2842 = vadd.f32 %v2330, %v2711
  %v2843 = vadd.f32 %v2331, %v2713
  %v2844 = vadd.f32 %v2332, %v2715
  %v2845 = vadd.f32 %v2333, %v2717
  %2846 = vrot.lane.b32.xlu0 %v1374, 80
  %v2847 = vpop.permute.xlu0 %2846
  %2848 = vrot.lane.b32.xlu0 %v1375, 80
  %v2849 = vpop.permute.xlu0 %2848
  %2850 = vrot.lane.b32.xlu0 %v1376, 80
  %v2851 = vpop.permute.xlu0 %2850
  %2852 = vrot.lane.b32.xlu0 %v1377, 80
  %v2853 = vpop.permute.xlu0 %2852
  %2854 = vrot.lane.b32.xlu0 %v1378, 80
  %v2855 = vpop.permute.xlu0 %2854
  %2856 = vrot.lane.b32.xlu0 %v1379, 80
  %v2857 = vpop.permute.xlu0 %2856
  %2858 = vrot.lane.b32.xlu0 %v1380, 80
  %v2859 = vpop.permute.xlu0 %2858
  %2860 = vrot.lane.b32.xlu0 %v1381, 80
  %v2861 = vpop.permute.xlu0 %2860
  %2862 = vrot.lane.b32.xlu0 %v1382, 80
  %v2863 = vpop.permute.xlu0 %2862
  %2864 = vrot.lane.b32.xlu0 %v1383, 80
  %v2865 = vpop.permute.xlu0 %2864
  %2866 = vrot.lane.b32.xlu0 %v1384, 80
  %v2867 = vpop.permute.xlu0 %2866
  %2868 = vrot.lane.b32.xlu0 %v1385, 80
  %v2869 = vpop.permute.xlu0 %2868
  %2870 = vrot.lane.b32.xlu0 %v1386, 80
  %v2871 = vpop.permute.xlu0 %2870
  %2872 = vrot.lane.b32.xlu0 %v1387, 80
  %v2873 = vpop.permute.xlu0 %2872
  %2874 = vrot.lane.b32.xlu0 %v1388, 80
  %v2875 = vpop.permute.xlu0 %2874
  %2876 = vrot.lane.b32.xlu0 %v1389, 80
  %v2877 = vpop.permute.xlu0 %2876
  %2878 = vrot.lane.b32.xlu0 %v1390, 80
  %v2879 = vpop.permute.xlu0 %2878
  %2880 = vrot.lane.b32.xlu0 %v1391, 80
  %v2881 = vpop.permute.xlu0 %2880
  %2882 = vrot.lane.b32.xlu0 %v1392, 80
  %v2883 = vpop.permute.xlu0 %2882
  %2884 = vrot.lane.b32.xlu0 %v1393, 80
  %v2885 = vpop.permute.xlu0 %2884
  %2886 = vrot.lane.b32.xlu0 %v1394, 80
  %v2887 = vpop.permute.xlu0 %2886
  %2888 = vrot.lane.b32.xlu0 %v1395, 80
  %v2889 = vpop.permute.xlu0 %2888
  %2890 = vrot.lane.b32.xlu0 %v1396, 80
  %v2891 = vpop.permute.xlu0 %2890
  %2892 = vrot.lane.b32.xlu0 %v1397, 80
  %v2893 = vpop.permute.xlu0 %2892
  %2894 = vrot.lane.b32.xlu0 %v1398, 80
  %v2895 = vpop.permute.xlu0 %2894
  %2896 = vrot.lane.b32.xlu0 %v1399, 80
  %v2897 = vpop.permute.xlu0 %2896
  %2898 = vrot.lane.b32.xlu0 %v1400, 80
  %v2899 = vpop.permute.xlu0 %2898
  %2900 = vrot.lane.b32.xlu0 %v1401, 80
  %v2901 = vpop.permute.xlu0 %2900
  %2902 = vrot.lane.b32.xlu0 %v1402, 80
  %v2903 = vpop.permute.xlu0 %2902
  %2904 = vrot.lane.b32.xlu0 %v1403, 80
  %v2905 = vpop.permute.xlu0 %2904
  %2906 = vrot.lane.b32.xlu0 %v1404, 80
  %v2907 = vpop.permute.xlu0 %2906
  %2908 = vrot.lane.b32.xlu0 %v1405, 80
  %v2909 = vpop.permute.xlu0 %2908
  %2910 = vrot.lane.b32.xlu0 %v1406, 80
  %v2911 = vpop.permute.xlu0 %2910
  %2912 = vrot.lane.b32.xlu0 %v1407, 80
  %v2913 = vpop.permute.xlu0 %2912
  %2914 = vrot.lane.b32.xlu0 %v1408, 80
  %v2915 = vpop.permute.xlu0 %2914
  %2916 = vrot.lane.b32.xlu0 %v1409, 80
  %v2917 = vpop.permute.xlu0 %2916
  %2918 = vrot.lane.b32.xlu0 %v1410, 80
  %v2919 = vpop.permute.xlu0 %2918
  %2920 = vrot.lane.b32.xlu0 %v1411, 80
  %v2921 = vpop.permute.xlu0 %2920
  %2922 = vrot.lane.b32.xlu0 %v1412, 80
  %v2923 = vpop.permute.xlu0 %2922
  %2924 = vrot.lane.b32.xlu0 %v1413, 80
  %v2925 = vpop.permute.xlu0 %2924
  %2926 = vrot.lane.b32.xlu0 %v1414, 80
  %v2927 = vpop.permute.xlu0 %2926
  %2928 = vrot.lane.b32.xlu0 %v1415, 80
  %v2929 = vpop.permute.xlu0 %2928
  %2930 = vrot.lane.b32.xlu0 %v1416, 80
  %v2931 = vpop.permute.xlu0 %2930
  %2932 = vrot.lane.b32.xlu0 %v1417, 80
  %v2933 = vpop.permute.xlu0 %2932
  %2934 = vrot.lane.b32.xlu0 %v1418, 80
  %v2935 = vpop.permute.xlu0 %2934
  %2936 = vrot.lane.b32.xlu0 %v1419, 80
  %v2937 = vpop.permute.xlu0 %2936
  %2938 = vrot.lane.b32.xlu0 %v1420, 80
  %v2939 = vpop.permute.xlu0 %2938
  %2940 = vrot.lane.b32.xlu0 %v1421, 80
  %v2941 = vpop.permute.xlu0 %2940
  %2942 = vrot.lane.b32.xlu0 %v1422, 80
  %v2943 = vpop.permute.xlu0 %2942
  %2944 = vrot.lane.b32.xlu0 %v1423, 80
  %v2945 = vpop.permute.xlu0 %2944
  %2946 = vrot.lane.b32.xlu0 %v1424, 80
  %v2947 = vpop.permute.xlu0 %2946
  %2948 = vrot.lane.b32.xlu0 %v1425, 80
  %v2949 = vpop.permute.xlu0 %2948
  %2950 = vrot.lane.b32.xlu0 %v1426, 80
  %v2951 = vpop.permute.xlu0 %2950
  %2952 = vrot.lane.b32.xlu0 %v1427, 80
  %v2953 = vpop.permute.xlu0 %2952
  %2954 = vrot.lane.b32.xlu0 %v1428, 80
  %v2955 = vpop.permute.xlu0 %2954
  %2956 = vrot.lane.b32.xlu0 %v1429, 80
  %v2957 = vpop.permute.xlu0 %2956
  %2958 = vrot.lane.b32.xlu0 %v1430, 80
  %v2959 = vpop.permute.xlu0 %2958
  %2960 = vrot.lane.b32.xlu0 %v1431, 80
  %v2961 = vpop.permute.xlu0 %2960
  %2962 = vrot.lane.b32.xlu0 %v1432, 80
  %v2963 = vpop.permute.xlu0 %2962
  %2964 = vrot.lane.b32.xlu0 %v1433, 80
  %v2965 = vpop.permute.xlu0 %2964
  %2966 = vrot.lane.b32.xlu0 %v1434, 80
  %v2967 = vpop.permute.xlu0 %2966
  %2968 = vrot.lane.b32.xlu0 %v1435, 80
  %v2969 = vpop.permute.xlu0 %2968
  %2970 = vrot.lane.b32.xlu0 %v1436, 80
  %v2971 = vpop.permute.xlu0 %2970
  %2972 = vrot.lane.b32.xlu0 %v1437, 80
  %v2973 = vpop.permute.xlu0 %2972
  %v3038 = vadd.f32 %v2526, %v2847
  %v3039 = vadd.f32 %v2527, %v2849
  %v3040 = vadd.f32 %v2528, %v2851
  %v3041 = vadd.f32 %v2529, %v2853
  %v3042 = vadd.f32 %v2530, %v2855
  %v3043 = vadd.f32 %v2531, %v2857
  %v3044 = vadd.f32 %v2532, %v2859
  %v3045 = vadd.f32 %v2533, %v2861
  %v3046 = vadd.f32 %v2534, %v2863
  %v3047 = vadd.f32 %v2535, %v2865
  %v3048 = vadd.f32 %v2536, %v2867
  %v3049 = vadd.f32 %v2537, %v2869
  %v3050 = vadd.f32 %v2538, %v2871
  %v3051 = vadd.f32 %v2539, %v2873
  %v3052 = vadd.f32 %v2540, %v2875
  %v3053 = vadd.f32 %v2541, %v2877
  %v3054 = vadd.f32 %v2542, %v2879
  %v3055 = vadd.f32 %v2543, %v2881
  %v3056 = vadd.f32 %v2544, %v2883
  %v3057 = vadd.f32 %v2545, %v2885
  %v3058 = vadd.f32 %v2546, %v2887
  %v3059 = vadd.f32 %v2547, %v2889
  %v3060 = vadd.f32 %v2548, %v2891
  %v3061 = vadd.f32 %v2549, %v2893
  %v3062 = vadd.f32 %v2550, %v2895
  %v3063 = vadd.f32 %v2551, %v2897
  %v3064 = vadd.f32 %v2552, %v2899
  %v3065 = vadd.f32 %v2553, %v2901
  %v3066 = vadd.f32 %v2554, %v2903
  %v3067 = vadd.f32 %v2555, %v2905
  %v3068 = vadd.f32 %v2556, %v2907
  %v3069 = vadd.f32 %v2557, %v2909
  %v3070 = vadd.f32 %v2558, %v2911
  %v3071 = vadd.f32 %v2559, %v2913
  %v3072 = vadd.f32 %v2560, %v2915
  %v3073 = vadd.f32 %v2561, %v2917
  %v3074 = vadd.f32 %v2562, %v2919
  %v3075 = vadd.f32 %v2563, %v2921
  %v3076 = vadd.f32 %v2564, %v2923
  %v3077 = vadd.f32 %v2565, %v2925
  %v3078 = vadd.f32 %v2566, %v2927
  %v3079 = vadd.f32 %v2567, %v2929
  %v3080 = vadd.f32 %v2568, %v2931
  %v3081 = vadd.f32 %v2569, %v2933
  %v3082 = vadd.f32 %v2570, %v2935
  %v3083 = vadd.f32 %v2571, %v2937
  %v3084 = vadd.f32 %v2572, %v2939
  %v3085 = vadd.f32 %v2573, %v2941
  %v3086 = vadd.f32 %v2574, %v2943
  %v3087 = vadd.f32 %v2575, %v2945
  %v3088 = vadd.f32 %v2576, %v2947
  %v3089 = vadd.f32 %v2577, %v2949
  %v3090 = vadd.f32 %v2578, %v2951
  %v3091 = vadd.f32 %v2579, %v2953
  %v3092 = vadd.f32 %v2580, %v2955
  %v3093 = vadd.f32 %v2581, %v2957
  %v3094 = vadd.f32 %v2582, %v2959
  %v3095 = vadd.f32 %v2583, %v2961
  %v3096 = vadd.f32 %v2584, %v2963
  %v3097 = vadd.f32 %v2585, %v2965
  %v3098 = vadd.f32 %v2586, %v2967
  %v3099 = vadd.f32 %v2587, %v2969
  %v3100 = vadd.f32 %v2588, %v2971
  %v3101 = vadd.f32 %v2589, %v2973
  %vm3102 = vcmask 130048
  %v3103 = vsel %vm3102, %v2782, 0.0
  %v3104 = vsel %vm3102, %v2783, 0.0
  %v3105 = vadd.f32 %v3103, %v3104
  %v3106 = vsel %vm3102, %v2784, 0.0
  %v3107 = vadd.f32 %v3105, %v3106
  %v3108 = vsel %vm3102, %v2785, 0.0
  %v3109 = vadd.f32 %v3107, %v3108
  %v3110 = vsel %vm3102, %v2786, 0.0
  %v3111 = vadd.f32 %v3109, %v3110
  %v3112 = vsel %vm3102, %v2787, 0.0
  %v3113 = vadd.f32 %v3111, %v3112
  %v3114 = vsel %vm3102, %v2788, 0.0
  %v3115 = vadd.f32 %v3113, %v3114
  %v3116 = vsel %vm3102, %v2789, 0.0
  %v3117 = vadd.f32 %v3115, %v3116
  %v3118 = vsel %vm3102, %v2790, 0.0
  %v3119 = vadd.f32 %v3117, %v3118
  %v3120 = vsel %vm3102, %v2791, 0.0
  %v3121 = vadd.f32 %v3119, %v3120
  %v3122 = vsel %vm3102, %v2792, 0.0
  %v3123 = vadd.f32 %v3121, %v3122
  %v3124 = vsel %vm3102, %v2793, 0.0
  %v3125 = vadd.f32 %v3123, %v3124
  %v3126 = vsel %vm3102, %v2794, 0.0
  %v3127 = vadd.f32 %v3125, %v3126
  %v3128 = vsel %vm3102, %v2795, 0.0
  %v3129 = vadd.f32 %v3127, %v3128
  %v3130 = vsel %vm3102, %v2796, 0.0
  %v3131 = vadd.f32 %v3129, %v3130
  %v3132 = vsel %vm3102, %v2797, 0.0
  %v3133 = vadd.f32 %v3131, %v3132
  %v3134 = vsel %vm3102, %v2798, 0.0
  %v3135 = vadd.f32 %v3133, %v3134
  %v3136 = vsel %vm3102, %v2799, 0.0
  %v3137 = vadd.f32 %v3135, %v3136
  %v3138 = vsel %vm3102, %v2800, 0.0
  %v3139 = vadd.f32 %v3137, %v3138
  %v3140 = vsel %vm3102, %v2801, 0.0
  %v3141 = vadd.f32 %v3139, %v3140
  %v3142 = vsel %vm3102, %v2802, 0.0
  %v3143 = vadd.f32 %v3141, %v3142
  %v3144 = vsel %vm3102, %v2803, 0.0
  %v3145 = vadd.f32 %v3143, %v3144
  %v3146 = vsel %vm3102, %v2804, 0.0
  %v3147 = vadd.f32 %v3145, %v3146
  %v3148 = vsel %vm3102, %v2805, 0.0
  %v3149 = vadd.f32 %v3147, %v3148
  %v3150 = vsel %vm3102, %v2806, 0.0
  %v3151 = vadd.f32 %v3149, %v3150
  %v3152 = vsel %vm3102, %v2807, 0.0
  %v3153 = vadd.f32 %v3151, %v3152
  %v3154 = vsel %vm3102, %v2808, 0.0
  %v3155 = vadd.f32 %v3153, %v3154
  %v3156 = vsel %vm3102, %v2809, 0.0
  %v3157 = vadd.f32 %v3155, %v3156
  %v3158 = vsel %vm3102, %v2810, 0.0
  %v3159 = vadd.f32 %v3157, %v3158
  %v3160 = vsel %vm3102, %v2811, 0.0
  %v3161 = vadd.f32 %v3159, %v3160
  %v3162 = vsel %vm3102, %v2812, 0.0
  %v3163 = vadd.f32 %v3161, %v3162
  %v3164 = vsel %vm3102, %v2813, 0.0
  %v3165 = vadd.f32 %v3163, %v3164
  %v3166 = vsel %vm3102, %v2814, 0.0
  %v3167 = vadd.f32 %v3165, %v3166
  %v3168 = vsel %vm3102, %v2815, 0.0
  %v3169 = vadd.f32 %v3167, %v3168
  %v3170 = vsel %vm3102, %v2816, 0.0
  %v3171 = vadd.f32 %v3169, %v3170
  %v3172 = vsel %vm3102, %v2817, 0.0
  %v3173 = vadd.f32 %v3171, %v3172
  %v3174 = vsel %vm3102, %v2818, 0.0
  %v3175 = vadd.f32 %v3173, %v3174
  %v3176 = vsel %vm3102, %v2819, 0.0
  %v3177 = vadd.f32 %v3175, %v3176
  %v3178 = vsel %vm3102, %v2820, 0.0
  %v3179 = vadd.f32 %v3177, %v3178
  %v3180 = vsel %vm3102, %v2821, 0.0
  %v3181 = vadd.f32 %v3179, %v3180
  %v3182 = vsel %vm3102, %v2822, 0.0
  %v3183 = vadd.f32 %v3181, %v3182
  %v3184 = vsel %vm3102, %v2823, 0.0
  %v3185 = vadd.f32 %v3183, %v3184
  %v3186 = vsel %vm3102, %v2824, 0.0
  %v3187 = vadd.f32 %v3185, %v3186
  %v3188 = vsel %vm3102, %v2825, 0.0
  %v3189 = vadd.f32 %v3187, %v3188
  %v3190 = vsel %vm3102, %v2826, 0.0
  %v3191 = vadd.f32 %v3189, %v3190
  %v3192 = vsel %vm3102, %v2827, 0.0
  %v3193 = vadd.f32 %v3191, %v3192
  %v3194 = vsel %vm3102, %v2828, 0.0
  %v3195 = vadd.f32 %v3193, %v3194
  %v3196 = vsel %vm3102, %v2829, 0.0
  %v3197 = vadd.f32 %v3195, %v3196
  %v3198 = vsel %vm3102, %v2830, 0.0
  %v3199 = vadd.f32 %v3197, %v3198
  %v3200 = vsel %vm3102, %v2831, 0.0
  %v3201 = vadd.f32 %v3199, %v3200
  %v3202 = vsel %vm3102, %v2832, 0.0
  %v3203 = vadd.f32 %v3201, %v3202
  %v3204 = vsel %vm3102, %v2833, 0.0
  %v3205 = vadd.f32 %v3203, %v3204
  %v3206 = vsel %vm3102, %v2834, 0.0
  %v3207 = vadd.f32 %v3205, %v3206
  %v3208 = vsel %vm3102, %v2835, 0.0
  %v3209 = vadd.f32 %v3207, %v3208
  %v3210 = vsel %vm3102, %v2836, 0.0
  %v3211 = vadd.f32 %v3209, %v3210
  %v3212 = vsel %vm3102, %v2837, 0.0
  %v3213 = vadd.f32 %v3211, %v3212
  %v3214 = vsel %vm3102, %v2838, 0.0
  %v3215 = vadd.f32 %v3213, %v3214
  %v3216 = vsel %vm3102, %v2839, 0.0
  %v3217 = vadd.f32 %v3215, %v3216
  %v3218 = vsel %vm3102, %v2840, 0.0
  %v3219 = vadd.f32 %v3217, %v3218
  %v3220 = vsel %vm3102, %v2841, 0.0
  %v3221 = vadd.f32 %v3219, %v3220
  %v3222 = vsel %vm3102, %v2842, 0.0
  %v3223 = vadd.f32 %v3221, %v3222
  %v3224 = vsel %vm3102, %v2843, 0.0
  %v3225 = vadd.f32 %v3223, %v3224
  %v3226 = vsel %vm3102, %v2844, 0.0
  %v3227 = vadd.f32 %v3225, %v3226
  %v3228 = vsel %vm3102, %v2845, 0.0
  %v3229 = vadd.f32 %v3227, %v3228
  %v3230 = vrot.slane %v3229, 4
  %v3231 = vadd.f32 %v3229, %v3230
  %v3232 = vrot.slane %v3231, 2
  %v3233 = vadd.f32 %v3231, %v3232
  %v3234 = vrot.slane %v3233, 1
  %v3235 = vadd.f32 %v3233, %v3234
  %v3236 = vmul.f32 %v3235, 0.00048828125
  %v3237 = vsel %vm3102, %v3038, 0.0
  %v3238 = vsel %vm3102, %v3039, 0.0
  %v3239 = vadd.f32 %v3237, %v3238
  %v3240 = vsel %vm3102, %v3040, 0.0
  %v3241 = vadd.f32 %v3239, %v3240
  %v3242 = vsel %vm3102, %v3041, 0.0
  %v3243 = vadd.f32 %v3241, %v3242
  %v3244 = vsel %vm3102, %v3042, 0.0
  %v3245 = vadd.f32 %v3243, %v3244
  %v3246 = vsel %vm3102, %v3043, 0.0
  %v3247 = vadd.f32 %v3245, %v3246
  %v3248 = vsel %vm3102, %v3044, 0.0
  %v3249 = vadd.f32 %v3247, %v3248
  %v3250 = vsel %vm3102, %v3045, 0.0
  %v3251 = vadd.f32 %v3249, %v3250
  %v3252 = vsel %vm3102, %v3046, 0.0
  %v3253 = vadd.f32 %v3251, %v3252
  %v3254 = vsel %vm3102, %v3047, 0.0
  %v3255 = vadd.f32 %v3253, %v3254
  %v3256 = vsel %vm3102, %v3048, 0.0
  %v3257 = vadd.f32 %v3255, %v3256
  %v3258 = vsel %vm3102, %v3049, 0.0
  %v3259 = vadd.f32 %v3257, %v3258
  %v3260 = vsel %vm3102, %v3050, 0.0
  %v3261 = vadd.f32 %v3259, %v3260
  %v3262 = vsel %vm3102, %v3051, 0.0
  %v3263 = vadd.f32 %v3261, %v3262
  %v3264 = vsel %vm3102, %v3052, 0.0
  %v3265 = vadd.f32 %v3263, %v3264
  %v3266 = vsel %vm3102, %v3053, 0.0
  %v3267 = vadd.f32 %v3265, %v3266
  %v3268 = vsel %vm3102, %v3054, 0.0
  %v3269 = vadd.f32 %v3267, %v3268
  %v3270 = vsel %vm3102, %v3055, 0.0
  %v3271 = vadd.f32 %v3269, %v3270
  %v3272 = vsel %vm3102, %v3056, 0.0
  %v3273 = vadd.f32 %v3271, %v3272
  %v3274 = vsel %vm3102, %v3057, 0.0
  %v3275 = vadd.f32 %v3273, %v3274
  %v3276 = vsel %vm3102, %v3058, 0.0
  %v3277 = vadd.f32 %v3275, %v3276
  %v3278 = vsel %vm3102, %v3059, 0.0
  %v3279 = vadd.f32 %v3277, %v3278
  %v3280 = vsel %vm3102, %v3060, 0.0
  %v3281 = vadd.f32 %v3279, %v3280
  %v3282 = vsel %vm3102, %v3061, 0.0
  %v3283 = vadd.f32 %v3281, %v3282
  %v3284 = vsel %vm3102, %v3062, 0.0
  %v3285 = vadd.f32 %v3283, %v3284
  %v3286 = vsel %vm3102, %v3063, 0.0
  %v3287 = vadd.f32 %v3285, %v3286
  %v3288 = vsel %vm3102, %v3064, 0.0
  %v3289 = vadd.f32 %v3287, %v3288
  %v3290 = vsel %vm3102, %v3065, 0.0
  %v3291 = vadd.f32 %v3289, %v3290
  %v3292 = vsel %vm3102, %v3066, 0.0
  %v3293 = vadd.f32 %v3291, %v3292
  %v3294 = vsel %vm3102, %v3067, 0.0
  %v3295 = vadd.f32 %v3293, %v3294
  %v3296 = vsel %vm3102, %v3068, 0.0
  %v3297 = vadd.f32 %v3295, %v3296
  %v3298 = vsel %vm3102, %v3069, 0.0
  %v3299 = vadd.f32 %v3297, %v3298
  %v3300 = vsel %vm3102, %v3070, 0.0
  %v3301 = vadd.f32 %v3299, %v3300
  %v3302 = vsel %vm3102, %v3071, 0.0
  %v3303 = vadd.f32 %v3301, %v3302
  %v3304 = vsel %vm3102, %v3072, 0.0
  %v3305 = vadd.f32 %v3303, %v3304
  %v3306 = vsel %vm3102, %v3073, 0.0
  %v3307 = vadd.f32 %v3305, %v3306
  %v3308 = vsel %vm3102, %v3074, 0.0
  %v3309 = vadd.f32 %v3307, %v3308
  %v3310 = vsel %vm3102, %v3075, 0.0
  %v3311 = vadd.f32 %v3309, %v3310
  %v3312 = vsel %vm3102, %v3076, 0.0
  %v3313 = vadd.f32 %v3311, %v3312
  %v3314 = vsel %vm3102, %v3077, 0.0
  %v3315 = vadd.f32 %v3313, %v3314
  %v3316 = vsel %vm3102, %v3078, 0.0
  %v3317 = vadd.f32 %v3315, %v3316
  %v3318 = vsel %vm3102, %v3079, 0.0
  %v3319 = vadd.f32 %v3317, %v3318
  %v3320 = vsel %vm3102, %v3080, 0.0
  %v3321 = vadd.f32 %v3319, %v3320
  %v3322 = vsel %vm3102, %v3081, 0.0
  %v3323 = vadd.f32 %v3321, %v3322
  %v3324 = vsel %vm3102, %v3082, 0.0
  %v3325 = vadd.f32 %v3323, %v3324
  %v3326 = vsel %vm3102, %v3083, 0.0
  %v3327 = vadd.f32 %v3325, %v3326
  %v3328 = vsel %vm3102, %v3084, 0.0
  %v3329 = vadd.f32 %v3327, %v3328
  %v3330 = vsel %vm3102, %v3085, 0.0
  %v3331 = vadd.f32 %v3329, %v3330
  %v3332 = vsel %vm3102, %v3086, 0.0
  %v3333 = vadd.f32 %v3331, %v3332
  %v3334 = vsel %vm3102, %v3087, 0.0
  %v3335 = vadd.f32 %v3333, %v3334
  %v3336 = vsel %vm3102, %v3088, 0.0
  %v3337 = vadd.f32 %v3335, %v3336
  %v3338 = vsel %vm3102, %v3089, 0.0
  %v3339 = vadd.f32 %v3337, %v3338
  %v3340 = vsel %vm3102, %v3090, 0.0
  %v3341 = vadd.f32 %v3339, %v3340
  %v3342 = vsel %vm3102, %v3091, 0.0
  %v3343 = vadd.f32 %v3341, %v3342
  %v3344 = vsel %vm3102, %v3092, 0.0
  %v3345 = vadd.f32 %v3343, %v3344
  %v3346 = vsel %vm3102, %v3093, 0.0
  %v3347 = vadd.f32 %v3345, %v3346
  %v3348 = vsel %vm3102, %v3094, 0.0
  %v3349 = vadd.f32 %v3347, %v3348
  %v3350 = vsel %vm3102, %v3095, 0.0
  %v3351 = vadd.f32 %v3349, %v3350
  %v3352 = vsel %vm3102, %v3096, 0.0
  %v3353 = vadd.f32 %v3351, %v3352
  %v3354 = vsel %vm3102, %v3097, 0.0
  %v3355 = vadd.f32 %v3353, %v3354
  %v3356 = vsel %vm3102, %v3098, 0.0
  %v3357 = vadd.f32 %v3355, %v3356
  %v3358 = vsel %vm3102, %v3099, 0.0
  %v3359 = vadd.f32 %v3357, %v3358
  %v3360 = vsel %vm3102, %v3100, 0.0
  %v3361 = vadd.f32 %v3359, %v3360
  %v3362 = vsel %vm3102, %v3101, 0.0
  %v3363 = vadd.f32 %v3361, %v3362
  %v3364 = vrot.slane %v3363, 4
  %v3365 = vadd.f32 %v3363, %v3364
  %v3366 = vrot.slane %v3365, 2
  %v3367 = vadd.f32 %v3365, %v3366
  %v3368 = vrot.slane %v3367, 1
  %v3369 = vadd.f32 %v3367, %v3368
  %v3370 = vmul.f32 %v3369, 0.00048828125
  %v3371 = vmul.f32 %v3236, %v3236
  %v3372 = vsub.f32 %v3370, %v3371
  %v3373 = vadd.f32 %v3372, 1e-05
  %v3374 = vrsqrt.pop %v3373
  %v3375 = vmul.f32 %v3374, %v3373
  %v3376 = vmul.f32 %v3375, %v3374
  %v3377 = vmul.f32 0.5, %v3376
  %v3378 = vsub.f32 1.5, %v3377
  %v3379 = vmul.f32 %v3374, %v3378
  %vm3380 = vweird.f32 %v3373
  %vm3381 = vweird.f32 %v3374
  %vm3382 = vmor %vm3380, %vm3381
  %v3383 = vsel %vm3382, %v3374, %v3379
  %v3384 = vld [vmem:[%s2] sm:$0x1]
  %v3385 = vmul.f32 %v3383, %v3384
  %v3386 = vld [vmem:[%s3] sm:$0x1]
  %v3387 = vmul.f32 %v3236, %v3385
  %v3388 = vsub.f32 %v3386, %v3387
  %3390 = vrot.lane.b32.xlu0 %v3385, 16
  %v3391 = vpop.permute.xlu0 %3390
  %3393 = vrot.lane.b32.xlu0 %v3385, 32
  %v3394 = vpop.permute.xlu0 %3393
  %3396 = vrot.lane.b32.xlu0 %v3385, 48
  %v3397 = vpop.permute.xlu0 %3396
  %v3399 = vsel %vm3102, %v3385, %v3391
  %v3400 = vsel %vm770, %v3399, %v3394
  %vm3401 = vcmask 392192
  %v3402 = vsel %vm3401, %v3400, %v3397
  %v3404 = vperm.slane %v3388, 0
  %3405 = vrot.lane.b32.xlu0 %v3404, 16
  %v3406 = vpop.permute.xlu0 %3405
  %3408 = vrot.lane.b32.xlu0 %v3404, 32
  %v3409 = vpop.permute.xlu0 %3408
  %3411 = vrot.lane.b32.xlu0 %v3404, 48
  %v3412 = vpop.permute.xlu0 %3411
  %v3414 = vsel %vm3102, %v3388, %v3406
  %v3415 = vsel %vm770, %v3414, %v3409
  %v3416 = vsel %vm3401, %v3415, %v3412
  %v3417 = vperm.slane %v3402, 0
  %v3418 = vmul.f32 %v1215, %v3417
  %v3419 = vmul.f32 %v1217, %v3417
  %v3420 = vmul.f32 %v1220, %v3417
  %v3421 = vmul.f32 %v1222, %v3417
  %v3422 = vmul.f32 %v1225, %v3417
  %v3423 = vmul.f32 %v1227, %v3417
  %v3424 = vmul.f32 %v1230, %v3417
  %v3425 = vmul.f32 %v1232, %v3417
  %v3426 = vmul.f32 %v1235, %v3417
  %v3427 = vmul.f32 %v1237, %v3417
  %v3428 = vmul.f32 %v1240, %v3417
  %v3429 = vmul.f32 %v1242, %v3417
  %v3430 = vmul.f32 %v1245, %v3417
  %v3431 = vmul.f32 %v1247, %v3417
  %v3432 = vmul.f32 %v1250, %v3417
  %v3433 = vmul.f32 %v1252, %v3417
  %v3434 = vmul.f32 %v1255, %v3417
  %v3435 = vmul.f32 %v1257, %v3417
  %v3436 = vmul.f32 %v1260, %v3417
  %v3437 = vmul.f32 %v1262, %v3417
  %v3438 = vmul.f32 %v1265, %v3417
  %v3439 = vmul.f32 %v1267, %v3417
  %v3440 = vmul.f32 %v1270, %v3417
  %v3441 = vmul.f32 %v1272, %v3417
  %v3442 = vmul.f32 %v1275, %v3417
  %v3443 = vmul.f32 %v1277, %v3417
  %v3444 = vmul.f32 %v1280, %v3417
  %v3445 = vmul.f32 %v1282, %v3417
  %v3446 = vmul.f32 %v1285, %v3417
  %v3447 = vmul.f32 %v1287, %v3417
  %v3448 = vmul.f32 %v1290, %v3417
  %v3449 = vmul.f32 %v1292, %v3417
  %v3450 = vmul.f32 %v1295, %v3417
  %v3451 = vmul.f32 %v1297, %v3417
  %v3452 = vmul.f32 %v1300, %v3417
  %v3453 = vmul.f32 %v1302, %v3417
  %v3454 = vmul.f32 %v1305, %v3417
  %v3455 = vmul.f32 %v1307, %v3417
  %v3456 = vmul.f32 %v1310, %v3417
  %v3457 = vmul.f32 %v1312, %v3417
  %v3458 = vmul.f32 %v1315, %v3417
  %v3459 = vmul.f32 %v1317, %v3417
  %v3460 = vmul.f32 %v1320, %v3417
  %v3461 = vmul.f32 %v1322, %v3417
  %v3462 = vmul.f32 %v1325, %v3417
  %v3463 = vmul.f32 %v1327, %v3417
  %v3464 = vmul.f32 %v1330, %v3417
  %v3465 = vmul.f32 %v1332, %v3417
  %v3466 = vmul.f32 %v1335, %v3417
  %v3467 = vmul.f32 %v1337, %v3417
  %v3468 = vmul.f32 %v1340, %v3417
  %v3469 = vmul.f32 %v1342, %v3417
  %v3470 = vmul.f32 %v1345, %v3417
  %v3471 = vmul.f32 %v1347, %v3417
  %v3472 = vmul.f32 %v1350, %v3417
  %v3473 = vmul.f32 %v1352, %v3417
  %v3474 = vmul.f32 %v1355, %v3417
  %v3475 = vmul.f32 %v1357, %v3417
  %v3476 = vmul.f32 %v1360, %v3417
  %v3477 = vmul.f32 %v1362, %v3417
  %v3478 = vmul.f32 %v1365, %v3417
  %v3479 = vmul.f32 %v1367, %v3417
  %v3480 = vmul.f32 %v1370, %v3417
  %v3481 = vmul.f32 %v1372, %v3417
  %v3482 = vperm.slane %v3416, 0
  %v3483 = vadd.f32 %v3418, %v3482
  %v3484 = vadd.f32 %v3419, %v3482
  %v3485 = vadd.f32 %v3420, %v3482
  %v3486 = vadd.f32 %v3421, %v3482
  %v3487 = vadd.f32 %v3422, %v3482
  %v3488 = vadd.f32 %v3423, %v3482
  %v3489 = vadd.f32 %v3424, %v3482
  %v3490 = vadd.f32 %v3425, %v3482
  %v3491 = vadd.f32 %v3426, %v3482
  %v3492 = vadd.f32 %v3427, %v3482
  %v3493 = vadd.f32 %v3428, %v3482
  %v3494 = vadd.f32 %v3429, %v3482
  %v3495 = vadd.f32 %v3430, %v3482
  %v3496 = vadd.f32 %v3431, %v3482
  %v3497 = vadd.f32 %v3432, %v3482
  %v3498 = vadd.f32 %v3433, %v3482
  %v3499 = vadd.f32 %v3434, %v3482
  %v3500 = vadd.f32 %v3435, %v3482
  %v3501 = vadd.f32 %v3436, %v3482
  %v3502 = vadd.f32 %v3437, %v3482
  %v3503 = vadd.f32 %v3438, %v3482
  %v3504 = vadd.f32 %v3439, %v3482
  %v3505 = vadd.f32 %v3440, %v3482
  %v3506 = vadd.f32 %v3441, %v3482
  %v3507 = vadd.f32 %v3442, %v3482
  %v3508 = vadd.f32 %v3443, %v3482
  %v3509 = vadd.f32 %v3444, %v3482
  %v3510 = vadd.f32 %v3445, %v3482
  %v3511 = vadd.f32 %v3446, %v3482
  %v3512 = vadd.f32 %v3447, %v3482
  %v3513 = vadd.f32 %v3448, %v3482
  %v3514 = vadd.f32 %v3449, %v3482
  %v3515 = vadd.f32 %v3450, %v3482
  %v3516 = vadd.f32 %v3451, %v3482
  %v3517 = vadd.f32 %v3452, %v3482
  %v3518 = vadd.f32 %v3453, %v3482
  %v3519 = vadd.f32 %v3454, %v3482
  %v3520 = vadd.f32 %v3455, %v3482
  %v3521 = vadd.f32 %v3456, %v3482
  %v3522 = vadd.f32 %v3457, %v3482
  %v3523 = vadd.f32 %v3458, %v3482
  %v3524 = vadd.f32 %v3459, %v3482
  %v3525 = vadd.f32 %v3460, %v3482
  %v3526 = vadd.f32 %v3461, %v3482
  %v3527 = vadd.f32 %v3462, %v3482
  %v3528 = vadd.f32 %v3463, %v3482
  %v3529 = vadd.f32 %v3464, %v3482
  %v3530 = vadd.f32 %v3465, %v3482
  %v3531 = vadd.f32 %v3466, %v3482
  %v3532 = vadd.f32 %v3467, %v3482
  %v3533 = vadd.f32 %v3468, %v3482
  %v3534 = vadd.f32 %v3469, %v3482
  %v3535 = vadd.f32 %v3470, %v3482
  %v3536 = vadd.f32 %v3471, %v3482
  %v3537 = vadd.f32 %v3472, %v3482
  %v3538 = vadd.f32 %v3473, %v3482
  %v3539 = vadd.f32 %v3474, %v3482
  %v3540 = vadd.f32 %v3475, %v3482
  %v3541 = vadd.f32 %v3476, %v3482
  %v3542 = vadd.f32 %v3477, %v3482
  %v3543 = vadd.f32 %v3478, %v3482
  %v3544 = vadd.f32 %v3479, %v3482
  %v3545 = vadd.f32 %v3480, %v3482
  %v3546 = vadd.f32 %v3481, %v3482
  %v3547 = vmax.f32 %v3483, 0.0
  %v3548 = vmax.f32 %v3484, 0.0
  %v3549 = vmax.f32 %v3485, 0.0
  %v3550 = vmax.f32 %v3486, 0.0
  %v3551 = vmax.f32 %v3487, 0.0
  %v3552 = vmax.f32 %v3488, 0.0
  %v3553 = vmax.f32 %v3489, 0.0
  %v3554 = vmax.f32 %v3490, 0.0
  %v3555 = vmax.f32 %v3491, 0.0
  %v3556 = vmax.f32 %v3492, 0.0
  %v3557 = vmax.f32 %v3493, 0.0
  %v3558 = vmax.f32 %v3494, 0.0
  %v3559 = vmax.f32 %v3495, 0.0
  %v3560 = vmax.f32 %v3496, 0.0
  %v3561 = vmax.f32 %v3497, 0.0
  %v3562 = vmax.f32 %v3498, 0.0
  %v3563 = vmax.f32 %v3499, 0.0
  %v3564 = vmax.f32 %v3500, 0.0
  %v3565 = vmax.f32 %v3501, 0.0
  %v3566 = vmax.f32 %v3502, 0.0
  %v3567 = vmax.f32 %v3503, 0.0
  %v3568 = vmax.f32 %v3504, 0.0
  %v3569 = vmax.f32 %v3505, 0.0
  %v3570 = vmax.f32 %v3506, 0.0
  %v3571 = vmax.f32 %v3507, 0.0
  %v3572 = vmax.f32 %v3508, 0.0
  %v3573 = vmax.f32 %v3509, 0.0
  %v3574 = vmax.f32 %v3510, 0.0
  %v3575 = vmax.f32 %v3511, 0.0
  %v3576 = vmax.f32 %v3512, 0.0
  %v3577 = vmax.f32 %v3513, 0.0
  %v3578 = vmax.f32 %v3514, 0.0
  %v3579 = vmax.f32 %v3515, 0.0
  %v3580 = vmax.f32 %v3516, 0.0
  %v3581 = vmax.f32 %v3517, 0.0
  %v3582 = vmax.f32 %v3518, 0.0
  %v3583 = vmax.f32 %v3519, 0.0
  %v3584 = vmax.f32 %v3520, 0.0
  %v3585 = vmax.f32 %v3521, 0.0
  %v3586 = vmax.f32 %v3522, 0.0
  %v3587 = vmax.f32 %v3523, 0.0
  %v3588 = vmax.f32 %v3524, 0.0
  %v3589 = vmax.f32 %v3525, 0.0
  %v3590 = vmax.f32 %v3526, 0.0
  %v3591 = vmax.f32 %v3527, 0.0
  %v3592 = vmax.f32 %v3528, 0.0
  %v3593 = vmax.f32 %v3529, 0.0
  %v3594 = vmax.f32 %v3530, 0.0
  %v3595 = vmax.f32 %v3531, 0.0
  %v3596 = vmax.f32 %v3532, 0.0
  %v3597 = vmax.f32 %v3533, 0.0
  %v3598 = vmax.f32 %v3534, 0.0
  %v3599 = vmax.f32 %v3535, 0.0
  %v3600 = vmax.f32 %v3536, 0.0
  %v3601 = vmax.f32 %v3537, 0.0
  %v3602 = vmax.f32 %v3538, 0.0
  %v3603 = vmax.f32 %v3539, 0.0
  %v3604 = vmax.f32 %v3540, 0.0
  %v3605 = vmax.f32 %v3541, 0.0
  %v3606 = vmax.f32 %v3542, 0.0
  %v3607 = vmax.f32 %v3543, 0.0
  %v3608 = vmax.f32 %v3544, 0.0
  %v3609 = vmax.f32 %v3545, 0.0
  %v3610 = vmax.f32 %v3546, 0.0
  %v3611 = vpack.c.bf16 %v3547, %v3547
  %v3612 = vpack.c.bf16 %v3548, %v3548
  %v3613 = vpack.c.bf16 %v3549, %v3549
  %v3614 = vpack.c.bf16 %v3550, %v3550
  %v3615 = vpack.c.bf16 %v3551, %v3551
  %v3616 = vpack.c.bf16 %v3552, %v3552
  %v3617 = vpack.c.bf16 %v3553, %v3553
  %v3618 = vpack.c.bf16 %v3554, %v3554
  %v3619 = vpack.c.bf16 %v3555, %v3555
  %v3620 = vpack.c.bf16 %v3556, %v3556
  %v3621 = vpack.c.bf16 %v3557, %v3557
  %v3622 = vpack.c.bf16 %v3558, %v3558
  %v3623 = vpack.c.bf16 %v3559, %v3559
  %v3624 = vpack.c.bf16 %v3560, %v3560
  %v3625 = vpack.c.bf16 %v3561, %v3561
  %v3626 = vpack.c.bf16 %v3562, %v3562
  %v3627 = vpack.c.bf16 %v3563, %v3563
  %v3628 = vpack.c.bf16 %v3564, %v3564
  %v3629 = vpack.c.bf16 %v3565, %v3565
  %v3630 = vpack.c.bf16 %v3566, %v3566
  %v3631 = vpack.c.bf16 %v3567, %v3567
  %v3632 = vpack.c.bf16 %v3568, %v3568
  %v3633 = vpack.c.bf16 %v3569, %v3569
  %v3634 = vpack.c.bf16 %v3570, %v3570
  %v3635 = vpack.c.bf16 %v3571, %v3571
  %v3636 = vpack.c.bf16 %v3572, %v3572
  %v3637 = vpack.c.bf16 %v3573, %v3573
  %v3638 = vpack.c.bf16 %v3574, %v3574
  %v3639 = vpack.c.bf16 %v3575, %v3575
  %v3640 = vpack.c.bf16 %v3576, %v3576
  %v3641 = vpack.c.bf16 %v3577, %v3577
  %v3642 = vpack.c.bf16 %v3578, %v3578
  %v3643 = vpack.c.bf16 %v3579, %v3579
  %v3644 = vpack.c.bf16 %v3580, %v3580
  %v3645 = vpack.c.bf16 %v3581, %v3581
  %v3646 = vpack.c.bf16 %v3582, %v3582
  %v3647 = vpack.c.bf16 %v3583, %v3583
  %v3648 = vpack.c.bf16 %v3584, %v3584
  %v3649 = vpack.c.bf16 %v3585, %v3585
  %v3650 = vpack.c.bf16 %v3586, %v3586
  %v3651 = vpack.c.bf16 %v3587, %v3587
  %v3652 = vpack.c.bf16 %v3588, %v3588
  %v3653 = vpack.c.bf16 %v3589, %v3589
  %v3654 = vpack.c.bf16 %v3590, %v3590
  %v3655 = vpack.c.bf16 %v3591, %v3591
  %v3656 = vpack.c.bf16 %v3592, %v3592
  %v3657 = vpack.c.bf16 %v3593, %v3593
  %v3658 = vpack.c.bf16 %v3594, %v3594
  %v3659 = vpack.c.bf16 %v3595, %v3595
  %v3660 = vpack.c.bf16 %v3596, %v3596
  %v3661 = vpack.c.bf16 %v3597, %v3597
  %v3662 = vpack.c.bf16 %v3598, %v3598
  %v3663 = vpack.c.bf16 %v3599, %v3599
  %v3664 = vpack.c.bf16 %v3600, %v3600
  %v3665 = vpack.c.bf16 %v3601, %v3601
  %v3666 = vpack.c.bf16 %v3602, %v3602
  %v3667 = vpack.c.bf16 %v3603, %v3603
  %v3668 = vpack.c.bf16 %v3604, %v3604
  %v3669 = vpack.c.bf16 %v3605, %v3605
  %v3670 = vpack.c.bf16 %v3606, %v3606
  %v3671 = vpack.c.bf16 %v3607, %v3607
  %v3672 = vpack.c.bf16 %v3608, %v3608
  %v3673 = vpack.c.bf16 %v3609, %v3609
  %v3674 = vpack.c.bf16 %v3610, %v3610
  %vm3675 = vcmask 519168
  %3676 = vst.msk [vmem:[%s4] sm:$0xf] %vm3675, %v3611
  %3677 = vst.msk [vmem:[%s4 + $0x4] sm:$0xf] %vm3675, %v3612
  %3678 = vst.msk [vmem:[%s4 + $0x8] sm:$0xf] %vm3675, %v3613
  %3679 = vst.msk [vmem:[%s4 + $0xc] sm:$0xf] %vm3675, %v3614
  %3680 = vst.msk [vmem:[%s4 + $0x10] sm:$0xf] %vm3675, %v3615
  %3681 = vst.msk [vmem:[%s4 + $0x14] sm:$0xf] %vm3675, %v3616
  %3682 = vst.msk [vmem:[%s4 + $0x18] sm:$0xf] %vm3675, %v3617
  %3683 = vst.msk [vmem:[%s4 + $0x1c] sm:$0xf] %vm3675, %v3618
  %3684 = vst.msk [vmem:[%s4 + $0x20] sm:$0xf] %vm3675, %v3619
  %3685 = vst.msk [vmem:[%s4 + $0x24] sm:$0xf] %vm3675, %v3620
  %3686 = vst.msk [vmem:[%s4 + $0x28] sm:$0xf] %vm3675, %v3621
  %3687 = vst.msk [vmem:[%s4 + $0x2c] sm:$0xf] %vm3675, %v3622
  %3688 = vst.msk [vmem:[%s4 + $0x30] sm:$0xf] %vm3675, %v3623
  %3689 = vst.msk [vmem:[%s4 + $0x34] sm:$0xf] %vm3675, %v3624
  %3690 = vst.msk [vmem:[%s4 + $0x38] sm:$0xf] %vm3675, %v3625
  %3691 = vst.msk [vmem:[%s4 + $0x3c] sm:$0xf] %vm3675, %v3626
  %3692 = vst.msk [vmem:[%s4 + $0x40] sm:$0xf] %vm3675, %v3627
  %3693 = vst.msk [vmem:[%s4 + $0x44] sm:$0xf] %vm3675, %v3628
  %3694 = vst.msk [vmem:[%s4 + $0x48] sm:$0xf] %vm3675, %v3629
  %3695 = vst.msk [vmem:[%s4 + $0x4c] sm:$0xf] %vm3675, %v3630
  %3696 = vst.msk [vmem:[%s4 + $0x50] sm:$0xf] %vm3675, %v3631
  %3697 = vst.msk [vmem:[%s4 + $0x54] sm:$0xf] %vm3675, %v3632
  %3698 = vst.msk [vmem:[%s4 + $0x58] sm:$0xf] %vm3675, %v3633
  %3699 = vst.msk [vmem:[%s4 + $0x5c] sm:$0xf] %vm3675, %v3634
  %3700 = vst.msk [vmem:[%s4 + $0x60] sm:$0xf] %vm3675, %v3635
  %3701 = vst.msk [vmem:[%s4 + $0x64] sm:$0xf] %vm3675, %v3636
  %3702 = vst.msk [vmem:[%s4 + $0x68] sm:$0xf] %vm3675, %v3637
  %3703 = vst.msk [vmem:[%s4 + $0x6c] sm:$0xf] %vm3675, %v3638
  %3704 = vst.msk [vmem:[%s4 + $0x70] sm:$0xf] %vm3675, %v3639
  %3705 = vst.msk [vmem:[%s4 + $0x74] sm:$0xf] %vm3675, %v3640
  %3706 = vst.msk [vmem:[%s4 + $0x78] sm:$0xf] %vm3675, %v3641
  %3707 = vst.msk [vmem:[%s4 + $0x7c] sm:$0xf] %vm3675, %v3642
  %3708 = vst.msk [vmem:[%s4 + $0x80] sm:$0xf] %vm3675, %v3643
  %3709 = vst.msk [vmem:[%s4 + $0x84] sm:$0xf] %vm3675, %v3644
  %3710 = vst.msk [vmem:[%s4 + $0x88] sm:$0xf] %vm3675, %v3645
  %3711 = vst.msk [vmem:[%s4 + $0x8c] sm:$0xf] %vm3675, %v3646
  %3712 = vst.msk [vmem:[%s4 + $0x90] sm:$0xf] %vm3675, %v3647
  %3713 = vst.msk [vmem:[%s4 + $0x94] sm:$0xf] %vm3675, %v3648
  %3714 = vst.msk [vmem:[%s4 + $0x98] sm:$0xf] %vm3675, %v3649
  %3715 = vst.msk [vmem:[%s4 + $0x9c] sm:$0xf] %vm3675, %v3650
  %3716 = vst.msk [vmem:[%s4 + $0xa0] sm:$0xf] %vm3675, %v3651
  %3717 = vst.msk [vmem:[%s4 + $0xa4] sm:$0xf] %vm3675, %v3652
  %3718 = vst.msk [vmem:[%s4 + $0xa8] sm:$0xf] %vm3675, %v3653
  %3719 = vst.msk [vmem:[%s4 + $0xac] sm:$0xf] %vm3675, %v3654
  %3720 = vst.msk [vmem:[%s4 + $0xb0] sm:$0xf] %vm3675, %v3655
  %3721 = vst.msk [vmem:[%s4 + $0xb4] sm:$0xf] %vm3675, %v3656
  %3722 = vst.msk [vmem:[%s4 + $0xb8] sm:$0xf] %vm3675, %v3657
  %3723 = vst.msk [vmem:[%s4 + $0xbc] sm:$0xf] %vm3675, %v3658
  %3724 = vst.msk [vmem:[%s4 + $0xc0] sm:$0xf] %vm3675, %v3659
  %3725 = vst.msk [vmem:[%s4 + $0xc4] sm:$0xf] %vm3675, %v3660
  %3726 = vst.msk [vmem:[%s4 + $0xc8] sm:$0xf] %vm3675, %v3661
  %3727 = vst.msk [vmem:[%s4 + $0xcc] sm:$0xf] %vm3675, %v3662
  %3728 = vst.msk [vmem:[%s4 + $0xd0] sm:$0xf] %vm3675, %v3663
  %3729 = vst.msk [vmem:[%s4 + $0xd4] sm:$0xf] %vm3675, %v3664
  %3730 = vst.msk [vmem:[%s4 + $0xd8] sm:$0xf] %vm3675, %v3665
  %3731 = vst.msk [vmem:[%s4 + $0xdc] sm:$0xf] %vm3675, %v3666
  %3732 = vst.msk [vmem:[%s4 + $0xe0] sm:$0xf] %vm3675, %v3667
  %3733 = vst.msk [vmem:[%s4 + $0xe4] sm:$0xf] %vm3675, %v3668
  %3734 = vst.msk [vmem:[%s4 + $0xe8] sm:$0xf] %vm3675, %v3669
  %3735 = vst.msk [vmem:[%s4 + $0xec] sm:$0xf] %vm3675, %v3670
  %3736 = vst.msk [vmem:[%s4 + $0xf0] sm:$0xf] %vm3675, %v3671
  %3737 = vst.msk [vmem:[%s4 + $0xf4] sm:$0xf] %vm3675, %v3672
  %3738 = vst.msk [vmem:[%s4 + $0xf8] sm:$0xf] %vm3675, %v3673
  %3739 = vst.msk [vmem:[%s4 + $0xfc] sm:$0xf] %vm3675, %v3674
  // Predicated region
  $region18: #{generator_forward.8} parent=0 // pred_check
    _
  $region19: #{generator_forward.8} parent=0 // pred_check_branch
    %3741 = sbr.rel (0) target = $region21
  $region20: #{generator_forward.8} parent=0 // pred_region
    _
  $region21: #{generator_forward.8} parent=0 // pred_fallthru
    _
  // Predicated region
  $region22: #{generator_forward.8} parent=0 // pred_check
    _
  $region23: #{generator_forward.8} parent=0 // pred_check_branch
    %3743 = sbr.rel (0) target = $region25
  $region24: #{generator_forward.8} parent=0 // pred_region
    _
  $region25: #{generator_forward.8} parent=0 // pred_fallthru
    _

// kernel: generator_forward.9
$region0: #{generator_forward.9}
  #allocation0 [shape = 'u32[]', space=smem, size = 0x4, offset = 0x4, fixed_abs, tag = 'smem constant byte address 0x4 - core index']
  #allocation1 [shape = 'u32[72,128]{1,0:T(1,128)}', space=vmem, size = 0x9000, scoped, tag = 'internal scratch']
  %s0 = inlined_call_operand.vmem [shape: bf16[2048,144], index: 0, kind: input, shape index: {}]
  %s1 = inlined_call_operand.vmem [shape: bf16[144,12], index: 1, kind: input, shape index: {}]
  %s2 = inlined_call_operand.vmem [shape: f32[2048,12], index: 2, kind: output, shape index: {}]
  %s3 = sld [smem:[#allocation0]]
  $region41: #{generator_forward.9} parent=0
    _
  %s5 = ssub.s32 1, %s3
  %s6 = scalar_select 0, %s5, %s3
  loop: start=0, step=1, limit=4
  $region2: #{generator_forward.9} parent=0 // loop_pre_header
    _
  $region3: #{generator_forward.9} parent=0 // loop_header
    %s8 = sphi 0, %s12
    %p9 = scmp.ge.s32.totalorder %s8, 4
    %s18 = sphi 0, %s20
    %s21 = sphi 0, %s18
    %s22 = sphi 0, %s21
    %s38 = sphi 0, %s22
    %s42 = sphi 0, %s42
    %s44 = sphi 0, %s42
    %s45 = sphi 0, %s44
    %s59 = sphi 0, %s45
    %s65 = sphi 0, %s67
    %s68 = sphi 0, %s65
    %s69 = sphi 0, %s68
    %s85 = sphi 0, %s69
  $region4: #{generator_forward.9} parent=0 // loop_header_branch
    %11 = sbr.rel (%p9) target = $region8
  $region5: #{generator_forward.9} parent=0 // loop_body
    %s13 = ssub.s32 %s8, 1
    %s14 = ssub.s32 %s8, 2
    %s15 = sadd.s32 %s8, 1
    %s16 = ssub.s32 %s8, %s15
    %p17 = scmp.eq.s32.totalorder %s16, 0
    %s19 = sadd.s32 %s18, 1
    %s20 = scalar_select %p17, %s18, %s19
    %p23 = pneg %p17
    %p24 = scmp.eq.s32.totalorder %s8, 1
    %p25 = por %p23, %p24
    %p26 = scmp.ne.s32.totalorder %s18, %s21
    %p27 = scmp.eq.s32.totalorder %s8, 0
    %p28 = por %p26, %p27
    %p29 = scmp.ne.s32.totalorder %s18, %s21
    %p30 = scmp.eq.s32.totalorder %s13, 1
    %p31 = por %p29, %p30
    %p32 = scmp.ne.s32.totalorder %s21, %s22
    %p33 = scmp.eq.s32.totalorder %s13, 0
    %p34 = por %p32, %p33
    %p35 = scmp.ne.s32.totalorder %s21, %s22
    %p36 = scmp.eq.s32.totalorder %s14, 1
    %p37 = por %p35, %p36
    %p39 = scmp.ne.s32.totalorder %s22, %s38
    %p40 = scmp.eq.s32.totalorder %s14, 0
    %p41 = por %p39, %p40
    %s43 = sadd.s32 %s42, 1
    %p46 = scmp.eq.s32.totalorder %s8, 1
    %p47 = scmp.ne.s32.totalorder %s42, %s44
    %p48 = scmp.eq.s32.totalorder %s8, 0
    %p49 = por %p47, %p48
    %p50 = scmp.ne.s32.totalorder %s42, %s44
    %p51 = scmp.eq.s32.totalorder %s13, 1
    %p52 = por %p50, %p51
    %p53 = scmp.ne.s32.totalorder %s44, %s45
    %p54 = scmp.eq.s32.totalorder %s13, 0
    %p55 = por %p53, %p54
    %p56 = scmp.ne.s32.totalorder %s44, %s45
    %p57 = scmp.eq.s32.totalorder %s14, 1
    %p58 = por %p56, %p57
    %p60 = scmp.ne.s32.totalorder %s45, %s59
    %p61 = scmp.eq.s32.totalorder %s14, 0
    %p62 = por %p60, %p61
    %s63 = ssub.s32 %s8, %s15
    %p64 = scmp.eq.s32.totalorder %s63, 0
    %s66 = sadd.s32 %s65, 1
    %s67 = scalar_select %p64, %s65, %s66
    %p70 = pneg %p64
    %p71 = scmp.eq.s32.totalorder %s8, 1
    %p72 = por %p70, %p71
    %p73 = scmp.ne.s32.totalorder %s65, %s68
    %p74 = scmp.eq.s32.totalorder %s8, 0
    %p75 = por %p73, %p74
    %p76 = scmp.ne.s32.totalorder %s65, %s68
    %p77 = scmp.eq.s32.totalorder %s13, 1
    %p78 = por %p76, %p77
    %p79 = scmp.ne.s32.totalorder %s68, %s69
    %p80 = scmp.eq.s32.totalorder %s13, 0
    %p81 = por %p79, %p80
    %p82 = scmp.ne.s32.totalorder %s68, %s69
    %p83 = scmp.eq.s32.totalorder %s14, 1
    %p84 = por %p82, %p83
    %p86 = scmp.ne.s32.totalorder %s69, %s85
    %p87 = scmp.eq.s32.totalorder %s14, 0
    %p88 = por %p86, %p87
    %p89 = scmp.le.s32.totalorder 1, %s8
    %p90 = scmp.lt.s32.totalorder %s8, 3
    %p91 = pnand %p89, %p90
    %p92 = pneg %p91
    // Predicated region
    $region9: #{generator_forward.9} parent=5 // pred_check
      _
    $region10: #{generator_forward.9} parent=5 // pred_check_branch
      %94 = sbr.rel (%p91) target = $region12
    $region11: #{generator_forward.9} parent=5 // pred_region
      %s95 = ssub.s32 %s8, 1
      // Predicated region
      $region13: #{generator_forward.9} parent=11 // pred_check
        %p96 = pneg %p55
      $region14: #{generator_forward.9} parent=11 // pred_check_branch
        %98 = sbr.rel (%p96) target = $region16
      $region15: #{generator_forward.9} parent=11 // pred_region
        _
      $region16: #{generator_forward.9} parent=11 // pred_fallthru
        _
    $region12: #{generator_forward.9} parent=5 // pred_fallthru
      _
    %p99 = scmp.lt.s32.totalorder %s8, 2
    // Predicated region
    $region17: #{generator_forward.9} parent=5 // pred_check
      %p100 = pneg %p99
    $region18: #{generator_forward.9} parent=5 // pred_check_branch
      %102 = sbr.rel (%p100) target = $region20
    $region19: #{generator_forward.9} parent=5 // pred_region
      // Predicated region
      $region21: #{generator_forward.9} parent=19 // pred_check
        %p103 = pneg %p28
      $region22: #{generator_forward.9} parent=19 // pred_check_branch
        %105 = sbr.rel (%p103) target = $region24
      $region23: #{generator_forward.9} parent=19 // pred_region
        %s106 = smul.u32 128, %s8
        %p107 = scmp.lt.s32.totalorder %s106, 255
        %s108 = scalar_select %p107, %s106, 255
        %s109 = smul.addr %s108, 2
        %s110 = smul.addr %s109, 4
        %s111 = scalar_lea.vmem %s0, %s110
        %s112 = smul.u32 128, %s8
      $region24: #{generator_forward.9} parent=19 // pred_fallthru
        _
    $region20: #{generator_forward.9} parent=5 // pred_fallthru
      _
    %p113 = scmp.le.s32.totalorder 1, %s8
    %p114 = scmp.lt.s32.totalorder %s8, 3
    %p115 = pnand %p113, %p114
    %p116 = pneg %p115
    // Predicated region
    $region25: #{generator_forward.9} parent=5 // pred_check
      _
    $region26: #{generator_forward.9} parent=5 // pred_check_branch
      %118 = sbr.rel (%p115) target = $region28
    $region27: #{generator_forward.9} parent=5 // pred_region
      %s119 = ssub.s32 %s8, 1
      %s120 = smul.u32 128, %s13
      %p121 = scmp.lt.s32.totalorder %s120, 255
      %s122 = scalar_select %p121, %s120, 255
      %s123 = smul.addr %s122, 2
      %s124 = smul.addr %s123, 4
      %s125 = scalar_lea.vmem %s0, %s124
      %p126 = pneg %p34
      %p127 = pneg %p31
      %p128 = pneg %p55
      %p129 = pneg %p52
      %p130 = pneg %p81
      %p131 = pneg %p78
      %s132 = smul.u32 128, %s13
      %p133 = scmp.lt.s32.totalorder %s132, 255
      %s134 = scalar_select %p133, %s132, 255
      %s135 = smul.addr %s134, 8
      %s136 = scalar_lea.vmem %s2, %s135
      %s137 = smul.u32 128, %s13
      %p138 = scmp.lt.s32.totalorder %s137, 255
      %s139 = scalar_select %p138, %s137, 255
      %s140 = smul.addr %s139, 2
      %s141 = smul.addr %s140, 4
      %s142 = scalar_lea.vmem %s0, %s141
      %s143 = smul.u32 128, %s13
      %s144 = smul.u32 128, %s13
      %p145 = scmp.lt.s32.totalorder %s144, 255
      %s146 = scalar_select %p145, %s144, 255
      %s147 = smul.addr %s146, 8
      %s148 = scalar_lea.vmem %s2, %s147
      %s149 = smul.u32 128, %s13
      %v151 = vld [vmem:[%s142] sm:$0xff]
      %v152 = vld [vmem:[%s142 + $0x8] sm:$0xff]
      %v153 = vld [vmem:[%s142 + $0x10] sm:$0xff]
      %v154 = vld [vmem:[%s142 + $0x18] sm:$0xff]
      %v155 = vld [vmem:[%s142 + $0x20] sm:$0xff]
      %v156 = vld [vmem:[%s142 + $0x28] sm:$0xff]
      %v157 = vld [vmem:[%s142 + $0x30] sm:$0xff]
      %v158 = vld [vmem:[%s142 + $0x38] sm:$0xff]
      %v159 = vld [vmem:[%s142 + $0x40] sm:$0xff]
      %v160 = vld [vmem:[%s142 + $0x48] sm:$0xff]
      %v161 = vld [vmem:[%s142 + $0x50] sm:$0xff]
      %v162 = vld [vmem:[%s142 + $0x58] sm:$0xff]
      %v163 = vld [vmem:[%s142 + $0x60] sm:$0xff]
      %v164 = vld [vmem:[%s142 + $0x68] sm:$0xff]
      %v165 = vld [vmem:[%s142 + $0x70] sm:$0xff]
      %v166 = vld [vmem:[%s142 + $0x78] sm:$0xff]
      %v167 = vld [vmem:[%s142 + $0x80] sm:$0xff]
      %v168 = vld [vmem:[%s142 + $0x88] sm:$0xff]
      %v169 = vld [vmem:[%s142 + $0x90] sm:$0xff]
      %v170 = vld [vmem:[%s142 + $0x98] sm:$0xff]
      %v171 = vld [vmem:[%s142 + $0xa0] sm:$0xff]
      %v172 = vld [vmem:[%s142 + $0xa8] sm:$0xff]
      %v173 = vld [vmem:[%s142 + $0xb0] sm:$0xff]
      %v174 = vld [vmem:[%s142 + $0xb8] sm:$0xff]
      %v175 = vld [vmem:[%s142 + $0xc0] sm:$0xff]
      %v176 = vld [vmem:[%s142 + $0xc8] sm:$0xff]
      %v177 = vld [vmem:[%s142 + $0xd0] sm:$0xff]
      %v178 = vld [vmem:[%s142 + $0xd8] sm:$0xff]
      %v179 = vld [vmem:[%s142 + $0xe0] sm:$0xff]
      %v180 = vld [vmem:[%s142 + $0xe8] sm:$0xff]
      %v181 = vld [vmem:[%s142 + $0xf0] sm:$0xff]
      %v182 = vld [vmem:[%s142 + $0xf8] sm:$0xff]
      %v183 = vld [vmem:[%s142 + $0x100] sm:$0xff]
      %v184 = vld [vmem:[%s142 + $0x108] sm:$0xff]
      %v185 = vld [vmem:[%s142 + $0x110] sm:$0xff]
      %v186 = vld [vmem:[%s142 + $0x118] sm:$0xff]
      %v187 = vld [vmem:[%s142 + $0x120] sm:$0xff]
      %v188 = vld [vmem:[%s142 + $0x128] sm:$0xff]
      %v189 = vld [vmem:[%s142 + $0x130] sm:$0xff]
      %v190 = vld [vmem:[%s142 + $0x138] sm:$0xff]
      %v191 = vld [vmem:[%s142 + $0x140] sm:$0xff]
      %v192 = vld [vmem:[%s142 + $0x148] sm:$0xff]
      %v193 = vld [vmem:[%s142 + $0x150] sm:$0xff]
      %v194 = vld [vmem:[%s142 + $0x158] sm:$0xff]
      %v195 = vld [vmem:[%s142 + $0x160] sm:$0xff]
      %v196 = vld [vmem:[%s142 + $0x168] sm:$0xff]
      %v197 = vld [vmem:[%s142 + $0x170] sm:$0xff]
      %v198 = vld [vmem:[%s142 + $0x178] sm:$0xff]
      %v199 = vld [vmem:[%s142 + $0x180] sm:$0xff]
      %v200 = vld [vmem:[%s142 + $0x188] sm:$0xff]
      %v201 = vld [vmem:[%s142 + $0x190] sm:$0xff]
      %v202 = vld [vmem:[%s142 + $0x198] sm:$0xff]
      %v203 = vld [vmem:[%s142 + $0x1a0] sm:$0xff]
      %v204 = vld [vmem:[%s142 + $0x1a8] sm:$0xff]
      %v205 = vld [vmem:[%s142 + $0x1b0] sm:$0xff]
      %v206 = vld [vmem:[%s142 + $0x1b8] sm:$0xff]
      %v207 = vld [vmem:[%s142 + $0x1c0] sm:$0xff]
      %v208 = vld [vmem:[%s142 + $0x1c8] sm:$0xff]
      %v209 = vld [vmem:[%s142 + $0x1d0] sm:$0xff]
      %v210 = vld [vmem:[%s142 + $0x1d8] sm:$0xff]
      %v211 = vld [vmem:[%s142 + $0x1e0] sm:$0xff]
      %v212 = vld [vmem:[%s142 + $0x1e8] sm:$0xff]
      %v213 = vld [vmem:[%s142 + $0x1f0] sm:$0xff]
      %v214 = vld [vmem:[%s142 + $0x1f8] sm:$0xff]
      %v215 = vld [vmem:[%s142 + $0x200] sm:$0xff]
      %v216 = vld [vmem:[%s142 + $0x208] sm:$0xff]
      %v217 = vld [vmem:[%s142 + $0x210] sm:$0xff]
      %v218 = vld [vmem:[%s142 + $0x218] sm:$0xff]
      %v219 = vld [vmem:[%s142 + $0x220] sm:$0xff]
      %v220 = vld [vmem:[%s142 + $0x228] sm:$0xff]
      %v221 = vld [vmem:[%s142 + $0x230] sm:$0xff]
      %v222 = vld [vmem:[%s142 + $0x238] sm:$0xff]
      %v223 = vld [vmem:[%s142 + $0x240] sm:$0xff]
      %v224 = vld [vmem:[%s142 + $0x248] sm:$0xff]
      %v225 = vld [vmem:[%s142 + $0x250] sm:$0xff]
      %v226 = vld [vmem:[%s142 + $0x258] sm:$0xff]
      %v227 = vld [vmem:[%s142 + $0x260] sm:$0xff]
      %v228 = vld [vmem:[%s142 + $0x268] sm:$0xff]
      %v229 = vld [vmem:[%s142 + $0x270] sm:$0xff]
      %v230 = vld [vmem:[%s142 + $0x278] sm:$0xff]
      %v231 = vld [vmem:[%s142 + $0x280] sm:$0xff]
      %v232 = vld [vmem:[%s142 + $0x288] sm:$0xff]
      %v233 = vld [vmem:[%s142 + $0x290] sm:$0xff]
      %v234 = vld [vmem:[%s142 + $0x298] sm:$0xff]
      %v235 = vld [vmem:[%s142 + $0x2a0] sm:$0xff]
      %v236 = vld [vmem:[%s142 + $0x2a8] sm:$0xff]
      %v237 = vld [vmem:[%s142 + $0x2b0] sm:$0xff]
      %v238 = vld [vmem:[%s142 + $0x2b8] sm:$0xff]
      %v239 = vld [vmem:[%s142 + $0x2c0] sm:$0xff]
      %v240 = vld [vmem:[%s142 + $0x2c8] sm:$0xff]
      %v241 = vld [vmem:[%s142 + $0x2d0] sm:$0xff]
      %v242 = vld [vmem:[%s142 + $0x2d8] sm:$0xff]
      %v243 = vld [vmem:[%s142 + $0x2e0] sm:$0xff]
      %v244 = vld [vmem:[%s142 + $0x2e8] sm:$0xff]
      %v245 = vld [vmem:[%s142 + $0x2f0] sm:$0xff]
      %v246 = vld [vmem:[%s142 + $0x2f8] sm:$0xff]
      %v247 = vld [vmem:[%s142 + $0x300] sm:$0xff]
      %v248 = vld [vmem:[%s142 + $0x308] sm:$0xff]
      %v249 = vld [vmem:[%s142 + $0x310] sm:$0xff]
      %v250 = vld [vmem:[%s142 + $0x318] sm:$0xff]
      %v251 = vld [vmem:[%s142 + $0x320] sm:$0xff]
      %v252 = vld [vmem:[%s142 + $0x328] sm:$0xff]
      %v253 = vld [vmem:[%s142 + $0x330] sm:$0xff]
      %v254 = vld [vmem:[%s142 + $0x338] sm:$0xff]
      %v255 = vld [vmem:[%s142 + $0x340] sm:$0xff]
      %v256 = vld [vmem:[%s142 + $0x348] sm:$0xff]
      %v257 = vld [vmem:[%s142 + $0x350] sm:$0xff]
      %v258 = vld [vmem:[%s142 + $0x358] sm:$0xff]
      %v259 = vld [vmem:[%s142 + $0x360] sm:$0xff]
      %v260 = vld [vmem:[%s142 + $0x368] sm:$0xff]
      %v261 = vld [vmem:[%s142 + $0x370] sm:$0xff]
      %v262 = vld [vmem:[%s142 + $0x378] sm:$0xff]
      %v263 = vld [vmem:[%s142 + $0x380] sm:$0xff]
      %v264 = vld [vmem:[%s142 + $0x388] sm:$0xff]
      %v265 = vld [vmem:[%s142 + $0x390] sm:$0xff]
      %v266 = vld [vmem:[%s142 + $0x398] sm:$0xff]
      %v267 = vld [vmem:[%s142 + $0x3a0] sm:$0xff]
      %v268 = vld [vmem:[%s142 + $0x3a8] sm:$0xff]
      %v269 = vld [vmem:[%s142 + $0x3b0] sm:$0xff]
      %v270 = vld [vmem:[%s142 + $0x3b8] sm:$0xff]
      %v271 = vld [vmem:[%s142 + $0x3c0] sm:$0xff]
      %v272 = vld [vmem:[%s142 + $0x3c8] sm:$0xff]
      %v273 = vld [vmem:[%s142 + $0x3d0] sm:$0xff]
      %v274 = vld [vmem:[%s142 + $0x3d8] sm:$0xff]
      %v275 = vld [vmem:[%s142 + $0x3e0] sm:$0xff]
      %v276 = vld [vmem:[%s142 + $0x3e8] sm:$0xff]
      %v277 = vld [vmem:[%s142 + $0x3f0] sm:$0xff]
      %v278 = vld [vmem:[%s142 + $0x3f8] sm:$0xff]
      %v279 = vld [vmem:[%s1] sm:$0xf]
      %v280 = vld [vmem:[%s1 + $0x4] sm:$0xf]
      %v281 = vld [vmem:[%s1 + $0x8] sm:$0xf]
      %v282 = vld [vmem:[%s1 + $0xc] sm:$0xf]
      %v283 = vld [vmem:[%s1 + $0x10] sm:$0xf]
      %v284 = vld [vmem:[%s1 + $0x14] sm:$0xf]
      %v285 = vld [vmem:[%s1 + $0x18] sm:$0xf]
      %v286 = vld [vmem:[%s1 + $0x1c] sm:$0xf]
      %v287 = vld [vmem:[%s1 + $0x20] sm:$0xf]
      %v288 = vld [vmem:[%s1 + $0x24] sm:$0xf]
      %v289 = vld [vmem:[%s1 + $0x28] sm:$0xf]
      %v290 = vld [vmem:[%s1 + $0x2c] sm:$0xf]
      %v291 = vld [vmem:[%s1 + $0x30] sm:$0xf]
      %v292 = vld [vmem:[%s1 + $0x34] sm:$0xf]
      %v293 = vld [vmem:[%s1 + $0x38] sm:$0xf]
      %v294 = vld [vmem:[%s1 + $0x3c] sm:$0xf]
      %v295 = vld [vmem:[%s1 + $0x40] sm:$0xf]
      %v296 = vld [vmem:[%s1 + $0x44] sm:$0xf]
      %v425 = vunpack.c.l.b16 %v151
      %v426 = vunpack.c.h.b16 %v151
      %v427 = vunpack.c.l.b16 %v152
      %v428 = vunpack.c.h.b16 %v152
      %v429 = vunpack.c.l.b16 %v153
      %v430 = vunpack.c.h.b16 %v153
      %v431 = vunpack.c.l.b16 %v154
      %v432 = vunpack.c.h.b16 %v154
      %v433 = vunpack.c.l.b16 %v155
      %v434 = vunpack.c.h.b16 %v155
      %v435 = vunpack.c.l.b16 %v156
      %v436 = vunpack.c.h.b16 %v156
      %v437 = vunpack.c.l.b16 %v157
      %v438 = vunpack.c.h.b16 %v157
      %v439 = vunpack.c.l.b16 %v158
      %v440 = vunpack.c.h.b16 %v158
      %v441 = vunpack.c.l.b16 %v159
      %v442 = vunpack.c.h.b16 %v159
      %v443 = vunpack.c.l.b16 %v160
      %v444 = vunpack.c.h.b16 %v160
      %v445 = vunpack.c.l.b16 %v161
      %v446 = vunpack.c.h.b16 %v161
      %v447 = vunpack.c.l.b16 %v162
      %v448 = vunpack.c.h.b16 %v162
      %v449 = vunpack.c.l.b16 %v163
      %v450 = vunpack.c.h.b16 %v163
      %v451 = vunpack.c.l.b16 %v164
      %v452 = vunpack.c.h.b16 %v164
      %v453 = vunpack.c.l.b16 %v165
      %v454 = vunpack.c.h.b16 %v165
      %v455 = vunpack.c.l.b16 %v166
      %v456 = vunpack.c.h.b16 %v166
      %v457 = vunpack.c.l.b16 %v167
      %v458 = vunpack.c.h.b16 %v167
      %v459 = vunpack.c.l.b16 %v168
      %v460 = vunpack.c.h.b16 %v168
      %v461 = vunpack.c.l.b16 %v169
      %v462 = vunpack.c.h.b16 %v169
      %v463 = vunpack.c.l.b16 %v170
      %v464 = vunpack.c.h.b16 %v170
      %v465 = vunpack.c.l.b16 %v171
      %v466 = vunpack.c.h.b16 %v171
      %v467 = vunpack.c.l.b16 %v172
      %v468 = vunpack.c.h.b16 %v172
      %v469 = vunpack.c.l.b16 %v173
      %v470 = vunpack.c.h.b16 %v173
      %v471 = vunpack.c.l.b16 %v174
      %v472 = vunpack.c.h.b16 %v174
      %v473 = vunpack.c.l.b16 %v175
      %v474 = vunpack.c.h.b16 %v175
      %v475 = vunpack.c.l.b16 %v176
      %v476 = vunpack.c.h.b16 %v176
      %v477 = vunpack.c.l.b16 %v177
      %v478 = vunpack.c.h.b16 %v177
      %v479 = vunpack.c.l.b16 %v178
      %v480 = vunpack.c.h.b16 %v178
      %v481 = vunpack.c.l.b16 %v179
      %v482 = vunpack.c.h.b16 %v179
      %v483 = vunpack.c.l.b16 %v180
      %v484 = vunpack.c.h.b16 %v180
      %v485 = vunpack.c.l.b16 %v181
      %v486 = vunpack.c.h.b16 %v181
      %v487 = vunpack.c.l.b16 %v182
      %v488 = vunpack.c.h.b16 %v182
      %v489 = vunpack.c.l.b16 %v183
      %v490 = vunpack.c.h.b16 %v183
      %v491 = vunpack.c.l.b16 %v184
      %v492 = vunpack.c.h.b16 %v184
      %v493 = vunpack.c.l.b16 %v185
      %v494 = vunpack.c.h.b16 %v185
      %v495 = vunpack.c.l.b16 %v186
      %v496 = vunpack.c.h.b16 %v186
      %v497 = vunpack.c.l.b16 %v187
      %v498 = vunpack.c.h.b16 %v187
      %v499 = vunpack.c.l.b16 %v188
      %v500 = vunpack.c.h.b16 %v188
      %v501 = vunpack.c.l.b16 %v189
      %v502 = vunpack.c.h.b16 %v189
      %v503 = vunpack.c.l.b16 %v190
      %v504 = vunpack.c.h.b16 %v190
      %v505 = vunpack.c.l.b16 %v191
      %v506 = vunpack.c.h.b16 %v191
      %v507 = vunpack.c.l.b16 %v192
      %v508 = vunpack.c.h.b16 %v192
      %v509 = vunpack.c.l.b16 %v193
      %v510 = vunpack.c.h.b16 %v193
      %v511 = vunpack.c.l.b16 %v194
      %v512 = vunpack.c.h.b16 %v194
      %v513 = vunpack.c.l.b16 %v195
      %v514 = vunpack.c.h.b16 %v195
      %v515 = vunpack.c.l.b16 %v196
      %v516 = vunpack.c.h.b16 %v196
      %v517 = vunpack.c.l.b16 %v197
      %v518 = vunpack.c.h.b16 %v197
      %v519 = vunpack.c.l.b16 %v198
      %v520 = vunpack.c.h.b16 %v198
      %v521 = vunpack.c.l.b16 %v199
      %v522 = vunpack.c.h.b16 %v199
      %v523 = vunpack.c.l.b16 %v200
      %v524 = vunpack.c.h.b16 %v200
      %v525 = vunpack.c.l.b16 %v201
      %v526 = vunpack.c.h.b16 %v201
      %v527 = vunpack.c.l.b16 %v202
      %v528 = vunpack.c.h.b16 %v202
      %v529 = vunpack.c.l.b16 %v203
      %v530 = vunpack.c.h.b16 %v203
      %v531 = vunpack.c.l.b16 %v204
      %v532 = vunpack.c.h.b16 %v204
      %v533 = vunpack.c.l.b16 %v205
      %v534 = vunpack.c.h.b16 %v205
      %v535 = vunpack.c.l.b16 %v206
      %v536 = vunpack.c.h.b16 %v206
      %v537 = vunpack.c.l.b16 %v207
      %v538 = vunpack.c.h.b16 %v207
      %v539 = vunpack.c.l.b16 %v208
      %v540 = vunpack.c.h.b16 %v208
      %v541 = vunpack.c.l.b16 %v209
      %v542 = vunpack.c.h.b16 %v209
      %v543 = vunpack.c.l.b16 %v210
      %v544 = vunpack.c.h.b16 %v210
      %v545 = vunpack.c.l.b16 %v211
      %v546 = vunpack.c.h.b16 %v211
      %v547 = vunpack.c.l.b16 %v212
      %v548 = vunpack.c.h.b16 %v212
      %v549 = vunpack.c.l.b16 %v213
      %v550 = vunpack.c.h.b16 %v213
      %v551 = vunpack.c.l.b16 %v214
      %v552 = vunpack.c.h.b16 %v214
      %v553 = vunpack.c.l.b16 %v215
      %v554 = vunpack.c.h.b16 %v215
      %v555 = vunpack.c.l.b16 %v216
      %v556 = vunpack.c.h.b16 %v216
      %v557 = vunpack.c.l.b16 %v217
      %v558 = vunpack.c.h.b16 %v217
      %v559 = vunpack.c.l.b16 %v218
      %v560 = vunpack.c.h.b16 %v218
      %v561 = vunpack.c.l.b16 %v219
      %v562 = vunpack.c.h.b16 %v219
      %v563 = vunpack.c.l.b16 %v220
      %v564 = vunpack.c.h.b16 %v220
      %v565 = vunpack.c.l.b16 %v221
      %v566 = vunpack.c.h.b16 %v221
      %v567 = vunpack.c.l.b16 %v222
      %v568 = vunpack.c.h.b16 %v222
      %v569 = vunpack.c.l.b16 %v223
      %v570 = vunpack.c.h.b16 %v223
      %v571 = vunpack.c.l.b16 %v224
      %v572 = vunpack.c.h.b16 %v224
      %v573 = vunpack.c.l.b16 %v225
      %v574 = vunpack.c.h.b16 %v225
      %v575 = vunpack.c.l.b16 %v226
      %v576 = vunpack.c.h.b16 %v226
      %v577 = vunpack.c.l.b16 %v227
      %v578 = vunpack.c.h.b16 %v227
      %v579 = vunpack.c.l.b16 %v228
      %v580 = vunpack.c.h.b16 %v228
      %v581 = vunpack.c.l.b16 %v229
      %v582 = vunpack.c.h.b16 %v229
      %v583 = vunpack.c.l.b16 %v230
      %v584 = vunpack.c.h.b16 %v230
      %v585 = vunpack.c.l.b16 %v231
      %v586 = vunpack.c.h.b16 %v231
      %v587 = vunpack.c.l.b16 %v232
      %v588 = vunpack.c.h.b16 %v232
      %v589 = vunpack.c.l.b16 %v233
      %v590 = vunpack.c.h.b16 %v233
      %v591 = vunpack.c.l.b16 %v234
      %v592 = vunpack.c.h.b16 %v234
      %v593 = vunpack.c.l.b16 %v235
      %v594 = vunpack.c.h.b16 %v235
      %v595 = vunpack.c.l.b16 %v236
      %v596 = vunpack.c.h.b16 %v236
      %v597 = vunpack.c.l.b16 %v237
      %v598 = vunpack.c.h.b16 %v237
      %v599 = vunpack.c.l.b16 %v238
      %v600 = vunpack.c.h.b16 %v238
      %v601 = vunpack.c.l.b16 %v239
      %v602 = vunpack.c.h.b16 %v239
      %v603 = vunpack.c.l.b16 %v240
      %v604 = vunpack.c.h.b16 %v240
      %v605 = vunpack.c.l.b16 %v241
      %v606 = vunpack.c.h.b16 %v241
      %v607 = vunpack.c.l.b16 %v242
      %v608 = vunpack.c.h.b16 %v242
      %v609 = vunpack.c.l.b16 %v243
      %v610 = vunpack.c.h.b16 %v243
      %v611 = vunpack.c.l.b16 %v244
      %v612 = vunpack.c.h.b16 %v244
      %v613 = vunpack.c.l.b16 %v245
      %v614 = vunpack.c.h.b16 %v245
      %v615 = vunpack.c.l.b16 %v246
      %v616 = vunpack.c.h.b16 %v246
      %v617 = vunpack.c.l.b16 %v247
      %v618 = vunpack.c.h.b16 %v247
      %v619 = vunpack.c.l.b16 %v248
      %v620 = vunpack.c.h.b16 %v248
      %v621 = vunpack.c.l.b16 %v249
      %v622 = vunpack.c.h.b16 %v249
      %v623 = vunpack.c.l.b16 %v250
      %v624 = vunpack.c.h.b16 %v250
      %v625 = vunpack.c.l.b16 %v251
      %v626 = vunpack.c.h.b16 %v251
      %v627 = vunpack.c.l.b16 %v252
      %v628 = vunpack.c.h.b16 %v252
      %v629 = vunpack.c.l.b16 %v253
      %v630 = vunpack.c.h.b16 %v253
      %v631 = vunpack.c.l.b16 %v254
      %v632 = vunpack.c.h.b16 %v254
      %v633 = vunpack.c.l.b16 %v255
      %v634 = vunpack.c.h.b16 %v255
      %v635 = vunpack.c.l.b16 %v256
      %v636 = vunpack.c.h.b16 %v256
      %v637 = vunpack.c.l.b16 %v257
      %v638 = vunpack.c.h.b16 %v257
      %v639 = vunpack.c.l.b16 %v258
      %v640 = vunpack.c.h.b16 %v258
      %v641 = vunpack.c.l.b16 %v259
      %v642 = vunpack.c.h.b16 %v259
      %v643 = vunpack.c.l.b16 %v260
      %v644 = vunpack.c.h.b16 %v260
      %v645 = vunpack.c.l.b16 %v261
      %v646 = vunpack.c.h.b16 %v261
      %v647 = vunpack.c.l.b16 %v262
      %v648 = vunpack.c.h.b16 %v262
      %v649 = vunpack.c.l.b16 %v263
      %v650 = vunpack.c.h.b16 %v263
      %v651 = vunpack.c.l.b16 %v264
      %v652 = vunpack.c.h.b16 %v264
      %v653 = vunpack.c.l.b16 %v265
      %v654 = vunpack.c.h.b16 %v265
      %v655 = vunpack.c.l.b16 %v266
      %v656 = vunpack.c.h.b16 %v266
      %v657 = vunpack.c.l.b16 %v267
      %v658 = vunpack.c.h.b16 %v267
      %v659 = vunpack.c.l.b16 %v268
      %v660 = vunpack.c.h.b16 %v268
      %v661 = vunpack.c.l.b16 %v269
      %v662 = vunpack.c.h.b16 %v269
      %v663 = vunpack.c.l.b16 %v270
      %v664 = vunpack.c.h.b16 %v270
      %v665 = vunpack.c.l.b16 %v271
      %v666 = vunpack.c.h.b16 %v271
      %v667 = vunpack.c.l.b16 %v272
      %v668 = vunpack.c.h.b16 %v272
      %v669 = vunpack.c.l.b16 %v273
      %v670 = vunpack.c.h.b16 %v273
      %v671 = vunpack.c.l.b16 %v274
      %v672 = vunpack.c.h.b16 %v274
      %v673 = vunpack.c.l.b16 %v275
      %v674 = vunpack.c.h.b16 %v275
      %v675 = vunpack.c.l.b16 %v276
      %v676 = vunpack.c.h.b16 %v276
      %v677 = vunpack.c.l.b16 %v277
      %v678 = vunpack.c.h.b16 %v277
      %v679 = vunpack.c.l.b16 %v278
      %v680 = vunpack.c.h.b16 %v278
      %v681 = vpack.c.b16 %v427, %v425
      %v682 = vpack.c.b16 %v428, %v426
      %v683 = vpack.c.b16 %v431, %v429
      %v684 = vpack.c.b16 %v432, %v430
      %v685 = vpack.c.b16 %v435, %v433
      %v686 = vpack.c.b16 %v436, %v434
      %v687 = vpack.c.b16 %v439, %v437
      %v688 = vpack.c.b16 %v440, %v438
      %v689 = vpack.c.b16 %v443, %v441
      %v690 = vpack.c.b16 %v444, %v442
      %v691 = vpack.c.b16 %v447, %v445
      %v692 = vpack.c.b16 %v448, %v446
      %v693 = vpack.c.b16 %v451, %v449
      %v694 = vpack.c.b16 %v452, %v450
      %v695 = vpack.c.b16 %v455, %v453
      %v696 = vpack.c.b16 %v456, %v454
      %v697 = vpack.c.b16 %v459, %v457
      %v698 = vpack.c.b16 %v460, %v458
      %v699 = vpack.c.b16 %v463, %v461
      %v700 = vpack.c.b16 %v464, %v462
      %v701 = vpack.c.b16 %v467, %v465
      %v702 = vpack.c.b16 %v468, %v466
      %v703 = vpack.c.b16 %v471, %v469
      %v704 = vpack.c.b16 %v472, %v470
      %v705 = vpack.c.b16 %v475, %v473
      %v706 = vpack.c.b16 %v476, %v474
      %v707 = vpack.c.b16 %v479, %v477
      %v708 = vpack.c.b16 %v480, %v478
      %v709 = vpack.c.b16 %v483, %v481
      %v710 = vpack.c.b16 %v484, %v482
      %v711 = vpack.c.b16 %v487, %v485
      %v712 = vpack.c.b16 %v488, %v486
      %v713 = vpack.c.b16 %v491, %v489
      %v714 = vpack.c.b16 %v492, %v490
      %v715 = vpack.c.b16 %v495, %v493
      %v716 = vpack.c.b16 %v496, %v494
      %v717 = vpack.c.b16 %v499, %v497
      %v718 = vpack.c.b16 %v500, %v498
      %v719 = vpack.c.b16 %v503, %v501
      %v720 = vpack.c.b16 %v504, %v502
      %v721 = vpack.c.b16 %v507, %v505
      %v722 = vpack.c.b16 %v508, %v506
      %v723 = vpack.c.b16 %v511, %v509
      %v724 = vpack.c.b16 %v512, %v510
      %v725 = vpack.c.b16 %v515, %v513
      %v726 = vpack.c.b16 %v516, %v514
      %v727 = vpack.c.b16 %v519, %v517
      %v728 = vpack.c.b16 %v520, %v518
      %v729 = vpack.c.b16 %v523, %v521
      %v730 = vpack.c.b16 %v524, %v522
      %v731 = vpack.c.b16 %v527, %v525
      %v732 = vpack.c.b16 %v528, %v526
      %v733 = vpack.c.b16 %v531, %v529
      %v734 = vpack.c.b16 %v532, %v530
      %v735 = vpack.c.b16 %v535, %v533
      %v736 = vpack.c.b16 %v536, %v534
      %v737 = vpack.c.b16 %v539, %v537
      %v738 = vpack.c.b16 %v540, %v538
      %v739 = vpack.c.b16 %v543, %v541
      %v740 = vpack.c.b16 %v544, %v542
      %v741 = vpack.c.b16 %v547, %v545
      %v742 = vpack.c.b16 %v548, %v546
      %v743 = vpack.c.b16 %v551, %v549
      %v744 = vpack.c.b16 %v552, %v550
      %v745 = vpack.c.b16 %v555, %v553
      %v746 = vpack.c.b16 %v556, %v554
      %v747 = vpack.c.b16 %v559, %v557
      %v748 = vpack.c.b16 %v560, %v558
      %v749 = vpack.c.b16 %v563, %v561
      %v750 = vpack.c.b16 %v564, %v562
      %v751 = vpack.c.b16 %v567, %v565
      %v752 = vpack.c.b16 %v568, %v566
      %v753 = vpack.c.b16 %v571, %v569
      %v754 = vpack.c.b16 %v572, %v570
      %v755 = vpack.c.b16 %v575, %v573
      %v756 = vpack.c.b16 %v576, %v574
      %v757 = vpack.c.b16 %v579, %v577
      %v758 = vpack.c.b16 %v580, %v578
      %v759 = vpack.c.b16 %v583, %v581
      %v760 = vpack.c.b16 %v584, %v582
      %v761 = vpack.c.b16 %v587, %v585
      %v762 = vpack.c.b16 %v588, %v586
      %v763 = vpack.c.b16 %v591, %v589
      %v764 = vpack.c.b16 %v592, %v590
      %v765 = vpack.c.b16 %v595, %v593
      %v766 = vpack.c.b16 %v596, %v594
      %v767 = vpack.c.b16 %v599, %v597
      %v768 = vpack.c.b16 %v600, %v598
      %v769 = vpack.c.b16 %v603, %v601
      %v770 = vpack.c.b16 %v604, %v602
      %v771 = vpack.c.b16 %v607, %v605
      %v772 = vpack.c.b16 %v608, %v606
      %v773 = vpack.c.b16 %v611, %v609
      %v774 = vpack.c.b16 %v612, %v610
      %v775 = vpack.c.b16 %v615, %v613
      %v776 = vpack.c.b16 %v616, %v614
      %v777 = vpack.c.b16 %v619, %v617
      %v778 = vpack.c.b16 %v620, %v618
      %v779 = vpack.c.b16 %v623, %v621
      %v780 = vpack.c.b16 %v624, %v622
      %v781 = vpack.c.b16 %v627, %v625
      %v782 = vpack.c.b16 %v628, %v626
      %v783 = vpack.c.b16 %v631, %v629
      %v784 = vpack.c.b16 %v632, %v630
      %v785 = vpack.c.b16 %v635, %v633
      %v786 = vpack.c.b16 %v636, %v634
      %v787 = vpack.c.b16 %v639, %v637
      %v788 = vpack.c.b16 %v640, %v638
      %v789 = vpack.c.b16 %v643, %v641
      %v790 = vpack.c.b16 %v644, %v642
      %v791 = vpack.c.b16 %v647, %v645
      %v792 = vpack.c.b16 %v648, %v646
      %v793 = vpack.c.b16 %v651, %v649
      %v794 = vpack.c.b16 %v652, %v650
      %v795 = vpack.c.b16 %v655, %v653
      %v796 = vpack.c.b16 %v656, %v654
      %v797 = vpack.c.b16 %v659, %v657
      %v798 = vpack.c.b16 %v660, %v658
      %v799 = vpack.c.b16 %v663, %v661
      %v800 = vpack.c.b16 %v664, %v662
      %v801 = vpack.c.b16 %v667, %v665
      %v802 = vpack.c.b16 %v668, %v666
      %v803 = vpack.c.b16 %v671, %v669
      %v804 = vpack.c.b16 %v672, %v670
      %v805 = vpack.c.b16 %v675, %v673
      %v806 = vpack.c.b16 %v676, %v674
      %v807 = vpack.c.b16 %v679, %v677
      %v808 = vpack.c.b16 %v680, %v678
      %v891 = vunpack.c.l.b16 %v279
      %v892 = vunpack.c.l.b16 %v280
      %v893 = vunpack.c.l.b16 %v281
      %v894 = vunpack.c.l.b16 %v282
      %v895 = vunpack.c.l.b16 %v283
      %v896 = vunpack.c.l.b16 %v284
      %v897 = vunpack.c.l.b16 %v285
      %v898 = vunpack.c.l.b16 %v286
      %v899 = vunpack.c.l.b16 %v287
      %v900 = vunpack.c.l.b16 %v288
      %v901 = vunpack.c.l.b16 %v289
      %v902 = vunpack.c.l.b16 %v290
      %v903 = vunpack.c.l.b16 %v291
      %v904 = vunpack.c.l.b16 %v292
      %v905 = vunpack.c.l.b16 %v293
      %v906 = vunpack.c.l.b16 %v294
      %v907 = vunpack.c.l.b16 %v295
      %v908 = vunpack.c.l.b16 %v296
      %v909 = vpack.c.b16 %v892, %v891
      %v910 = vpack.c.b16 %v894, %v893
      %v911 = vpack.c.b16 %v896, %v895
      %v912 = vpack.c.b16 %v898, %v897
      %v913 = vpack.c.b16 %v900, %v899
      %v914 = vpack.c.b16 %v902, %v901
      %v915 = vpack.c.b16 %v904, %v903
      %v916 = vpack.c.b16 %v906, %v905
      %v917 = vpack.c.b16 %v908, %v907
      %vm927 = vcmask 130048
      %v929 = vsel %vm927, %v682, 0
      %v932 = vsel %vm927, %v684, 0
      %v935 = vsel %vm927, %v686, 0
      %v938 = vsel %vm927, %v688, 0
      %v941 = vsel %vm927, %v690, 0
      %v944 = vsel %vm927, %v692, 0
      %v947 = vsel %vm927, %v694, 0
      %v950 = vsel %vm927, %v696, 0
      %v953 = vsel %vm927, %v698, 0
      %v956 = vsel %vm927, %v700, 0
      %v959 = vsel %vm927, %v702, 0
      %v962 = vsel %vm927, %v704, 0
      %v965 = vsel %vm927, %v706, 0
      %v968 = vsel %vm927, %v708, 0
      %v971 = vsel %vm927, %v710, 0
      %v974 = vsel %vm927, %v712, 0
      %v977 = vsel %vm927, %v714, 0
      %v980 = vsel %vm927, %v716, 0
      %v983 = vsel %vm927, %v718, 0
      %v986 = vsel %vm927, %v720, 0
      %v989 = vsel %vm927, %v722, 0
      %v992 = vsel %vm927, %v724, 0
      %v995 = vsel %vm927, %v726, 0
      %v998 = vsel %vm927, %v728, 0
      %v1001 = vsel %vm927, %v730, 0
      %v1004 = vsel %vm927, %v732, 0
      %v1007 = vsel %vm927, %v734, 0
      %v1010 = vsel %vm927, %v736, 0
      %v1013 = vsel %vm927, %v738, 0
      %v1016 = vsel %vm927, %v740, 0
      %v1019 = vsel %vm927, %v742, 0
      %v1022 = vsel %vm927, %v744, 0
      %v1025 = vsel %vm927, %v746, 0
      %v1028 = vsel %vm927, %v748, 0
      %v1031 = vsel %vm927, %v750, 0
      %v1034 = vsel %vm927, %v752, 0
      %v1037 = vsel %vm927, %v754, 0
      %v1040 = vsel %vm927, %v756, 0
      %v1043 = vsel %vm927, %v758, 0
      %v1046 = vsel %vm927, %v760, 0
      %v1049 = vsel %vm927, %v762, 0
      %v1052 = vsel %vm927, %v764, 0
      %v1055 = vsel %vm927, %v766, 0
      %v1058 = vsel %vm927, %v768, 0
      %v1061 = vsel %vm927, %v770, 0
      %v1064 = vsel %vm927, %v772, 0
      %v1067 = vsel %vm927, %v774, 0
      %v1070 = vsel %vm927, %v776, 0
      %v1073 = vsel %vm927, %v778, 0
      %v1076 = vsel %vm927, %v780, 0
      %v1079 = vsel %vm927, %v782, 0
      %v1082 = vsel %vm927, %v784, 0
      %v1085 = vsel %vm927, %v786, 0
      %v1088 = vsel %vm927, %v788, 0
      %v1091 = vsel %vm927, %v790, 0
      %v1094 = vsel %vm927, %v792, 0
      %v1097 = vsel %vm927, %v794, 0
      %v1100 = vsel %vm927, %v796, 0
      %v1103 = vsel %vm927, %v798, 0
      %v1106 = vsel %vm927, %v800, 0
      %v1109 = vsel %vm927, %v802, 0
      %v1112 = vsel %vm927, %v804, 0
      %v1115 = vsel %vm927, %v806, 0
      %v1118 = vsel %vm927, %v808, 0
      %1120 = vmatpush.bf16.msra.mxu0 %v916
      %1121 = vmatpush.bf16.msra.mxu0 %v915
      %1122 = vmatpush.bf16.msra.mxu0 %v914
      %1123 = vmatpush.bf16.msra.mxu0 %v913
      %1124 = vmatpush.bf16.msra.mxu0 %v912
      %1125 = vmatpush.bf16.msra.mxu0 %v911
      %1126 = vmatpush.bf16.msra.mxu0 %v910
      %1127 = vmatpush.bf16.msra.mxu0 %v909
      %1128 = vmatmul.bf16.gmra.mxu0 %v681
      %v1129 = vpop.f32.mrf.mxu0
      %v1130 = vadd.f32 0.0, %v1129
      %v1131 = vpop.f32.mrf.mxu0
      %v1132 = vadd.f32 0.0, %v1131
      %1133 = vmatmul.bf16.gmra.mxu0 %v683
      %v1134 = vpop.f32.mrf.mxu0
      %v1135 = vadd.f32 0.0, %v1134
      %v1136 = vpop.f32.mrf.mxu0
      %v1137 = vadd.f32 0.0, %v1136
      %1138 = vmatmul.bf16.gmra.mxu0 %v685
      %v1139 = vpop.f32.mrf.mxu0
      %v1140 = vadd.f32 0.0, %v1139
      %v1141 = vpop.f32.mrf.mxu0
      %v1142 = vadd.f32 0.0, %v1141
      %1143 = vmatmul.bf16.gmra.mxu0 %v687
      %v1144 = vpop.f32.mrf.mxu0
      %v1145 = vadd.f32 0.0, %v1144
      %v1146 = vpop.f32.mrf.mxu0
      %v1147 = vadd.f32 0.0, %v1146
      %1148 = vmatmul.bf16.gmra.mxu0 %v689
      %v1149 = vpop.f32.mrf.mxu0
      %v1150 = vadd.f32 0.0, %v1149
      %v1151 = vpop.f32.mrf.mxu0
      %v1152 = vadd.f32 0.0, %v1151
      %1153 = vmatmul.bf16.gmra.mxu0 %v691
      %v1154 = vpop.f32.mrf.mxu0
      %v1155 = vadd.f32 0.0, %v1154
      %v1156 = vpop.f32.mrf.mxu0
      %v1157 = vadd.f32 0.0, %v1156
      %1158 = vmatmul.bf16.gmra.mxu0 %v693
      %v1159 = vpop.f32.mrf.mxu0
      %v1160 = vadd.f32 0.0, %v1159
      %v1161 = vpop.f32.mrf.mxu0
      %v1162 = vadd.f32 0.0, %v1161
      %1163 = vmatmul.bf16.gmra.mxu0 %v695
      %v1164 = vpop.f32.mrf.mxu0
      %v1165 = vadd.f32 0.0, %v1164
      %v1166 = vpop.f32.mrf.mxu0
      %v1167 = vadd.f32 0.0, %v1166
      %1168 = vmatmul.bf16.gmra.mxu0 %v697
      %v1169 = vpop.f32.mrf.mxu0
      %v1170 = vadd.f32 0.0, %v1169
      %v1171 = vpop.f32.mrf.mxu0
      %v1172 = vadd.f32 0.0, %v1171
      %1173 = vmatmul.bf16.gmra.mxu0 %v699
      %v1174 = vpop.f32.mrf.mxu0
      %v1175 = vadd.f32 0.0, %v1174
      %v1176 = vpop.f32.mrf.mxu0
      %v1177 = vadd.f32 0.0, %v1176
      %1178 = vmatmul.bf16.gmra.mxu0 %v701
      %v1179 = vpop.f32.mrf.mxu0
      %v1180 = vadd.f32 0.0, %v1179
      %v1181 = vpop.f32.mrf.mxu0
      %v1182 = vadd.f32 0.0, %v1181
      %1183 = vmatmul.bf16.gmra.mxu0 %v703
      %v1184 = vpop.f32.mrf.mxu0
      %v1185 = vadd.f32 0.0, %v1184
      %v1186 = vpop.f32.mrf.mxu0
      %v1187 = vadd.f32 0.0, %v1186
      %1188 = vmatmul.bf16.gmra.mxu0 %v705
      %v1189 = vpop.f32.mrf.mxu0
      %v1190 = vadd.f32 0.0, %v1189
      %v1191 = vpop.f32.mrf.mxu0
      %v1192 = vadd.f32 0.0, %v1191
      %1193 = vmatmul.bf16.gmra.mxu0 %v707
      %v1194 = vpop.f32.mrf.mxu0
      %v1195 = vadd.f32 0.0, %v1194
      %v1196 = vpop.f32.mrf.mxu0
      %v1197 = vadd.f32 0.0, %v1196
      %1198 = vmatmul.bf16.gmra.mxu0 %v709
      %v1199 = vpop.f32.mrf.mxu0
      %v1200 = vadd.f32 0.0, %v1199
      %v1201 = vpop.f32.mrf.mxu0
      %v1202 = vadd.f32 0.0, %v1201
      %1203 = vmatmul.bf16.gmra.mxu0 %v711
      %v1204 = vpop.f32.mrf.mxu0
      %v1205 = vadd.f32 0.0, %v1204
      %v1206 = vpop.f32.mrf.mxu0
      %v1207 = vadd.f32 0.0, %v1206
      %1208 = vmatmul.bf16.gmra.mxu0 %v713
      %v1209 = vpop.f32.mrf.mxu0
      %v1210 = vadd.f32 0.0, %v1209
      %v1211 = vpop.f32.mrf.mxu0
      %v1212 = vadd.f32 0.0, %v1211
      %1213 = vmatmul.bf16.gmra.mxu0 %v715
      %v1214 = vpop.f32.mrf.mxu0
      %v1215 = vadd.f32 0.0, %v1214
      %v1216 = vpop.f32.mrf.mxu0
      %v1217 = vadd.f32 0.0, %v1216
      %1218 = vmatmul.bf16.gmra.mxu0 %v717
      %v1219 = vpop.f32.mrf.mxu0
      %v1220 = vadd.f32 0.0, %v1219
      %v1221 = vpop.f32.mrf.mxu0
      %v1222 = vadd.f32 0.0, %v1221
      %1223 = vmatmul.bf16.gmra.mxu0 %v719
      %v1224 = vpop.f32.mrf.mxu0
      %v1225 = vadd.f32 0.0, %v1224
      %v1226 = vpop.f32.mrf.mxu0
      %v1227 = vadd.f32 0.0, %v1226
      %1228 = vmatmul.bf16.gmra.mxu0 %v721
      %v1229 = vpop.f32.mrf.mxu0
      %v1230 = vadd.f32 0.0, %v1229
      %v1231 = vpop.f32.mrf.mxu0
      %v1232 = vadd.f32 0.0, %v1231
      %1233 = vmatmul.bf16.gmra.mxu0 %v723
      %v1234 = vpop.f32.mrf.mxu0
      %v1235 = vadd.f32 0.0, %v1234
      %v1236 = vpop.f32.mrf.mxu0
      %v1237 = vadd.f32 0.0, %v1236
      %1238 = vmatmul.bf16.gmra.mxu0 %v725
      %v1239 = vpop.f32.mrf.mxu0
      %v1240 = vadd.f32 0.0, %v1239
      %v1241 = vpop.f32.mrf.mxu0
      %v1242 = vadd.f32 0.0, %v1241
      %1243 = vmatmul.bf16.gmra.mxu0 %v727
      %v1244 = vpop.f32.mrf.mxu0
      %v1245 = vadd.f32 0.0, %v1244
      %v1246 = vpop.f32.mrf.mxu0
      %v1247 = vadd.f32 0.0, %v1246
      %1248 = vmatmul.bf16.gmra.mxu0 %v729
      %v1249 = vpop.f32.mrf.mxu0
      %v1250 = vadd.f32 0.0, %v1249
      %v1251 = vpop.f32.mrf.mxu0
      %v1252 = vadd.f32 0.0, %v1251
      %1253 = vmatmul.bf16.gmra.mxu0 %v731
      %v1254 = vpop.f32.mrf.mxu0
      %v1255 = vadd.f32 0.0, %v1254
      %v1256 = vpop.f32.mrf.mxu0
      %v1257 = vadd.f32 0.0, %v1256
      %1258 = vmatmul.bf16.gmra.mxu0 %v733
      %v1259 = vpop.f32.mrf.mxu0
      %v1260 = vadd.f32 0.0, %v1259
      %v1261 = vpop.f32.mrf.mxu0
      %v1262 = vadd.f32 0.0, %v1261
      %1263 = vmatmul.bf16.gmra.mxu0 %v735
      %v1264 = vpop.f32.mrf.mxu0
      %v1265 = vadd.f32 0.0, %v1264
      %v1266 = vpop.f32.mrf.mxu0
      %v1267 = vadd.f32 0.0, %v1266
      %1268 = vmatmul.bf16.gmra.mxu0 %v737
      %v1269 = vpop.f32.mrf.mxu0
      %v1270 = vadd.f32 0.0, %v1269
      %v1271 = vpop.f32.mrf.mxu0
      %v1272 = vadd.f32 0.0, %v1271
      %1273 = vmatmul.bf16.gmra.mxu0 %v739
      %v1274 = vpop.f32.mrf.mxu0
      %v1275 = vadd.f32 0.0, %v1274
      %v1276 = vpop.f32.mrf.mxu0
      %v1277 = vadd.f32 0.0, %v1276
      %1278 = vmatmul.bf16.gmra.mxu0 %v741
      %v1279 = vpop.f32.mrf.mxu0
      %v1280 = vadd.f32 0.0, %v1279
      %v1281 = vpop.f32.mrf.mxu0
      %v1282 = vadd.f32 0.0, %v1281
      %1283 = vmatmul.bf16.gmra.mxu0 %v743
      %v1284 = vpop.f32.mrf.mxu0
      %v1285 = vadd.f32 0.0, %v1284
      %v1286 = vpop.f32.mrf.mxu0
      %v1287 = vadd.f32 0.0, %v1286
      %1288 = vmatmul.bf16.gmra.mxu0 %v745
      %v1289 = vpop.f32.mrf.mxu0
      %v1290 = vadd.f32 0.0, %v1289
      %v1291 = vpop.f32.mrf.mxu0
      %v1292 = vadd.f32 0.0, %v1291
      %1293 = vmatmul.bf16.gmra.mxu0 %v747
      %v1294 = vpop.f32.mrf.mxu0
      %v1295 = vadd.f32 0.0, %v1294
      %v1296 = vpop.f32.mrf.mxu0
      %v1297 = vadd.f32 0.0, %v1296
      %1298 = vmatmul.bf16.gmra.mxu0 %v749
      %v1299 = vpop.f32.mrf.mxu0
      %v1300 = vadd.f32 0.0, %v1299
      %v1301 = vpop.f32.mrf.mxu0
      %v1302 = vadd.f32 0.0, %v1301
      %1303 = vmatmul.bf16.gmra.mxu0 %v751
      %v1304 = vpop.f32.mrf.mxu0
      %v1305 = vadd.f32 0.0, %v1304
      %v1306 = vpop.f32.mrf.mxu0
      %v1307 = vadd.f32 0.0, %v1306
      %1308 = vmatmul.bf16.gmra.mxu0 %v753
      %v1309 = vpop.f32.mrf.mxu0
      %v1310 = vadd.f32 0.0, %v1309
      %v1311 = vpop.f32.mrf.mxu0
      %v1312 = vadd.f32 0.0, %v1311
      %1313 = vmatmul.bf16.gmra.mxu0 %v755
      %v1314 = vpop.f32.mrf.mxu0
      %v1315 = vadd.f32 0.0, %v1314
      %v1316 = vpop.f32.mrf.mxu0
      %v1317 = vadd.f32 0.0, %v1316
      %1318 = vmatmul.bf16.gmra.mxu0 %v757
      %v1319 = vpop.f32.mrf.mxu0
      %v1320 = vadd.f32 0.0, %v1319
      %v1321 = vpop.f32.mrf.mxu0
      %v1322 = vadd.f32 0.0, %v1321
      %1323 = vmatmul.bf16.gmra.mxu0 %v759
      %v1324 = vpop.f32.mrf.mxu0
      %v1325 = vadd.f32 0.0, %v1324
      %v1326 = vpop.f32.mrf.mxu0
      %v1327 = vadd.f32 0.0, %v1326
      %1328 = vmatmul.bf16.gmra.mxu0 %v761
      %v1329 = vpop.f32.mrf.mxu0
      %v1330 = vadd.f32 0.0, %v1329
      %v1331 = vpop.f32.mrf.mxu0
      %v1332 = vadd.f32 0.0, %v1331
      %1333 = vmatmul.bf16.gmra.mxu0 %v763
      %v1334 = vpop.f32.mrf.mxu0
      %v1335 = vadd.f32 0.0, %v1334
      %v1336 = vpop.f32.mrf.mxu0
      %v1337 = vadd.f32 0.0, %v1336
      %1338 = vmatmul.bf16.gmra.mxu0 %v765
      %v1339 = vpop.f32.mrf.mxu0
      %v1340 = vadd.f32 0.0, %v1339
      %v1341 = vpop.f32.mrf.mxu0
      %v1342 = vadd.f32 0.0, %v1341
      %1343 = vmatmul.bf16.gmra.mxu0 %v767
      %v1344 = vpop.f32.mrf.mxu0
      %v1345 = vadd.f32 0.0, %v1344
      %v1346 = vpop.f32.mrf.mxu0
      %v1347 = vadd.f32 0.0, %v1346
      %1348 = vmatmul.bf16.gmra.mxu0 %v769
      %v1349 = vpop.f32.mrf.mxu0
      %v1350 = vadd.f32 0.0, %v1349
      %v1351 = vpop.f32.mrf.mxu0
      %v1352 = vadd.f32 0.0, %v1351
      %1353 = vmatmul.bf16.gmra.mxu0 %v771
      %v1354 = vpop.f32.mrf.mxu0
      %v1355 = vadd.f32 0.0, %v1354
      %v1356 = vpop.f32.mrf.mxu0
      %v1357 = vadd.f32 0.0, %v1356
      %1358 = vmatmul.bf16.gmra.mxu0 %v773
      %v1359 = vpop.f32.mrf.mxu0
      %v1360 = vadd.f32 0.0, %v1359
      %v1361 = vpop.f32.mrf.mxu0
      %v1362 = vadd.f32 0.0, %v1361
      %1363 = vmatmul.bf16.gmra.mxu0 %v775
      %v1364 = vpop.f32.mrf.mxu0
      %v1365 = vadd.f32 0.0, %v1364
      %v1366 = vpop.f32.mrf.mxu0
      %v1367 = vadd.f32 0.0, %v1366
      %1368 = vmatmul.bf16.gmra.mxu0 %v777
      %v1369 = vpop.f32.mrf.mxu0
      %v1370 = vadd.f32 0.0, %v1369
      %v1371 = vpop.f32.mrf.mxu0
      %v1372 = vadd.f32 0.0, %v1371
      %1373 = vmatmul.bf16.gmra.mxu0 %v779
      %v1374 = vpop.f32.mrf.mxu0
      %v1375 = vadd.f32 0.0, %v1374
      %v1376 = vpop.f32.mrf.mxu0
      %v1377 = vadd.f32 0.0, %v1376
      %1378 = vmatmul.bf16.gmra.mxu0 %v781
      %v1379 = vpop.f32.mrf.mxu0
      %v1380 = vadd.f32 0.0, %v1379
      %v1381 = vpop.f32.mrf.mxu0
      %v1382 = vadd.f32 0.0, %v1381
      %1383 = vmatmul.bf16.gmra.mxu0 %v783
      %v1384 = vpop.f32.mrf.mxu0
      %v1385 = vadd.f32 0.0, %v1384
      %v1386 = vpop.f32.mrf.mxu0
      %v1387 = vadd.f32 0.0, %v1386
      %1388 = vmatmul.bf16.gmra.mxu0 %v785
      %v1389 = vpop.f32.mrf.mxu0
      %v1390 = vadd.f32 0.0, %v1389
      %v1391 = vpop.f32.mrf.mxu0
      %v1392 = vadd.f32 0.0, %v1391
      %1393 = vmatmul.bf16.gmra.mxu0 %v787
      %v1394 = vpop.f32.mrf.mxu0
      %v1395 = vadd.f32 0.0, %v1394
      %v1396 = vpop.f32.mrf.mxu0
      %v1397 = vadd.f32 0.0, %v1396
      %1398 = vmatmul.bf16.gmra.mxu0 %v789
      %v1399 = vpop.f32.mrf.mxu0
      %v1400 = vadd.f32 0.0, %v1399
      %v1401 = vpop.f32.mrf.mxu0
      %v1402 = vadd.f32 0.0, %v1401
      %1403 = vmatmul.bf16.gmra.mxu0 %v791
      %v1404 = vpop.f32.mrf.mxu0
      %v1405 = vadd.f32 0.0, %v1404
      %v1406 = vpop.f32.mrf.mxu0
      %v1407 = vadd.f32 0.0, %v1406
      %1408 = vmatmul.bf16.gmra.mxu0 %v793
      %v1409 = vpop.f32.mrf.mxu0
      %v1410 = vadd.f32 0.0, %v1409
      %v1411 = vpop.f32.mrf.mxu0
      %v1412 = vadd.f32 0.0, %v1411
      %1413 = vmatmul.bf16.gmra.mxu0 %v795
      %v1414 = vpop.f32.mrf.mxu0
      %v1415 = vadd.f32 0.0, %v1414
      %v1416 = vpop.f32.mrf.mxu0
      %v1417 = vadd.f32 0.0, %v1416
      %1418 = vmatmul.bf16.gmra.mxu0 %v797
      %v1419 = vpop.f32.mrf.mxu0
      %v1420 = vadd.f32 0.0, %v1419
      %v1421 = vpop.f32.mrf.mxu0
      %v1422 = vadd.f32 0.0, %v1421
      %1423 = vmatmul.bf16.gmra.mxu0 %v799
      %v1424 = vpop.f32.mrf.mxu0
      %v1425 = vadd.f32 0.0, %v1424
      %v1426 = vpop.f32.mrf.mxu0
      %v1427 = vadd.f32 0.0, %v1426
      %1428 = vmatmul.bf16.gmra.mxu0 %v801
      %v1429 = vpop.f32.mrf.mxu0
      %v1430 = vadd.f32 0.0, %v1429
      %v1431 = vpop.f32.mrf.mxu0
      %v1432 = vadd.f32 0.0, %v1431
      %1433 = vmatmul.bf16.gmra.mxu0 %v803
      %v1434 = vpop.f32.mrf.mxu0
      %v1435 = vadd.f32 0.0, %v1434
      %v1436 = vpop.f32.mrf.mxu0
      %v1437 = vadd.f32 0.0, %v1436
      %1438 = vmatmul.bf16.gmra.mxu0 %v805
      %v1439 = vpop.f32.mrf.mxu0
      %v1440 = vadd.f32 0.0, %v1439
      %v1441 = vpop.f32.mrf.mxu0
      %v1442 = vadd.f32 0.0, %v1441
      %1443 = vmatmul.bf16.gmra.mxu0 %v807
      %v1444 = vpop.f32.mrf.mxu0
      %v1445 = vadd.f32 0.0, %v1444
      %v1446 = vpop.f32.mrf.mxu0
      %v1447 = vadd.f32 0.0, %v1446
      %1448 = vdwg.mxu0
      %1449 = vmatpush.bf16.msra.mxu0 0
      %1450 = vmatpush.bf16.msra.mxu0 0
      %1451 = vmatpush.bf16.msra.mxu0 0
      %1452 = vmatpush.bf16.msra.mxu0 0
      %1453 = vmatpush.bf16.msra.mxu0 0
      %1454 = vmatpush.bf16.msra.mxu0 0
      %1455 = vmatpush.bf16.msra.mxu0 0
      %1456 = vmatpush.bf16.msra.mxu0 %v917
      %1457 = vmatmul.bf16.gmra.mxu0 %v929
      %v1458 = vpop.f32.mrf.mxu0
      %v1459 = vadd.f32 %v1130, %v1458
      %v1460 = vpop.f32.mrf.mxu0
      %v1461 = vadd.f32 %v1132, %v1460
      %1462 = vmatmul.bf16.gmra.mxu0 %v932
      %v1463 = vpop.f32.mrf.mxu0
      %v1464 = vadd.f32 %v1135, %v1463
      %v1465 = vpop.f32.mrf.mxu0
      %v1466 = vadd.f32 %v1137, %v1465
      %1467 = vmatmul.bf16.gmra.mxu0 %v935
      %v1468 = vpop.f32.mrf.mxu0
      %v1469 = vadd.f32 %v1140, %v1468
      %v1470 = vpop.f32.mrf.mxu0
      %v1471 = vadd.f32 %v1142, %v1470
      %1472 = vmatmul.bf16.gmra.mxu0 %v938
      %v1473 = vpop.f32.mrf.mxu0
      %v1474 = vadd.f32 %v1145, %v1473
      %v1475 = vpop.f32.mrf.mxu0
      %v1476 = vadd.f32 %v1147, %v1475
      %1477 = vmatmul.bf16.gmra.mxu0 %v941
      %v1478 = vpop.f32.mrf.mxu0
      %v1479 = vadd.f32 %v1150, %v1478
      %v1480 = vpop.f32.mrf.mxu0
      %v1481 = vadd.f32 %v1152, %v1480
      %1482 = vmatmul.bf16.gmra.mxu0 %v944
      %v1483 = vpop.f32.mrf.mxu0
      %v1484 = vadd.f32 %v1155, %v1483
      %v1485 = vpop.f32.mrf.mxu0
      %v1486 = vadd.f32 %v1157, %v1485
      %1487 = vmatmul.bf16.gmra.mxu0 %v947
      %v1488 = vpop.f32.mrf.mxu0
      %v1489 = vadd.f32 %v1160, %v1488
      %v1490 = vpop.f32.mrf.mxu0
      %v1491 = vadd.f32 %v1162, %v1490
      %1492 = vmatmul.bf16.gmra.mxu0 %v950
      %v1493 = vpop.f32.mrf.mxu0
      %v1494 = vadd.f32 %v1165, %v1493
      %v1495 = vpop.f32.mrf.mxu0
      %v1496 = vadd.f32 %v1167, %v1495
      %1497 = vmatmul.bf16.gmra.mxu0 %v953
      %v1498 = vpop.f32.mrf.mxu0
      %v1499 = vadd.f32 %v1170, %v1498
      %v1500 = vpop.f32.mrf.mxu0
      %v1501 = vadd.f32 %v1172, %v1500
      %1502 = vmatmul.bf16.gmra.mxu0 %v956
      %v1503 = vpop.f32.mrf.mxu0
      %v1504 = vadd.f32 %v1175, %v1503
      %v1505 = vpop.f32.mrf.mxu0
      %v1506 = vadd.f32 %v1177, %v1505
      %1507 = vmatmul.bf16.gmra.mxu0 %v959
      %v1508 = vpop.f32.mrf.mxu0
      %v1509 = vadd.f32 %v1180, %v1508
      %v1510 = vpop.f32.mrf.mxu0
      %v1511 = vadd.f32 %v1182, %v1510
      %1512 = vmatmul.bf16.gmra.mxu0 %v962
      %v1513 = vpop.f32.mrf.mxu0
      %v1514 = vadd.f32 %v1185, %v1513
      %v1515 = vpop.f32.mrf.mxu0
      %v1516 = vadd.f32 %v1187, %v1515
      %1517 = vmatmul.bf16.gmra.mxu0 %v965
      %v1518 = vpop.f32.mrf.mxu0
      %v1519 = vadd.f32 %v1190, %v1518
      %v1520 = vpop.f32.mrf.mxu0
      %v1521 = vadd.f32 %v1192, %v1520
      %1522 = vmatmul.bf16.gmra.mxu0 %v968
      %v1523 = vpop.f32.mrf.mxu0
      %v1524 = vadd.f32 %v1195, %v1523
      %v1525 = vpop.f32.mrf.mxu0
      %v1526 = vadd.f32 %v1197, %v1525
      %1527 = vmatmul.bf16.gmra.mxu0 %v971
      %v1528 = vpop.f32.mrf.mxu0
      %v1529 = vadd.f32 %v1200, %v1528
      %v1530 = vpop.f32.mrf.mxu0
      %v1531 = vadd.f32 %v1202, %v1530
      %1532 = vmatmul.bf16.gmra.mxu0 %v974
      %v1533 = vpop.f32.mrf.mxu0
      %v1534 = vadd.f32 %v1205, %v1533
      %v1535 = vpop.f32.mrf.mxu0
      %v1536 = vadd.f32 %v1207, %v1535
      %1537 = vmatmul.bf16.gmra.mxu0 %v977
      %v1538 = vpop.f32.mrf.mxu0
      %v1539 = vadd.f32 %v1210, %v1538
      %v1540 = vpop.f32.mrf.mxu0
      %v1541 = vadd.f32 %v1212, %v1540
      %1542 = vmatmul.bf16.gmra.mxu0 %v980
      %v1543 = vpop.f32.mrf.mxu0
      %v1544 = vadd.f32 %v1215, %v1543
      %v1545 = vpop.f32.mrf.mxu0
      %v1546 = vadd.f32 %v1217, %v1545
      %1547 = vmatmul.bf16.gmra.mxu0 %v983
      %v1548 = vpop.f32.mrf.mxu0
      %v1549 = vadd.f32 %v1220, %v1548
      %v1550 = vpop.f32.mrf.mxu0
      %v1551 = vadd.f32 %v1222, %v1550
      %1552 = vmatmul.bf16.gmra.mxu0 %v986
      %v1553 = vpop.f32.mrf.mxu0
      %v1554 = vadd.f32 %v1225, %v1553
      %v1555 = vpop.f32.mrf.mxu0
      %v1556 = vadd.f32 %v1227, %v1555
      %1557 = vmatmul.bf16.gmra.mxu0 %v989
      %v1558 = vpop.f32.mrf.mxu0
      %v1559 = vadd.f32 %v1230, %v1558
      %v1560 = vpop.f32.mrf.mxu0
      %v1561 = vadd.f32 %v1232, %v1560
      %1562 = vmatmul.bf16.gmra.mxu0 %v992
      %v1563 = vpop.f32.mrf.mxu0
      %v1564 = vadd.f32 %v1235, %v1563
      %v1565 = vpop.f32.mrf.mxu0
      %v1566 = vadd.f32 %v1237, %v1565
      %1567 = vmatmul.bf16.gmra.mxu0 %v995
      %v1568 = vpop.f32.mrf.mxu0
      %v1569 = vadd.f32 %v1240, %v1568
      %v1570 = vpop.f32.mrf.mxu0
      %v1571 = vadd.f32 %v1242, %v1570
      %1572 = vmatmul.bf16.gmra.mxu0 %v998
      %v1573 = vpop.f32.mrf.mxu0
      %v1574 = vadd.f32 %v1245, %v1573
      %v1575 = vpop.f32.mrf.mxu0
      %v1576 = vadd.f32 %v1247, %v1575
      %1577 = vmatmul.bf16.gmra.mxu0 %v1001
      %v1578 = vpop.f32.mrf.mxu0
      %v1579 = vadd.f32 %v1250, %v1578
      %v1580 = vpop.f32.mrf.mxu0
      %v1581 = vadd.f32 %v1252, %v1580
      %1582 = vmatmul.bf16.gmra.mxu0 %v1004
      %v1583 = vpop.f32.mrf.mxu0
      %v1584 = vadd.f32 %v1255, %v1583
      %v1585 = vpop.f32.mrf.mxu0
      %v1586 = vadd.f32 %v1257, %v1585
      %1587 = vmatmul.bf16.gmra.mxu0 %v1007
      %v1588 = vpop.f32.mrf.mxu0
      %v1589 = vadd.f32 %v1260, %v1588
      %v1590 = vpop.f32.mrf.mxu0
      %v1591 = vadd.f32 %v1262, %v1590
      %1592 = vmatmul.bf16.gmra.mxu0 %v1010
      %v1593 = vpop.f32.mrf.mxu0
      %v1594 = vadd.f32 %v1265, %v1593
      %v1595 = vpop.f32.mrf.mxu0
      %v1596 = vadd.f32 %v1267, %v1595
      %1597 = vmatmul.bf16.gmra.mxu0 %v1013
      %v1598 = vpop.f32.mrf.mxu0
      %v1599 = vadd.f32 %v1270, %v1598
      %v1600 = vpop.f32.mrf.mxu0
      %v1601 = vadd.f32 %v1272, %v1600
      %1602 = vmatmul.bf16.gmra.mxu0 %v1016
      %v1603 = vpop.f32.mrf.mxu0
      %v1604 = vadd.f32 %v1275, %v1603
      %v1605 = vpop.f32.mrf.mxu0
      %v1606 = vadd.f32 %v1277, %v1605
      %1607 = vmatmul.bf16.gmra.mxu0 %v1019
      %v1608 = vpop.f32.mrf.mxu0
      %v1609 = vadd.f32 %v1280, %v1608
      %v1610 = vpop.f32.mrf.mxu0
      %v1611 = vadd.f32 %v1282, %v1610
      %1612 = vmatmul.bf16.gmra.mxu0 %v1022
      %v1613 = vpop.f32.mrf.mxu0
      %v1614 = vadd.f32 %v1285, %v1613
      %v1615 = vpop.f32.mrf.mxu0
      %v1616 = vadd.f32 %v1287, %v1615
      %1617 = vmatmul.bf16.gmra.mxu0 %v1025
      %v1618 = vpop.f32.mrf.mxu0
      %v1619 = vadd.f32 %v1290, %v1618
      %v1620 = vpop.f32.mrf.mxu0
      %v1621 = vadd.f32 %v1292, %v1620
      %1622 = vmatmul.bf16.gmra.mxu0 %v1028
      %v1623 = vpop.f32.mrf.mxu0
      %v1624 = vadd.f32 %v1295, %v1623
      %v1625 = vpop.f32.mrf.mxu0
      %v1626 = vadd.f32 %v1297, %v1625
      %1627 = vmatmul.bf16.gmra.mxu0 %v1031
      %v1628 = vpop.f32.mrf.mxu0
      %v1629 = vadd.f32 %v1300, %v1628
      %v1630 = vpop.f32.mrf.mxu0
      %v1631 = vadd.f32 %v1302, %v1630
      %1632 = vmatmul.bf16.gmra.mxu0 %v1034
      %v1633 = vpop.f32.mrf.mxu0
      %v1634 = vadd.f32 %v1305, %v1633
      %v1635 = vpop.f32.mrf.mxu0
      %v1636 = vadd.f32 %v1307, %v1635
      %1637 = vmatmul.bf16.gmra.mxu0 %v1037
      %v1638 = vpop.f32.mrf.mxu0
      %v1639 = vadd.f32 %v1310, %v1638
      %v1640 = vpop.f32.mrf.mxu0
      %v1641 = vadd.f32 %v1312, %v1640
      %1642 = vmatmul.bf16.gmra.mxu0 %v1040
      %v1643 = vpop.f32.mrf.mxu0
      %v1644 = vadd.f32 %v1315, %v1643
      %v1645 = vpop.f32.mrf.mxu0
      %v1646 = vadd.f32 %v1317, %v1645
      %1647 = vmatmul.bf16.gmra.mxu0 %v1043
      %v1648 = vpop.f32.mrf.mxu0
      %v1649 = vadd.f32 %v1320, %v1648
      %v1650 = vpop.f32.mrf.mxu0
      %v1651 = vadd.f32 %v1322, %v1650
      %1652 = vmatmul.bf16.gmra.mxu0 %v1046
      %v1653 = vpop.f32.mrf.mxu0
      %v1654 = vadd.f32 %v1325, %v1653
      %v1655 = vpop.f32.mrf.mxu0
      %v1656 = vadd.f32 %v1327, %v1655
      %1657 = vmatmul.bf16.gmra.mxu0 %v1049
      %v1658 = vpop.f32.mrf.mxu0
      %v1659 = vadd.f32 %v1330, %v1658
      %v1660 = vpop.f32.mrf.mxu0
      %v1661 = vadd.f32 %v1332, %v1660
      %1662 = vmatmul.bf16.gmra.mxu0 %v1052
      %v1663 = vpop.f32.mrf.mxu0
      %v1664 = vadd.f32 %v1335, %v1663
      %v1665 = vpop.f32.mrf.mxu0
      %v1666 = vadd.f32 %v1337, %v1665
      %1667 = vmatmul.bf16.gmra.mxu0 %v1055
      %v1668 = vpop.f32.mrf.mxu0
      %v1669 = vadd.f32 %v1340, %v1668
      %v1670 = vpop.f32.mrf.mxu0
      %v1671 = vadd.f32 %v1342, %v1670
      %1672 = vmatmul.bf16.gmra.mxu0 %v1058
      %v1673 = vpop.f32.mrf.mxu0
      %v1674 = vadd.f32 %v1345, %v1673
      %v1675 = vpop.f32.mrf.mxu0
      %v1676 = vadd.f32 %v1347, %v1675
      %1677 = vmatmul.bf16.gmra.mxu0 %v1061
      %v1678 = vpop.f32.mrf.mxu0
      %v1679 = vadd.f32 %v1350, %v1678
      %v1680 = vpop.f32.mrf.mxu0
      %v1681 = vadd.f32 %v1352, %v1680
      %1682 = vmatmul.bf16.gmra.mxu0 %v1064
      %v1683 = vpop.f32.mrf.mxu0
      %v1684 = vadd.f32 %v1355, %v1683
      %v1685 = vpop.f32.mrf.mxu0
      %v1686 = vadd.f32 %v1357, %v1685
      %1687 = vmatmul.bf16.gmra.mxu0 %v1067
      %v1688 = vpop.f32.mrf.mxu0
      %v1689 = vadd.f32 %v1360, %v1688
      %v1690 = vpop.f32.mrf.mxu0
      %v1691 = vadd.f32 %v1362, %v1690
      %1692 = vmatmul.bf16.gmra.mxu0 %v1070
      %v1693 = vpop.f32.mrf.mxu0
      %v1694 = vadd.f32 %v1365, %v1693
      %v1695 = vpop.f32.mrf.mxu0
      %v1696 = vadd.f32 %v1367, %v1695
      %1697 = vmatmul.bf16.gmra.mxu0 %v1073
      %v1698 = vpop.f32.mrf.mxu0
      %v1699 = vadd.f32 %v1370, %v1698
      %v1700 = vpop.f32.mrf.mxu0
      %v1701 = vadd.f32 %v1372, %v1700
      %1702 = vmatmul.bf16.gmra.mxu0 %v1076
      %v1703 = vpop.f32.mrf.mxu0
      %v1704 = vadd.f32 %v1375, %v1703
      %v1705 = vpop.f32.mrf.mxu0
      %v1706 = vadd.f32 %v1377, %v1705
      %1707 = vmatmul.bf16.gmra.mxu0 %v1079
      %v1708 = vpop.f32.mrf.mxu0
      %v1709 = vadd.f32 %v1380, %v1708
      %v1710 = vpop.f32.mrf.mxu0
      %v1711 = vadd.f32 %v1382, %v1710
      %1712 = vmatmul.bf16.gmra.mxu0 %v1082
      %v1713 = vpop.f32.mrf.mxu0
      %v1714 = vadd.f32 %v1385, %v1713
      %v1715 = vpop.f32.mrf.mxu0
      %v1716 = vadd.f32 %v1387, %v1715
      %1717 = vmatmul.bf16.gmra.mxu0 %v1085
      %v1718 = vpop.f32.mrf.mxu0
      %v1719 = vadd.f32 %v1390, %v1718
      %v1720 = vpop.f32.mrf.mxu0
      %v1721 = vadd.f32 %v1392, %v1720
      %1722 = vmatmul.bf16.gmra.mxu0 %v1088
      %v1723 = vpop.f32.mrf.mxu0
      %v1724 = vadd.f32 %v1395, %v1723
      %v1725 = vpop.f32.mrf.mxu0
      %v1726 = vadd.f32 %v1397, %v1725
      %1727 = vmatmul.bf16.gmra.mxu0 %v1091
      %v1728 = vpop.f32.mrf.mxu0
      %v1729 = vadd.f32 %v1400, %v1728
      %v1730 = vpop.f32.mrf.mxu0
      %v1731 = vadd.f32 %v1402, %v1730
      %1732 = vmatmul.bf16.gmra.mxu0 %v1094
      %v1733 = vpop.f32.mrf.mxu0
      %v1734 = vadd.f32 %v1405, %v1733
      %v1735 = vpop.f32.mrf.mxu0
      %v1736 = vadd.f32 %v1407, %v1735
      %1737 = vmatmul.bf16.gmra.mxu0 %v1097
      %v1738 = vpop.f32.mrf.mxu0
      %v1739 = vadd.f32 %v1410, %v1738
      %v1740 = vpop.f32.mrf.mxu0
      %v1741 = vadd.f32 %v1412, %v1740
      %1742 = vmatmul.bf16.gmra.mxu0 %v1100
      %v1743 = vpop.f32.mrf.mxu0
      %v1744 = vadd.f32 %v1415, %v1743
      %v1745 = vpop.f32.mrf.mxu0
      %v1746 = vadd.f32 %v1417, %v1745
      %1747 = vmatmul.bf16.gmra.mxu0 %v1103
      %v1748 = vpop.f32.mrf.mxu0
      %v1749 = vadd.f32 %v1420, %v1748
      %v1750 = vpop.f32.mrf.mxu0
      %v1751 = vadd.f32 %v1422, %v1750
      %1752 = vmatmul.bf16.gmra.mxu0 %v1106
      %v1753 = vpop.f32.mrf.mxu0
      %v1754 = vadd.f32 %v1425, %v1753
      %v1755 = vpop.f32.mrf.mxu0
      %v1756 = vadd.f32 %v1427, %v1755
      %1757 = vmatmul.bf16.gmra.mxu0 %v1109
      %v1758 = vpop.f32.mrf.mxu0
      %v1759 = vadd.f32 %v1430, %v1758
      %v1760 = vpop.f32.mrf.mxu0
      %v1761 = vadd.f32 %v1432, %v1760
      %1762 = vmatmul.bf16.gmra.mxu0 %v1112
      %v1763 = vpop.f32.mrf.mxu0
      %v1764 = vadd.f32 %v1435, %v1763
      %v1765 = vpop.f32.mrf.mxu0
      %v1766 = vadd.f32 %v1437, %v1765
      %1767 = vmatmul.bf16.gmra.mxu0 %v1115
      %v1768 = vpop.f32.mrf.mxu0
      %v1769 = vadd.f32 %v1440, %v1768
      %v1770 = vpop.f32.mrf.mxu0
      %v1771 = vadd.f32 %v1442, %v1770
      %1772 = vmatmul.bf16.gmra.mxu0 %v1118
      %v1773 = vpop.f32.mrf.mxu0
      %v1774 = vadd.f32 %v1445, %v1773
      %v1775 = vpop.f32.mrf.mxu0
      %v1776 = vadd.f32 %v1447, %v1775
      %1777 = vdwg.mxu0
      %v1778 = vtanh.pop %v1459
      %v1779 = vtanh.pop %v1461
      %v1780 = vtanh.pop %v1464
      %v1781 = vtanh.pop %v1466
      %v1782 = vtanh.pop %v1469
      %v1783 = vtanh.pop %v1471
      %v1784 = vtanh.pop %v1474
      %v1785 = vtanh.pop %v1476
      %v1786 = vtanh.pop %v1479
      %v1787 = vtanh.pop %v1481
      %v1788 = vtanh.pop %v1484
      %v1789 = vtanh.pop %v1486
      %v1790 = vtanh.pop %v1489
      %v1791 = vtanh.pop %v1491
      %v1792 = vtanh.pop %v1494
      %v1793 = vtanh.pop %v1496
      %v1794 = vtanh.pop %v1499
      %v1795 = vtanh.pop %v1501
      %v1796 = vtanh.pop %v1504
      %v1797 = vtanh.pop %v1506
      %v1798 = vtanh.pop %v1509
      %v1799 = vtanh.pop %v1511
      %v1800 = vtanh.pop %v1514
      %v1801 = vtanh.pop %v1516
      %v1802 = vtanh.pop %v1519
      %v1803 = vtanh.pop %v1521
      %v1804 = vtanh.pop %v1524
      %v1805 = vtanh.pop %v1526
      %v1806 = vtanh.pop %v1529
      %v1807 = vtanh.pop %v1531
      %v1808 = vtanh.pop %v1534
      %v1809 = vtanh.pop %v1536
      %v1810 = vtanh.pop %v1539
      %v1811 = vtanh.pop %v1541
      %v1812 = vtanh.pop %v1544
      %v1813 = vtanh.pop %v1546
      %v1814 = vtanh.pop %v1549
      %v1815 = vtanh.pop %v1551
      %v1816 = vtanh.pop %v1554
      %v1817 = vtanh.pop %v1556
      %v1818 = vtanh.pop %v1559
      %v1819 = vtanh.pop %v1561
      %v1820 = vtanh.pop %v1564
      %v1821 = vtanh.pop %v1566
      %v1822 = vtanh.pop %v1569
      %v1823 = vtanh.pop %v1571
      %v1824 = vtanh.pop %v1574
      %v1825 = vtanh.pop %v1576
      %v1826 = vtanh.pop %v1579
      %v1827 = vtanh.pop %v1581
      %v1828 = vtanh.pop %v1584
      %v1829 = vtanh.pop %v1586
      %v1830 = vtanh.pop %v1589
      %v1831 = vtanh.pop %v1591
      %v1832 = vtanh.pop %v1594
      %v1833 = vtanh.pop %v1596
      %v1834 = vtanh.pop %v1599
      %v1835 = vtanh.pop %v1601
      %v1836 = vtanh.pop %v1604
      %v1837 = vtanh.pop %v1606
      %v1838 = vtanh.pop %v1609
      %v1839 = vtanh.pop %v1611
      %v1840 = vtanh.pop %v1614
      %v1841 = vtanh.pop %v1616
      %v1842 = vtanh.pop %v1619
      %v1843 = vtanh.pop %v1621
      %v1844 = vtanh.pop %v1624
      %v1845 = vtanh.pop %v1626
      %v1846 = vtanh.pop %v1629
      %v1847 = vtanh.pop %v1631
      %v1848 = vtanh.pop %v1634
      %v1849 = vtanh.pop %v1636
      %v1850 = vtanh.pop %v1639
      %v1851 = vtanh.pop %v1641
      %v1852 = vtanh.pop %v1644
      %v1853 = vtanh.pop %v1646
      %v1854 = vtanh.pop %v1649
      %v1855 = vtanh.pop %v1651
      %v1856 = vtanh.pop %v1654
      %v1857 = vtanh.pop %v1656
      %v1858 = vtanh.pop %v1659
      %v1859 = vtanh.pop %v1661
      %v1860 = vtanh.pop %v1664
      %v1861 = vtanh.pop %v1666
      %v1862 = vtanh.pop %v1669
      %v1863 = vtanh.pop %v1671
      %v1864 = vtanh.pop %v1674
      %v1865 = vtanh.pop %v1676
      %v1866 = vtanh.pop %v1679
      %v1867 = vtanh.pop %v1681
      %v1868 = vtanh.pop %v1684
      %v1869 = vtanh.pop %v1686
      %v1870 = vtanh.pop %v1689
      %v1871 = vtanh.pop %v1691
      %v1872 = vtanh.pop %v1694
      %v1873 = vtanh.pop %v1696
      %v1874 = vtanh.pop %v1699
      %v1875 = vtanh.pop %v1701
      %v1876 = vtanh.pop %v1704
      %v1877 = vtanh.pop %v1706
      %v1878 = vtanh.pop %v1709
      %v1879 = vtanh.pop %v1711
      %v1880 = vtanh.pop %v1714
      %v1881 = vtanh.pop %v1716
      %v1882 = vtanh.pop %v1719
      %v1883 = vtanh.pop %v1721
      %v1884 = vtanh.pop %v1724
      %v1885 = vtanh.pop %v1726
      %v1886 = vtanh.pop %v1729
      %v1887 = vtanh.pop %v1731
      %v1888 = vtanh.pop %v1734
      %v1889 = vtanh.pop %v1736
      %v1890 = vtanh.pop %v1739
      %v1891 = vtanh.pop %v1741
      %v1892 = vtanh.pop %v1744
      %v1893 = vtanh.pop %v1746
      %v1894 = vtanh.pop %v1749
      %v1895 = vtanh.pop %v1751
      %v1896 = vtanh.pop %v1754
      %v1897 = vtanh.pop %v1756
      %v1898 = vtanh.pop %v1759
      %v1899 = vtanh.pop %v1761
      %v1900 = vtanh.pop %v1764
      %v1901 = vtanh.pop %v1766
      %v1902 = vtanh.pop %v1769
      %v1903 = vtanh.pop %v1771
      %v1904 = vtanh.pop %v1774
      %v1905 = vtanh.pop %v1776
      %vm1906 = vcmask 97280
      %1907 = vst.msk [vmem:[%s148] sm:$0xff] %vm1906, %v1778
      %1908 = vst.msk [vmem:[%s148 + $0x8] sm:$0xff] %vm1906, %v1779
      %1909 = vst.msk [vmem:[%s148 + $0x10] sm:$0xff] %vm1906, %v1780
      %1910 = vst.msk [vmem:[%s148 + $0x18] sm:$0xff] %vm1906, %v1781
      %1911 = vst.msk [vmem:[%s148 + $0x20] sm:$0xff] %vm1906, %v1782
      %1912 = vst.msk [vmem:[%s148 + $0x28] sm:$0xff] %vm1906, %v1783
      %1913 = vst.msk [vmem:[%s148 + $0x30] sm:$0xff] %vm1906, %v1784
      %1914 = vst.msk [vmem:[%s148 + $0x38] sm:$0xff] %vm1906, %v1785
      %1915 = vst.msk [vmem:[%s148 + $0x40] sm:$0xff] %vm1906, %v1786
      %1916 = vst.msk [vmem:[%s148 + $0x48] sm:$0xff] %vm1906, %v1787
      %1917 = vst.msk [vmem:[%s148 + $0x50] sm:$0xff] %vm1906, %v1788
      %1918 = vst.msk [vmem:[%s148 + $0x58] sm:$0xff] %vm1906, %v1789
      %1919 = vst.msk [vmem:[%s148 + $0x60] sm:$0xff] %vm1906, %v1790
      %1920 = vst.msk [vmem:[%s148 + $0x68] sm:$0xff] %vm1906, %v1791
      %1921 = vst.msk [vmem:[%s148 + $0x70] sm:$0xff] %vm1906, %v1792
      %1922 = vst.msk [vmem:[%s148 + $0x78] sm:$0xff] %vm1906, %v1793
      %1923 = vst.msk [vmem:[%s148 + $0x80] sm:$0xff] %vm1906, %v1794
      %1924 = vst.msk [vmem:[%s148 + $0x88] sm:$0xff] %vm1906, %v1795
      %1925 = vst.msk [vmem:[%s148 + $0x90] sm:$0xff] %vm1906, %v1796
      %1926 = vst.msk [vmem:[%s148 + $0x98] sm:$0xff] %vm1906, %v1797
      %1927 = vst.msk [vmem:[%s148 + $0xa0] sm:$0xff] %vm1906, %v1798
      %1928 = vst.msk [vmem:[%s148 + $0xa8] sm:$0xff] %vm1906, %v1799
      %1929 = vst.msk [vmem:[%s148 + $0xb0] sm:$0xff] %vm1906, %v1800
      %1930 = vst.msk [vmem:[%s148 + $0xb8] sm:$0xff] %vm1906, %v1801
      %1931 = vst.msk [vmem:[%s148 + $0xc0] sm:$0xff] %vm1906, %v1802
      %1932 = vst.msk [vmem:[%s148 + $0xc8] sm:$0xff] %vm1906, %v1803
      %1933 = vst.msk [vmem:[%s148 + $0xd0] sm:$0xff] %vm1906, %v1804
      %1934 = vst.msk [vmem:[%s148 + $0xd8] sm:$0xff] %vm1906, %v1805
      %1935 = vst.msk [vmem:[%s148 + $0xe0] sm:$0xff] %vm1906, %v1806
      %1936 = vst.msk [vmem:[%s148 + $0xe8] sm:$0xff] %vm1906, %v1807
      %1937 = vst.msk [vmem:[%s148 + $0xf0] sm:$0xff] %vm1906, %v1808
      %1938 = vst.msk [vmem:[%s148 + $0xf8] sm:$0xff] %vm1906, %v1809
      %1939 = vst.msk [vmem:[%s148 + $0x100] sm:$0xff] %vm1906, %v1810
      %1940 = vst.msk [vmem:[%s148 + $0x108] sm:$0xff] %vm1906, %v1811
      %1941 = vst.msk [vmem:[%s148 + $0x110] sm:$0xff] %vm1906, %v1812
      %1942 = vst.msk [vmem:[%s148 + $0x118] sm:$0xff] %vm1906, %v1813
      %1943 = vst.msk [vmem:[%s148 + $0x120] sm:$0xff] %vm1906, %v1814
      %1944 = vst.msk [vmem:[%s148 + $0x128] sm:$0xff] %vm1906, %v1815
      %1945 = vst.msk [vmem:[%s148 + $0x130] sm:$0xff] %vm1906, %v1816
      %1946 = vst.msk [vmem:[%s148 + $0x138] sm:$0xff] %vm1906, %v1817
      %1947 = vst.msk [vmem:[%s148 + $0x140] sm:$0xff] %vm1906, %v1818
      %1948 = vst.msk [vmem:[%s148 + $0x148] sm:$0xff] %vm1906, %v1819
      %1949 = vst.msk [vmem:[%s148 + $0x150] sm:$0xff] %vm1906, %v1820
      %1950 = vst.msk [vmem:[%s148 + $0x158] sm:$0xff] %vm1906, %v1821
      %1951 = vst.msk [vmem:[%s148 + $0x160] sm:$0xff] %vm1906, %v1822
      %1952 = vst.msk [vmem:[%s148 + $0x168] sm:$0xff] %vm1906, %v1823
      %1953 = vst.msk [vmem:[%s148 + $0x170] sm:$0xff] %vm1906, %v1824
      %1954 = vst.msk [vmem:[%s148 + $0x178] sm:$0xff] %vm1906, %v1825
      %1955 = vst.msk [vmem:[%s148 + $0x180] sm:$0xff] %vm1906, %v1826
      %1956 = vst.msk [vmem:[%s148 + $0x188] sm:$0xff] %vm1906, %v1827
      %1957 = vst.msk [vmem:[%s148 + $0x190] sm:$0xff] %vm1906, %v1828
      %1958 = vst.msk [vmem:[%s148 + $0x198] sm:$0xff] %vm1906, %v1829
      %1959 = vst.msk [vmem:[%s148 + $0x1a0] sm:$0xff] %vm1906, %v1830
      %1960 = vst.msk [vmem:[%s148 + $0x1a8] sm:$0xff] %vm1906, %v1831
      %1961 = vst.msk [vmem:[%s148 + $0x1b0] sm:$0xff] %vm1906, %v1832
      %1962 = vst.msk [vmem:[%s148 + $0x1b8] sm:$0xff] %vm1906, %v1833
      %1963 = vst.msk [vmem:[%s148 + $0x1c0] sm:$0xff] %vm1906, %v1834
      %1964 = vst.msk [vmem:[%s148 + $0x1c8] sm:$0xff] %vm1906, %v1835
      %1965 = vst.msk [vmem:[%s148 + $0x1d0] sm:$0xff] %vm1906, %v1836
      %1966 = vst.msk [vmem:[%s148 + $0x1d8] sm:$0xff] %vm1906, %v1837
      %1967 = vst.msk [vmem:[%s148 + $0x1e0] sm:$0xff] %vm1906, %v1838
      %1968 = vst.msk [vmem:[%s148 + $0x1e8] sm:$0xff] %vm1906, %v1839
      %1969 = vst.msk [vmem:[%s148 + $0x1f0] sm:$0xff] %vm1906, %v1840
      %1970 = vst.msk [vmem:[%s148 + $0x1f8] sm:$0xff] %vm1906, %v1841
      %1971 = vst.msk [vmem:[%s148 + $0x200] sm:$0xff] %vm1906, %v1842
      %1972 = vst.msk [vmem:[%s148 + $0x208] sm:$0xff] %vm1906, %v1843
      %1973 = vst.msk [vmem:[%s148 + $0x210] sm:$0xff] %vm1906, %v1844
      %1974 = vst.msk [vmem:[%s148 + $0x218] sm:$0xff] %vm1906, %v1845
      %1975 = vst.msk [vmem:[%s148 + $0x220] sm:$0xff] %vm1906, %v1846
      %1976 = vst.msk [vmem:[%s148 + $0x228] sm:$0xff] %vm1906, %v1847
      %1977 = vst.msk [vmem:[%s148 + $0x230] sm:$0xff] %vm1906, %v1848
      %1978 = vst.msk [vmem:[%s148 + $0x238] sm:$0xff] %vm1906, %v1849
      %1979 = vst.msk [vmem:[%s148 + $0x240] sm:$0xff] %vm1906, %v1850
      %1980 = vst.msk [vmem:[%s148 + $0x248] sm:$0xff] %vm1906, %v1851
      %1981 = vst.msk [vmem:[%s148 + $0x250] sm:$0xff] %vm1906, %v1852
      %1982 = vst.msk [vmem:[%s148 + $0x258] sm:$0xff] %vm1906, %v1853
      %1983 = vst.msk [vmem:[%s148 + $0x260] sm:$0xff] %vm1906, %v1854
      %1984 = vst.msk [vmem:[%s148 + $0x268] sm:$0xff] %vm1906, %v1855
      %1985 = vst.msk [vmem:[%s148 + $0x270] sm:$0xff] %vm1906, %v1856
      %1986 = vst.msk [vmem:[%s148 + $0x278] sm:$0xff] %vm1906, %v1857
      %1987 = vst.msk [vmem:[%s148 + $0x280] sm:$0xff] %vm1906, %v1858
      %1988 = vst.msk [vmem:[%s148 + $0x288] sm:$0xff] %vm1906, %v1859
      %1989 = vst.msk [vmem:[%s148 + $0x290] sm:$0xff] %vm1906, %v1860
      %1990 = vst.msk [vmem:[%s148 + $0x298] sm:$0xff] %vm1906, %v1861
      %1991 = vst.msk [vmem:[%s148 + $0x2a0] sm:$0xff] %vm1906, %v1862
      %1992 = vst.msk [vmem:[%s148 + $0x2a8] sm:$0xff] %vm1906, %v1863
      %1993 = vst.msk [vmem:[%s148 + $0x2b0] sm:$0xff] %vm1906, %v1864
      %1994 = vst.msk [vmem:[%s148 + $0x2b8] sm:$0xff] %vm1906, %v1865
      %1995 = vst.msk [vmem:[%s148 + $0x2c0] sm:$0xff] %vm1906, %v1866
      %1996 = vst.msk [vmem:[%s148 + $0x2c8] sm:$0xff] %vm1906, %v1867
      %1997 = vst.msk [vmem:[%s148 + $0x2d0] sm:$0xff] %vm1906, %v1868
      %1998 = vst.msk [vmem:[%s148 + $0x2d8] sm:$0xff] %vm1906, %v1869
      %1999 = vst.msk [vmem:[%s148 + $0x2e0] sm:$0xff] %vm1906, %v1870
      %2000 = vst.msk [vmem:[%s148 + $0x2e8] sm:$0xff] %vm1906, %v1871
      %2001 = vst.msk [vmem:[%s148 + $0x2f0] sm:$0xff] %vm1906, %v1872
      %2002 = vst.msk [vmem:[%s148 + $0x2f8] sm:$0xff] %vm1906, %v1873
      %2003 = vst.msk [vmem:[%s148 + $0x300] sm:$0xff] %vm1906, %v1874
      %2004 = vst.msk [vmem:[%s148 + $0x308] sm:$0xff] %vm1906, %v1875
      %2005 = vst.msk [vmem:[%s148 + $0x310] sm:$0xff] %vm1906, %v1876
      %2006 = vst.msk [vmem:[%s148 + $0x318] sm:$0xff] %vm1906, %v1877
      %2007 = vst.msk [vmem:[%s148 + $0x320] sm:$0xff] %vm1906, %v1878
      %2008 = vst.msk [vmem:[%s148 + $0x328] sm:$0xff] %vm1906, %v1879
      %2009 = vst.msk [vmem:[%s148 + $0x330] sm:$0xff] %vm1906, %v1880
      %2010 = vst.msk [vmem:[%s148 + $0x338] sm:$0xff] %vm1906, %v1881
      %2011 = vst.msk [vmem:[%s148 + $0x340] sm:$0xff] %vm1906, %v1882
      %2012 = vst.msk [vmem:[%s148 + $0x348] sm:$0xff] %vm1906, %v1883
      %2013 = vst.msk [vmem:[%s148 + $0x350] sm:$0xff] %vm1906, %v1884
      %2014 = vst.msk [vmem:[%s148 + $0x358] sm:$0xff] %vm1906, %v1885
      %2015 = vst.msk [vmem:[%s148 + $0x360] sm:$0xff] %vm1906, %v1886
      %2016 = vst.msk [vmem:[%s148 + $0x368] sm:$0xff] %vm1906, %v1887
      %2017 = vst.msk [vmem:[%s148 + $0x370] sm:$0xff] %vm1906, %v1888
      %2018 = vst.msk [vmem:[%s148 + $0x378] sm:$0xff] %vm1906, %v1889
      %2019 = vst.msk [vmem:[%s148 + $0x380] sm:$0xff] %vm1906, %v1890
      %2020 = vst.msk [vmem:[%s148 + $0x388] sm:$0xff] %vm1906, %v1891
      %2021 = vst.msk [vmem:[%s148 + $0x390] sm:$0xff] %vm1906, %v1892
      %2022 = vst.msk [vmem:[%s148 + $0x398] sm:$0xff] %vm1906, %v1893
      %2023 = vst.msk [vmem:[%s148 + $0x3a0] sm:$0xff] %vm1906, %v1894
      %2024 = vst.msk [vmem:[%s148 + $0x3a8] sm:$0xff] %vm1906, %v1895
      %2025 = vst.msk [vmem:[%s148 + $0x3b0] sm:$0xff] %vm1906, %v1896
      %2026 = vst.msk [vmem:[%s148 + $0x3b8] sm:$0xff] %vm1906, %v1897
      %2027 = vst.msk [vmem:[%s148 + $0x3c0] sm:$0xff] %vm1906, %v1898
      %2028 = vst.msk [vmem:[%s148 + $0x3c8] sm:$0xff] %vm1906, %v1899
      %2029 = vst.msk [vmem:[%s148 + $0x3d0] sm:$0xff] %vm1906, %v1900
      %2030 = vst.msk [vmem:[%s148 + $0x3d8] sm:$0xff] %vm1906, %v1901
      %2031 = vst.msk [vmem:[%s148 + $0x3e0] sm:$0xff] %vm1906, %v1902
      %2032 = vst.msk [vmem:[%s148 + $0x3e8] sm:$0xff] %vm1906, %v1903
      %2033 = vst.msk [vmem:[%s148 + $0x3f0] sm:$0xff] %vm1906, %v1904
      %2034 = vst.msk [vmem:[%s148 + $0x3f8] sm:$0xff] %vm1906, %v1905
      %s2035 = smul.u32 128, %s13
      %p2036 = scmp.lt.s32.totalorder %s2035, 255
      %s2037 = scalar_select %p2036, %s2035, 255
      %s2038 = smul.addr %s2037, 8
      %s2039 = scalar_lea.vmem %s2, %s2038
      // Predicated region
      $region29: #{generator_forward.9} parent=27 // pred_check
        %p2040 = pneg %p78
      $region30: #{generator_forward.9} parent=27 // pred_check_branch
        %2042 = sbr.rel (%p2040) target = $region32
      $region31: #{generator_forward.9} parent=27 // pred_region
        %s2043 = smul.u32 128, %s13
      $region32: #{generator_forward.9} parent=27 // pred_fallthru
        _
    $region28: #{generator_forward.9} parent=5 // pred_fallthru
      _
    %p2044 = scmp.le.s32.totalorder 2, %s8
    // Predicated region
    $region33: #{generator_forward.9} parent=5 // pred_check
      %p2045 = pneg %p2044
    $region34: #{generator_forward.9} parent=5 // pred_check_branch
      %2047 = sbr.rel (%p2045) target = $region36
    $region35: #{generator_forward.9} parent=5 // pred_region
      %s2048 = ssub.s32 %s8, 2
      // Predicated region
      $region37: #{generator_forward.9} parent=35 // pred_check
        %p2049 = pneg %p84
      $region38: #{generator_forward.9} parent=35 // pred_check_branch
        %2051 = sbr.rel (%p2049) target = $region40
      $region39: #{generator_forward.9} parent=35 // pred_region
        %s2052 = smul.u32 128, %s14
        %p2053 = scmp.lt.s32.totalorder %s2052, 255
        %s2054 = scalar_select %p2053, %s2052, 255
        %s2055 = smul.addr %s2054, 8
        %s2056 = scalar_lea.vmem %s2, %s2055
      $region40: #{generator_forward.9} parent=35 // pred_fallthru
        _
    $region36: #{generator_forward.9} parent=5 // pred_fallthru
      _
  $region6: #{generator_forward.9} parent=0 // loop_footer
    %s12 = sadd.s32 1, %s8
  $region7: #{generator_forward.9} parent=0 // loop_footer_branch
    %7 = sbr.rel target = $region3
  $region8: #{generator_forward.9} parent=0 // loop_exit
    _

</llo_original>
